<compile_context>
chip_gen: v7x
topology: tpu7x:2x2x1
jax: 0.10.0
libtpu: 0.0.40
codegen_flags: <defaults>
</compile_context>

<pallas_src>
import numpy as np
import jax
import jax.numpy as jnp
from jax.experimental import pallas as pl
from jax.experimental.pallas import tpu as pltpu

# ----------------------------- model config ---------------------------------
DECAY = 0.3
THRESH = 0.5
NCLASS = 10
NWIN = 4
BATCH = 2
IN_SPATIAL = 16
KSIZE = 3

LAYER_CONFIG = [
    dict(input_channels=2, rcnn_channels=4, scnn_channels=4, conv_kernel_size=3,
         pool_kernel_size=2, conv_stride=1, pool_stride=2,
         fc_padding=1, fv_padding=1, avr_pool=True),
    dict(input_channels=8, rcnn_channels=4, scnn_channels=4, conv_kernel_size=3,
         pool_kernel_size=2, conv_stride=1, pool_stride=2,
         fc_padding=1, fv_padding=1, avr_pool=True),
]
BUFFER_CONFIG = [
    dict(scnn_channels=4, rcnn_channels=4, output_size=16, pooled_size=8),
    dict(scnn_channels=4, rcnn_channels=4, output_size=8, pooled_size=4),
]
LINEAR_CONFIG = [
    dict(input_channels=(4 + 4) * 4 * 4, output_channels=32),
    dict(input_channels=32, output_channels=NCLASS),
]
# TODO(synk): zero-channel branches (scnn_channels==0 / rcnn_channels==0) and
# avr_pool=False fall back to the same structure and are not exercised here.

NLAYERS = len(LAYER_CONFIG)
CIN = [c['input_channels'] for c in LAYER_CONFIG]          # [2, 8]
CS = LAYER_CONFIG[0]['scnn_channels']                      # 4
CR = LAYER_CONFIG[0]['rcnn_channels']                      # 4
HS = [b['output_size'] for b in BUFFER_CONFIG]             # [16, 8]
HW = [h * h for h in HS]                                   # [256, 64]
HPS = [b['pooled_size'] for b in BUFFER_CONFIG]            # [8, 4]
HPWP = [h * h for h in HPS]                                # [64, 16]
PADS = [h + 1 for h in HS]                                 # halo widths [17, 9]
F_IN = LINEAR_CONFIG[0]['input_channels']                  # 128
F_HID = LINEAR_CONFIG[0]['output_channels']                # 32


# --------------------------- constant matrices -------------------------------
def _pool_matrix_T(H, k, s):
    """AvgPool2d(k, s) on an HxH map as a (H*H, Hp*Hp) right-multiplier."""
    Hp = (H - k) // s + 1
    P = np.zeros((H * H, Hp * Hp), np.float32)
    for oh in range(Hp):
        for ow in range(Hp):
            for dh in range(k):
                for dw in range(k):
                    P[(oh * s + dh) * H + (ow * s + dw), oh * Hp + ow] = 1.0 / (k * k)
    return jnp.asarray(P)


def _shift_masks(H):
    """(9, H*H) validity masks for the 9 (kh, kw) taps of a 3x3 pad-1 conv."""
    m = np.zeros((9, H * H), np.float32)
    for kh in range(KSIZE):
        for kw in range(KSIZE):
            sh, sw = kh - 1, kw - 1
            for h in range(H):
                for w in range(H):
                    if 0 <= h + sh < H and 0 <= w + sw < H:
                        m[kh * KSIZE + kw, h * H + w] = 1.0
    return jnp.asarray(m)


POOL_T = [_pool_matrix_T(HS[l], LAYER_CONFIG[l]['pool_kernel_size'],
                         LAYER_CONFIG[l]['pool_stride']) for l in range(NLAYERS)]
MASKS = [_shift_masks(HS[l]) for l in range(NLAYERS)]


# ------------------------------ Pallas kernel --------------------------------
def _im2col(x, H, buf_ref, msk_ref):
    """x: (C, H*H) channels-first map.  Stage into a zero-halo scratch and read
    the 9 shifted taps back with static pl.ds windows.  Returns (9*C, H*H)
    patches, rows ordered (kh, kw)-major / channel-minor."""
    n = H * H
    pad = H + 1
    buf_ref[:, pl.ds(pad, n)] = x
    pieces = []
    for kh in range(KSIZE):
        for kw in range(KSIZE):
            k = kh * KSIZE + kw
            shift = (kh - 1) * H + (kw - 1)
            win = buf_ref[:, pl.ds(pad + shift, n)]        # (C, HW)
            pieces.append(win * msk_ref[k:k + 1, :])       # zero image-border taps
    return jnp.concatenate(pieces, axis=0)


def hnn_kernel(x_ref,
               wfc0_ref, bfc0_ref, wfv0_ref, bfv0_ref, pmt0_ref, msk0_ref,
               wfc1_ref, bfc1_ref, wfv1_ref, bfv1_ref, pmt1_ref, msk1_ref,
               w1_ref, b1_ref, w2_ref, b2_ref,
               out_ref,
               bufx0, bufy0, bufx1, bufy1, fbuf):
    f32 = jnp.float32

    # zero the halo staging buffers once per sample (only the interior is ever
    # rewritten afterwards, so the halos stay zero)
    for buf in (bufx0, bufy0, bufx1, bufy1):
        buf[...] = jnp.zeros(buf.shape, f32)

    layer = [
        (wfc0_ref, bfc0_ref, wfv0_ref, bfv0_ref, pmt0_ref, msk0_ref, bufx0, bufy0, HS[0]),
        (wfc1_ref, bfc1_ref, wfv1_ref, bfv1_ref, pmt1_ref, msk1_ref, bufx1, bufy1, HS[1]),
    ]

    # per-layer state, channels-first (C, HW), held in registers/VMEM values
    mem = [jnp.zeros((CS, HW[l]), f32) for l in range(NLAYERS)]
    spk = [jnp.zeros((CS, HW[l]), f32) for l in range(NLAYERS)]
    rcy = [jnp.zeros((CR, HW[l]), f32) for l in range(NLAYERS)]
    accum = jnp.zeros((CS + CR, HPWP[-1]), f32)
    pooled = jnp.zeros((CS + CR, HPWP[-1]), f32)

    for _t in range(NWIN):
        x = x_ref[_t]                                      # (CIN0, HW0) channels-first
        for l in range(NLAYERS):
            (wfc_ref, bfc_ref, wfv_ref, bfv_ref,
             pmt_ref, msk_ref, bufx, bufy, H) = layer[l]

            xp = _im2col(x, H, bufx, msk_ref)              # (9*Cin, HW)
            yp = _im2col(rcy[l], H, bufy, msk_ref)         # (9*Cr, HW)

            # fused [scnn_fc ; rcnn_fc] conv (one MXU matmul) + rcnn_fv conv
            cfc = jnp.dot(wfc_ref[...], xp, preferred_element_type=f32) + bfc_ref[...]
            cfv = jnp.dot(wfv_ref[...], yp, preferred_element_type=f32) + bfv_ref[...]
            conv_s = cfc[0:CS, :]
            conv_r = cfc[CS:CS + CR, :]

            # scnn membrane update; ActFun.forward == (x > 0).float()
            new_mem = mem[l] * DECAY * (1.0 - spk[l]) + conv_s
            new_spk = ((new_mem - THRESH) > 0.0).astype(f32)
            # rcnn: y = tanh(conv1(x) + relu(conv2(y_old)))
            new_y = jnp.tanh(conv_r + jnp.maximum(cfv, 0.0))
            mem[l], spk[l], rcy[l] = new_mem, new_spk, new_y

            # AvgPool2d(2,2) for both branches with ONE matmul; the result is
            # also the next layer's input (channel order == torch.cat(dim=1)).
            act = jnp.concatenate([new_spk, new_y], axis=0)          # (CS+CR, HW)
            pooled = jnp.dot(act, pmt_ref[...], preferred_element_type=f32)
            x = pooled
        accum = accum + pooled     # torch: scnn_accum += pooled_scnn_spike (last layer)

    # torch.cat((scnn_accum, pooled_rcnn_y), dim=1).view(B, -1): NCHW flatten order
    hp = HPWP[-1]
    for c in range(CS):
        fbuf[:, pl.ds(c * hp, hp)] = accum[c:c + 1, :]
    for c in range(CR):
        fbuf[:, pl.ds((CS + c) * hp, hp)] = pooled[CS + c:CS + c + 1, :]
    feat = fbuf[...]                                                  # (1, F_IN)

    hid = jnp.dot(feat, w1_ref[...], preferred_element_type=f32) + b1_ref[...]
    hid = jnp.maximum(hid, 0.0)
    out_ref[...] = jnp.dot(hid, w2_ref[...], preferred_element_type=f32) + b2_ref[...]


# ------------------------------- wrapper --------------------------------------
def _whole_spec(shape):
    nd = len(shape)
    return pl.BlockSpec(tuple(shape), lambda b, _n=nd: (0,) * _n)


@jax.jit
def hnn_forward(inputs, params):
    """inputs: (B, C, H, W, T) float32 (PyTorch layout)."""
    B = inputs.shape[0]
    # hoist the layout fixup out of the time loop: one transpose + reshape
    x_all = jnp.transpose(inputs, (0, 4, 1, 2, 3)).reshape(B, NWIN, CIN[0], HW[0])

    l0, l1 = params['layers']
    operands = (
        x_all,
        l0['wfc'], l0['bfc'], l0['wfv'], l0['bfv'], POOL_T[0], MASKS[0],
        l1['wfc'], l1['bfc'], l1['wfv'], l1['bfv'], POOL_T[1], MASKS[1],
        params['w1'], params['b1'], params['w2'], params['b2'],
    )
    in_specs = [pl.BlockSpec((None, NWIN, CIN[0], HW[0]), lambda b: (b, 0, 0, 0))]
    in_specs += [_whole_spec(op.shape) for op in operands[1:]]

    out = pl.pallas_call(
        hnn_kernel,
        grid=(B,),
        in_specs=in_specs,
        out_specs=pl.BlockSpec((None, 1, NCLASS), lambda b: (b, 0, 0)),
        out_shape=jax.ShapeDtypeStruct((B, 1, NCLASS), jnp.float32),
        scratch_shapes=[
            pltpu.VMEM((CIN[0], HW[0] + 2 * PADS[0]), jnp.float32),   # layer-0 x halo
            pltpu.VMEM((CR,     HW[0] + 2 * PADS[0]), jnp.float32),   # layer-0 y halo
            pltpu.VMEM((CIN[1], HW[1] + 2 * PADS[1]), jnp.float32),   # layer-1 x halo
            pltpu.VMEM((CR,     HW[1] + 2 * PADS[1]), jnp.float32),   # layer-1 y halo
            pltpu.VMEM((1, F_IN), jnp.float32),                       # NCHW flatten buffer
        ],
        compiler_params=pltpu.CompilerParams(dimension_semantics=("parallel",)),
    )(*operands)
    return out.reshape(B, NCLASS)


# ------------------------------ parameter init --------------------------------
def init_params(key):
    params = {'layers': []}
    for cfg in LAYER_CONFIG:
        Cin, Cs, Cr = cfg['input_channels'], cfg['scnn_channels'], cfg['rcnn_channels']
        k = cfg['conv_kernel_size']
        key, *ks = jax.random.split(key, 5)
        # TODO(synk): when porting trained PyTorch weights, permute Conv2d
        # weights (Cout, Cin, kh, kw) to columns ordered (kh, kw)-major /
        # Cin-minor and stack scnn_fc / rcnn_fc rows into wfc.
        params['layers'].append(dict(
            wfc=0.2 * jax.random.normal(ks[0], (Cs + Cr, k * k * Cin), jnp.float32),
            bfc=0.2 * jax.random.normal(ks[1], (Cs + Cr, 1), jnp.float32),
            wfv=0.2 * jax.random.normal(ks[2], (Cr, k * k * Cr), jnp.float32),
            bfv=0.2 * jax.random.normal(ks[3], (Cr, 1), jnp.float32),
        ))
    key, k1, k2, k3, k4 = jax.random.split(key, 5)
    params['w1'] = 0.1 * jax.random.normal(k1, (F_IN, F_HID), jnp.float32)
    params['b1'] = 0.1 * jax.random.normal(k2, (1, F_HID), jnp.float32)
    params['w2'] = 0.1 * jax.random.normal(k3, (F_HID, NCLASS), jnp.float32)
    params['b2'] = 0.1 * jax.random.normal(k4, (1, NCLASS), jnp.float32)
    return params


# ---------------------------------- main ---------------------------------------
if __name__ == "__main__":
    key = jax.random.PRNGKey(0)
    kp, kx = jax.random.split(key)
    params = init_params(kp)
    inputs = jax.random.normal(
        kx, (BATCH, CIN[0], IN_SPATIAL, IN_SPATIAL, NWIN), jnp.float32)
    out = hnn_forward(inputs, params)
    jax.block_until_ready(out)
    assert out.shape == (BATCH, NCLASS) and out.dtype == jnp.float32
    print("KERNEL_OK")
</pallas_src>

<mosaic_0001>
module attributes {stable_mosaic.version = 11 : i64} {
  func.func @hnn_kernel(%arg0: i32, %arg1: memref<1x4x2x256xf32, #tpu.memory_space<vmem>>, %arg2: memref<8x18xf32, #tpu.memory_space<vmem>>, %arg3: memref<8x1xf32, #tpu.memory_space<vmem>>, %arg4: memref<4x36xf32, #tpu.memory_space<vmem>>, %arg5: memref<4x1xf32, #tpu.memory_space<vmem>>, %arg6: memref<256x64xf32, #tpu.memory_space<vmem>>, %arg7: memref<9x256xf32, #tpu.memory_space<vmem>>, %arg8: memref<8x72xf32, #tpu.memory_space<vmem>>, %arg9: memref<8x1xf32, #tpu.memory_space<vmem>>, %arg10: memref<4x36xf32, #tpu.memory_space<vmem>>, %arg11: memref<4x1xf32, #tpu.memory_space<vmem>>, %arg12: memref<64x16xf32, #tpu.memory_space<vmem>>, %arg13: memref<9x64xf32, #tpu.memory_space<vmem>>, %arg14: memref<128x32xf32, #tpu.memory_space<vmem>>, %arg15: memref<1x32xf32, #tpu.memory_space<vmem>>, %arg16: memref<32x10xf32, #tpu.memory_space<vmem>>, %arg17: memref<1x10xf32, #tpu.memory_space<vmem>>, %arg18: memref<1x1x10xf32, #tpu.memory_space<vmem>>, %arg19: memref<2x290xf32, #tpu.memory_space<vmem>>, %arg20: memref<4x290xf32, #tpu.memory_space<vmem>>, %arg21: memref<8x82xf32, #tpu.memory_space<vmem>>, %arg22: memref<4x82xf32, #tpu.memory_space<vmem>>, %arg23: memref<1x128xf32, #tpu.memory_space<vmem>>) attributes {dimension_semantics = [#tpu.dimension_semantics<parallel>], iteration_bounds = array<i64: 2>, scalar_prefetch = 0 : i64, scratch_operands = 5 : i64, tpu.core_type = #tpu.core_type<tc>, window_params = [{transform_indices = @transform_0, window_bounds = array<i64: 1, 4, 2, 256>}, {pipeline_mode = #tpu.pipeline_mode<synchronous>, transform_indices = @transform_1, window_bounds = array<i64: 8, 18>}, {pipeline_mode = #tpu.pipeline_mode<synchronous>, transform_indices = @transform_2, window_bounds = array<i64: 8, 1>}, {pipeline_mode = #tpu.pipeline_mode<synchronous>, transform_indices = @transform_3, window_bounds = array<i64: 4, 36>}, {pipeline_mode = #tpu.pipeline_mode<synchronous>, transform_indices = @transform_4, window_bounds = array<i64: 4, 1>}, {pipeline_mode = #tpu.pipeline_mode<synchronous>, transform_indices = @transform_5, window_bounds = array<i64: 256, 64>}, {pipeline_mode = #tpu.pipeline_mode<synchronous>, transform_indices = @transform_6, window_bounds = array<i64: 9, 256>}, {pipeline_mode = #tpu.pipeline_mode<synchronous>, transform_indices = @transform_7, window_bounds = array<i64: 8, 72>}, {pipeline_mode = #tpu.pipeline_mode<synchronous>, transform_indices = @transform_8, window_bounds = array<i64: 8, 1>}, {pipeline_mode = #tpu.pipeline_mode<synchronous>, transform_indices = @transform_9, window_bounds = array<i64: 4, 36>}, {pipeline_mode = #tpu.pipeline_mode<synchronous>, transform_indices = @transform_10, window_bounds = array<i64: 4, 1>}, {pipeline_mode = #tpu.pipeline_mode<synchronous>, transform_indices = @transform_11, window_bounds = array<i64: 64, 16>}, {pipeline_mode = #tpu.pipeline_mode<synchronous>, transform_indices = @transform_12, window_bounds = array<i64: 9, 64>}, {pipeline_mode = #tpu.pipeline_mode<synchronous>, transform_indices = @transform_13, window_bounds = array<i64: 128, 32>}, {pipeline_mode = #tpu.pipeline_mode<synchronous>, transform_indices = @transform_14, window_bounds = array<i64: 1, 32>}, {pipeline_mode = #tpu.pipeline_mode<synchronous>, transform_indices = @transform_15, window_bounds = array<i64: 32, 10>}, {pipeline_mode = #tpu.pipeline_mode<synchronous>, transform_indices = @transform_16, window_bounds = array<i64: 1, 10>}, {transform_indices = @transform_17, window_bounds = array<i64: 1, 1, 10>}]} {
    %cst = arith.constant 0.000000e+00 : f32
    %0 = vector.broadcast %cst : f32 to vector<2x290xf32>
    %c0 = arith.constant 0 : index
    %c0_0 = arith.constant 0 : index
    %1 = vector.load %arg19[%c0, %c0_0] : memref<2x290xf32, #tpu.memory_space<vmem>>, vector<2x290xf32>
    tpu.vector_store %arg19[%c0, %c0_0], %0 {strides = array<i32>} : memref<2x290xf32, #tpu.memory_space<vmem>>, vector<2x290xf32>,
    %cst_1 = arith.constant 0.000000e+00 : f32
    %2 = vector.broadcast %cst_1 : f32 to vector<4x290xf32>
    %c0_2 = arith.constant 0 : index
    %c0_3 = arith.constant 0 : index
    %3 = vector.load %arg20[%c0_2, %c0_3] : memref<4x290xf32, #tpu.memory_space<vmem>>, vector<4x290xf32>
    tpu.vector_store %arg20[%c0_2, %c0_3], %2 {strides = array<i32>} : memref<4x290xf32, #tpu.memory_space<vmem>>, vector<4x290xf32>,
    %cst_4 = arith.constant 0.000000e+00 : f32
    %4 = vector.broadcast %cst_4 : f32 to vector<8x82xf32>
    %c0_5 = arith.constant 0 : index
    %c0_6 = arith.constant 0 : index
    %5 = vector.load %arg21[%c0_5, %c0_6] : memref<8x82xf32, #tpu.memory_space<vmem>>, vector<8x82xf32>
    tpu.vector_store %arg21[%c0_5, %c0_6], %4 {strides = array<i32>} : memref<8x82xf32, #tpu.memory_space<vmem>>, vector<8x82xf32>,
    %cst_7 = arith.constant 0.000000e+00 : f32
    %6 = vector.broadcast %cst_7 : f32 to vector<4x82xf32>
    %c0_8 = arith.constant 0 : index
    %c0_9 = arith.constant 0 : index
    %7 = vector.load %arg22[%c0_8, %c0_9] : memref<4x82xf32, #tpu.memory_space<vmem>>, vector<4x82xf32>
    tpu.vector_store %arg22[%c0_8, %c0_9], %6 {strides = array<i32>} : memref<4x82xf32, #tpu.memory_space<vmem>>, vector<4x82xf32>,
    %cst_10 = arith.constant 0.000000e+00 : f32
    %8 = vector.broadcast %cst_10 : f32 to vector<4x256xf32>
    %cst_11 = arith.constant 0.000000e+00 : f32
    %9 = vector.broadcast %cst_11 : f32 to vector<4x64xf32>
    %cst_12 = arith.constant 0.000000e+00 : f32
    %10 = vector.broadcast %cst_12 : f32 to vector<4x256xf32>
    %cst_13 = arith.constant 0.000000e+00 : f32
    %11 = vector.broadcast %cst_13 : f32 to vector<4x64xf32>
    %cst_14 = arith.constant 0.000000e+00 : f32
    %12 = vector.broadcast %cst_14 : f32 to vector<4x256xf32>
    %cst_15 = arith.constant 0.000000e+00 : f32
    %13 = vector.broadcast %cst_15 : f32 to vector<4x64xf32>
    %cst_16 = arith.constant 0.000000e+00 : f32
    %14 = vector.broadcast %cst_16 : f32 to vector<8x16xf32>
    %c0_17 = arith.constant 0 : index
    %c0_18 = arith.constant 0 : index
    %c0_19 = arith.constant 0 : index
    %c0_20 = arith.constant 0 : index
    %15 = vector.load %arg1[%c0_17, %c0_18, %c0_19, %c0_20] : memref<1x4x2x256xf32, #tpu.memory_space<vmem>>, vector<1x1x2x256xf32>
    %16 = vector.shape_cast %15 : vector<1x1x2x256xf32> to vector<2x256xf32>
    %c0_21 = arith.constant 0 : index
    %c17 = arith.constant 17 : index
    %17 = vector.load %arg19[%c0_21, %c17] : memref<2x290xf32, #tpu.memory_space<vmem>>, vector<2x256xf32>
    tpu.vector_store %arg19[%c0_21, %c17], %16 {strides = array<i32>} : memref<2x290xf32, #tpu.memory_space<vmem>>, vector<2x256xf32>,
    %c0_22 = arith.constant 0 : index
    %c0_23 = arith.constant 0 : index
    %18 = vector.load %arg19[%c0_22, %c0_23] : memref<2x290xf32, #tpu.memory_space<vmem>>, vector<2x256xf32>
    %c0_24 = arith.constant 0 : index
    %c0_25 = arith.constant 0 : index
    %19 = vector.load %arg7[%c0_24, %c0_25] : memref<9x256xf32, #tpu.memory_space<vmem>>, vector<1x256xf32>
    %20 = vector.broadcast %19 : vector<1x256xf32> to vector<2x256xf32>
    %21 = arith.mulf %18, %20 : vector<2x256xf32>
    %c0_26 = arith.constant 0 : index
    %c1 = arith.constant 1 : index
    %22 = vector.load %arg19[%c0_26, %c1] : memref<2x290xf32, #tpu.memory_space<vmem>>, vector<2x256xf32>
    %c1_27 = arith.constant 1 : index
    %c0_28 = arith.constant 0 : index
    %23 = vector.load %arg7[%c1_27, %c0_28] : memref<9x256xf32, #tpu.memory_space<vmem>>, vector<1x256xf32>
    %24 = vector.broadcast %23 : vector<1x256xf32> to vector<2x256xf32>
    %25 = arith.mulf %22, %24 : vector<2x256xf32>
    %c0_29 = arith.constant 0 : index
    %c2 = arith.constant 2 : index
    %26 = vector.load %arg19[%c0_29, %c2] : memref<2x290xf32, #tpu.memory_space<vmem>>, vector<2x256xf32>
    %c2_30 = arith.constant 2 : index
    %c0_31 = arith.constant 0 : index
    %27 = vector.load %arg7[%c2_30, %c0_31] : memref<9x256xf32, #tpu.memory_space<vmem>>, vector<1x256xf32>
    %28 = vector.broadcast %27 : vector<1x256xf32> to vector<2x256xf32>
    %29 = arith.mulf %26, %28 : vector<2x256xf32>
    %c0_32 = arith.constant 0 : index
    %c16 = arith.constant 16 : index
    %30 = vector.load %arg19[%c0_32, %c16] : memref<2x290xf32, #tpu.memory_space<vmem>>, vector<2x256xf32>
    %c3 = arith.constant 3 : index
    %c0_33 = arith.constant 0 : index
    %31 = vector.load %arg7[%c3, %c0_33] : memref<9x256xf32, #tpu.memory_space<vmem>>, vector<1x256xf32>
    %32 = vector.broadcast %31 : vector<1x256xf32> to vector<2x256xf32>
    %33 = arith.mulf %30, %32 : vector<2x256xf32>
    %c0_34 = arith.constant 0 : index
    %c17_35 = arith.constant 17 : index
    %34 = vector.load %arg19[%c0_34, %c17_35] : memref<2x290xf32, #tpu.memory_space<vmem>>, vector<2x256xf32>
    %c4 = arith.constant 4 : index
    %c0_36 = arith.constant 0 : index
    %35 = vector.load %arg7[%c4, %c0_36] : memref<9x256xf32, #tpu.memory_space<vmem>>, vector<1x256xf32>
    %36 = vector.broadcast %35 : vector<1x256xf32> to vector<2x256xf32>
    %37 = arith.mulf %34, %36 : vector<2x256xf32>
    %c0_37 = arith.constant 0 : index
    %c18 = arith.constant 18 : index
    %38 = vector.load %arg19[%c0_37, %c18] : memref<2x290xf32, #tpu.memory_space<vmem>>, vector<2x256xf32>
    %c5 = arith.constant 5 : index
    %c0_38 = arith.constant 0 : index
    %39 = vector.load %arg7[%c5, %c0_38] : memref<9x256xf32, #tpu.memory_space<vmem>>, vector<1x256xf32>
    %40 = vector.broadcast %39 : vector<1x256xf32> to vector<2x256xf32>
    %41 = arith.mulf %38, %40 : vector<2x256xf32>
    %c0_39 = arith.constant 0 : index
    %c32 = arith.constant 32 : index
    %42 = vector.load %arg19[%c0_39, %c32] : memref<2x290xf32, #tpu.memory_space<vmem>>, vector<2x256xf32>
    %c6 = arith.constant 6 : index
    %c0_40 = arith.constant 0 : index
    %43 = vector.load %arg7[%c6, %c0_40] : memref<9x256xf32, #tpu.memory_space<vmem>>, vector<1x256xf32>
    %44 = vector.broadcast %43 : vector<1x256xf32> to vector<2x256xf32>
    %45 = arith.mulf %42, %44 : vector<2x256xf32>
    %c0_41 = arith.constant 0 : index
    %c33 = arith.constant 33 : index
    %46 = vector.load %arg19[%c0_41, %c33] : memref<2x290xf32, #tpu.memory_space<vmem>>, vector<2x256xf32>
    %c7 = arith.constant 7 : index
    %c0_42 = arith.constant 0 : index
    %47 = vector.load %arg7[%c7, %c0_42] : memref<9x256xf32, #tpu.memory_space<vmem>>, vector<1x256xf32>
    %48 = vector.broadcast %47 : vector<1x256xf32> to vector<2x256xf32>
    %49 = arith.mulf %46, %48 : vector<2x256xf32>
    %c0_43 = arith.constant 0 : index
    %c34 = arith.constant 34 : index
    %50 = vector.load %arg19[%c0_43, %c34] : memref<2x290xf32, #tpu.memory_space<vmem>>, vector<2x256xf32>
    %c8 = arith.constant 8 : index
    %c0_44 = arith.constant 0 : index
    %51 = vector.load %arg7[%c8, %c0_44] : memref<9x256xf32, #tpu.memory_space<vmem>>, vector<1x256xf32>
    %52 = vector.broadcast %51 : vector<1x256xf32> to vector<2x256xf32>
    %53 = arith.mulf %50, %52 : vector<2x256xf32>
    %54 = tpu.concatenate %21, %25, %29, %33, %37, %41, %45, %49, %53 in 0 : vector<2x256xf32>, vector<2x256xf32>, vector<2x256xf32>, vector<2x256xf32>, vector<2x256xf32>, vector<2x256xf32>, vector<2x256xf32>, vector<2x256xf32>, vector<2x256xf32> -> vector<18x256xf32>
    %c0_45 = arith.constant 0 : index
    %c17_46 = arith.constant 17 : index
    %55 = vector.load %arg20[%c0_45, %c17_46] : memref<4x290xf32, #tpu.memory_space<vmem>>, vector<4x256xf32>
    tpu.vector_store %arg20[%c0_45, %c17_46], %12 {strides = array<i32>} : memref<4x290xf32, #tpu.memory_space<vmem>>, vector<4x256xf32>,
    %c0_47 = arith.constant 0 : index
    %c0_48 = arith.constant 0 : index
    %56 = vector.load %arg20[%c0_47, %c0_48] : memref<4x290xf32, #tpu.memory_space<vmem>>, vector<4x256xf32>
    %c0_49 = arith.constant 0 : index
    %c0_50 = arith.constant 0 : index
    %57 = vector.load %arg7[%c0_49, %c0_50] : memref<9x256xf32, #tpu.memory_space<vmem>>, vector<1x256xf32>
    %58 = vector.broadcast %57 : vector<1x256xf32> to vector<4x256xf32>
    %59 = arith.mulf %56, %58 : vector<4x256xf32>
    %c0_51 = arith.constant 0 : index
    %c1_52 = arith.constant 1 : index
    %60 = vector.load %arg20[%c0_51, %c1_52] : memref<4x290xf32, #tpu.memory_space<vmem>>, vector<4x256xf32>
    %c1_53 = arith.constant 1 : index
    %c0_54 = arith.constant 0 : index
    %61 = vector.load %arg7[%c1_53, %c0_54] : memref<9x256xf32, #tpu.memory_space<vmem>>, vector<1x256xf32>
    %62 = vector.broadcast %61 : vector<1x256xf32> to vector<4x256xf32>
    %63 = arith.mulf %60, %62 : vector<4x256xf32>
    %c0_55 = arith.constant 0 : index
    %c2_56 = arith.constant 2 : index
    %64 = vector.load %arg20[%c0_55, %c2_56] : memref<4x290xf32, #tpu.memory_space<vmem>>, vector<4x256xf32>
    %c2_57 = arith.constant 2 : index
    %c0_58 = arith.constant 0 : index
    %65 = vector.load %arg7[%c2_57, %c0_58] : memref<9x256xf32, #tpu.memory_space<vmem>>, vector<1x256xf32>
    %66 = vector.broadcast %65 : vector<1x256xf32> to vector<4x256xf32>
    %67 = arith.mulf %64, %66 : vector<4x256xf32>
    %c0_59 = arith.constant 0 : index
    %c16_60 = arith.constant 16 : index
    %68 = vector.load %arg20[%c0_59, %c16_60] : memref<4x290xf32, #tpu.memory_space<vmem>>, vector<4x256xf32>
    %c3_61 = arith.constant 3 : index
    %c0_62 = arith.constant 0 : index
    %69 = vector.load %arg7[%c3_61, %c0_62] : memref<9x256xf32, #tpu.memory_space<vmem>>, vector<1x256xf32>
    %70 = vector.broadcast %69 : vector<1x256xf32> to vector<4x256xf32>
    %71 = arith.mulf %68, %70 : vector<4x256xf32>
    %c0_63 = arith.constant 0 : index
    %c17_64 = arith.constant 17 : index
    %72 = vector.load %arg20[%c0_63, %c17_64] : memref<4x290xf32, #tpu.memory_space<vmem>>, vector<4x256xf32>
    %c4_65 = arith.constant 4 : index
    %c0_66 = arith.constant 0 : index
    %73 = vector.load %arg7[%c4_65, %c0_66] : memref<9x256xf32, #tpu.memory_space<vmem>>, vector<1x256xf32>
    %74 = vector.broadcast %73 : vector<1x256xf32> to vector<4x256xf32>
    %75 = arith.mulf %72, %74 : vector<4x256xf32>
    %c0_67 = arith.constant 0 : index
    %c18_68 = arith.constant 18 : index
    %76 = vector.load %arg20[%c0_67, %c18_68] : memref<4x290xf32, #tpu.memory_space<vmem>>, vector<4x256xf32>
    %c5_69 = arith.constant 5 : index
    %c0_70 = arith.constant 0 : index
    %77 = vector.load %arg7[%c5_69, %c0_70] : memref<9x256xf32, #tpu.memory_space<vmem>>, vector<1x256xf32>
    %78 = vector.broadcast %77 : vector<1x256xf32> to vector<4x256xf32>
    %79 = arith.mulf %76, %78 : vector<4x256xf32>
    %c0_71 = arith.constant 0 : index
    %c32_72 = arith.constant 32 : index
    %80 = vector.load %arg20[%c0_71, %c32_72] : memref<4x290xf32, #tpu.memory_space<vmem>>, vector<4x256xf32>
    %c6_73 = arith.constant 6 : index
    %c0_74 = arith.constant 0 : index
    %81 = vector.load %arg7[%c6_73, %c0_74] : memref<9x256xf32, #tpu.memory_space<vmem>>, vector<1x256xf32>
    %82 = vector.broadcast %81 : vector<1x256xf32> to vector<4x256xf32>
    %83 = arith.mulf %80, %82 : vector<4x256xf32>
    %c0_75 = arith.constant 0 : index
    %c33_76 = arith.constant 33 : index
    %84 = vector.load %arg20[%c0_75, %c33_76] : memref<4x290xf32, #tpu.memory_space<vmem>>, vector<4x256xf32>
    %c7_77 = arith.constant 7 : index
    %c0_78 = arith.constant 0 : index
    %85 = vector.load %arg7[%c7_77, %c0_78] : memref<9x256xf32, #tpu.memory_space<vmem>>, vector<1x256xf32>
    %86 = vector.broadcast %85 : vector<1x256xf32> to vector<4x256xf32>
    %87 = arith.mulf %84, %86 : vector<4x256xf32>
    %c0_79 = arith.constant 0 : index
    %c34_80 = arith.constant 34 : index
    %88 = vector.load %arg20[%c0_79, %c34_80] : memref<4x290xf32, #tpu.memory_space<vmem>>, vector<4x256xf32>
    %c8_81 = arith.constant 8 : index
    %c0_82 = arith.constant 0 : index
    %89 = vector.load %arg7[%c8_81, %c0_82] : memref<9x256xf32, #tpu.memory_space<vmem>>, vector<1x256xf32>
    %90 = vector.broadcast %89 : vector<1x256xf32> to vector<4x256xf32>
    %91 = arith.mulf %88, %90 : vector<4x256xf32>
    %92 = tpu.concatenate %59, %63, %67, %71, %75, %79, %83, %87, %91 in 0 : vector<4x256xf32>, vector<4x256xf32>, vector<4x256xf32>, vector<4x256xf32>, vector<4x256xf32>, vector<4x256xf32>, vector<4x256xf32>, vector<4x256xf32>, vector<4x256xf32> -> vector<36x256xf32>
    %c0_83 = arith.constant 0 : index
    %c0_84 = arith.constant 0 : index
    %93 = vector.load %arg2[%c0_83, %c0_84] : memref<8x18xf32, #tpu.memory_space<vmem>>, vector<8x18xf32>
    %cst_85 = arith.constant dense<0.000000e+00> : vector<8x256xf32>
    %94 = tpu.matmul %93, %54, %cst_85 {dimension_numbers = #tpu.dot_dimension_numbers<[1], [0], [0], [1], [0, 0, 1, 1], [], []>} : vector<8x18xf32>, vector<18x256xf32>, vector<8x256xf32> -> vector<8x256xf32>
    %c0_86 = arith.constant 0 : index
    %c0_87 = arith.constant 0 : index
    %95 = vector.load %arg3[%c0_86, %c0_87] : memref<8x1xf32, #tpu.memory_space<vmem>>, vector<8x1xf32>
    %96 = vector.broadcast %95 : vector<8x1xf32> to vector<8x256xf32>
    %97 = arith.addf %94, %96 : vector<8x256xf32>
    %c0_88 = arith.constant 0 : index
    %c0_89 = arith.constant 0 : index
    %98 = vector.load %arg4[%c0_88, %c0_89] : memref<4x36xf32, #tpu.memory_space<vmem>>, vector<4x36xf32>
    %cst_90 = arith.constant dense<0.000000e+00> : vector<4x256xf32>
    %99 = tpu.matmul %98, %92, %cst_90 {dimension_numbers = #tpu.dot_dimension_numbers<[1], [0], [0], [1], [0, 0, 1, 1], [], []>} : vector<4x36xf32>, vector<36x256xf32>, vector<4x256xf32> -> vector<4x256xf32>
    %c0_91 = arith.constant 0 : index
    %c0_92 = arith.constant 0 : index
    %100 = vector.load %arg5[%c0_91, %c0_92] : memref<4x1xf32, #tpu.memory_space<vmem>>, vector<4x1xf32>
    %101 = vector.broadcast %100 : vector<4x1xf32> to vector<4x256xf32>
    %102 = arith.addf %99, %101 : vector<4x256xf32>
    %103 = vector.extract_strided_slice %97 {offsets = [0, 0], sizes = [4, 256], strides = [1, 1]} : vector<8x256xf32> to vector<4x256xf32>
    %104 = vector.extract_strided_slice %97 {offsets = [4, 0], sizes = [4, 256], strides = [1, 1]} : vector<8x256xf32> to vector<4x256xf32>
    %cst_93 = arith.constant 3.000000e-01 : f32
    %105 = vector.broadcast %cst_93 : f32 to vector<4x256xf32>
    %106 = arith.mulf %8, %105 : vector<4x256xf32>
    %cst_94 = arith.constant 1.000000e+00 : f32
    %107 = vector.broadcast %cst_94 : f32 to vector<4x256xf32>
    %108 = arith.subf %107, %10 : vector<4x256xf32>
    %109 = arith.mulf %106, %108 : vector<4x256xf32>
    %110 = arith.addf %109, %103 : vector<4x256xf32>
    %cst_95 = arith.constant 5.000000e-01 : f32
    %111 = vector.broadcast %cst_95 : f32 to vector<4x256xf32>
    %112 = arith.subf %110, %111 : vector<4x256xf32>
    %cst_96 = arith.constant 0.000000e+00 : f32
    %113 = vector.broadcast %cst_96 : f32 to vector<4x256xf32>
    %114 = arith.cmpf ogt, %112, %113 : vector<4x256xf32>
    %115 = arith.extui %114 : vector<4x256xi1> to vector<4x256xi32>
    %116 = arith.sitofp %115 : vector<4x256xi32> to vector<4x256xf32>
    %cst_97 = arith.constant 0.000000e+00 : f32
    %117 = vector.broadcast %cst_97 : f32 to vector<4x256xf32>
    %118 = arith.maximumf %102, %117 : vector<4x256xf32>
    %119 = arith.addf %104, %118 : vector<4x256xf32>
    %120 = math.tanh %119 : vector<4x256xf32>
    %121 = tpu.concatenate %116, %120 in 0 : vector<4x256xf32>, vector<4x256xf32> -> vector<8x256xf32>
    %c0_98 = arith.constant 0 : index
    %c0_99 = arith.constant 0 : index
    %122 = vector.load %arg6[%c0_98, %c0_99] : memref<256x64xf32, #tpu.memory_space<vmem>>, vector<256x64xf32>
    %cst_100 = arith.constant dense<0.000000e+00> : vector<8x64xf32>
    %123 = tpu.matmul %121, %122, %cst_100 {dimension_numbers = #tpu.dot_dimension_numbers<[1], [0], [0], [1], [0, 0, 1, 1], [], []>} : vector<8x256xf32>, vector<256x64xf32>, vector<8x64xf32> -> vector<8x64xf32>
    %c0_101 = arith.constant 0 : index
    %c9 = arith.constant 9 : index
    %124 = vector.load %arg21[%c0_101, %c9] : memref<8x82xf32, #tpu.memory_space<vmem>>, vector<8x64xf32>
    tpu.vector_store %arg21[%c0_101, %c9], %123 {strides = array<i32>} : memref<8x82xf32, #tpu.memory_space<vmem>>, vector<8x64xf32>,
    %c0_102 = arith.constant 0 : index
    %c0_103 = arith.constant 0 : index
    %125 = vector.load %arg21[%c0_102, %c0_103] : memref<8x82xf32, #tpu.memory_space<vmem>>, vector<8x64xf32>
    %c0_104 = arith.constant 0 : index
    %c0_105 = arith.constant 0 : index
    %126 = vector.load %arg13[%c0_104, %c0_105] : memref<9x64xf32, #tpu.memory_space<vmem>>, vector<1x64xf32>
    %127 = vector.broadcast %126 : vector<1x64xf32> to vector<8x64xf32>
    %128 = arith.mulf %125, %127 : vector<8x64xf32>
    %c0_106 = arith.constant 0 : index
    %c1_107 = arith.constant 1 : index
    %129 = vector.load %arg21[%c0_106, %c1_107] : memref<8x82xf32, #tpu.memory_space<vmem>>, vector<8x64xf32>
    %c1_108 = arith.constant 1 : index
    %c0_109 = arith.constant 0 : index
    %130 = vector.load %arg13[%c1_108, %c0_109] : memref<9x64xf32, #tpu.memory_space<vmem>>, vector<1x64xf32>
    %131 = vector.broadcast %130 : vector<1x64xf32> to vector<8x64xf32>
    %132 = arith.mulf %129, %131 : vector<8x64xf32>
    %c0_110 = arith.constant 0 : index
    %c2_111 = arith.constant 2 : index
    %133 = vector.load %arg21[%c0_110, %c2_111] : memref<8x82xf32, #tpu.memory_space<vmem>>, vector<8x64xf32>
    %c2_112 = arith.constant 2 : index
    %c0_113 = arith.constant 0 : index
    %134 = vector.load %arg13[%c2_112, %c0_113] : memref<9x64xf32, #tpu.memory_space<vmem>>, vector<1x64xf32>
    %135 = vector.broadcast %134 : vector<1x64xf32> to vector<8x64xf32>
    %136 = arith.mulf %133, %135 : vector<8x64xf32>
    %c0_114 = arith.constant 0 : index
    %c8_115 = arith.constant 8 : index
    %137 = vector.load %arg21[%c0_114, %c8_115] : memref<8x82xf32, #tpu.memory_space<vmem>>, vector<8x64xf32>
    %c3_116 = arith.constant 3 : index
    %c0_117 = arith.constant 0 : index
    %138 = vector.load %arg13[%c3_116, %c0_117] : memref<9x64xf32, #tpu.memory_space<vmem>>, vector<1x64xf32>
    %139 = vector.broadcast %138 : vector<1x64xf32> to vector<8x64xf32>
    %140 = arith.mulf %137, %139 : vector<8x64xf32>
    %c0_118 = arith.constant 0 : index
    %c9_119 = arith.constant 9 : index
    %141 = vector.load %arg21[%c0_118, %c9_119] : memref<8x82xf32, #tpu.memory_space<vmem>>, vector<8x64xf32>
    %c4_120 = arith.constant 4 : index
    %c0_121 = arith.constant 0 : index
    %142 = vector.load %arg13[%c4_120, %c0_121] : memref<9x64xf32, #tpu.memory_space<vmem>>, vector<1x64xf32>
    %143 = vector.broadcast %142 : vector<1x64xf32> to vector<8x64xf32>
    %144 = arith.mulf %141, %143 : vector<8x64xf32>
    %c0_122 = arith.constant 0 : index
    %c10 = arith.constant 10 : index
    %145 = vector.load %arg21[%c0_122, %c10] : memref<8x82xf32, #tpu.memory_space<vmem>>, vector<8x64xf32>
    %c5_123 = arith.constant 5 : index
    %c0_124 = arith.constant 0 : index
    %146 = vector.load %arg13[%c5_123, %c0_124] : memref<9x64xf32, #tpu.memory_space<vmem>>, vector<1x64xf32>
    %147 = vector.broadcast %146 : vector<1x64xf32> to vector<8x64xf32>
    %148 = arith.mulf %145, %147 : vector<8x64xf32>
    %c0_125 = arith.constant 0 : index
    %c16_126 = arith.constant 16 : index
    %149 = vector.load %arg21[%c0_125, %c16_126] : memref<8x82xf32, #tpu.memory_space<vmem>>, vector<8x64xf32>
    %c6_127 = arith.constant 6 : index
    %c0_128 = arith.constant 0 : index
    %150 = vector.load %arg13[%c6_127, %c0_128] : memref<9x64xf32, #tpu.memory_space<vmem>>, vector<1x64xf32>
    %151 = vector.broadcast %150 : vector<1x64xf32> to vector<8x64xf32>
    %152 = arith.mulf %149, %151 : vector<8x64xf32>
    %c0_129 = arith.constant 0 : index
    %c17_130 = arith.constant 17 : index
    %153 = vector.load %arg21[%c0_129, %c17_130] : memref<8x82xf32, #tpu.memory_space<vmem>>, vector<8x64xf32>
    %c7_131 = arith.constant 7 : index
    %c0_132 = arith.constant 0 : index
    %154 = vector.load %arg13[%c7_131, %c0_132] : memref<9x64xf32, #tpu.memory_space<vmem>>, vector<1x64xf32>
    %155 = vector.broadcast %154 : vector<1x64xf32> to vector<8x64xf32>
    %156 = arith.mulf %153, %155 : vector<8x64xf32>
    %c0_133 = arith.constant 0 : index
    %c18_134 = arith.constant 18 : index
    %157 = vector.load %arg21[%c0_133, %c18_134] : memref<8x82xf32, #tpu.memory_space<vmem>>, vector<8x64xf32>
    %c8_135 = arith.constant 8 : index
    %c0_136 = arith.constant 0 : index
    %158 = vector.load %arg13[%c8_135, %c0_136] : memref<9x64xf32, #tpu.memory_space<vmem>>, vector<1x64xf32>
    %159 = vector.broadcast %158 : vector<1x64xf32> to vector<8x64xf32>
    %160 = arith.mulf %157, %159 : vector<8x64xf32>
    %161 = tpu.concatenate %128, %132, %136, %140, %144, %148, %152, %156, %160 in 0 : vector<8x64xf32>, vector<8x64xf32>, vector<8x64xf32>, vector<8x64xf32>, vector<8x64xf32>, vector<8x64xf32>, vector<8x64xf32>, vector<8x64xf32>, vector<8x64xf32> -> vector<72x64xf32>
    %c0_137 = arith.constant 0 : index
    %c9_138 = arith.constant 9 : index
    %162 = vector.load %arg22[%c0_137, %c9_138] : memref<4x82xf32, #tpu.memory_space<vmem>>, vector<4x64xf32>
    tpu.vector_store %arg22[%c0_137, %c9_138], %13 {strides = array<i32>} : memref<4x82xf32, #tpu.memory_space<vmem>>, vector<4x64xf32>,
    %c0_139 = arith.constant 0 : index
    %c0_140 = arith.constant 0 : index
    %163 = vector.load %arg22[%c0_139, %c0_140] : memref<4x82xf32, #tpu.memory_space<vmem>>, vector<4x64xf32>
    %c0_141 = arith.constant 0 : index
    %c0_142 = arith.constant 0 : index
    %164 = vector.load %arg13[%c0_141, %c0_142] : memref<9x64xf32, #tpu.memory_space<vmem>>, vector<1x64xf32>
    %165 = vector.broadcast %164 : vector<1x64xf32> to vector<4x64xf32>
    %166 = arith.mulf %163, %165 : vector<4x64xf32>
    %c0_143 = arith.constant 0 : index
    %c1_144 = arith.constant 1 : index
    %167 = vector.load %arg22[%c0_143, %c1_144] : memref<4x82xf32, #tpu.memory_space<vmem>>, vector<4x64xf32>
    %c1_145 = arith.constant 1 : index
    %c0_146 = arith.constant 0 : index
    %168 = vector.load %arg13[%c1_145, %c0_146] : memref<9x64xf32, #tpu.memory_space<vmem>>, vector<1x64xf32>
    %169 = vector.broadcast %168 : vector<1x64xf32> to vector<4x64xf32>
    %170 = arith.mulf %167, %169 : vector<4x64xf32>
    %c0_147 = arith.constant 0 : index
    %c2_148 = arith.constant 2 : index
    %171 = vector.load %arg22[%c0_147, %c2_148] : memref<4x82xf32, #tpu.memory_space<vmem>>, vector<4x64xf32>
    %c2_149 = arith.constant 2 : index
    %c0_150 = arith.constant 0 : index
    %172 = vector.load %arg13[%c2_149, %c0_150] : memref<9x64xf32, #tpu.memory_space<vmem>>, vector<1x64xf32>
    %173 = vector.broadcast %172 : vector<1x64xf32> to vector<4x64xf32>
    %174 = arith.mulf %171, %173 : vector<4x64xf32>
    %c0_151 = arith.constant 0 : index
    %c8_152 = arith.constant 8 : index
    %175 = vector.load %arg22[%c0_151, %c8_152] : memref<4x82xf32, #tpu.memory_space<vmem>>, vector<4x64xf32>
    %c3_153 = arith.constant 3 : index
    %c0_154 = arith.constant 0 : index
    %176 = vector.load %arg13[%c3_153, %c0_154] : memref<9x64xf32, #tpu.memory_space<vmem>>, vector<1x64xf32>
    %177 = vector.broadcast %176 : vector<1x64xf32> to vector<4x64xf32>
    %178 = arith.mulf %175, %177 : vector<4x64xf32>
    %c0_155 = arith.constant 0 : index
    %c9_156 = arith.constant 9 : index
    %179 = vector.load %arg22[%c0_155, %c9_156] : memref<4x82xf32, #tpu.memory_space<vmem>>, vector<4x64xf32>
    %c4_157 = arith.constant 4 : index
    %c0_158 = arith.constant 0 : index
    %180 = vector.load %arg13[%c4_157, %c0_158] : memref<9x64xf32, #tpu.memory_space<vmem>>, vector<1x64xf32>
    %181 = vector.broadcast %180 : vector<1x64xf32> to vector<4x64xf32>
    %182 = arith.mulf %179, %181 : vector<4x64xf32>
    %c0_159 = arith.constant 0 : index
    %c10_160 = arith.constant 10 : index
    %183 = vector.load %arg22[%c0_159, %c10_160] : memref<4x82xf32, #tpu.memory_space<vmem>>, vector<4x64xf32>
    %c5_161 = arith.constant 5 : index
    %c0_162 = arith.constant 0 : index
    %184 = vector.load %arg13[%c5_161, %c0_162] : memref<9x64xf32, #tpu.memory_space<vmem>>, vector<1x64xf32>
    %185 = vector.broadcast %184 : vector<1x64xf32> to vector<4x64xf32>
    %186 = arith.mulf %183, %185 : vector<4x64xf32>
    %c0_163 = arith.constant 0 : index
    %c16_164 = arith.constant 16 : index
    %187 = vector.load %arg22[%c0_163, %c16_164] : memref<4x82xf32, #tpu.memory_space<vmem>>, vector<4x64xf32>
    %c6_165 = arith.constant 6 : index
    %c0_166 = arith.constant 0 : index
    %188 = vector.load %arg13[%c6_165, %c0_166] : memref<9x64xf32, #tpu.memory_space<vmem>>, vector<1x64xf32>
    %189 = vector.broadcast %188 : vector<1x64xf32> to vector<4x64xf32>
    %190 = arith.mulf %187, %189 : vector<4x64xf32>
    %c0_167 = arith.constant 0 : index
    %c17_168 = arith.constant 17 : index
    %191 = vector.load %arg22[%c0_167, %c17_168] : memref<4x82xf32, #tpu.memory_space<vmem>>, vector<4x64xf32>
    %c7_169 = arith.constant 7 : index
    %c0_170 = arith.constant 0 : index
    %192 = vector.load %arg13[%c7_169, %c0_170] : memref<9x64xf32, #tpu.memory_space<vmem>>, vector<1x64xf32>
    %193 = vector.broadcast %192 : vector<1x64xf32> to vector<4x64xf32>
    %194 = arith.mulf %191, %193 : vector<4x64xf32>
    %c0_171 = arith.constant 0 : index
    %c18_172 = arith.constant 18 : index
    %195 = vector.load %arg22[%c0_171, %c18_172] : memref<4x82xf32, #tpu.memory_space<vmem>>, vector<4x64xf32>
    %c8_173 = arith.constant 8 : index
    %c0_174 = arith.constant 0 : index
    %196 = vector.load %arg13[%c8_173, %c0_174] : memref<9x64xf32, #tpu.memory_space<vmem>>, vector<1x64xf32>
    %197 = vector.broadcast %196 : vector<1x64xf32> to vector<4x64xf32>
    %198 = arith.mulf %195, %197 : vector<4x64xf32>
    %199 = tpu.concatenate %166, %170, %174, %178, %182, %186, %190, %194, %198 in 0 : vector<4x64xf32>, vector<4x64xf32>, vector<4x64xf32>, vector<4x64xf32>, vector<4x64xf32>, vector<4x64xf32>, vector<4x64xf32>, vector<4x64xf32>, vector<4x64xf32> -> vector<36x64xf32>
    %c0_175 = arith.constant 0 : index
    %c0_176 = arith.constant 0 : index
    %200 = vector.load %arg8[%c0_175, %c0_176] : memref<8x72xf32, #tpu.memory_space<vmem>>, vector<8x72xf32>
    %cst_177 = arith.constant dense<0.000000e+00> : vector<8x64xf32>
    %201 = tpu.matmul %200, %161, %cst_177 {dimension_numbers = #tpu.dot_dimension_numbers<[1], [0], [0], [1], [0, 0, 1, 1], [], []>} : vector<8x72xf32>, vector<72x64xf32>, vector<8x64xf32> -> vector<8x64xf32>
    %c0_178 = arith.constant 0 : index
    %c0_179 = arith.constant 0 : index
    %202 = vector.load %arg9[%c0_178, %c0_179] : memref<8x1xf32, #tpu.memory_space<vmem>>, vector<8x1xf32>
    %203 = vector.broadcast %202 : vector<8x1xf32> to vector<8x64xf32>
    %204 = arith.addf %201, %203 : vector<8x64xf32>
    %c0_180 = arith.constant 0 : index
    %c0_181 = arith.constant 0 : index
    %205 = vector.load %arg10[%c0_180, %c0_181] : memref<4x36xf32, #tpu.memory_space<vmem>>, vector<4x36xf32>
    %cst_182 = arith.constant dense<0.000000e+00> : vector<4x64xf32>
    %206 = tpu.matmul %205, %199, %cst_182 {dimension_numbers = #tpu.dot_dimension_numbers<[1], [0], [0], [1], [0, 0, 1, 1], [], []>} : vector<4x36xf32>, vector<36x64xf32>, vector<4x64xf32> -> vector<4x64xf32>
    %c0_183 = arith.constant 0 : index
    %c0_184 = arith.constant 0 : index
    %207 = vector.load %arg11[%c0_183, %c0_184] : memref<4x1xf32, #tpu.memory_space<vmem>>, vector<4x1xf32>
    %208 = vector.broadcast %207 : vector<4x1xf32> to vector<4x64xf32>
    %209 = arith.addf %206, %208 : vector<4x64xf32>
    %210 = vector.extract_strided_slice %204 {offsets = [0, 0], sizes = [4, 64], strides = [1, 1]} : vector<8x64xf32> to vector<4x64xf32>
    %211 = vector.extract_strided_slice %204 {offsets = [4, 0], sizes = [4, 64], strides = [1, 1]} : vector<8x64xf32> to vector<4x64xf32>
    %cst_185 = arith.constant 3.000000e-01 : f32
    %212 = vector.broadcast %cst_185 : f32 to vector<4x64xf32>
    %213 = arith.mulf %9, %212 : vector<4x64xf32>
    %cst_186 = arith.constant 1.000000e+00 : f32
    %214 = vector.broadcast %cst_186 : f32 to vector<4x64xf32>
    %215 = arith.subf %214, %11 : vector<4x64xf32>
    %216 = arith.mulf %213, %215 : vector<4x64xf32>
    %217 = arith.addf %216, %210 : vector<4x64xf32>
    %cst_187 = arith.constant 5.000000e-01 : f32
    %218 = vector.broadcast %cst_187 : f32 to vector<4x64xf32>
    %219 = arith.subf %217, %218 : vector<4x64xf32>
    %cst_188 = arith.constant 0.000000e+00 : f32
    %220 = vector.broadcast %cst_188 : f32 to vector<4x64xf32>
    %221 = arith.cmpf ogt, %219, %220 : vector<4x64xf32>
    %222 = arith.extui %221 : vector<4x64xi1> to vector<4x64xi32>
    %223 = arith.sitofp %222 : vector<4x64xi32> to vector<4x64xf32>
    %cst_189 = arith.constant 0.000000e+00 : f32
    %224 = vector.broadcast %cst_189 : f32 to vector<4x64xf32>
    %225 = arith.maximumf %209, %224 : vector<4x64xf32>
    %226 = arith.addf %211, %225 : vector<4x64xf32>
    %227 = math.tanh %226 : vector<4x64xf32>
    %228 = tpu.concatenate %223, %227 in 0 : vector<4x64xf32>, vector<4x64xf32> -> vector<8x64xf32>
    %c0_190 = arith.constant 0 : index
    %c0_191 = arith.constant 0 : index
    %229 = vector.load %arg12[%c0_190, %c0_191] : memref<64x16xf32, #tpu.memory_space<vmem>>, vector<64x16xf32>
    %cst_192 = arith.constant dense<0.000000e+00> : vector<8x16xf32>
    %230 = tpu.matmul %228, %229, %cst_192 {dimension_numbers = #tpu.dot_dimension_numbers<[1], [0], [0], [1], [0, 0, 1, 1], [], []>} : vector<8x64xf32>, vector<64x16xf32>, vector<8x16xf32> -> vector<8x16xf32>
    %231 = arith.addf %14, %230 : vector<8x16xf32>
    %c0_193 = arith.constant 0 : index
    %c1_194 = arith.constant 1 : index
    %c0_195 = arith.constant 0 : index
    %c0_196 = arith.constant 0 : index
    %232 = vector.load %arg1[%c0_193, %c1_194, %c0_195, %c0_196] : memref<1x4x2x256xf32, #tpu.memory_space<vmem>>, vector<1x1x2x256xf32>
    %233 = vector.shape_cast %232 : vector<1x1x2x256xf32> to vector<2x256xf32>
    %c0_197 = arith.constant 0 : index
    %c17_198 = arith.constant 17 : index
    %234 = vector.load %arg19[%c0_197, %c17_198] : memref<2x290xf32, #tpu.memory_space<vmem>>, vector<2x256xf32>
    tpu.vector_store %arg19[%c0_197, %c17_198], %233 {strides = array<i32>} : memref<2x290xf32, #tpu.memory_space<vmem>>, vector<2x256xf32>,
    %c0_199 = arith.constant 0 : index
    %c0_200 = arith.constant 0 : index
    %235 = vector.load %arg19[%c0_199, %c0_200] : memref<2x290xf32, #tpu.memory_space<vmem>>, vector<2x256xf32>
    %c0_201 = arith.constant 0 : index
    %c0_202 = arith.constant 0 : index
    %236 = vector.load %arg7[%c0_201, %c0_202] : memref<9x256xf32, #tpu.memory_space<vmem>>, vector<1x256xf32>
    %237 = vector.broadcast %236 : vector<1x256xf32> to vector<2x256xf32>
    %238 = arith.mulf %235, %237 : vector<2x256xf32>
    %c0_203 = arith.constant 0 : index
    %c1_204 = arith.constant 1 : index
    %239 = vector.load %arg19[%c0_203, %c1_204] : memref<2x290xf32, #tpu.memory_space<vmem>>, vector<2x256xf32>
    %c1_205 = arith.constant 1 : index
    %c0_206 = arith.constant 0 : index
    %240 = vector.load %arg7[%c1_205, %c0_206] : memref<9x256xf32, #tpu.memory_space<vmem>>, vector<1x256xf32>
    %241 = vector.broadcast %240 : vector<1x256xf32> to vector<2x256xf32>
    %242 = arith.mulf %239, %241 : vector<2x256xf32>
    %c0_207 = arith.constant 0 : index
    %c2_208 = arith.constant 2 : index
    %243 = vector.load %arg19[%c0_207, %c2_208] : memref<2x290xf32, #tpu.memory_space<vmem>>, vector<2x256xf32>
    %c2_209 = arith.constant 2 : index
    %c0_210 = arith.constant 0 : index
    %244 = vector.load %arg7[%c2_209, %c0_210] : memref<9x256xf32, #tpu.memory_space<vmem>>, vector<1x256xf32>
    %245 = vector.broadcast %244 : vector<1x256xf32> to vector<2x256xf32>
    %246 = arith.mulf %243, %245 : vector<2x256xf32>
    %c0_211 = arith.constant 0 : index
    %c16_212 = arith.constant 16 : index
    %247 = vector.load %arg19[%c0_211, %c16_212] : memref<2x290xf32, #tpu.memory_space<vmem>>, vector<2x256xf32>
    %c3_213 = arith.constant 3 : index
    %c0_214 = arith.constant 0 : index
    %248 = vector.load %arg7[%c3_213, %c0_214] : memref<9x256xf32, #tpu.memory_space<vmem>>, vector<1x256xf32>
    %249 = vector.broadcast %248 : vector<1x256xf32> to vector<2x256xf32>
    %250 = arith.mulf %247, %249 : vector<2x256xf32>
    %c0_215 = arith.constant 0 : index
    %c17_216 = arith.constant 17 : index
    %251 = vector.load %arg19[%c0_215, %c17_216] : memref<2x290xf32, #tpu.memory_space<vmem>>, vector<2x256xf32>
    %c4_217 = arith.constant 4 : index
    %c0_218 = arith.constant 0 : index
    %252 = vector.load %arg7[%c4_217, %c0_218] : memref<9x256xf32, #tpu.memory_space<vmem>>, vector<1x256xf32>
    %253 = vector.broadcast %252 : vector<1x256xf32> to vector<2x256xf32>
    %254 = arith.mulf %251, %253 : vector<2x256xf32>
    %c0_219 = arith.constant 0 : index
    %c18_220 = arith.constant 18 : index
    %255 = vector.load %arg19[%c0_219, %c18_220] : memref<2x290xf32, #tpu.memory_space<vmem>>, vector<2x256xf32>
    %c5_221 = arith.constant 5 : index
    %c0_222 = arith.constant 0 : index
    %256 = vector.load %arg7[%c5_221, %c0_222] : memref<9x256xf32, #tpu.memory_space<vmem>>, vector<1x256xf32>
    %257 = vector.broadcast %256 : vector<1x256xf32> to vector<2x256xf32>
    %258 = arith.mulf %255, %257 : vector<2x256xf32>
    %c0_223 = arith.constant 0 : index
    %c32_224 = arith.constant 32 : index
    %259 = vector.load %arg19[%c0_223, %c32_224] : memref<2x290xf32, #tpu.memory_space<vmem>>, vector<2x256xf32>
    %c6_225 = arith.constant 6 : index
    %c0_226 = arith.constant 0 : index
    %260 = vector.load %arg7[%c6_225, %c0_226] : memref<9x256xf32, #tpu.memory_space<vmem>>, vector<1x256xf32>
    %261 = vector.broadcast %260 : vector<1x256xf32> to vector<2x256xf32>
    %262 = arith.mulf %259, %261 : vector<2x256xf32>
    %c0_227 = arith.constant 0 : index
    %c33_228 = arith.constant 33 : index
    %263 = vector.load %arg19[%c0_227, %c33_228] : memref<2x290xf32, #tpu.memory_space<vmem>>, vector<2x256xf32>
    %c7_229 = arith.constant 7 : index
    %c0_230 = arith.constant 0 : index
    %264 = vector.load %arg7[%c7_229, %c0_230] : memref<9x256xf32, #tpu.memory_space<vmem>>, vector<1x256xf32>
    %265 = vector.broadcast %264 : vector<1x256xf32> to vector<2x256xf32>
    %266 = arith.mulf %263, %265 : vector<2x256xf32>
    %c0_231 = arith.constant 0 : index
    %c34_232 = arith.constant 34 : index
    %267 = vector.load %arg19[%c0_231, %c34_232] : memref<2x290xf32, #tpu.memory_space<vmem>>, vector<2x256xf32>
    %c8_233 = arith.constant 8 : index
    %c0_234 = arith.constant 0 : index
    %268 = vector.load %arg7[%c8_233, %c0_234] : memref<9x256xf32, #tpu.memory_space<vmem>>, vector<1x256xf32>
    %269 = vector.broadcast %268 : vector<1x256xf32> to vector<2x256xf32>
    %270 = arith.mulf %267, %269 : vector<2x256xf32>
    %271 = tpu.concatenate %238, %242, %246, %250, %254, %258, %262, %266, %270 in 0 : vector<2x256xf32>, vector<2x256xf32>, vector<2x256xf32>, vector<2x256xf32>, vector<2x256xf32>, vector<2x256xf32>, vector<2x256xf32>, vector<2x256xf32>, vector<2x256xf32> -> vector<18x256xf32>
    %c0_235 = arith.constant 0 : index
    %c17_236 = arith.constant 17 : index
    %272 = vector.load %arg20[%c0_235, %c17_236] : memref<4x290xf32, #tpu.memory_space<vmem>>, vector<4x256xf32>
    tpu.vector_store %arg20[%c0_235, %c17_236], %120 {strides = array<i32>} : memref<4x290xf32, #tpu.memory_space<vmem>>, vector<4x256xf32>,
    %c0_237 = arith.constant 0 : index
    %c0_238 = arith.constant 0 : index
    %273 = vector.load %arg20[%c0_237, %c0_238] : memref<4x290xf32, #tpu.memory_space<vmem>>, vector<4x256xf32>
    %c0_239 = arith.constant 0 : index
    %c0_240 = arith.constant 0 : index
    %274 = vector.load %arg7[%c0_239, %c0_240] : memref<9x256xf32, #tpu.memory_space<vmem>>, vector<1x256xf32>
    %275 = vector.broadcast %274 : vector<1x256xf32> to vector<4x256xf32>
    %276 = arith.mulf %273, %275 : vector<4x256xf32>
    %c0_241 = arith.constant 0 : index
    %c1_242 = arith.constant 1 : index
    %277 = vector.load %arg20[%c0_241, %c1_242] : memref<4x290xf32, #tpu.memory_space<vmem>>, vector<4x256xf32>
    %c1_243 = arith.constant 1 : index
    %c0_244 = arith.constant 0 : index
    %278 = vector.load %arg7[%c1_243, %c0_244] : memref<9x256xf32, #tpu.memory_space<vmem>>, vector<1x256xf32>
    %279 = vector.broadcast %278 : vector<1x256xf32> to vector<4x256xf32>
    %280 = arith.mulf %277, %279 : vector<4x256xf32>
    %c0_245 = arith.constant 0 : index
    %c2_246 = arith.constant 2 : index
    %281 = vector.load %arg20[%c0_245, %c2_246] : memref<4x290xf32, #tpu.memory_space<vmem>>, vector<4x256xf32>
    %c2_247 = arith.constant 2 : index
    %c0_248 = arith.constant 0 : index
    %282 = vector.load %arg7[%c2_247, %c0_248] : memref<9x256xf32, #tpu.memory_space<vmem>>, vector<1x256xf32>
    %283 = vector.broadcast %282 : vector<1x256xf32> to vector<4x256xf32>
    %284 = arith.mulf %281, %283 : vector<4x256xf32>
    %c0_249 = arith.constant 0 : index
    %c16_250 = arith.constant 16 : index
    %285 = vector.load %arg20[%c0_249, %c16_250] : memref<4x290xf32, #tpu.memory_space<vmem>>, vector<4x256xf32>
    %c3_251 = arith.constant 3 : index
    %c0_252 = arith.constant 0 : index
    %286 = vector.load %arg7[%c3_251, %c0_252] : memref<9x256xf32, #tpu.memory_space<vmem>>, vector<1x256xf32>
    %287 = vector.broadcast %286 : vector<1x256xf32> to vector<4x256xf32>
    %288 = arith.mulf %285, %287 : vector<4x256xf32>
    %c0_253 = arith.constant 0 : index
    %c17_254 = arith.constant 17 : index
    %289 = vector.load %arg20[%c0_253, %c17_254] : memref<4x290xf32, #tpu.memory_space<vmem>>, vector<4x256xf32>
    %c4_255 = arith.constant 4 : index
    %c0_256 = arith.constant 0 : index
    %290 = vector.load %arg7[%c4_255, %c0_256] : memref<9x256xf32, #tpu.memory_space<vmem>>, vector<1x256xf32>
    %291 = vector.broadcast %290 : vector<1x256xf32> to vector<4x256xf32>
    %292 = arith.mulf %289, %291 : vector<4x256xf32>
    %c0_257 = arith.constant 0 : index
    %c18_258 = arith.constant 18 : index
    %293 = vector.load %arg20[%c0_257, %c18_258] : memref<4x290xf32, #tpu.memory_space<vmem>>, vector<4x256xf32>
    %c5_259 = arith.constant 5 : index
    %c0_260 = arith.constant 0 : index
    %294 = vector.load %arg7[%c5_259, %c0_260] : memref<9x256xf32, #tpu.memory_space<vmem>>, vector<1x256xf32>
    %295 = vector.broadcast %294 : vector<1x256xf32> to vector<4x256xf32>
    %296 = arith.mulf %293, %295 : vector<4x256xf32>
    %c0_261 = arith.constant 0 : index
    %c32_262 = arith.constant 32 : index
    %297 = vector.load %arg20[%c0_261, %c32_262] : memref<4x290xf32, #tpu.memory_space<vmem>>, vector<4x256xf32>
    %c6_263 = arith.constant 6 : index
    %c0_264 = arith.constant 0 : index
    %298 = vector.load %arg7[%c6_263, %c0_264] : memref<9x256xf32, #tpu.memory_space<vmem>>, vector<1x256xf32>
    %299 = vector.broadcast %298 : vector<1x256xf32> to vector<4x256xf32>
    %300 = arith.mulf %297, %299 : vector<4x256xf32>
    %c0_265 = arith.constant 0 : index
    %c33_266 = arith.constant 33 : index
    %301 = vector.load %arg20[%c0_265, %c33_266] : memref<4x290xf32, #tpu.memory_space<vmem>>, vector<4x256xf32>
    %c7_267 = arith.constant 7 : index
    %c0_268 = arith.constant 0 : index
    %302 = vector.load %arg7[%c7_267, %c0_268] : memref<9x256xf32, #tpu.memory_space<vmem>>, vector<1x256xf32>
    %303 = vector.broadcast %302 : vector<1x256xf32> to vector<4x256xf32>
    %304 = arith.mulf %301, %303 : vector<4x256xf32>
    %c0_269 = arith.constant 0 : index
    %c34_270 = arith.constant 34 : index
    %305 = vector.load %arg20[%c0_269, %c34_270] : memref<4x290xf32, #tpu.memory_space<vmem>>, vector<4x256xf32>
    %c8_271 = arith.constant 8 : index
    %c0_272 = arith.constant 0 : index
    %306 = vector.load %arg7[%c8_271, %c0_272] : memref<9x256xf32, #tpu.memory_space<vmem>>, vector<1x256xf32>
    %307 = vector.broadcast %306 : vector<1x256xf32> to vector<4x256xf32>
    %308 = arith.mulf %305, %307 : vector<4x256xf32>
    %309 = tpu.concatenate %276, %280, %284, %288, %292, %296, %300, %304, %308 in 0 : vector<4x256xf32>, vector<4x256xf32>, vector<4x256xf32>, vector<4x256xf32>, vector<4x256xf32>, vector<4x256xf32>, vector<4x256xf32>, vector<4x256xf32>, vector<4x256xf32> -> vector<36x256xf32>
    %c0_273 = arith.constant 0 : index
    %c0_274 = arith.constant 0 : index
    %310 = vector.load %arg2[%c0_273, %c0_274] : memref<8x18xf32, #tpu.memory_space<vmem>>, vector<8x18xf32>
    %cst_275 = arith.constant dense<0.000000e+00> : vector<8x256xf32>
    %311 = tpu.matmul %310, %271, %cst_275 {dimension_numbers = #tpu.dot_dimension_numbers<[1], [0], [0], [1], [0, 0, 1, 1], [], []>} : vector<8x18xf32>, vector<18x256xf32>, vector<8x256xf32> -> vector<8x256xf32>
    %c0_276 = arith.constant 0 : index
    %c0_277 = arith.constant 0 : index
    %312 = vector.load %arg3[%c0_276, %c0_277] : memref<8x1xf32, #tpu.memory_space<vmem>>, vector<8x1xf32>
    %313 = vector.broadcast %312 : vector<8x1xf32> to vector<8x256xf32>
    %314 = arith.addf %311, %313 : vector<8x256xf32>
    %c0_278 = arith.constant 0 : index
    %c0_279 = arith.constant 0 : index
    %315 = vector.load %arg4[%c0_278, %c0_279] : memref<4x36xf32, #tpu.memory_space<vmem>>, vector<4x36xf32>
    %cst_280 = arith.constant dense<0.000000e+00> : vector<4x256xf32>
    %316 = tpu.matmul %315, %309, %cst_280 {dimension_numbers = #tpu.dot_dimension_numbers<[1], [0], [0], [1], [0, 0, 1, 1], [], []>} : vector<4x36xf32>, vector<36x256xf32>, vector<4x256xf32> -> vector<4x256xf32>
    %c0_281 = arith.constant 0 : index
    %c0_282 = arith.constant 0 : index
    %317 = vector.load %arg5[%c0_281, %c0_282] : memref<4x1xf32, #tpu.memory_space<vmem>>, vector<4x1xf32>
    %318 = vector.broadcast %317 : vector<4x1xf32> to vector<4x256xf32>
    %319 = arith.addf %316, %318 : vector<4x256xf32>
    %320 = vector.extract_strided_slice %314 {offsets = [0, 0], sizes = [4, 256], strides = [1, 1]} : vector<8x256xf32> to vector<4x256xf32>
    %321 = vector.extract_strided_slice %314 {offsets = [4, 0], sizes = [4, 256], strides = [1, 1]} : vector<8x256xf32> to vector<4x256xf32>
    %cst_283 = arith.constant 3.000000e-01 : f32
    %322 = vector.broadcast %cst_283 : f32 to vector<4x256xf32>
    %323 = arith.mulf %110, %322 : vector<4x256xf32>
    %cst_284 = arith.constant 1.000000e+00 : f32
    %324 = vector.broadcast %cst_284 : f32 to vector<4x256xf32>
    %325 = arith.subf %324, %116 : vector<4x256xf32>
    %326 = arith.mulf %323, %325 : vector<4x256xf32>
    %327 = arith.addf %326, %320 : vector<4x256xf32>
    %cst_285 = arith.constant 5.000000e-01 : f32
    %328 = vector.broadcast %cst_285 : f32 to vector<4x256xf32>
    %329 = arith.subf %327, %328 : vector<4x256xf32>
    %cst_286 = arith.constant 0.000000e+00 : f32
    %330 = vector.broadcast %cst_286 : f32 to vector<4x256xf32>
    %331 = arith.cmpf ogt, %329, %330 : vector<4x256xf32>
    %332 = arith.extui %331 : vector<4x256xi1> to vector<4x256xi32>
    %333 = arith.sitofp %332 : vector<4x256xi32> to vector<4x256xf32>
    %cst_287 = arith.constant 0.000000e+00 : f32
    %334 = vector.broadcast %cst_287 : f32 to vector<4x256xf32>
    %335 = arith.maximumf %319, %334 : vector<4x256xf32>
    %336 = arith.addf %321, %335 : vector<4x256xf32>
    %337 = math.tanh %336 : vector<4x256xf32>
    %338 = tpu.concatenate %333, %337 in 0 : vector<4x256xf32>, vector<4x256xf32> -> vector<8x256xf32>
    %c0_288 = arith.constant 0 : index
    %c0_289 = arith.constant 0 : index
    %339 = vector.load %arg6[%c0_288, %c0_289] : memref<256x64xf32, #tpu.memory_space<vmem>>, vector<256x64xf32>
    %cst_290 = arith.constant dense<0.000000e+00> : vector<8x64xf32>
    %340 = tpu.matmul %338, %339, %cst_290 {dimension_numbers = #tpu.dot_dimension_numbers<[1], [0], [0], [1], [0, 0, 1, 1], [], []>} : vector<8x256xf32>, vector<256x64xf32>, vector<8x64xf32> -> vector<8x64xf32>
    %c0_291 = arith.constant 0 : index
    %c9_292 = arith.constant 9 : index
    %341 = vector.load %arg21[%c0_291, %c9_292] : memref<8x82xf32, #tpu.memory_space<vmem>>, vector<8x64xf32>
    tpu.vector_store %arg21[%c0_291, %c9_292], %340 {strides = array<i32>} : memref<8x82xf32, #tpu.memory_space<vmem>>, vector<8x64xf32>,
    %c0_293 = arith.constant 0 : index
    %c0_294 = arith.constant 0 : index
    %342 = vector.load %arg21[%c0_293, %c0_294] : memref<8x82xf32, #tpu.memory_space<vmem>>, vector<8x64xf32>
    %c0_295 = arith.constant 0 : index
    %c0_296 = arith.constant 0 : index
    %343 = vector.load %arg13[%c0_295, %c0_296] : memref<9x64xf32, #tpu.memory_space<vmem>>, vector<1x64xf32>
    %344 = vector.broadcast %343 : vector<1x64xf32> to vector<8x64xf32>
    %345 = arith.mulf %342, %344 : vector<8x64xf32>
    %c0_297 = arith.constant 0 : index
    %c1_298 = arith.constant 1 : index
    %346 = vector.load %arg21[%c0_297, %c1_298] : memref<8x82xf32, #tpu.memory_space<vmem>>, vector<8x64xf32>
    %c1_299 = arith.constant 1 : index
    %c0_300 = arith.constant 0 : index
    %347 = vector.load %arg13[%c1_299, %c0_300] : memref<9x64xf32, #tpu.memory_space<vmem>>, vector<1x64xf32>
    %348 = vector.broadcast %347 : vector<1x64xf32> to vector<8x64xf32>
    %349 = arith.mulf %346, %348 : vector<8x64xf32>
    %c0_301 = arith.constant 0 : index
    %c2_302 = arith.constant 2 : index
    %350 = vector.load %arg21[%c0_301, %c2_302] : memref<8x82xf32, #tpu.memory_space<vmem>>, vector<8x64xf32>
    %c2_303 = arith.constant 2 : index
    %c0_304 = arith.constant 0 : index
    %351 = vector.load %arg13[%c2_303, %c0_304] : memref<9x64xf32, #tpu.memory_space<vmem>>, vector<1x64xf32>
    %352 = vector.broadcast %351 : vector<1x64xf32> to vector<8x64xf32>
    %353 = arith.mulf %350, %352 : vector<8x64xf32>
    %c0_305 = arith.constant 0 : index
    %c8_306 = arith.constant 8 : index
    %354 = vector.load %arg21[%c0_305, %c8_306] : memref<8x82xf32, #tpu.memory_space<vmem>>, vector<8x64xf32>
    %c3_307 = arith.constant 3 : index
    %c0_308 = arith.constant 0 : index
    %355 = vector.load %arg13[%c3_307, %c0_308] : memref<9x64xf32, #tpu.memory_space<vmem>>, vector<1x64xf32>
    %356 = vector.broadcast %355 : vector<1x64xf32> to vector<8x64xf32>
    %357 = arith.mulf %354, %356 : vector<8x64xf32>
    %c0_309 = arith.constant 0 : index
    %c9_310 = arith.constant 9 : index
    %358 = vector.load %arg21[%c0_309, %c9_310] : memref<8x82xf32, #tpu.memory_space<vmem>>, vector<8x64xf32>
    %c4_311 = arith.constant 4 : index
    %c0_312 = arith.constant 0 : index
    %359 = vector.load %arg13[%c4_311, %c0_312] : memref<9x64xf32, #tpu.memory_space<vmem>>, vector<1x64xf32>
    %360 = vector.broadcast %359 : vector<1x64xf32> to vector<8x64xf32>
    %361 = arith.mulf %358, %360 : vector<8x64xf32>
    %c0_313 = arith.constant 0 : index
    %c10_314 = arith.constant 10 : index
    %362 = vector.load %arg21[%c0_313, %c10_314] : memref<8x82xf32, #tpu.memory_space<vmem>>, vector<8x64xf32>
    %c5_315 = arith.constant 5 : index
    %c0_316 = arith.constant 0 : index
    %363 = vector.load %arg13[%c5_315, %c0_316] : memref<9x64xf32, #tpu.memory_space<vmem>>, vector<1x64xf32>
    %364 = vector.broadcast %363 : vector<1x64xf32> to vector<8x64xf32>
    %365 = arith.mulf %362, %364 : vector<8x64xf32>
    %c0_317 = arith.constant 0 : index
    %c16_318 = arith.constant 16 : index
    %366 = vector.load %arg21[%c0_317, %c16_318] : memref<8x82xf32, #tpu.memory_space<vmem>>, vector<8x64xf32>
    %c6_319 = arith.constant 6 : index
    %c0_320 = arith.constant 0 : index
    %367 = vector.load %arg13[%c6_319, %c0_320] : memref<9x64xf32, #tpu.memory_space<vmem>>, vector<1x64xf32>
    %368 = vector.broadcast %367 : vector<1x64xf32> to vector<8x64xf32>
    %369 = arith.mulf %366, %368 : vector<8x64xf32>
    %c0_321 = arith.constant 0 : index
    %c17_322 = arith.constant 17 : index
    %370 = vector.load %arg21[%c0_321, %c17_322] : memref<8x82xf32, #tpu.memory_space<vmem>>, vector<8x64xf32>
    %c7_323 = arith.constant 7 : index
    %c0_324 = arith.constant 0 : index
    %371 = vector.load %arg13[%c7_323, %c0_324] : memref<9x64xf32, #tpu.memory_space<vmem>>, vector<1x64xf32>
    %372 = vector.broadcast %371 : vector<1x64xf32> to vector<8x64xf32>
    %373 = arith.mulf %370, %372 : vector<8x64xf32>
    %c0_325 = arith.constant 0 : index
    %c18_326 = arith.constant 18 : index
    %374 = vector.load %arg21[%c0_325, %c18_326] : memref<8x82xf32, #tpu.memory_space<vmem>>, vector<8x64xf32>
    %c8_327 = arith.constant 8 : index
    %c0_328 = arith.constant 0 : index
    %375 = vector.load %arg13[%c8_327, %c0_328] : memref<9x64xf32, #tpu.memory_space<vmem>>, vector<1x64xf32>
    %376 = vector.broadcast %375 : vector<1x64xf32> to vector<8x64xf32>
    %377 = arith.mulf %374, %376 : vector<8x64xf32>
    %378 = tpu.concatenate %345, %349, %353, %357, %361, %365, %369, %373, %377 in 0 : vector<8x64xf32>, vector<8x64xf32>, vector<8x64xf32>, vector<8x64xf32>, vector<8x64xf32>, vector<8x64xf32>, vector<8x64xf32>, vector<8x64xf32>, vector<8x64xf32> -> vector<72x64xf32>
    %c0_329 = arith.constant 0 : index
    %c9_330 = arith.constant 9 : index
    %379 = vector.load %arg22[%c0_329, %c9_330] : memref<4x82xf32, #tpu.memory_space<vmem>>, vector<4x64xf32>
    tpu.vector_store %arg22[%c0_329, %c9_330], %227 {strides = array<i32>} : memref<4x82xf32, #tpu.memory_space<vmem>>, vector<4x64xf32>,
    %c0_331 = arith.constant 0 : index
    %c0_332 = arith.constant 0 : index
    %380 = vector.load %arg22[%c0_331, %c0_332] : memref<4x82xf32, #tpu.memory_space<vmem>>, vector<4x64xf32>
    %c0_333 = arith.constant 0 : index
    %c0_334 = arith.constant 0 : index
    %381 = vector.load %arg13[%c0_333, %c0_334] : memref<9x64xf32, #tpu.memory_space<vmem>>, vector<1x64xf32>
    %382 = vector.broadcast %381 : vector<1x64xf32> to vector<4x64xf32>
    %383 = arith.mulf %380, %382 : vector<4x64xf32>
    %c0_335 = arith.constant 0 : index
    %c1_336 = arith.constant 1 : index
    %384 = vector.load %arg22[%c0_335, %c1_336] : memref<4x82xf32, #tpu.memory_space<vmem>>, vector<4x64xf32>
    %c1_337 = arith.constant 1 : index
    %c0_338 = arith.constant 0 : index
    %385 = vector.load %arg13[%c1_337, %c0_338] : memref<9x64xf32, #tpu.memory_space<vmem>>, vector<1x64xf32>
    %386 = vector.broadcast %385 : vector<1x64xf32> to vector<4x64xf32>
    %387 = arith.mulf %384, %386 : vector<4x64xf32>
    %c0_339 = arith.constant 0 : index
    %c2_340 = arith.constant 2 : index
    %388 = vector.load %arg22[%c0_339, %c2_340] : memref<4x82xf32, #tpu.memory_space<vmem>>, vector<4x64xf32>
    %c2_341 = arith.constant 2 : index
    %c0_342 = arith.constant 0 : index
    %389 = vector.load %arg13[%c2_341, %c0_342] : memref<9x64xf32, #tpu.memory_space<vmem>>, vector<1x64xf32>
    %390 = vector.broadcast %389 : vector<1x64xf32> to vector<4x64xf32>
    %391 = arith.mulf %388, %390 : vector<4x64xf32>
    %c0_343 = arith.constant 0 : index
    %c8_344 = arith.constant 8 : index
    %392 = vector.load %arg22[%c0_343, %c8_344] : memref<4x82xf32, #tpu.memory_space<vmem>>, vector<4x64xf32>
    %c3_345 = arith.constant 3 : index
    %c0_346 = arith.constant 0 : index
    %393 = vector.load %arg13[%c3_345, %c0_346] : memref<9x64xf32, #tpu.memory_space<vmem>>, vector<1x64xf32>
    %394 = vector.broadcast %393 : vector<1x64xf32> to vector<4x64xf32>
    %395 = arith.mulf %392, %394 : vector<4x64xf32>
    %c0_347 = arith.constant 0 : index
    %c9_348 = arith.constant 9 : index
    %396 = vector.load %arg22[%c0_347, %c9_348] : memref<4x82xf32, #tpu.memory_space<vmem>>, vector<4x64xf32>
    %c4_349 = arith.constant 4 : index
    %c0_350 = arith.constant 0 : index
    %397 = vector.load %arg13[%c4_349, %c0_350] : memref<9x64xf32, #tpu.memory_space<vmem>>, vector<1x64xf32>
    %398 = vector.broadcast %397 : vector<1x64xf32> to vector<4x64xf32>
    %399 = arith.mulf %396, %398 : vector<4x64xf32>
    %c0_351 = arith.constant 0 : index
    %c10_352 = arith.constant 10 : index
    %400 = vector.load %arg22[%c0_351, %c10_352] : memref<4x82xf32, #tpu.memory_space<vmem>>, vector<4x64xf32>
    %c5_353 = arith.constant 5 : index
    %c0_354 = arith.constant 0 : index
    %401 = vector.load %arg13[%c5_353, %c0_354] : memref<9x64xf32, #tpu.memory_space<vmem>>, vector<1x64xf32>
    %402 = vector.broadcast %401 : vector<1x64xf32> to vector<4x64xf32>
    %403 = arith.mulf %400, %402 : vector<4x64xf32>
    %c0_355 = arith.constant 0 : index
    %c16_356 = arith.constant 16 : index
    %404 = vector.load %arg22[%c0_355, %c16_356] : memref<4x82xf32, #tpu.memory_space<vmem>>, vector<4x64xf32>
    %c6_357 = arith.constant 6 : index
    %c0_358 = arith.constant 0 : index
    %405 = vector.load %arg13[%c6_357, %c0_358] : memref<9x64xf32, #tpu.memory_space<vmem>>, vector<1x64xf32>
    %406 = vector.broadcast %405 : vector<1x64xf32> to vector<4x64xf32>
    %407 = arith.mulf %404, %406 : vector<4x64xf32>
    %c0_359 = arith.constant 0 : index
    %c17_360 = arith.constant 17 : index
    %408 = vector.load %arg22[%c0_359, %c17_360] : memref<4x82xf32, #tpu.memory_space<vmem>>, vector<4x64xf32>
    %c7_361 = arith.constant 7 : index
    %c0_362 = arith.constant 0 : index
    %409 = vector.load %arg13[%c7_361, %c0_362] : memref<9x64xf32, #tpu.memory_space<vmem>>, vector<1x64xf32>
    %410 = vector.broadcast %409 : vector<1x64xf32> to vector<4x64xf32>
    %411 = arith.mulf %408, %410 : vector<4x64xf32>
    %c0_363 = arith.constant 0 : index
    %c18_364 = arith.constant 18 : index
    %412 = vector.load %arg22[%c0_363, %c18_364] : memref<4x82xf32, #tpu.memory_space<vmem>>, vector<4x64xf32>
    %c8_365 = arith.constant 8 : index
    %c0_366 = arith.constant 0 : index
    %413 = vector.load %arg13[%c8_365, %c0_366] : memref<9x64xf32, #tpu.memory_space<vmem>>, vector<1x64xf32>
    %414 = vector.broadcast %413 : vector<1x64xf32> to vector<4x64xf32>
    %415 = arith.mulf %412, %414 : vector<4x64xf32>
    %416 = tpu.concatenate %383, %387, %391, %395, %399, %403, %407, %411, %415 in 0 : vector<4x64xf32>, vector<4x64xf32>, vector<4x64xf32>, vector<4x64xf32>, vector<4x64xf32>, vector<4x64xf32>, vector<4x64xf32>, vector<4x64xf32>, vector<4x64xf32> -> vector<36x64xf32>
    %c0_367 = arith.constant 0 : index
    %c0_368 = arith.constant 0 : index
    %417 = vector.load %arg8[%c0_367, %c0_368] : memref<8x72xf32, #tpu.memory_space<vmem>>, vector<8x72xf32>
    %cst_369 = arith.constant dense<0.000000e+00> : vector<8x64xf32>
    %418 = tpu.matmul %417, %378, %cst_369 {dimension_numbers = #tpu.dot_dimension_numbers<[1], [0], [0], [1], [0, 0, 1, 1], [], []>} : vector<8x72xf32>, vector<72x64xf32>, vector<8x64xf32> -> vector<8x64xf32>
    %c0_370 = arith.constant 0 : index
    %c0_371 = arith.constant 0 : index
    %419 = vector.load %arg9[%c0_370, %c0_371] : memref<8x1xf32, #tpu.memory_space<vmem>>, vector<8x1xf32>
    %420 = vector.broadcast %419 : vector<8x1xf32> to vector<8x64xf32>
    %421 = arith.addf %418, %420 : vector<8x64xf32>
    %c0_372 = arith.constant 0 : index
    %c0_373 = arith.constant 0 : index
    %422 = vector.load %arg10[%c0_372, %c0_373] : memref<4x36xf32, #tpu.memory_space<vmem>>, vector<4x36xf32>
    %cst_374 = arith.constant dense<0.000000e+00> : vector<4x64xf32>
    %423 = tpu.matmul %422, %416, %cst_374 {dimension_numbers = #tpu.dot_dimension_numbers<[1], [0], [0], [1], [0, 0, 1, 1], [], []>} : vector<4x36xf32>, vector<36x64xf32>, vector<4x64xf32> -> vector<4x64xf32>
    %c0_375 = arith.constant 0 : index
    %c0_376 = arith.constant 0 : index
    %424 = vector.load %arg11[%c0_375, %c0_376] : memref<4x1xf32, #tpu.memory_space<vmem>>, vector<4x1xf32>
    %425 = vector.broadcast %424 : vector<4x1xf32> to vector<4x64xf32>
    %426 = arith.addf %423, %425 : vector<4x64xf32>
    %427 = vector.extract_strided_slice %421 {offsets = [0, 0], sizes = [4, 64], strides = [1, 1]} : vector<8x64xf32> to vector<4x64xf32>
    %428 = vector.extract_strided_slice %421 {offsets = [4, 0], sizes = [4, 64], strides = [1, 1]} : vector<8x64xf32> to vector<4x64xf32>
    %cst_377 = arith.constant 3.000000e-01 : f32
    %429 = vector.broadcast %cst_377 : f32 to vector<4x64xf32>
    %430 = arith.mulf %217, %429 : vector<4x64xf32>
    %cst_378 = arith.constant 1.000000e+00 : f32
    %431 = vector.broadcast %cst_378 : f32 to vector<4x64xf32>
    %432 = arith.subf %431, %223 : vector<4x64xf32>
    %433 = arith.mulf %430, %432 : vector<4x64xf32>
    %434 = arith.addf %433, %427 : vector<4x64xf32>
    %cst_379 = arith.constant 5.000000e-01 : f32
    %435 = vector.broadcast %cst_379 : f32 to vector<4x64xf32>
    %436 = arith.subf %434, %435 : vector<4x64xf32>
    %cst_380 = arith.constant 0.000000e+00 : f32
    %437 = vector.broadcast %cst_380 : f32 to vector<4x64xf32>
    %438 = arith.cmpf ogt, %436, %437 : vector<4x64xf32>
    %439 = arith.extui %438 : vector<4x64xi1> to vector<4x64xi32>
    %440 = arith.sitofp %439 : vector<4x64xi32> to vector<4x64xf32>
    %cst_381 = arith.constant 0.000000e+00 : f32
    %441 = vector.broadcast %cst_381 : f32 to vector<4x64xf32>
    %442 = arith.maximumf %426, %441 : vector<4x64xf32>
    %443 = arith.addf %428, %442 : vector<4x64xf32>
    %444 = math.tanh %443 : vector<4x64xf32>
    %445 = tpu.concatenate %440, %444 in 0 : vector<4x64xf32>, vector<4x64xf32> -> vector<8x64xf32>
    %c0_382 = arith.constant 0 : index
    %c0_383 = arith.constant 0 : index
    %446 = vector.load %arg12[%c0_382, %c0_383] : memref<64x16xf32, #tpu.memory_space<vmem>>, vector<64x16xf32>
    %cst_384 = arith.constant dense<0.000000e+00> : vector<8x16xf32>
    %447 = tpu.matmul %445, %446, %cst_384 {dimension_numbers = #tpu.dot_dimension_numbers<[1], [0], [0], [1], [0, 0, 1, 1], [], []>} : vector<8x64xf32>, vector<64x16xf32>, vector<8x16xf32> -> vector<8x16xf32>
    %448 = arith.addf %231, %447 : vector<8x16xf32>
    %c0_385 = arith.constant 0 : index
    %c2_386 = arith.constant 2 : index
    %c0_387 = arith.constant 0 : index
    %c0_388 = arith.constant 0 : index
    %449 = vector.load %arg1[%c0_385, %c2_386, %c0_387, %c0_388] : memref<1x4x2x256xf32, #tpu.memory_space<vmem>>, vector<1x1x2x256xf32>
    %450 = vector.shape_cast %449 : vector<1x1x2x256xf32> to vector<2x256xf32>
    %c0_389 = arith.constant 0 : index
    %c17_390 = arith.constant 17 : index
    %451 = vector.load %arg19[%c0_389, %c17_390] : memref<2x290xf32, #tpu.memory_space<vmem>>, vector<2x256xf32>
    tpu.vector_store %arg19[%c0_389, %c17_390], %450 {strides = array<i32>} : memref<2x290xf32, #tpu.memory_space<vmem>>, vector<2x256xf32>,
    %c0_391 = arith.constant 0 : index
    %c0_392 = arith.constant 0 : index
    %452 = vector.load %arg19[%c0_391, %c0_392] : memref<2x290xf32, #tpu.memory_space<vmem>>, vector<2x256xf32>
    %c0_393 = arith.constant 0 : index
    %c0_394 = arith.constant 0 : index
    %453 = vector.load %arg7[%c0_393, %c0_394] : memref<9x256xf32, #tpu.memory_space<vmem>>, vector<1x256xf32>
    %454 = vector.broadcast %453 : vector<1x256xf32> to vector<2x256xf32>
    %455 = arith.mulf %452, %454 : vector<2x256xf32>
    %c0_395 = arith.constant 0 : index
    %c1_396 = arith.constant 1 : index
    %456 = vector.load %arg19[%c0_395, %c1_396] : memref<2x290xf32, #tpu.memory_space<vmem>>, vector<2x256xf32>
    %c1_397 = arith.constant 1 : index
    %c0_398 = arith.constant 0 : index
    %457 = vector.load %arg7[%c1_397, %c0_398] : memref<9x256xf32, #tpu.memory_space<vmem>>, vector<1x256xf32>
    %458 = vector.broadcast %457 : vector<1x256xf32> to vector<2x256xf32>
    %459 = arith.mulf %456, %458 : vector<2x256xf32>
    %c0_399 = arith.constant 0 : index
    %c2_400 = arith.constant 2 : index
    %460 = vector.load %arg19[%c0_399, %c2_400] : memref<2x290xf32, #tpu.memory_space<vmem>>, vector<2x256xf32>
    %c2_401 = arith.constant 2 : index
    %c0_402 = arith.constant 0 : index
    %461 = vector.load %arg7[%c2_401, %c0_402] : memref<9x256xf32, #tpu.memory_space<vmem>>, vector<1x256xf32>
    %462 = vector.broadcast %461 : vector<1x256xf32> to vector<2x256xf32>
    %463 = arith.mulf %460, %462 : vector<2x256xf32>
    %c0_403 = arith.constant 0 : index
    %c16_404 = arith.constant 16 : index
    %464 = vector.load %arg19[%c0_403, %c16_404] : memref<2x290xf32, #tpu.memory_space<vmem>>, vector<2x256xf32>
    %c3_405 = arith.constant 3 : index
    %c0_406 = arith.constant 0 : index
    %465 = vector.load %arg7[%c3_405, %c0_406] : memref<9x256xf32, #tpu.memory_space<vmem>>, vector<1x256xf32>
    %466 = vector.broadcast %465 : vector<1x256xf32> to vector<2x256xf32>
    %467 = arith.mulf %464, %466 : vector<2x256xf32>
    %c0_407 = arith.constant 0 : index
    %c17_408 = arith.constant 17 : index
    %468 = vector.load %arg19[%c0_407, %c17_408] : memref<2x290xf32, #tpu.memory_space<vmem>>, vector<2x256xf32>
    %c4_409 = arith.constant 4 : index
    %c0_410 = arith.constant 0 : index
    %469 = vector.load %arg7[%c4_409, %c0_410] : memref<9x256xf32, #tpu.memory_space<vmem>>, vector<1x256xf32>
    %470 = vector.broadcast %469 : vector<1x256xf32> to vector<2x256xf32>
    %471 = arith.mulf %468, %470 : vector<2x256xf32>
    %c0_411 = arith.constant 0 : index
    %c18_412 = arith.constant 18 : index
    %472 = vector.load %arg19[%c0_411, %c18_412] : memref<2x290xf32, #tpu.memory_space<vmem>>, vector<2x256xf32>
    %c5_413 = arith.constant 5 : index
    %c0_414 = arith.constant 0 : index
    %473 = vector.load %arg7[%c5_413, %c0_414] : memref<9x256xf32, #tpu.memory_space<vmem>>, vector<1x256xf32>
    %474 = vector.broadcast %473 : vector<1x256xf32> to vector<2x256xf32>
    %475 = arith.mulf %472, %474 : vector<2x256xf32>
    %c0_415 = arith.constant 0 : index
    %c32_416 = arith.constant 32 : index
    %476 = vector.load %arg19[%c0_415, %c32_416] : memref<2x290xf32, #tpu.memory_space<vmem>>, vector<2x256xf32>
    %c6_417 = arith.constant 6 : index
    %c0_418 = arith.constant 0 : index
    %477 = vector.load %arg7[%c6_417, %c0_418] : memref<9x256xf32, #tpu.memory_space<vmem>>, vector<1x256xf32>
    %478 = vector.broadcast %477 : vector<1x256xf32> to vector<2x256xf32>
    %479 = arith.mulf %476, %478 : vector<2x256xf32>
    %c0_419 = arith.constant 0 : index
    %c33_420 = arith.constant 33 : index
    %480 = vector.load %arg19[%c0_419, %c33_420] : memref<2x290xf32, #tpu.memory_space<vmem>>, vector<2x256xf32>
    %c7_421 = arith.constant 7 : index
    %c0_422 = arith.constant 0 : index
    %481 = vector.load %arg7[%c7_421, %c0_422] : memref<9x256xf32, #tpu.memory_space<vmem>>, vector<1x256xf32>
    %482 = vector.broadcast %481 : vector<1x256xf32> to vector<2x256xf32>
    %483 = arith.mulf %480, %482 : vector<2x256xf32>
    %c0_423 = arith.constant 0 : index
    %c34_424 = arith.constant 34 : index
    %484 = vector.load %arg19[%c0_423, %c34_424] : memref<2x290xf32, #tpu.memory_space<vmem>>, vector<2x256xf32>
    %c8_425 = arith.constant 8 : index
    %c0_426 = arith.constant 0 : index
    %485 = vector.load %arg7[%c8_425, %c0_426] : memref<9x256xf32, #tpu.memory_space<vmem>>, vector<1x256xf32>
    %486 = vector.broadcast %485 : vector<1x256xf32> to vector<2x256xf32>
    %487 = arith.mulf %484, %486 : vector<2x256xf32>
    %488 = tpu.concatenate %455, %459, %463, %467, %471, %475, %479, %483, %487 in 0 : vector<2x256xf32>, vector<2x256xf32>, vector<2x256xf32>, vector<2x256xf32>, vector<2x256xf32>, vector<2x256xf32>, vector<2x256xf32>, vector<2x256xf32>, vector<2x256xf32> -> vector<18x256xf32>
    %c0_427 = arith.constant 0 : index
    %c17_428 = arith.constant 17 : index
    %489 = vector.load %arg20[%c0_427, %c17_428] : memref<4x290xf32, #tpu.memory_space<vmem>>, vector<4x256xf32>
    tpu.vector_store %arg20[%c0_427, %c17_428], %337 {strides = array<i32>} : memref<4x290xf32, #tpu.memory_space<vmem>>, vector<4x256xf32>,
    %c0_429 = arith.constant 0 : index
    %c0_430 = arith.constant 0 : index
    %490 = vector.load %arg20[%c0_429, %c0_430] : memref<4x290xf32, #tpu.memory_space<vmem>>, vector<4x256xf32>
    %c0_431 = arith.constant 0 : index
    %c0_432 = arith.constant 0 : index
    %491 = vector.load %arg7[%c0_431, %c0_432] : memref<9x256xf32, #tpu.memory_space<vmem>>, vector<1x256xf32>
    %492 = vector.broadcast %491 : vector<1x256xf32> to vector<4x256xf32>
    %493 = arith.mulf %490, %492 : vector<4x256xf32>
    %c0_433 = arith.constant 0 : index
    %c1_434 = arith.constant 1 : index
    %494 = vector.load %arg20[%c0_433, %c1_434] : memref<4x290xf32, #tpu.memory_space<vmem>>, vector<4x256xf32>
    %c1_435 = arith.constant 1 : index
    %c0_436 = arith.constant 0 : index
    %495 = vector.load %arg7[%c1_435, %c0_436] : memref<9x256xf32, #tpu.memory_space<vmem>>, vector<1x256xf32>
    %496 = vector.broadcast %495 : vector<1x256xf32> to vector<4x256xf32>
    %497 = arith.mulf %494, %496 : vector<4x256xf32>
    %c0_437 = arith.constant 0 : index
    %c2_438 = arith.constant 2 : index
    %498 = vector.load %arg20[%c0_437, %c2_438] : memref<4x290xf32, #tpu.memory_space<vmem>>, vector<4x256xf32>
    %c2_439 = arith.constant 2 : index
    %c0_440 = arith.constant 0 : index
    %499 = vector.load %arg7[%c2_439, %c0_440] : memref<9x256xf32, #tpu.memory_space<vmem>>, vector<1x256xf32>
    %500 = vector.broadcast %499 : vector<1x256xf32> to vector<4x256xf32>
    %501 = arith.mulf %498, %500 : vector<4x256xf32>
    %c0_441 = arith.constant 0 : index
    %c16_442 = arith.constant 16 : index
    %502 = vector.load %arg20[%c0_441, %c16_442] : memref<4x290xf32, #tpu.memory_space<vmem>>, vector<4x256xf32>
    %c3_443 = arith.constant 3 : index
    %c0_444 = arith.constant 0 : index
    %503 = vector.load %arg7[%c3_443, %c0_444] : memref<9x256xf32, #tpu.memory_space<vmem>>, vector<1x256xf32>
    %504 = vector.broadcast %503 : vector<1x256xf32> to vector<4x256xf32>
    %505 = arith.mulf %502, %504 : vector<4x256xf32>
    %c0_445 = arith.constant 0 : index
    %c17_446 = arith.constant 17 : index
    %506 = vector.load %arg20[%c0_445, %c17_446] : memref<4x290xf32, #tpu.memory_space<vmem>>, vector<4x256xf32>
    %c4_447 = arith.constant 4 : index
    %c0_448 = arith.constant 0 : index
    %507 = vector.load %arg7[%c4_447, %c0_448] : memref<9x256xf32, #tpu.memory_space<vmem>>, vector<1x256xf32>
    %508 = vector.broadcast %507 : vector<1x256xf32> to vector<4x256xf32>
    %509 = arith.mulf %506, %508 : vector<4x256xf32>
    %c0_449 = arith.constant 0 : index
    %c18_450 = arith.constant 18 : index
    %510 = vector.load %arg20[%c0_449, %c18_450] : memref<4x290xf32, #tpu.memory_space<vmem>>, vector<4x256xf32>
    %c5_451 = arith.constant 5 : index
    %c0_452 = arith.constant 0 : index
    %511 = vector.load %arg7[%c5_451, %c0_452] : memref<9x256xf32, #tpu.memory_space<vmem>>, vector<1x256xf32>
    %512 = vector.broadcast %511 : vector<1x256xf32> to vector<4x256xf32>
    %513 = arith.mulf %510, %512 : vector<4x256xf32>
    %c0_453 = arith.constant 0 : index
    %c32_454 = arith.constant 32 : index
    %514 = vector.load %arg20[%c0_453, %c32_454] : memref<4x290xf32, #tpu.memory_space<vmem>>, vector<4x256xf32>
    %c6_455 = arith.constant 6 : index
    %c0_456 = arith.constant 0 : index
    %515 = vector.load %arg7[%c6_455, %c0_456] : memref<9x256xf32, #tpu.memory_space<vmem>>, vector<1x256xf32>
    %516 = vector.broadcast %515 : vector<1x256xf32> to vector<4x256xf32>
    %517 = arith.mulf %514, %516 : vector<4x256xf32>
    %c0_457 = arith.constant 0 : index
    %c33_458 = arith.constant 33 : index
    %518 = vector.load %arg20[%c0_457, %c33_458] : memref<4x290xf32, #tpu.memory_space<vmem>>, vector<4x256xf32>
    %c7_459 = arith.constant 7 : index
    %c0_460 = arith.constant 0 : index
    %519 = vector.load %arg7[%c7_459, %c0_460] : memref<9x256xf32, #tpu.memory_space<vmem>>, vector<1x256xf32>
    %520 = vector.broadcast %519 : vector<1x256xf32> to vector<4x256xf32>
    %521 = arith.mulf %518, %520 : vector<4x256xf32>
    %c0_461 = arith.constant 0 : index
    %c34_462 = arith.constant 34 : index
    %522 = vector.load %arg20[%c0_461, %c34_462] : memref<4x290xf32, #tpu.memory_space<vmem>>, vector<4x256xf32>
    %c8_463 = arith.constant 8 : index
    %c0_464 = arith.constant 0 : index
    %523 = vector.load %arg7[%c8_463, %c0_464] : memref<9x256xf32, #tpu.memory_space<vmem>>, vector<1x256xf32>
    %524 = vector.broadcast %523 : vector<1x256xf32> to vector<4x256xf32>
    %525 = arith.mulf %522, %524 : vector<4x256xf32>
    %526 = tpu.concatenate %493, %497, %501, %505, %509, %513, %517, %521, %525 in 0 : vector<4x256xf32>, vector<4x256xf32>, vector<4x256xf32>, vector<4x256xf32>, vector<4x256xf32>, vector<4x256xf32>, vector<4x256xf32>, vector<4x256xf32>, vector<4x256xf32> -> vector<36x256xf32>
    %c0_465 = arith.constant 0 : index
    %c0_466 = arith.constant 0 : index
    %527 = vector.load %arg2[%c0_465, %c0_466] : memref<8x18xf32, #tpu.memory_space<vmem>>, vector<8x18xf32>
    %cst_467 = arith.constant dense<0.000000e+00> : vector<8x256xf32>
    %528 = tpu.matmul %527, %488, %cst_467 {dimension_numbers = #tpu.dot_dimension_numbers<[1], [0], [0], [1], [0, 0, 1, 1], [], []>} : vector<8x18xf32>, vector<18x256xf32>, vector<8x256xf32> -> vector<8x256xf32>
    %c0_468 = arith.constant 0 : index
    %c0_469 = arith.constant 0 : index
    %529 = vector.load %arg3[%c0_468, %c0_469] : memref<8x1xf32, #tpu.memory_space<vmem>>, vector<8x1xf32>
    %530 = vector.broadcast %529 : vector<8x1xf32> to vector<8x256xf32>
    %531 = arith.addf %528, %530 : vector<8x256xf32>
    %c0_470 = arith.constant 0 : index
    %c0_471 = arith.constant 0 : index
    %532 = vector.load %arg4[%c0_470, %c0_471] : memref<4x36xf32, #tpu.memory_space<vmem>>, vector<4x36xf32>
    %cst_472 = arith.constant dense<0.000000e+00> : vector<4x256xf32>
    %533 = tpu.matmul %532, %526, %cst_472 {dimension_numbers = #tpu.dot_dimension_numbers<[1], [0], [0], [1], [0, 0, 1, 1], [], []>} : vector<4x36xf32>, vector<36x256xf32>, vector<4x256xf32> -> vector<4x256xf32>
    %c0_473 = arith.constant 0 : index
    %c0_474 = arith.constant 0 : index
    %534 = vector.load %arg5[%c0_473, %c0_474] : memref<4x1xf32, #tpu.memory_space<vmem>>, vector<4x1xf32>
    %535 = vector.broadcast %534 : vector<4x1xf32> to vector<4x256xf32>
    %536 = arith.addf %533, %535 : vector<4x256xf32>
    %537 = vector.extract_strided_slice %531 {offsets = [0, 0], sizes = [4, 256], strides = [1, 1]} : vector<8x256xf32> to vector<4x256xf32>
    %538 = vector.extract_strided_slice %531 {offsets = [4, 0], sizes = [4, 256], strides = [1, 1]} : vector<8x256xf32> to vector<4x256xf32>
    %cst_475 = arith.constant 3.000000e-01 : f32
    %539 = vector.broadcast %cst_475 : f32 to vector<4x256xf32>
    %540 = arith.mulf %327, %539 : vector<4x256xf32>
    %cst_476 = arith.constant 1.000000e+00 : f32
    %541 = vector.broadcast %cst_476 : f32 to vector<4x256xf32>
    %542 = arith.subf %541, %333 : vector<4x256xf32>
    %543 = arith.mulf %540, %542 : vector<4x256xf32>
    %544 = arith.addf %543, %537 : vector<4x256xf32>
    %cst_477 = arith.constant 5.000000e-01 : f32
    %545 = vector.broadcast %cst_477 : f32 to vector<4x256xf32>
    %546 = arith.subf %544, %545 : vector<4x256xf32>
    %cst_478 = arith.constant 0.000000e+00 : f32
    %547 = vector.broadcast %cst_478 : f32 to vector<4x256xf32>
    %548 = arith.cmpf ogt, %546, %547 : vector<4x256xf32>
    %549 = arith.extui %548 : vector<4x256xi1> to vector<4x256xi32>
    %550 = arith.sitofp %549 : vector<4x256xi32> to vector<4x256xf32>
    %cst_479 = arith.constant 0.000000e+00 : f32
    %551 = vector.broadcast %cst_479 : f32 to vector<4x256xf32>
    %552 = arith.maximumf %536, %551 : vector<4x256xf32>
    %553 = arith.addf %538, %552 : vector<4x256xf32>
    %554 = math.tanh %553 : vector<4x256xf32>
    %555 = tpu.concatenate %550, %554 in 0 : vector<4x256xf32>, vector<4x256xf32> -> vector<8x256xf32>
    %c0_480 = arith.constant 0 : index
    %c0_481 = arith.constant 0 : index
    %556 = vector.load %arg6[%c0_480, %c0_481] : memref<256x64xf32, #tpu.memory_space<vmem>>, vector<256x64xf32>
    %cst_482 = arith.constant dense<0.000000e+00> : vector<8x64xf32>
    %557 = tpu.matmul %555, %556, %cst_482 {dimension_numbers = #tpu.dot_dimension_numbers<[1], [0], [0], [1], [0, 0, 1, 1], [], []>} : vector<8x256xf32>, vector<256x64xf32>, vector<8x64xf32> -> vector<8x64xf32>
    %c0_483 = arith.constant 0 : index
    %c9_484 = arith.constant 9 : index
    %558 = vector.load %arg21[%c0_483, %c9_484] : memref<8x82xf32, #tpu.memory_space<vmem>>, vector<8x64xf32>
    tpu.vector_store %arg21[%c0_483, %c9_484], %557 {strides = array<i32>} : memref<8x82xf32, #tpu.memory_space<vmem>>, vector<8x64xf32>,
    %c0_485 = arith.constant 0 : index
    %c0_486 = arith.constant 0 : index
    %559 = vector.load %arg21[%c0_485, %c0_486] : memref<8x82xf32, #tpu.memory_space<vmem>>, vector<8x64xf32>
    %c0_487 = arith.constant 0 : index
    %c0_488 = arith.constant 0 : index
    %560 = vector.load %arg13[%c0_487, %c0_488] : memref<9x64xf32, #tpu.memory_space<vmem>>, vector<1x64xf32>
    %561 = vector.broadcast %560 : vector<1x64xf32> to vector<8x64xf32>
    %562 = arith.mulf %559, %561 : vector<8x64xf32>
    %c0_489 = arith.constant 0 : index
    %c1_490 = arith.constant 1 : index
    %563 = vector.load %arg21[%c0_489, %c1_490] : memref<8x82xf32, #tpu.memory_space<vmem>>, vector<8x64xf32>
    %c1_491 = arith.constant 1 : index
    %c0_492 = arith.constant 0 : index
    %564 = vector.load %arg13[%c1_491, %c0_492] : memref<9x64xf32, #tpu.memory_space<vmem>>, vector<1x64xf32>
    %565 = vector.broadcast %564 : vector<1x64xf32> to vector<8x64xf32>
    %566 = arith.mulf %563, %565 : vector<8x64xf32>
    %c0_493 = arith.constant 0 : index
    %c2_494 = arith.constant 2 : index
    %567 = vector.load %arg21[%c0_493, %c2_494] : memref<8x82xf32, #tpu.memory_space<vmem>>, vector<8x64xf32>
    %c2_495 = arith.constant 2 : index
    %c0_496 = arith.constant 0 : index
    %568 = vector.load %arg13[%c2_495, %c0_496] : memref<9x64xf32, #tpu.memory_space<vmem>>, vector<1x64xf32>
    %569 = vector.broadcast %568 : vector<1x64xf32> to vector<8x64xf32>
    %570 = arith.mulf %567, %569 : vector<8x64xf32>
    %c0_497 = arith.constant 0 : index
    %c8_498 = arith.constant 8 : index
    %571 = vector.load %arg21[%c0_497, %c8_498] : memref<8x82xf32, #tpu.memory_space<vmem>>, vector<8x64xf32>
    %c3_499 = arith.constant 3 : index
    %c0_500 = arith.constant 0 : index
    %572 = vector.load %arg13[%c3_499, %c0_500] : memref<9x64xf32, #tpu.memory_space<vmem>>, vector<1x64xf32>
    %573 = vector.broadcast %572 : vector<1x64xf32> to vector<8x64xf32>
    %574 = arith.mulf %571, %573 : vector<8x64xf32>
    %c0_501 = arith.constant 0 : index
    %c9_502 = arith.constant 9 : index
    %575 = vector.load %arg21[%c0_501, %c9_502] : memref<8x82xf32, #tpu.memory_space<vmem>>, vector<8x64xf32>
    %c4_503 = arith.constant 4 : index
    %c0_504 = arith.constant 0 : index
    %576 = vector.load %arg13[%c4_503, %c0_504] : memref<9x64xf32, #tpu.memory_space<vmem>>, vector<1x64xf32>
    %577 = vector.broadcast %576 : vector<1x64xf32> to vector<8x64xf32>
    %578 = arith.mulf %575, %577 : vector<8x64xf32>
    %c0_505 = arith.constant 0 : index
    %c10_506 = arith.constant 10 : index
    %579 = vector.load %arg21[%c0_505, %c10_506] : memref<8x82xf32, #tpu.memory_space<vmem>>, vector<8x64xf32>
    %c5_507 = arith.constant 5 : index
    %c0_508 = arith.constant 0 : index
    %580 = vector.load %arg13[%c5_507, %c0_508] : memref<9x64xf32, #tpu.memory_space<vmem>>, vector<1x64xf32>
    %581 = vector.broadcast %580 : vector<1x64xf32> to vector<8x64xf32>
    %582 = arith.mulf %579, %581 : vector<8x64xf32>
    %c0_509 = arith.constant 0 : index
    %c16_510 = arith.constant 16 : index
    %583 = vector.load %arg21[%c0_509, %c16_510] : memref<8x82xf32, #tpu.memory_space<vmem>>, vector<8x64xf32>
    %c6_511 = arith.constant 6 : index
    %c0_512 = arith.constant 0 : index
    %584 = vector.load %arg13[%c6_511, %c0_512] : memref<9x64xf32, #tpu.memory_space<vmem>>, vector<1x64xf32>
    %585 = vector.broadcast %584 : vector<1x64xf32> to vector<8x64xf32>
    %586 = arith.mulf %583, %585 : vector<8x64xf32>
    %c0_513 = arith.constant 0 : index
    %c17_514 = arith.constant 17 : index
    %587 = vector.load %arg21[%c0_513, %c17_514] : memref<8x82xf32, #tpu.memory_space<vmem>>, vector<8x64xf32>
    %c7_515 = arith.constant 7 : index
    %c0_516 = arith.constant 0 : index
    %588 = vector.load %arg13[%c7_515, %c0_516] : memref<9x64xf32, #tpu.memory_space<vmem>>, vector<1x64xf32>
    %589 = vector.broadcast %588 : vector<1x64xf32> to vector<8x64xf32>
    %590 = arith.mulf %587, %589 : vector<8x64xf32>
    %c0_517 = arith.constant 0 : index
    %c18_518 = arith.constant 18 : index
    %591 = vector.load %arg21[%c0_517, %c18_518] : memref<8x82xf32, #tpu.memory_space<vmem>>, vector<8x64xf32>
    %c8_519 = arith.constant 8 : index
    %c0_520 = arith.constant 0 : index
    %592 = vector.load %arg13[%c8_519, %c0_520] : memref<9x64xf32, #tpu.memory_space<vmem>>, vector<1x64xf32>
    %593 = vector.broadcast %592 : vector<1x64xf32> to vector<8x64xf32>
    %594 = arith.mulf %591, %593 : vector<8x64xf32>
    %595 = tpu.concatenate %562, %566, %570, %574, %578, %582, %586, %590, %594 in 0 : vector<8x64xf32>, vector<8x64xf32>, vector<8x64xf32>, vector<8x64xf32>, vector<8x64xf32>, vector<8x64xf32>, vector<8x64xf32>, vector<8x64xf32>, vector<8x64xf32> -> vector<72x64xf32>
    %c0_521 = arith.constant 0 : index
    %c9_522 = arith.constant 9 : index
    %596 = vector.load %arg22[%c0_521, %c9_522] : memref<4x82xf32, #tpu.memory_space<vmem>>, vector<4x64xf32>
    tpu.vector_store %arg22[%c0_521, %c9_522], %444 {strides = array<i32>} : memref<4x82xf32, #tpu.memory_space<vmem>>, vector<4x64xf32>,
    %c0_523 = arith.constant 0 : index
    %c0_524 = arith.constant 0 : index
    %597 = vector.load %arg22[%c0_523, %c0_524] : memref<4x82xf32, #tpu.memory_space<vmem>>, vector<4x64xf32>
    %c0_525 = arith.constant 0 : index
    %c0_526 = arith.constant 0 : index
    %598 = vector.load %arg13[%c0_525, %c0_526] : memref<9x64xf32, #tpu.memory_space<vmem>>, vector<1x64xf32>
    %599 = vector.broadcast %598 : vector<1x64xf32> to vector<4x64xf32>
    %600 = arith.mulf %597, %599 : vector<4x64xf32>
    %c0_527 = arith.constant 0 : index
    %c1_528 = arith.constant 1 : index
    %601 = vector.load %arg22[%c0_527, %c1_528] : memref<4x82xf32, #tpu.memory_space<vmem>>, vector<4x64xf32>
    %c1_529 = arith.constant 1 : index
    %c0_530 = arith.constant 0 : index
    %602 = vector.load %arg13[%c1_529, %c0_530] : memref<9x64xf32, #tpu.memory_space<vmem>>, vector<1x64xf32>
    %603 = vector.broadcast %602 : vector<1x64xf32> to vector<4x64xf32>
    %604 = arith.mulf %601, %603 : vector<4x64xf32>
    %c0_531 = arith.constant 0 : index
    %c2_532 = arith.constant 2 : index
    %605 = vector.load %arg22[%c0_531, %c2_532] : memref<4x82xf32, #tpu.memory_space<vmem>>, vector<4x64xf32>
    %c2_533 = arith.constant 2 : index
    %c0_534 = arith.constant 0 : index
    %606 = vector.load %arg13[%c2_533, %c0_534] : memref<9x64xf32, #tpu.memory_space<vmem>>, vector<1x64xf32>
    %607 = vector.broadcast %606 : vector<1x64xf32> to vector<4x64xf32>
    %608 = arith.mulf %605, %607 : vector<4x64xf32>
    %c0_535 = arith.constant 0 : index
    %c8_536 = arith.constant 8 : index
    %609 = vector.load %arg22[%c0_535, %c8_536] : memref<4x82xf32, #tpu.memory_space<vmem>>, vector<4x64xf32>
    %c3_537 = arith.constant 3 : index
    %c0_538 = arith.constant 0 : index
    %610 = vector.load %arg13[%c3_537, %c0_538] : memref<9x64xf32, #tpu.memory_space<vmem>>, vector<1x64xf32>
    %611 = vector.broadcast %610 : vector<1x64xf32> to vector<4x64xf32>
    %612 = arith.mulf %609, %611 : vector<4x64xf32>
    %c0_539 = arith.constant 0 : index
    %c9_540 = arith.constant 9 : index
    %613 = vector.load %arg22[%c0_539, %c9_540] : memref<4x82xf32, #tpu.memory_space<vmem>>, vector<4x64xf32>
    %c4_541 = arith.constant 4 : index
    %c0_542 = arith.constant 0 : index
    %614 = vector.load %arg13[%c4_541, %c0_542] : memref<9x64xf32, #tpu.memory_space<vmem>>, vector<1x64xf32>
    %615 = vector.broadcast %614 : vector<1x64xf32> to vector<4x64xf32>
    %616 = arith.mulf %613, %615 : vector<4x64xf32>
    %c0_543 = arith.constant 0 : index
    %c10_544 = arith.constant 10 : index
    %617 = vector.load %arg22[%c0_543, %c10_544] : memref<4x82xf32, #tpu.memory_space<vmem>>, vector<4x64xf32>
    %c5_545 = arith.constant 5 : index
    %c0_546 = arith.constant 0 : index
    %618 = vector.load %arg13[%c5_545, %c0_546] : memref<9x64xf32, #tpu.memory_space<vmem>>, vector<1x64xf32>
    %619 = vector.broadcast %618 : vector<1x64xf32> to vector<4x64xf32>
    %620 = arith.mulf %617, %619 : vector<4x64xf32>
    %c0_547 = arith.constant 0 : index
    %c16_548 = arith.constant 16 : index
    %621 = vector.load %arg22[%c0_547, %c16_548] : memref<4x82xf32, #tpu.memory_space<vmem>>, vector<4x64xf32>
    %c6_549 = arith.constant 6 : index
    %c0_550 = arith.constant 0 : index
    %622 = vector.load %arg13[%c6_549, %c0_550] : memref<9x64xf32, #tpu.memory_space<vmem>>, vector<1x64xf32>
    %623 = vector.broadcast %622 : vector<1x64xf32> to vector<4x64xf32>
    %624 = arith.mulf %621, %623 : vector<4x64xf32>
    %c0_551 = arith.constant 0 : index
    %c17_552 = arith.constant 17 : index
    %625 = vector.load %arg22[%c0_551, %c17_552] : memref<4x82xf32, #tpu.memory_space<vmem>>, vector<4x64xf32>
    %c7_553 = arith.constant 7 : index
    %c0_554 = arith.constant 0 : index
    %626 = vector.load %arg13[%c7_553, %c0_554] : memref<9x64xf32, #tpu.memory_space<vmem>>, vector<1x64xf32>
    %627 = vector.broadcast %626 : vector<1x64xf32> to vector<4x64xf32>
    %628 = arith.mulf %625, %627 : vector<4x64xf32>
    %c0_555 = arith.constant 0 : index
    %c18_556 = arith.constant 18 : index
    %629 = vector.load %arg22[%c0_555, %c18_556] : memref<4x82xf32, #tpu.memory_space<vmem>>, vector<4x64xf32>
    %c8_557 = arith.constant 8 : index
    %c0_558 = arith.constant 0 : index
    %630 = vector.load %arg13[%c8_557, %c0_558] : memref<9x64xf32, #tpu.memory_space<vmem>>, vector<1x64xf32>
    %631 = vector.broadcast %630 : vector<1x64xf32> to vector<4x64xf32>
    %632 = arith.mulf %629, %631 : vector<4x64xf32>
    %633 = tpu.concatenate %600, %604, %608, %612, %616, %620, %624, %628, %632 in 0 : vector<4x64xf32>, vector<4x64xf32>, vector<4x64xf32>, vector<4x64xf32>, vector<4x64xf32>, vector<4x64xf32>, vector<4x64xf32>, vector<4x64xf32>, vector<4x64xf32> -> vector<36x64xf32>
    %c0_559 = arith.constant 0 : index
    %c0_560 = arith.constant 0 : index
    %634 = vector.load %arg8[%c0_559, %c0_560] : memref<8x72xf32, #tpu.memory_space<vmem>>, vector<8x72xf32>
    %cst_561 = arith.constant dense<0.000000e+00> : vector<8x64xf32>
    %635 = tpu.matmul %634, %595, %cst_561 {dimension_numbers = #tpu.dot_dimension_numbers<[1], [0], [0], [1], [0, 0, 1, 1], [], []>} : vector<8x72xf32>, vector<72x64xf32>, vector<8x64xf32> -> vector<8x64xf32>
    %c0_562 = arith.constant 0 : index
    %c0_563 = arith.constant 0 : index
    %636 = vector.load %arg9[%c0_562, %c0_563] : memref<8x1xf32, #tpu.memory_space<vmem>>, vector<8x1xf32>
    %637 = vector.broadcast %636 : vector<8x1xf32> to vector<8x64xf32>
    %638 = arith.addf %635, %637 : vector<8x64xf32>
    %c0_564 = arith.constant 0 : index
    %c0_565 = arith.constant 0 : index
    %639 = vector.load %arg10[%c0_564, %c0_565] : memref<4x36xf32, #tpu.memory_space<vmem>>, vector<4x36xf32>
    %cst_566 = arith.constant dense<0.000000e+00> : vector<4x64xf32>
    %640 = tpu.matmul %639, %633, %cst_566 {dimension_numbers = #tpu.dot_dimension_numbers<[1], [0], [0], [1], [0, 0, 1, 1], [], []>} : vector<4x36xf32>, vector<36x64xf32>, vector<4x64xf32> -> vector<4x64xf32>
    %c0_567 = arith.constant 0 : index
    %c0_568 = arith.constant 0 : index
    %641 = vector.load %arg11[%c0_567, %c0_568] : memref<4x1xf32, #tpu.memory_space<vmem>>, vector<4x1xf32>
    %642 = vector.broadcast %641 : vector<4x1xf32> to vector<4x64xf32>
    %643 = arith.addf %640, %642 : vector<4x64xf32>
    %644 = vector.extract_strided_slice %638 {offsets = [0, 0], sizes = [4, 64], strides = [1, 1]} : vector<8x64xf32> to vector<4x64xf32>
    %645 = vector.extract_strided_slice %638 {offsets = [4, 0], sizes = [4, 64], strides = [1, 1]} : vector<8x64xf32> to vector<4x64xf32>
    %cst_569 = arith.constant 3.000000e-01 : f32
    %646 = vector.broadcast %cst_569 : f32 to vector<4x64xf32>
    %647 = arith.mulf %434, %646 : vector<4x64xf32>
    %cst_570 = arith.constant 1.000000e+00 : f32
    %648 = vector.broadcast %cst_570 : f32 to vector<4x64xf32>
    %649 = arith.subf %648, %440 : vector<4x64xf32>
    %650 = arith.mulf %647, %649 : vector<4x64xf32>
    %651 = arith.addf %650, %644 : vector<4x64xf32>
    %cst_571 = arith.constant 5.000000e-01 : f32
    %652 = vector.broadcast %cst_571 : f32 to vector<4x64xf32>
    %653 = arith.subf %651, %652 : vector<4x64xf32>
    %cst_572 = arith.constant 0.000000e+00 : f32
    %654 = vector.broadcast %cst_572 : f32 to vector<4x64xf32>
    %655 = arith.cmpf ogt, %653, %654 : vector<4x64xf32>
    %656 = arith.extui %655 : vector<4x64xi1> to vector<4x64xi32>
    %657 = arith.sitofp %656 : vector<4x64xi32> to vector<4x64xf32>
    %cst_573 = arith.constant 0.000000e+00 : f32
    %658 = vector.broadcast %cst_573 : f32 to vector<4x64xf32>
    %659 = arith.maximumf %643, %658 : vector<4x64xf32>
    %660 = arith.addf %645, %659 : vector<4x64xf32>
    %661 = math.tanh %660 : vector<4x64xf32>
    %662 = tpu.concatenate %657, %661 in 0 : vector<4x64xf32>, vector<4x64xf32> -> vector<8x64xf32>
    %c0_574 = arith.constant 0 : index
    %c0_575 = arith.constant 0 : index
    %663 = vector.load %arg12[%c0_574, %c0_575] : memref<64x16xf32, #tpu.memory_space<vmem>>, vector<64x16xf32>
    %cst_576 = arith.constant dense<0.000000e+00> : vector<8x16xf32>
    %664 = tpu.matmul %662, %663, %cst_576 {dimension_numbers = #tpu.dot_dimension_numbers<[1], [0], [0], [1], [0, 0, 1, 1], [], []>} : vector<8x64xf32>, vector<64x16xf32>, vector<8x16xf32> -> vector<8x16xf32>
    %665 = arith.addf %448, %664 : vector<8x16xf32>
    %c0_577 = arith.constant 0 : index
    %c3_578 = arith.constant 3 : index
    %c0_579 = arith.constant 0 : index
    %c0_580 = arith.constant 0 : index
    %666 = vector.load %arg1[%c0_577, %c3_578, %c0_579, %c0_580] : memref<1x4x2x256xf32, #tpu.memory_space<vmem>>, vector<1x1x2x256xf32>
    %667 = vector.shape_cast %666 : vector<1x1x2x256xf32> to vector<2x256xf32>
    %c0_581 = arith.constant 0 : index
    %c17_582 = arith.constant 17 : index
    %668 = vector.load %arg19[%c0_581, %c17_582] : memref<2x290xf32, #tpu.memory_space<vmem>>, vector<2x256xf32>
    tpu.vector_store %arg19[%c0_581, %c17_582], %667 {strides = array<i32>} : memref<2x290xf32, #tpu.memory_space<vmem>>, vector<2x256xf32>,
    %c0_583 = arith.constant 0 : index
    %c0_584 = arith.constant 0 : index
    %669 = vector.load %arg19[%c0_583, %c0_584] : memref<2x290xf32, #tpu.memory_space<vmem>>, vector<2x256xf32>
    %c0_585 = arith.constant 0 : index
    %c0_586 = arith.constant 0 : index
    %670 = vector.load %arg7[%c0_585, %c0_586] : memref<9x256xf32, #tpu.memory_space<vmem>>, vector<1x256xf32>
    %671 = vector.broadcast %670 : vector<1x256xf32> to vector<2x256xf32>
    %672 = arith.mulf %669, %671 : vector<2x256xf32>
    %c0_587 = arith.constant 0 : index
    %c1_588 = arith.constant 1 : index
    %673 = vector.load %arg19[%c0_587, %c1_588] : memref<2x290xf32, #tpu.memory_space<vmem>>, vector<2x256xf32>
    %c1_589 = arith.constant 1 : index
    %c0_590 = arith.constant 0 : index
    %674 = vector.load %arg7[%c1_589, %c0_590] : memref<9x256xf32, #tpu.memory_space<vmem>>, vector<1x256xf32>
    %675 = vector.broadcast %674 : vector<1x256xf32> to vector<2x256xf32>
    %676 = arith.mulf %673, %675 : vector<2x256xf32>
    %c0_591 = arith.constant 0 : index
    %c2_592 = arith.constant 2 : index
    %677 = vector.load %arg19[%c0_591, %c2_592] : memref<2x290xf32, #tpu.memory_space<vmem>>, vector<2x256xf32>
    %c2_593 = arith.constant 2 : index
    %c0_594 = arith.constant 0 : index
    %678 = vector.load %arg7[%c2_593, %c0_594] : memref<9x256xf32, #tpu.memory_space<vmem>>, vector<1x256xf32>
    %679 = vector.broadcast %678 : vector<1x256xf32> to vector<2x256xf32>
    %680 = arith.mulf %677, %679 : vector<2x256xf32>
    %c0_595 = arith.constant 0 : index
    %c16_596 = arith.constant 16 : index
    %681 = vector.load %arg19[%c0_595, %c16_596] : memref<2x290xf32, #tpu.memory_space<vmem>>, vector<2x256xf32>
    %c3_597 = arith.constant 3 : index
    %c0_598 = arith.constant 0 : index
    %682 = vector.load %arg7[%c3_597, %c0_598] : memref<9x256xf32, #tpu.memory_space<vmem>>, vector<1x256xf32>
    %683 = vector.broadcast %682 : vector<1x256xf32> to vector<2x256xf32>
    %684 = arith.mulf %681, %683 : vector<2x256xf32>
    %c0_599 = arith.constant 0 : index
    %c17_600 = arith.constant 17 : index
    %685 = vector.load %arg19[%c0_599, %c17_600] : memref<2x290xf32, #tpu.memory_space<vmem>>, vector<2x256xf32>
    %c4_601 = arith.constant 4 : index
    %c0_602 = arith.constant 0 : index
    %686 = vector.load %arg7[%c4_601, %c0_602] : memref<9x256xf32, #tpu.memory_space<vmem>>, vector<1x256xf32>
    %687 = vector.broadcast %686 : vector<1x256xf32> to vector<2x256xf32>
    %688 = arith.mulf %685, %687 : vector<2x256xf32>
    %c0_603 = arith.constant 0 : index
    %c18_604 = arith.constant 18 : index
    %689 = vector.load %arg19[%c0_603, %c18_604] : memref<2x290xf32, #tpu.memory_space<vmem>>, vector<2x256xf32>
    %c5_605 = arith.constant 5 : index
    %c0_606 = arith.constant 0 : index
    %690 = vector.load %arg7[%c5_605, %c0_606] : memref<9x256xf32, #tpu.memory_space<vmem>>, vector<1x256xf32>
    %691 = vector.broadcast %690 : vector<1x256xf32> to vector<2x256xf32>
    %692 = arith.mulf %689, %691 : vector<2x256xf32>
    %c0_607 = arith.constant 0 : index
    %c32_608 = arith.constant 32 : index
    %693 = vector.load %arg19[%c0_607, %c32_608] : memref<2x290xf32, #tpu.memory_space<vmem>>, vector<2x256xf32>
    %c6_609 = arith.constant 6 : index
    %c0_610 = arith.constant 0 : index
    %694 = vector.load %arg7[%c6_609, %c0_610] : memref<9x256xf32, #tpu.memory_space<vmem>>, vector<1x256xf32>
    %695 = vector.broadcast %694 : vector<1x256xf32> to vector<2x256xf32>
    %696 = arith.mulf %693, %695 : vector<2x256xf32>
    %c0_611 = arith.constant 0 : index
    %c33_612 = arith.constant 33 : index
    %697 = vector.load %arg19[%c0_611, %c33_612] : memref<2x290xf32, #tpu.memory_space<vmem>>, vector<2x256xf32>
    %c7_613 = arith.constant 7 : index
    %c0_614 = arith.constant 0 : index
    %698 = vector.load %arg7[%c7_613, %c0_614] : memref<9x256xf32, #tpu.memory_space<vmem>>, vector<1x256xf32>
    %699 = vector.broadcast %698 : vector<1x256xf32> to vector<2x256xf32>
    %700 = arith.mulf %697, %699 : vector<2x256xf32>
    %c0_615 = arith.constant 0 : index
    %c34_616 = arith.constant 34 : index
    %701 = vector.load %arg19[%c0_615, %c34_616] : memref<2x290xf32, #tpu.memory_space<vmem>>, vector<2x256xf32>
    %c8_617 = arith.constant 8 : index
    %c0_618 = arith.constant 0 : index
    %702 = vector.load %arg7[%c8_617, %c0_618] : memref<9x256xf32, #tpu.memory_space<vmem>>, vector<1x256xf32>
    %703 = vector.broadcast %702 : vector<1x256xf32> to vector<2x256xf32>
    %704 = arith.mulf %701, %703 : vector<2x256xf32>
    %705 = tpu.concatenate %672, %676, %680, %684, %688, %692, %696, %700, %704 in 0 : vector<2x256xf32>, vector<2x256xf32>, vector<2x256xf32>, vector<2x256xf32>, vector<2x256xf32>, vector<2x256xf32>, vector<2x256xf32>, vector<2x256xf32>, vector<2x256xf32> -> vector<18x256xf32>
    %c0_619 = arith.constant 0 : index
    %c17_620 = arith.constant 17 : index
    %706 = vector.load %arg20[%c0_619, %c17_620] : memref<4x290xf32, #tpu.memory_space<vmem>>, vector<4x256xf32>
    tpu.vector_store %arg20[%c0_619, %c17_620], %554 {strides = array<i32>} : memref<4x290xf32, #tpu.memory_space<vmem>>, vector<4x256xf32>,
    %c0_621 = arith.constant 0 : index
    %c0_622 = arith.constant 0 : index
    %707 = vector.load %arg20[%c0_621, %c0_622] : memref<4x290xf32, #tpu.memory_space<vmem>>, vector<4x256xf32>
    %c0_623 = arith.constant 0 : index
    %c0_624 = arith.constant 0 : index
    %708 = vector.load %arg7[%c0_623, %c0_624] : memref<9x256xf32, #tpu.memory_space<vmem>>, vector<1x256xf32>
    %709 = vector.broadcast %708 : vector<1x256xf32> to vector<4x256xf32>
    %710 = arith.mulf %707, %709 : vector<4x256xf32>
    %c0_625 = arith.constant 0 : index
    %c1_626 = arith.constant 1 : index
    %711 = vector.load %arg20[%c0_625, %c1_626] : memref<4x290xf32, #tpu.memory_space<vmem>>, vector<4x256xf32>
    %c1_627 = arith.constant 1 : index
    %c0_628 = arith.constant 0 : index
    %712 = vector.load %arg7[%c1_627, %c0_628] : memref<9x256xf32, #tpu.memory_space<vmem>>, vector<1x256xf32>
    %713 = vector.broadcast %712 : vector<1x256xf32> to vector<4x256xf32>
    %714 = arith.mulf %711, %713 : vector<4x256xf32>
    %c0_629 = arith.constant 0 : index
    %c2_630 = arith.constant 2 : index
    %715 = vector.load %arg20[%c0_629, %c2_630] : memref<4x290xf32, #tpu.memory_space<vmem>>, vector<4x256xf32>
    %c2_631 = arith.constant 2 : index
    %c0_632 = arith.constant 0 : index
    %716 = vector.load %arg7[%c2_631, %c0_632] : memref<9x256xf32, #tpu.memory_space<vmem>>, vector<1x256xf32>
    %717 = vector.broadcast %716 : vector<1x256xf32> to vector<4x256xf32>
    %718 = arith.mulf %715, %717 : vector<4x256xf32>
    %c0_633 = arith.constant 0 : index
    %c16_634 = arith.constant 16 : index
    %719 = vector.load %arg20[%c0_633, %c16_634] : memref<4x290xf32, #tpu.memory_space<vmem>>, vector<4x256xf32>
    %c3_635 = arith.constant 3 : index
    %c0_636 = arith.constant 0 : index
    %720 = vector.load %arg7[%c3_635, %c0_636] : memref<9x256xf32, #tpu.memory_space<vmem>>, vector<1x256xf32>
    %721 = vector.broadcast %720 : vector<1x256xf32> to vector<4x256xf32>
    %722 = arith.mulf %719, %721 : vector<4x256xf32>
    %c0_637 = arith.constant 0 : index
    %c17_638 = arith.constant 17 : index
    %723 = vector.load %arg20[%c0_637, %c17_638] : memref<4x290xf32, #tpu.memory_space<vmem>>, vector<4x256xf32>
    %c4_639 = arith.constant 4 : index
    %c0_640 = arith.constant 0 : index
    %724 = vector.load %arg7[%c4_639, %c0_640] : memref<9x256xf32, #tpu.memory_space<vmem>>, vector<1x256xf32>
    %725 = vector.broadcast %724 : vector<1x256xf32> to vector<4x256xf32>
    %726 = arith.mulf %723, %725 : vector<4x256xf32>
    %c0_641 = arith.constant 0 : index
    %c18_642 = arith.constant 18 : index
    %727 = vector.load %arg20[%c0_641, %c18_642] : memref<4x290xf32, #tpu.memory_space<vmem>>, vector<4x256xf32>
    %c5_643 = arith.constant 5 : index
    %c0_644 = arith.constant 0 : index
    %728 = vector.load %arg7[%c5_643, %c0_644] : memref<9x256xf32, #tpu.memory_space<vmem>>, vector<1x256xf32>
    %729 = vector.broadcast %728 : vector<1x256xf32> to vector<4x256xf32>
    %730 = arith.mulf %727, %729 : vector<4x256xf32>
    %c0_645 = arith.constant 0 : index
    %c32_646 = arith.constant 32 : index
    %731 = vector.load %arg20[%c0_645, %c32_646] : memref<4x290xf32, #tpu.memory_space<vmem>>, vector<4x256xf32>
    %c6_647 = arith.constant 6 : index
    %c0_648 = arith.constant 0 : index
    %732 = vector.load %arg7[%c6_647, %c0_648] : memref<9x256xf32, #tpu.memory_space<vmem>>, vector<1x256xf32>
    %733 = vector.broadcast %732 : vector<1x256xf32> to vector<4x256xf32>
    %734 = arith.mulf %731, %733 : vector<4x256xf32>
    %c0_649 = arith.constant 0 : index
    %c33_650 = arith.constant 33 : index
    %735 = vector.load %arg20[%c0_649, %c33_650] : memref<4x290xf32, #tpu.memory_space<vmem>>, vector<4x256xf32>
    %c7_651 = arith.constant 7 : index
    %c0_652 = arith.constant 0 : index
    %736 = vector.load %arg7[%c7_651, %c0_652] : memref<9x256xf32, #tpu.memory_space<vmem>>, vector<1x256xf32>
    %737 = vector.broadcast %736 : vector<1x256xf32> to vector<4x256xf32>
    %738 = arith.mulf %735, %737 : vector<4x256xf32>
    %c0_653 = arith.constant 0 : index
    %c34_654 = arith.constant 34 : index
    %739 = vector.load %arg20[%c0_653, %c34_654] : memref<4x290xf32, #tpu.memory_space<vmem>>, vector<4x256xf32>
    %c8_655 = arith.constant 8 : index
    %c0_656 = arith.constant 0 : index
    %740 = vector.load %arg7[%c8_655, %c0_656] : memref<9x256xf32, #tpu.memory_space<vmem>>, vector<1x256xf32>
    %741 = vector.broadcast %740 : vector<1x256xf32> to vector<4x256xf32>
    %742 = arith.mulf %739, %741 : vector<4x256xf32>
    %743 = tpu.concatenate %710, %714, %718, %722, %726, %730, %734, %738, %742 in 0 : vector<4x256xf32>, vector<4x256xf32>, vector<4x256xf32>, vector<4x256xf32>, vector<4x256xf32>, vector<4x256xf32>, vector<4x256xf32>, vector<4x256xf32>, vector<4x256xf32> -> vector<36x256xf32>
    %c0_657 = arith.constant 0 : index
    %c0_658 = arith.constant 0 : index
    %744 = vector.load %arg2[%c0_657, %c0_658] : memref<8x18xf32, #tpu.memory_space<vmem>>, vector<8x18xf32>
    %cst_659 = arith.constant dense<0.000000e+00> : vector<8x256xf32>
    %745 = tpu.matmul %744, %705, %cst_659 {dimension_numbers = #tpu.dot_dimension_numbers<[1], [0], [0], [1], [0, 0, 1, 1], [], []>} : vector<8x18xf32>, vector<18x256xf32>, vector<8x256xf32> -> vector<8x256xf32>
    %c0_660 = arith.constant 0 : index
    %c0_661 = arith.constant 0 : index
    %746 = vector.load %arg3[%c0_660, %c0_661] : memref<8x1xf32, #tpu.memory_space<vmem>>, vector<8x1xf32>
    %747 = vector.broadcast %746 : vector<8x1xf32> to vector<8x256xf32>
    %748 = arith.addf %745, %747 : vector<8x256xf32>
    %c0_662 = arith.constant 0 : index
    %c0_663 = arith.constant 0 : index
    %749 = vector.load %arg4[%c0_662, %c0_663] : memref<4x36xf32, #tpu.memory_space<vmem>>, vector<4x36xf32>
    %cst_664 = arith.constant dense<0.000000e+00> : vector<4x256xf32>
    %750 = tpu.matmul %749, %743, %cst_664 {dimension_numbers = #tpu.dot_dimension_numbers<[1], [0], [0], [1], [0, 0, 1, 1], [], []>} : vector<4x36xf32>, vector<36x256xf32>, vector<4x256xf32> -> vector<4x256xf32>
    %c0_665 = arith.constant 0 : index
    %c0_666 = arith.constant 0 : index
    %751 = vector.load %arg5[%c0_665, %c0_666] : memref<4x1xf32, #tpu.memory_space<vmem>>, vector<4x1xf32>
    %752 = vector.broadcast %751 : vector<4x1xf32> to vector<4x256xf32>
    %753 = arith.addf %750, %752 : vector<4x256xf32>
    %754 = vector.extract_strided_slice %748 {offsets = [0, 0], sizes = [4, 256], strides = [1, 1]} : vector<8x256xf32> to vector<4x256xf32>
    %755 = vector.extract_strided_slice %748 {offsets = [4, 0], sizes = [4, 256], strides = [1, 1]} : vector<8x256xf32> to vector<4x256xf32>
    %cst_667 = arith.constant 3.000000e-01 : f32
    %756 = vector.broadcast %cst_667 : f32 to vector<4x256xf32>
    %757 = arith.mulf %544, %756 : vector<4x256xf32>
    %cst_668 = arith.constant 1.000000e+00 : f32
    %758 = vector.broadcast %cst_668 : f32 to vector<4x256xf32>
    %759 = arith.subf %758, %550 : vector<4x256xf32>
    %760 = arith.mulf %757, %759 : vector<4x256xf32>
    %761 = arith.addf %760, %754 : vector<4x256xf32>
    %cst_669 = arith.constant 5.000000e-01 : f32
    %762 = vector.broadcast %cst_669 : f32 to vector<4x256xf32>
    %763 = arith.subf %761, %762 : vector<4x256xf32>
    %cst_670 = arith.constant 0.000000e+00 : f32
    %764 = vector.broadcast %cst_670 : f32 to vector<4x256xf32>
    %765 = arith.cmpf ogt, %763, %764 : vector<4x256xf32>
    %766 = arith.extui %765 : vector<4x256xi1> to vector<4x256xi32>
    %767 = arith.sitofp %766 : vector<4x256xi32> to vector<4x256xf32>
    %cst_671 = arith.constant 0.000000e+00 : f32
    %768 = vector.broadcast %cst_671 : f32 to vector<4x256xf32>
    %769 = arith.maximumf %753, %768 : vector<4x256xf32>
    %770 = arith.addf %755, %769 : vector<4x256xf32>
    %771 = math.tanh %770 : vector<4x256xf32>
    %772 = tpu.concatenate %767, %771 in 0 : vector<4x256xf32>, vector<4x256xf32> -> vector<8x256xf32>
    %c0_672 = arith.constant 0 : index
    %c0_673 = arith.constant 0 : index
    %773 = vector.load %arg6[%c0_672, %c0_673] : memref<256x64xf32, #tpu.memory_space<vmem>>, vector<256x64xf32>
    %cst_674 = arith.constant dense<0.000000e+00> : vector<8x64xf32>
    %774 = tpu.matmul %772, %773, %cst_674 {dimension_numbers = #tpu.dot_dimension_numbers<[1], [0], [0], [1], [0, 0, 1, 1], [], []>} : vector<8x256xf32>, vector<256x64xf32>, vector<8x64xf32> -> vector<8x64xf32>
    %c0_675 = arith.constant 0 : index
    %c9_676 = arith.constant 9 : index
    %775 = vector.load %arg21[%c0_675, %c9_676] : memref<8x82xf32, #tpu.memory_space<vmem>>, vector<8x64xf32>
    tpu.vector_store %arg21[%c0_675, %c9_676], %774 {strides = array<i32>} : memref<8x82xf32, #tpu.memory_space<vmem>>, vector<8x64xf32>,
    %c0_677 = arith.constant 0 : index
    %c0_678 = arith.constant 0 : index
    %776 = vector.load %arg21[%c0_677, %c0_678] : memref<8x82xf32, #tpu.memory_space<vmem>>, vector<8x64xf32>
    %c0_679 = arith.constant 0 : index
    %c0_680 = arith.constant 0 : index
    %777 = vector.load %arg13[%c0_679, %c0_680] : memref<9x64xf32, #tpu.memory_space<vmem>>, vector<1x64xf32>
    %778 = vector.broadcast %777 : vector<1x64xf32> to vector<8x64xf32>
    %779 = arith.mulf %776, %778 : vector<8x64xf32>
    %c0_681 = arith.constant 0 : index
    %c1_682 = arith.constant 1 : index
    %780 = vector.load %arg21[%c0_681, %c1_682] : memref<8x82xf32, #tpu.memory_space<vmem>>, vector<8x64xf32>
    %c1_683 = arith.constant 1 : index
    %c0_684 = arith.constant 0 : index
    %781 = vector.load %arg13[%c1_683, %c0_684] : memref<9x64xf32, #tpu.memory_space<vmem>>, vector<1x64xf32>
    %782 = vector.broadcast %781 : vector<1x64xf32> to vector<8x64xf32>
    %783 = arith.mulf %780, %782 : vector<8x64xf32>
    %c0_685 = arith.constant 0 : index
    %c2_686 = arith.constant 2 : index
    %784 = vector.load %arg21[%c0_685, %c2_686] : memref<8x82xf32, #tpu.memory_space<vmem>>, vector<8x64xf32>
    %c2_687 = arith.constant 2 : index
    %c0_688 = arith.constant 0 : index
    %785 = vector.load %arg13[%c2_687, %c0_688] : memref<9x64xf32, #tpu.memory_space<vmem>>, vector<1x64xf32>
    %786 = vector.broadcast %785 : vector<1x64xf32> to vector<8x64xf32>
    %787 = arith.mulf %784, %786 : vector<8x64xf32>
    %c0_689 = arith.constant 0 : index
    %c8_690 = arith.constant 8 : index
    %788 = vector.load %arg21[%c0_689, %c8_690] : memref<8x82xf32, #tpu.memory_space<vmem>>, vector<8x64xf32>
    %c3_691 = arith.constant 3 : index
    %c0_692 = arith.constant 0 : index
    %789 = vector.load %arg13[%c3_691, %c0_692] : memref<9x64xf32, #tpu.memory_space<vmem>>, vector<1x64xf32>
    %790 = vector.broadcast %789 : vector<1x64xf32> to vector<8x64xf32>
    %791 = arith.mulf %788, %790 : vector<8x64xf32>
    %c0_693 = arith.constant 0 : index
    %c9_694 = arith.constant 9 : index
    %792 = vector.load %arg21[%c0_693, %c9_694] : memref<8x82xf32, #tpu.memory_space<vmem>>, vector<8x64xf32>
    %c4_695 = arith.constant 4 : index
    %c0_696 = arith.constant 0 : index
    %793 = vector.load %arg13[%c4_695, %c0_696] : memref<9x64xf32, #tpu.memory_space<vmem>>, vector<1x64xf32>
    %794 = vector.broadcast %793 : vector<1x64xf32> to vector<8x64xf32>
    %795 = arith.mulf %792, %794 : vector<8x64xf32>
    %c0_697 = arith.constant 0 : index
    %c10_698 = arith.constant 10 : index
    %796 = vector.load %arg21[%c0_697, %c10_698] : memref<8x82xf32, #tpu.memory_space<vmem>>, vector<8x64xf32>
    %c5_699 = arith.constant 5 : index
    %c0_700 = arith.constant 0 : index
    %797 = vector.load %arg13[%c5_699, %c0_700] : memref<9x64xf32, #tpu.memory_space<vmem>>, vector<1x64xf32>
    %798 = vector.broadcast %797 : vector<1x64xf32> to vector<8x64xf32>
    %799 = arith.mulf %796, %798 : vector<8x64xf32>
    %c0_701 = arith.constant 0 : index
    %c16_702 = arith.constant 16 : index
    %800 = vector.load %arg21[%c0_701, %c16_702] : memref<8x82xf32, #tpu.memory_space<vmem>>, vector<8x64xf32>
    %c6_703 = arith.constant 6 : index
    %c0_704 = arith.constant 0 : index
    %801 = vector.load %arg13[%c6_703, %c0_704] : memref<9x64xf32, #tpu.memory_space<vmem>>, vector<1x64xf32>
    %802 = vector.broadcast %801 : vector<1x64xf32> to vector<8x64xf32>
    %803 = arith.mulf %800, %802 : vector<8x64xf32>
    %c0_705 = arith.constant 0 : index
    %c17_706 = arith.constant 17 : index
    %804 = vector.load %arg21[%c0_705, %c17_706] : memref<8x82xf32, #tpu.memory_space<vmem>>, vector<8x64xf32>
    %c7_707 = arith.constant 7 : index
    %c0_708 = arith.constant 0 : index
    %805 = vector.load %arg13[%c7_707, %c0_708] : memref<9x64xf32, #tpu.memory_space<vmem>>, vector<1x64xf32>
    %806 = vector.broadcast %805 : vector<1x64xf32> to vector<8x64xf32>
    %807 = arith.mulf %804, %806 : vector<8x64xf32>
    %c0_709 = arith.constant 0 : index
    %c18_710 = arith.constant 18 : index
    %808 = vector.load %arg21[%c0_709, %c18_710] : memref<8x82xf32, #tpu.memory_space<vmem>>, vector<8x64xf32>
    %c8_711 = arith.constant 8 : index
    %c0_712 = arith.constant 0 : index
    %809 = vector.load %arg13[%c8_711, %c0_712] : memref<9x64xf32, #tpu.memory_space<vmem>>, vector<1x64xf32>
    %810 = vector.broadcast %809 : vector<1x64xf32> to vector<8x64xf32>
    %811 = arith.mulf %808, %810 : vector<8x64xf32>
    %812 = tpu.concatenate %779, %783, %787, %791, %795, %799, %803, %807, %811 in 0 : vector<8x64xf32>, vector<8x64xf32>, vector<8x64xf32>, vector<8x64xf32>, vector<8x64xf32>, vector<8x64xf32>, vector<8x64xf32>, vector<8x64xf32>, vector<8x64xf32> -> vector<72x64xf32>
    %c0_713 = arith.constant 0 : index
    %c9_714 = arith.constant 9 : index
    %813 = vector.load %arg22[%c0_713, %c9_714] : memref<4x82xf32, #tpu.memory_space<vmem>>, vector<4x64xf32>
    tpu.vector_store %arg22[%c0_713, %c9_714], %661 {strides = array<i32>} : memref<4x82xf32, #tpu.memory_space<vmem>>, vector<4x64xf32>,
    %c0_715 = arith.constant 0 : index
    %c0_716 = arith.constant 0 : index
    %814 = vector.load %arg22[%c0_715, %c0_716] : memref<4x82xf32, #tpu.memory_space<vmem>>, vector<4x64xf32>
    %c0_717 = arith.constant 0 : index
    %c0_718 = arith.constant 0 : index
    %815 = vector.load %arg13[%c0_717, %c0_718] : memref<9x64xf32, #tpu.memory_space<vmem>>, vector<1x64xf32>
    %816 = vector.broadcast %815 : vector<1x64xf32> to vector<4x64xf32>
    %817 = arith.mulf %814, %816 : vector<4x64xf32>
    %c0_719 = arith.constant 0 : index
    %c1_720 = arith.constant 1 : index
    %818 = vector.load %arg22[%c0_719, %c1_720] : memref<4x82xf32, #tpu.memory_space<vmem>>, vector<4x64xf32>
    %c1_721 = arith.constant 1 : index
    %c0_722 = arith.constant 0 : index
    %819 = vector.load %arg13[%c1_721, %c0_722] : memref<9x64xf32, #tpu.memory_space<vmem>>, vector<1x64xf32>
    %820 = vector.broadcast %819 : vector<1x64xf32> to vector<4x64xf32>
    %821 = arith.mulf %818, %820 : vector<4x64xf32>
    %c0_723 = arith.constant 0 : index
    %c2_724 = arith.constant 2 : index
    %822 = vector.load %arg22[%c0_723, %c2_724] : memref<4x82xf32, #tpu.memory_space<vmem>>, vector<4x64xf32>
    %c2_725 = arith.constant 2 : index
    %c0_726 = arith.constant 0 : index
    %823 = vector.load %arg13[%c2_725, %c0_726] : memref<9x64xf32, #tpu.memory_space<vmem>>, vector<1x64xf32>
    %824 = vector.broadcast %823 : vector<1x64xf32> to vector<4x64xf32>
    %825 = arith.mulf %822, %824 : vector<4x64xf32>
    %c0_727 = arith.constant 0 : index
    %c8_728 = arith.constant 8 : index
    %826 = vector.load %arg22[%c0_727, %c8_728] : memref<4x82xf32, #tpu.memory_space<vmem>>, vector<4x64xf32>
    %c3_729 = arith.constant 3 : index
    %c0_730 = arith.constant 0 : index
    %827 = vector.load %arg13[%c3_729, %c0_730] : memref<9x64xf32, #tpu.memory_space<vmem>>, vector<1x64xf32>
    %828 = vector.broadcast %827 : vector<1x64xf32> to vector<4x64xf32>
    %829 = arith.mulf %826, %828 : vector<4x64xf32>
    %c0_731 = arith.constant 0 : index
    %c9_732 = arith.constant 9 : index
    %830 = vector.load %arg22[%c0_731, %c9_732] : memref<4x82xf32, #tpu.memory_space<vmem>>, vector<4x64xf32>
    %c4_733 = arith.constant 4 : index
    %c0_734 = arith.constant 0 : index
    %831 = vector.load %arg13[%c4_733, %c0_734] : memref<9x64xf32, #tpu.memory_space<vmem>>, vector<1x64xf32>
    %832 = vector.broadcast %831 : vector<1x64xf32> to vector<4x64xf32>
    %833 = arith.mulf %830, %832 : vector<4x64xf32>
    %c0_735 = arith.constant 0 : index
    %c10_736 = arith.constant 10 : index
    %834 = vector.load %arg22[%c0_735, %c10_736] : memref<4x82xf32, #tpu.memory_space<vmem>>, vector<4x64xf32>
    %c5_737 = arith.constant 5 : index
    %c0_738 = arith.constant 0 : index
    %835 = vector.load %arg13[%c5_737, %c0_738] : memref<9x64xf32, #tpu.memory_space<vmem>>, vector<1x64xf32>
    %836 = vector.broadcast %835 : vector<1x64xf32> to vector<4x64xf32>
    %837 = arith.mulf %834, %836 : vector<4x64xf32>
    %c0_739 = arith.constant 0 : index
    %c16_740 = arith.constant 16 : index
    %838 = vector.load %arg22[%c0_739, %c16_740] : memref<4x82xf32, #tpu.memory_space<vmem>>, vector<4x64xf32>
    %c6_741 = arith.constant 6 : index
    %c0_742 = arith.constant 0 : index
    %839 = vector.load %arg13[%c6_741, %c0_742] : memref<9x64xf32, #tpu.memory_space<vmem>>, vector<1x64xf32>
    %840 = vector.broadcast %839 : vector<1x64xf32> to vector<4x64xf32>
    %841 = arith.mulf %838, %840 : vector<4x64xf32>
    %c0_743 = arith.constant 0 : index
    %c17_744 = arith.constant 17 : index
    %842 = vector.load %arg22[%c0_743, %c17_744] : memref<4x82xf32, #tpu.memory_space<vmem>>, vector<4x64xf32>
    %c7_745 = arith.constant 7 : index
    %c0_746 = arith.constant 0 : index
    %843 = vector.load %arg13[%c7_745, %c0_746] : memref<9x64xf32, #tpu.memory_space<vmem>>, vector<1x64xf32>
    %844 = vector.broadcast %843 : vector<1x64xf32> to vector<4x64xf32>
    %845 = arith.mulf %842, %844 : vector<4x64xf32>
    %c0_747 = arith.constant 0 : index
    %c18_748 = arith.constant 18 : index
    %846 = vector.load %arg22[%c0_747, %c18_748] : memref<4x82xf32, #tpu.memory_space<vmem>>, vector<4x64xf32>
    %c8_749 = arith.constant 8 : index
    %c0_750 = arith.constant 0 : index
    %847 = vector.load %arg13[%c8_749, %c0_750] : memref<9x64xf32, #tpu.memory_space<vmem>>, vector<1x64xf32>
    %848 = vector.broadcast %847 : vector<1x64xf32> to vector<4x64xf32>
    %849 = arith.mulf %846, %848 : vector<4x64xf32>
    %850 = tpu.concatenate %817, %821, %825, %829, %833, %837, %841, %845, %849 in 0 : vector<4x64xf32>, vector<4x64xf32>, vector<4x64xf32>, vector<4x64xf32>, vector<4x64xf32>, vector<4x64xf32>, vector<4x64xf32>, vector<4x64xf32>, vector<4x64xf32> -> vector<36x64xf32>
    %c0_751 = arith.constant 0 : index
    %c0_752 = arith.constant 0 : index
    %851 = vector.load %arg8[%c0_751, %c0_752] : memref<8x72xf32, #tpu.memory_space<vmem>>, vector<8x72xf32>
    %cst_753 = arith.constant dense<0.000000e+00> : vector<8x64xf32>
    %852 = tpu.matmul %851, %812, %cst_753 {dimension_numbers = #tpu.dot_dimension_numbers<[1], [0], [0], [1], [0, 0, 1, 1], [], []>} : vector<8x72xf32>, vector<72x64xf32>, vector<8x64xf32> -> vector<8x64xf32>
    %c0_754 = arith.constant 0 : index
    %c0_755 = arith.constant 0 : index
    %853 = vector.load %arg9[%c0_754, %c0_755] : memref<8x1xf32, #tpu.memory_space<vmem>>, vector<8x1xf32>
    %854 = vector.broadcast %853 : vector<8x1xf32> to vector<8x64xf32>
    %855 = arith.addf %852, %854 : vector<8x64xf32>
    %c0_756 = arith.constant 0 : index
    %c0_757 = arith.constant 0 : index
    %856 = vector.load %arg10[%c0_756, %c0_757] : memref<4x36xf32, #tpu.memory_space<vmem>>, vector<4x36xf32>
    %cst_758 = arith.constant dense<0.000000e+00> : vector<4x64xf32>
    %857 = tpu.matmul %856, %850, %cst_758 {dimension_numbers = #tpu.dot_dimension_numbers<[1], [0], [0], [1], [0, 0, 1, 1], [], []>} : vector<4x36xf32>, vector<36x64xf32>, vector<4x64xf32> -> vector<4x64xf32>
    %c0_759 = arith.constant 0 : index
    %c0_760 = arith.constant 0 : index
    %858 = vector.load %arg11[%c0_759, %c0_760] : memref<4x1xf32, #tpu.memory_space<vmem>>, vector<4x1xf32>
    %859 = vector.broadcast %858 : vector<4x1xf32> to vector<4x64xf32>
    %860 = arith.addf %857, %859 : vector<4x64xf32>
    %861 = vector.extract_strided_slice %855 {offsets = [0, 0], sizes = [4, 64], strides = [1, 1]} : vector<8x64xf32> to vector<4x64xf32>
    %862 = vector.extract_strided_slice %855 {offsets = [4, 0], sizes = [4, 64], strides = [1, 1]} : vector<8x64xf32> to vector<4x64xf32>
    %cst_761 = arith.constant 3.000000e-01 : f32
    %863 = vector.broadcast %cst_761 : f32 to vector<4x64xf32>
    %864 = arith.mulf %651, %863 : vector<4x64xf32>
    %cst_762 = arith.constant 1.000000e+00 : f32
    %865 = vector.broadcast %cst_762 : f32 to vector<4x64xf32>
    %866 = arith.subf %865, %657 : vector<4x64xf32>
    %867 = arith.mulf %864, %866 : vector<4x64xf32>
    %868 = arith.addf %867, %861 : vector<4x64xf32>
    %cst_763 = arith.constant 5.000000e-01 : f32
    %869 = vector.broadcast %cst_763 : f32 to vector<4x64xf32>
    %870 = arith.subf %868, %869 : vector<4x64xf32>
    %cst_764 = arith.constant 0.000000e+00 : f32
    %871 = vector.broadcast %cst_764 : f32 to vector<4x64xf32>
    %872 = arith.cmpf ogt, %870, %871 : vector<4x64xf32>
    %873 = arith.extui %872 : vector<4x64xi1> to vector<4x64xi32>
    %874 = arith.sitofp %873 : vector<4x64xi32> to vector<4x64xf32>
    %cst_765 = arith.constant 0.000000e+00 : f32
    %875 = vector.broadcast %cst_765 : f32 to vector<4x64xf32>
    %876 = arith.maximumf %860, %875 : vector<4x64xf32>
    %877 = arith.addf %862, %876 : vector<4x64xf32>
    %878 = math.tanh %877 : vector<4x64xf32>
    %879 = tpu.concatenate %874, %878 in 0 : vector<4x64xf32>, vector<4x64xf32> -> vector<8x64xf32>
    %c0_766 = arith.constant 0 : index
    %c0_767 = arith.constant 0 : index
    %880 = vector.load %arg12[%c0_766, %c0_767] : memref<64x16xf32, #tpu.memory_space<vmem>>, vector<64x16xf32>
    %cst_768 = arith.constant dense<0.000000e+00> : vector<8x16xf32>
    %881 = tpu.matmul %879, %880, %cst_768 {dimension_numbers = #tpu.dot_dimension_numbers<[1], [0], [0], [1], [0, 0, 1, 1], [], []>} : vector<8x64xf32>, vector<64x16xf32>, vector<8x16xf32> -> vector<8x16xf32>
    %882 = arith.addf %665, %881 : vector<8x16xf32>
    %883 = vector.extract_strided_slice %882 {offsets = [0, 0], sizes = [1, 16], strides = [1, 1]} : vector<8x16xf32> to vector<1x16xf32>
    %c0_769 = arith.constant 0 : index
    %c0_770 = arith.constant 0 : index
    %884 = vector.load %arg23[%c0_769, %c0_770] : memref<1x128xf32, #tpu.memory_space<vmem>>, vector<1x16xf32>
    tpu.vector_store %arg23[%c0_769, %c0_770], %883 {strides = array<i32>} : memref<1x128xf32, #tpu.memory_space<vmem>>, vector<1x16xf32>,
    %885 = vector.extract_strided_slice %882 {offsets = [1, 0], sizes = [1, 16], strides = [1, 1]} : vector<8x16xf32> to vector<1x16xf32>
    %c0_771 = arith.constant 0 : index
    %c16_772 = arith.constant 16 : index
    %886 = vector.load %arg23[%c0_771, %c16_772] : memref<1x128xf32, #tpu.memory_space<vmem>>, vector<1x16xf32>
    tpu.vector_store %arg23[%c0_771, %c16_772], %885 {strides = array<i32>} : memref<1x128xf32, #tpu.memory_space<vmem>>, vector<1x16xf32>,
    %887 = vector.extract_strided_slice %882 {offsets = [2, 0], sizes = [1, 16], strides = [1, 1]} : vector<8x16xf32> to vector<1x16xf32>
    %c0_773 = arith.constant 0 : index
    %c32_774 = arith.constant 32 : index
    %888 = vector.load %arg23[%c0_773, %c32_774] : memref<1x128xf32, #tpu.memory_space<vmem>>, vector<1x16xf32>
    tpu.vector_store %arg23[%c0_773, %c32_774], %887 {strides = array<i32>} : memref<1x128xf32, #tpu.memory_space<vmem>>, vector<1x16xf32>,
    %889 = vector.extract_strided_slice %882 {offsets = [3, 0], sizes = [1, 16], strides = [1, 1]} : vector<8x16xf32> to vector<1x16xf32>
    %c0_775 = arith.constant 0 : index
    %c48 = arith.constant 48 : index
    %890 = vector.load %arg23[%c0_775, %c48] : memref<1x128xf32, #tpu.memory_space<vmem>>, vector<1x16xf32>
    tpu.vector_store %arg23[%c0_775, %c48], %889 {strides = array<i32>} : memref<1x128xf32, #tpu.memory_space<vmem>>, vector<1x16xf32>,
    %891 = vector.extract_strided_slice %881 {offsets = [4, 0], sizes = [1, 16], strides = [1, 1]} : vector<8x16xf32> to vector<1x16xf32>
    %c0_776 = arith.constant 0 : index
    %c64 = arith.constant 64 : index
    %892 = vector.load %arg23[%c0_776, %c64] : memref<1x128xf32, #tpu.memory_space<vmem>>, vector<1x16xf32>
    tpu.vector_store %arg23[%c0_776, %c64], %891 {strides = array<i32>} : memref<1x128xf32, #tpu.memory_space<vmem>>, vector<1x16xf32>,
    %893 = vector.extract_strided_slice %881 {offsets = [5, 0], sizes = [1, 16], strides = [1, 1]} : vector<8x16xf32> to vector<1x16xf32>
    %c0_777 = arith.constant 0 : index
    %c80 = arith.constant 80 : index
    %894 = vector.load %arg23[%c0_777, %c80] : memref<1x128xf32, #tpu.memory_space<vmem>>, vector<1x16xf32>
    tpu.vector_store %arg23[%c0_777, %c80], %893 {strides = array<i32>} : memref<1x128xf32, #tpu.memory_space<vmem>>, vector<1x16xf32>,
    %895 = vector.extract_strided_slice %881 {offsets = [6, 0], sizes = [1, 16], strides = [1, 1]} : vector<8x16xf32> to vector<1x16xf32>
    %c0_778 = arith.constant 0 : index
    %c96 = arith.constant 96 : index
    %896 = vector.load %arg23[%c0_778, %c96] : memref<1x128xf32, #tpu.memory_space<vmem>>, vector<1x16xf32>
    tpu.vector_store %arg23[%c0_778, %c96], %895 {strides = array<i32>} : memref<1x128xf32, #tpu.memory_space<vmem>>, vector<1x16xf32>,
    %897 = vector.extract_strided_slice %881 {offsets = [7, 0], sizes = [1, 16], strides = [1, 1]} : vector<8x16xf32> to vector<1x16xf32>
    %c0_779 = arith.constant 0 : index
    %c112 = arith.constant 112 : index
    %898 = vector.load %arg23[%c0_779, %c112] : memref<1x128xf32, #tpu.memory_space<vmem>>, vector<1x16xf32>
    tpu.vector_store %arg23[%c0_779, %c112], %897 {strides = array<i32>} : memref<1x128xf32, #tpu.memory_space<vmem>>, vector<1x16xf32>,
    %c0_780 = arith.constant 0 : index
    %c0_781 = arith.constant 0 : index
    %899 = vector.load %arg23[%c0_780, %c0_781] : memref<1x128xf32, #tpu.memory_space<vmem>>, vector<1x128xf32>
    %c0_782 = arith.constant 0 : index
    %c0_783 = arith.constant 0 : index
    %900 = vector.load %arg14[%c0_782, %c0_783] : memref<128x32xf32, #tpu.memory_space<vmem>>, vector<128x32xf32>
    %cst_784 = arith.constant dense<0.000000e+00> : vector<1x32xf32>
    %901 = tpu.matmul %899, %900, %cst_784 {dimension_numbers = #tpu.dot_dimension_numbers<[1], [0], [0], [1], [0, 0, 1, 1], [], []>} : vector<1x128xf32>, vector<128x32xf32>, vector<1x32xf32> -> vector<1x32xf32>
    %c0_785 = arith.constant 0 : index
    %c0_786 = arith.constant 0 : index
    %902 = vector.load %arg15[%c0_785, %c0_786] : memref<1x32xf32, #tpu.memory_space<vmem>>, vector<1x32xf32>
    %903 = arith.addf %901, %902 : vector<1x32xf32>
    %cst_787 = arith.constant 0.000000e+00 : f32
    %904 = vector.broadcast %cst_787 : f32 to vector<1x32xf32>
    %905 = arith.maximumf %903, %904 : vector<1x32xf32>
    %c0_788 = arith.constant 0 : index
    %c0_789 = arith.constant 0 : index
    %906 = vector.load %arg16[%c0_788, %c0_789] : memref<32x10xf32, #tpu.memory_space<vmem>>, vector<32x10xf32>
    %cst_790 = arith.constant dense<0.000000e+00> : vector<1x10xf32>
    %907 = tpu.matmul %905, %906, %cst_790 {dimension_numbers = #tpu.dot_dimension_numbers<[1], [0], [0], [1], [0, 0, 1, 1], [], []>} : vector<1x32xf32>, vector<32x10xf32>, vector<1x10xf32> -> vector<1x10xf32>
    %c0_791 = arith.constant 0 : index
    %c0_792 = arith.constant 0 : index
    %908 = vector.load %arg17[%c0_791, %c0_792] : memref<1x10xf32, #tpu.memory_space<vmem>>, vector<1x10xf32>
    %909 = arith.addf %907, %908 : vector<1x10xf32>
    %c0_793 = arith.constant 0 : index
    %c0_794 = arith.constant 0 : index
    %c0_795 = arith.constant 0 : index
    %910 = vector.load %arg18[%c0_793, %c0_794, %c0_795] : memref<1x1x10xf32, #tpu.memory_space<vmem>>, vector<1x1x10xf32>
    %911 = vector.shape_cast %910 : vector<1x1x10xf32> to vector<1x10xf32>
    %912 = vector.shape_cast %909 : vector<1x10xf32> to vector<1x1x10xf32>
    tpu.vector_store %arg18[%c0_793, %c0_794, %c0_795], %912 {strides = array<i32>} : memref<1x1x10xf32, #tpu.memory_space<vmem>>, vector<1x1x10xf32>,
    return
  }
  func.func @transform_0(%arg0: i32) -> (i32, i32, i32, i32) {
    %c0_i32 = arith.constant 0 : i32
    %c0_i32_0 = arith.constant 0 : i32
    %c0_i32_1 = arith.constant 0 : i32
    %c0_i32_2 = arith.constant 0 : i32
    return %arg0, %c0_i32, %c0_i32_0, %c0_i32_1 : i32, i32, i32, i32
  }
  func.func @transform_1(%arg0: i32) -> (i32, i32) {
    %c0_i32 = arith.constant 0 : i32
    %c0_i32_0 = arith.constant 0 : i32
    %c0_i32_1 = arith.constant 0 : i32
    return %c0_i32, %c0_i32_0 : i32, i32
  }
  func.func @transform_2(%arg0: i32) -> (i32, i32) {
    %c0_i32 = arith.constant 0 : i32
    %c0_i32_0 = arith.constant 0 : i32
    %c0_i32_1 = arith.constant 0 : i32
    return %c0_i32, %c0_i32_0 : i32, i32
  }
  func.func @transform_3(%arg0: i32) -> (i32, i32) {
    %c0_i32 = arith.constant 0 : i32
    %c0_i32_0 = arith.constant 0 : i32
    %c0_i32_1 = arith.constant 0 : i32
    return %c0_i32, %c0_i32_0 : i32, i32
  }
  func.func @transform_4(%arg0: i32) -> (i32, i32) {
    %c0_i32 = arith.constant 0 : i32
    %c0_i32_0 = arith.constant 0 : i32
    %c0_i32_1 = arith.constant 0 : i32
    return %c0_i32, %c0_i32_0 : i32, i32
  }
  func.func @transform_5(%arg0: i32) -> (i32, i32) {
    %c0_i32 = arith.constant 0 : i32
    %c0_i32_0 = arith.constant 0 : i32
    %c0_i32_1 = arith.constant 0 : i32
    return %c0_i32, %c0_i32_0 : i32, i32
  }
  func.func @transform_6(%arg0: i32) -> (i32, i32) {
    %c0_i32 = arith.constant 0 : i32
    %c0_i32_0 = arith.constant 0 : i32
    %c0_i32_1 = arith.constant 0 : i32
    return %c0_i32, %c0_i32_0 : i32, i32
  }
  func.func @transform_7(%arg0: i32) -> (i32, i32) {
    %c0_i32 = arith.constant 0 : i32
    %c0_i32_0 = arith.constant 0 : i32
    %c0_i32_1 = arith.constant 0 : i32
    return %c0_i32, %c0_i32_0 : i32, i32
  }
  func.func @transform_8(%arg0: i32) -> (i32, i32) {
    %c0_i32 = arith.constant 0 : i32
    %c0_i32_0 = arith.constant 0 : i32
    %c0_i32_1 = arith.constant 0 : i32
    return %c0_i32, %c0_i32_0 : i32, i32
  }
  func.func @transform_9(%arg0: i32) -> (i32, i32) {
    %c0_i32 = arith.constant 0 : i32
    %c0_i32_0 = arith.constant 0 : i32
    %c0_i32_1 = arith.constant 0 : i32
    return %c0_i32, %c0_i32_0 : i32, i32
  }
  func.func @transform_10(%arg0: i32) -> (i32, i32) {
    %c0_i32 = arith.constant 0 : i32
    %c0_i32_0 = arith.constant 0 : i32
    %c0_i32_1 = arith.constant 0 : i32
    return %c0_i32, %c0_i32_0 : i32, i32
  }
  func.func @transform_11(%arg0: i32) -> (i32, i32) {
    %c0_i32 = arith.constant 0 : i32
    %c0_i32_0 = arith.constant 0 : i32
    %c0_i32_1 = arith.constant 0 : i32
    return %c0_i32, %c0_i32_0 : i32, i32
  }
  func.func @transform_12(%arg0: i32) -> (i32, i32) {
    %c0_i32 = arith.constant 0 : i32
    %c0_i32_0 = arith.constant 0 : i32
    %c0_i32_1 = arith.constant 0 : i32
    return %c0_i32, %c0_i32_0 : i32, i32
  }
  func.func @transform_13(%arg0: i32) -> (i32, i32) {
    %c0_i32 = arith.constant 0 : i32
    %c0_i32_0 = arith.constant 0 : i32
    %c0_i32_1 = arith.constant 0 : i32
    return %c0_i32, %c0_i32_0 : i32, i32
  }
  func.func @transform_14(%arg0: i32) -> (i32, i32) {
    %c0_i32 = arith.constant 0 : i32
    %c0_i32_0 = arith.constant 0 : i32
    %c0_i32_1 = arith.constant 0 : i32
    return %c0_i32, %c0_i32_0 : i32, i32
  }
  func.func @transform_15(%arg0: i32) -> (i32, i32) {
    %c0_i32 = arith.constant 0 : i32
    %c0_i32_0 = arith.constant 0 : i32
    %c0_i32_1 = arith.constant 0 : i32
    return %c0_i32, %c0_i32_0 : i32, i32
  }
  func.func @transform_16(%arg0: i32) -> (i32, i32) {
    %c0_i32 = arith.constant 0 : i32
    %c0_i32_0 = arith.constant 0 : i32
    %c0_i32_1 = arith.constant 0 : i32
    return %c0_i32, %c0_i32_0 : i32, i32
  }
  func.func @transform_17(%arg0: i32) -> (i32, i32, i32) {
    %c0_i32 = arith.constant 0 : i32
    %c0_i32_0 = arith.constant 0 : i32
    %c0_i32_1 = arith.constant 0 : i32
    return %arg0, %c0_i32, %c0_i32_0 : i32, i32, i32
  }
}

</mosaic_0001>

<llo_original>
// kernel: hnn_forward.1
$region0: #{hnn_forward.1}
  #allocation0 [shape = 'u32[]', space=smem, size = 0x4, offset = 0x4, fixed_abs, tag = 'smem constant byte address 0x4 - core index']
  #allocation1 [shape = 'u32[144,128]{1,0:T(1,128)}', space=vmem, size = 0x12000, scoped, tag = 'internal scratch']
  #allocation2 [shape = 'f32[2,290]{1,0:T(2,128)}', space=vmem, size = 0xc00, scoped, tag = 'scratch operand']
  #allocation3 [shape = 'f32[4,290]{1,0:T(4,128)}', space=vmem, size = 0x1800, scoped, tag = 'scratch operand']
  #allocation4 [shape = 'f32[8,82]{1,0:T(8,128)}', space=vmem, size = 0x1000, scoped, tag = 'scratch operand']
  #allocation5 [shape = 'f32[4,82]{1,0:T(4,128)}', space=vmem, size = 0x800, scoped, tag = 'scratch operand']
  #allocation6 [shape = 'f32[1,128]{1,0:T(1,128)}', space=vmem, size = 0x200, scoped, tag = 'scratch operand']
  %s0 = inlined_call_operand.vmem [shape: f32[2,4,2,256], index: 0, kind: input, shape index: {}]
  %s1 = inlined_call_operand.vmem [shape: f32[8,18], index: 1, kind: input, shape index: {}]
  %s2 = inlined_call_operand.vmem [shape: f32[8,1], index: 2, kind: input, shape index: {}]
  %s3 = inlined_call_operand.vmem [shape: f32[4,36], index: 3, kind: input, shape index: {}]
  %s4 = inlined_call_operand.vmem [shape: f32[4,1], index: 4, kind: input, shape index: {}]
  %s5 = inlined_call_operand.vmem [shape: f32[256,64], index: 5, kind: input, shape index: {}]
  %s6 = inlined_call_operand.vmem [shape: f32[9,256], index: 6, kind: input, shape index: {}]
  %s7 = inlined_call_operand.vmem [shape: f32[8,72], index: 7, kind: input, shape index: {}]
  %s8 = inlined_call_operand.vmem [shape: f32[8,1], index: 8, kind: input, shape index: {}]
  %s9 = inlined_call_operand.vmem [shape: f32[4,36], index: 9, kind: input, shape index: {}]
  %s10 = inlined_call_operand.vmem [shape: f32[4,1], index: 10, kind: input, shape index: {}]
  %s11 = inlined_call_operand.vmem [shape: f32[64,16], index: 11, kind: input, shape index: {}]
  %s12 = inlined_call_operand.vmem [shape: f32[9,64], index: 12, kind: input, shape index: {}]
  %s13 = inlined_call_operand.vmem [shape: f32[128,32], index: 13, kind: input, shape index: {}]
  %s14 = inlined_call_operand.vmem [shape: f32[1,32], index: 14, kind: input, shape index: {}]
  %s15 = inlined_call_operand.vmem [shape: f32[32,10], index: 15, kind: input, shape index: {}]
  %s16 = inlined_call_operand.vmem [shape: f32[1,10], index: 16, kind: input, shape index: {}]
  %s17 = inlined_call_operand.hbm [shape: f32[2,1,10], index: 17, kind: output, shape index: {}]
  %s18 = sld [smem:[#allocation0]]
  $region101: #{hnn_forward.1} parent=0
    _
  %s20 = ssub.s32 1, %s18
  %s21 = scalar_select 0, %s20, %s18
  $region1: #{hnn_forward.1} parent=0
    #allocation7 [shape = 'u8[1024]{0}', space=vmem, size = 0x400, scoped, tag = 'output window, operand 0']
    #allocation8 [shape = 's32[2]{0}', space=sflag, size = 0x8, scoped, tag = 'scoped memory for hnn_forward.1']
    %22 = vsyncpa [#allocation8], 0
    %s23 = scalar_lea.sflag [#allocation8], 1
    %24 = vsyncpa %s23, 0
    loop: start=0, step=1, limit=4
    $region2: #{hnn_forward.1} parent=1 // loop_pre_header
      _
    $region3: #{hnn_forward.1} parent=1 // loop_header
      %s26 = sphi 0, %s30
      %p27 = scmp.ge.s32.totalorder %s26, 4
      %s36 = sphi 0, %s38
      %s39 = sphi 0, %s36
      %s40 = sphi 0, %s39
      %s56 = sphi 0, %s40
      %s60 = sphi 0, %s60
      %s62 = sphi 0, %s60
      %s63 = sphi 0, %s62
      %s77 = sphi 0, %s63
      %s81 = sphi 0, %s81
      %s83 = sphi 0, %s81
      %s84 = sphi 0, %s83
      %s98 = sphi 0, %s84
      %s102 = sphi 0, %s102
      %s104 = sphi 0, %s102
      %s105 = sphi 0, %s104
      %s119 = sphi 0, %s105
      %s123 = sphi 0, %s123
      %s125 = sphi 0, %s123
      %s126 = sphi 0, %s125
      %s140 = sphi 0, %s126
      %s144 = sphi 0, %s144
      %s146 = sphi 0, %s144
      %s147 = sphi 0, %s146
      %s161 = sphi 0, %s147
      %s165 = sphi 0, %s165
      %s167 = sphi 0, %s165
      %s168 = sphi 0, %s167
      %s182 = sphi 0, %s168
      %s186 = sphi 0, %s186
      %s188 = sphi 0, %s186
      %s189 = sphi 0, %s188
      %s203 = sphi 0, %s189
      %s207 = sphi 0, %s207
      %s209 = sphi 0, %s207
      %s210 = sphi 0, %s209
      %s224 = sphi 0, %s210
      %s228 = sphi 0, %s228
      %s230 = sphi 0, %s228
      %s231 = sphi 0, %s230
      %s245 = sphi 0, %s231
      %s249 = sphi 0, %s249
      %s251 = sphi 0, %s249
      %s252 = sphi 0, %s251
      %s266 = sphi 0, %s252
      %s270 = sphi 0, %s270
      %s272 = sphi 0, %s270
      %s273 = sphi 0, %s272
      %s287 = sphi 0, %s273
      %s291 = sphi 0, %s291
      %s293 = sphi 0, %s291
      %s294 = sphi 0, %s293
      %s308 = sphi 0, %s294
      %s312 = sphi 0, %s312
      %s314 = sphi 0, %s312
      %s315 = sphi 0, %s314
      %s329 = sphi 0, %s315
      %s333 = sphi 0, %s333
      %s335 = sphi 0, %s333
      %s336 = sphi 0, %s335
      %s350 = sphi 0, %s336
      %s354 = sphi 0, %s354
      %s356 = sphi 0, %s354
      %s357 = sphi 0, %s356
      %s371 = sphi 0, %s357
      %s375 = sphi 0, %s375
      %s377 = sphi 0, %s375
      %s378 = sphi 0, %s377
      %s392 = sphi 0, %s378
      %s398 = sphi 0, %s400
      %s401 = sphi 0, %s398
      %s402 = sphi 0, %s401
      %s418 = sphi 0, %s402
    $region4: #{hnn_forward.1} parent=1 // loop_header_branch
      %29 = sbr.rel (%p27) target = $region8
    $region5: #{hnn_forward.1} parent=1 // loop_body
      %s31 = ssub.s32 %s26, 1
      %s32 = ssub.s32 %s26, 2
      %s33 = sadd.s32 %s26, 1
      %s34 = ssub.s32 %s26, %s33
      %p35 = scmp.eq.s32.totalorder %s34, 0
      %s37 = sadd.s32 %s36, 1
      %s38 = scalar_select %p35, %s36, %s37
      %p41 = pneg %p35
      %p42 = scmp.eq.s32.totalorder %s26, 1
      %p43 = por %p41, %p42
      %p44 = scmp.ne.s32.totalorder %s36, %s39
      %p45 = scmp.eq.s32.totalorder %s26, 0
      %p46 = por %p44, %p45
      %p47 = scmp.ne.s32.totalorder %s36, %s39
      %p48 = scmp.eq.s32.totalorder %s31, 1
      %p49 = por %p47, %p48
      %p50 = scmp.ne.s32.totalorder %s39, %s40
      %p51 = scmp.eq.s32.totalorder %s31, 0
      %p52 = por %p50, %p51
      %p53 = scmp.ne.s32.totalorder %s39, %s40
      %p54 = scmp.eq.s32.totalorder %s32, 1
      %p55 = por %p53, %p54
      %p57 = scmp.ne.s32.totalorder %s40, %s56
      %p58 = scmp.eq.s32.totalorder %s32, 0
      %p59 = por %p57, %p58
      %s61 = sadd.s32 %s60, 1
      %p64 = scmp.eq.s32.totalorder %s26, 1
      %p65 = scmp.ne.s32.totalorder %s60, %s62
      %p66 = scmp.eq.s32.totalorder %s26, 0
      %p67 = por %p65, %p66
      %p68 = scmp.ne.s32.totalorder %s60, %s62
      %p69 = scmp.eq.s32.totalorder %s31, 1
      %p70 = por %p68, %p69
      %p71 = scmp.ne.s32.totalorder %s62, %s63
      %p72 = scmp.eq.s32.totalorder %s31, 0
      %p73 = por %p71, %p72
      %p74 = scmp.ne.s32.totalorder %s62, %s63
      %p75 = scmp.eq.s32.totalorder %s32, 1
      %p76 = por %p74, %p75
      %p78 = scmp.ne.s32.totalorder %s63, %s77
      %p79 = scmp.eq.s32.totalorder %s32, 0
      %p80 = por %p78, %p79
      %s82 = sadd.s32 %s81, 1
      %p85 = scmp.eq.s32.totalorder %s26, 1
      %p86 = scmp.ne.s32.totalorder %s81, %s83
      %p87 = scmp.eq.s32.totalorder %s26, 0
      %p88 = por %p86, %p87
      %p89 = scmp.ne.s32.totalorder %s81, %s83
      %p90 = scmp.eq.s32.totalorder %s31, 1
      %p91 = por %p89, %p90
      %p92 = scmp.ne.s32.totalorder %s83, %s84
      %p93 = scmp.eq.s32.totalorder %s31, 0
      %p94 = por %p92, %p93
      %p95 = scmp.ne.s32.totalorder %s83, %s84
      %p96 = scmp.eq.s32.totalorder %s32, 1
      %p97 = por %p95, %p96
      %p99 = scmp.ne.s32.totalorder %s84, %s98
      %p100 = scmp.eq.s32.totalorder %s32, 0
      %p101 = por %p99, %p100
      %s103 = sadd.s32 %s102, 1
      %p106 = scmp.eq.s32.totalorder %s26, 1
      %p107 = scmp.ne.s32.totalorder %s102, %s104
      %p108 = scmp.eq.s32.totalorder %s26, 0
      %p109 = por %p107, %p108
      %p110 = scmp.ne.s32.totalorder %s102, %s104
      %p111 = scmp.eq.s32.totalorder %s31, 1
      %p112 = por %p110, %p111
      %p113 = scmp.ne.s32.totalorder %s104, %s105
      %p114 = scmp.eq.s32.totalorder %s31, 0
      %p115 = por %p113, %p114
      %p116 = scmp.ne.s32.totalorder %s104, %s105
      %p117 = scmp.eq.s32.totalorder %s32, 1
      %p118 = por %p116, %p117
      %p120 = scmp.ne.s32.totalorder %s105, %s119
      %p121 = scmp.eq.s32.totalorder %s32, 0
      %p122 = por %p120, %p121
      %s124 = sadd.s32 %s123, 1
      %p127 = scmp.eq.s32.totalorder %s26, 1
      %p128 = scmp.ne.s32.totalorder %s123, %s125
      %p129 = scmp.eq.s32.totalorder %s26, 0
      %p130 = por %p128, %p129
      %p131 = scmp.ne.s32.totalorder %s123, %s125
      %p132 = scmp.eq.s32.totalorder %s31, 1
      %p133 = por %p131, %p132
      %p134 = scmp.ne.s32.totalorder %s125, %s126
      %p135 = scmp.eq.s32.totalorder %s31, 0
      %p136 = por %p134, %p135
      %p137 = scmp.ne.s32.totalorder %s125, %s126
      %p138 = scmp.eq.s32.totalorder %s32, 1
      %p139 = por %p137, %p138
      %p141 = scmp.ne.s32.totalorder %s126, %s140
      %p142 = scmp.eq.s32.totalorder %s32, 0
      %p143 = por %p141, %p142
      %s145 = sadd.s32 %s144, 1
      %p148 = scmp.eq.s32.totalorder %s26, 1
      %p149 = scmp.ne.s32.totalorder %s144, %s146
      %p150 = scmp.eq.s32.totalorder %s26, 0
      %p151 = por %p149, %p150
      %p152 = scmp.ne.s32.totalorder %s144, %s146
      %p153 = scmp.eq.s32.totalorder %s31, 1
      %p154 = por %p152, %p153
      %p155 = scmp.ne.s32.totalorder %s146, %s147
      %p156 = scmp.eq.s32.totalorder %s31, 0
      %p157 = por %p155, %p156
      %p158 = scmp.ne.s32.totalorder %s146, %s147
      %p159 = scmp.eq.s32.totalorder %s32, 1
      %p160 = por %p158, %p159
      %p162 = scmp.ne.s32.totalorder %s147, %s161
      %p163 = scmp.eq.s32.totalorder %s32, 0
      %p164 = por %p162, %p163
      %s166 = sadd.s32 %s165, 1
      %p169 = scmp.eq.s32.totalorder %s26, 1
      %p170 = scmp.ne.s32.totalorder %s165, %s167
      %p171 = scmp.eq.s32.totalorder %s26, 0
      %p172 = por %p170, %p171
      %p173 = scmp.ne.s32.totalorder %s165, %s167
      %p174 = scmp.eq.s32.totalorder %s31, 1
      %p175 = por %p173, %p174
      %p176 = scmp.ne.s32.totalorder %s167, %s168
      %p177 = scmp.eq.s32.totalorder %s31, 0
      %p178 = por %p176, %p177
      %p179 = scmp.ne.s32.totalorder %s167, %s168
      %p180 = scmp.eq.s32.totalorder %s32, 1
      %p181 = por %p179, %p180
      %p183 = scmp.ne.s32.totalorder %s168, %s182
      %p184 = scmp.eq.s32.totalorder %s32, 0
      %p185 = por %p183, %p184
      %s187 = sadd.s32 %s186, 1
      %p190 = scmp.eq.s32.totalorder %s26, 1
      %p191 = scmp.ne.s32.totalorder %s186, %s188
      %p192 = scmp.eq.s32.totalorder %s26, 0
      %p193 = por %p191, %p192
      %p194 = scmp.ne.s32.totalorder %s186, %s188
      %p195 = scmp.eq.s32.totalorder %s31, 1
      %p196 = por %p194, %p195
      %p197 = scmp.ne.s32.totalorder %s188, %s189
      %p198 = scmp.eq.s32.totalorder %s31, 0
      %p199 = por %p197, %p198
      %p200 = scmp.ne.s32.totalorder %s188, %s189
      %p201 = scmp.eq.s32.totalorder %s32, 1
      %p202 = por %p200, %p201
      %p204 = scmp.ne.s32.totalorder %s189, %s203
      %p205 = scmp.eq.s32.totalorder %s32, 0
      %p206 = por %p204, %p205
      %s208 = sadd.s32 %s207, 1
      %p211 = scmp.eq.s32.totalorder %s26, 1
      %p212 = scmp.ne.s32.totalorder %s207, %s209
      %p213 = scmp.eq.s32.totalorder %s26, 0
      %p214 = por %p212, %p213
      %p215 = scmp.ne.s32.totalorder %s207, %s209
      %p216 = scmp.eq.s32.totalorder %s31, 1
      %p217 = por %p215, %p216
      %p218 = scmp.ne.s32.totalorder %s209, %s210
      %p219 = scmp.eq.s32.totalorder %s31, 0
      %p220 = por %p218, %p219
      %p221 = scmp.ne.s32.totalorder %s209, %s210
      %p222 = scmp.eq.s32.totalorder %s32, 1
      %p223 = por %p221, %p222
      %p225 = scmp.ne.s32.totalorder %s210, %s224
      %p226 = scmp.eq.s32.totalorder %s32, 0
      %p227 = por %p225, %p226
      %s229 = sadd.s32 %s228, 1
      %p232 = scmp.eq.s32.totalorder %s26, 1
      %p233 = scmp.ne.s32.totalorder %s228, %s230
      %p234 = scmp.eq.s32.totalorder %s26, 0
      %p235 = por %p233, %p234
      %p236 = scmp.ne.s32.totalorder %s228, %s230
      %p237 = scmp.eq.s32.totalorder %s31, 1
      %p238 = por %p236, %p237
      %p239 = scmp.ne.s32.totalorder %s230, %s231
      %p240 = scmp.eq.s32.totalorder %s31, 0
      %p241 = por %p239, %p240
      %p242 = scmp.ne.s32.totalorder %s230, %s231
      %p243 = scmp.eq.s32.totalorder %s32, 1
      %p244 = por %p242, %p243
      %p246 = scmp.ne.s32.totalorder %s231, %s245
      %p247 = scmp.eq.s32.totalorder %s32, 0
      %p248 = por %p246, %p247
      %s250 = sadd.s32 %s249, 1
      %p253 = scmp.eq.s32.totalorder %s26, 1
      %p254 = scmp.ne.s32.totalorder %s249, %s251
      %p255 = scmp.eq.s32.totalorder %s26, 0
      %p256 = por %p254, %p255
      %p257 = scmp.ne.s32.totalorder %s249, %s251
      %p258 = scmp.eq.s32.totalorder %s31, 1
      %p259 = por %p257, %p258
      %p260 = scmp.ne.s32.totalorder %s251, %s252
      %p261 = scmp.eq.s32.totalorder %s31, 0
      %p262 = por %p260, %p261
      %p263 = scmp.ne.s32.totalorder %s251, %s252
      %p264 = scmp.eq.s32.totalorder %s32, 1
      %p265 = por %p263, %p264
      %p267 = scmp.ne.s32.totalorder %s252, %s266
      %p268 = scmp.eq.s32.totalorder %s32, 0
      %p269 = por %p267, %p268
      %s271 = sadd.s32 %s270, 1
      %p274 = scmp.eq.s32.totalorder %s26, 1
      %p275 = scmp.ne.s32.totalorder %s270, %s272
      %p276 = scmp.eq.s32.totalorder %s26, 0
      %p277 = por %p275, %p276
      %p278 = scmp.ne.s32.totalorder %s270, %s272
      %p279 = scmp.eq.s32.totalorder %s31, 1
      %p280 = por %p278, %p279
      %p281 = scmp.ne.s32.totalorder %s272, %s273
      %p282 = scmp.eq.s32.totalorder %s31, 0
      %p283 = por %p281, %p282
      %p284 = scmp.ne.s32.totalorder %s272, %s273
      %p285 = scmp.eq.s32.totalorder %s32, 1
      %p286 = por %p284, %p285
      %p288 = scmp.ne.s32.totalorder %s273, %s287
      %p289 = scmp.eq.s32.totalorder %s32, 0
      %p290 = por %p288, %p289
      %s292 = sadd.s32 %s291, 1
      %p295 = scmp.eq.s32.totalorder %s26, 1
      %p296 = scmp.ne.s32.totalorder %s291, %s293
      %p297 = scmp.eq.s32.totalorder %s26, 0
      %p298 = por %p296, %p297
      %p299 = scmp.ne.s32.totalorder %s291, %s293
      %p300 = scmp.eq.s32.totalorder %s31, 1
      %p301 = por %p299, %p300
      %p302 = scmp.ne.s32.totalorder %s293, %s294
      %p303 = scmp.eq.s32.totalorder %s31, 0
      %p304 = por %p302, %p303
      %p305 = scmp.ne.s32.totalorder %s293, %s294
      %p306 = scmp.eq.s32.totalorder %s32, 1
      %p307 = por %p305, %p306
      %p309 = scmp.ne.s32.totalorder %s294, %s308
      %p310 = scmp.eq.s32.totalorder %s32, 0
      %p311 = por %p309, %p310
      %s313 = sadd.s32 %s312, 1
      %p316 = scmp.eq.s32.totalorder %s26, 1
      %p317 = scmp.ne.s32.totalorder %s312, %s314
      %p318 = scmp.eq.s32.totalorder %s26, 0
      %p319 = por %p317, %p318
      %p320 = scmp.ne.s32.totalorder %s312, %s314
      %p321 = scmp.eq.s32.totalorder %s31, 1
      %p322 = por %p320, %p321
      %p323 = scmp.ne.s32.totalorder %s314, %s315
      %p324 = scmp.eq.s32.totalorder %s31, 0
      %p325 = por %p323, %p324
      %p326 = scmp.ne.s32.totalorder %s314, %s315
      %p327 = scmp.eq.s32.totalorder %s32, 1
      %p328 = por %p326, %p327
      %p330 = scmp.ne.s32.totalorder %s315, %s329
      %p331 = scmp.eq.s32.totalorder %s32, 0
      %p332 = por %p330, %p331
      %s334 = sadd.s32 %s333, 1
      %p337 = scmp.eq.s32.totalorder %s26, 1
      %p338 = scmp.ne.s32.totalorder %s333, %s335
      %p339 = scmp.eq.s32.totalorder %s26, 0
      %p340 = por %p338, %p339
      %p341 = scmp.ne.s32.totalorder %s333, %s335
      %p342 = scmp.eq.s32.totalorder %s31, 1
      %p343 = por %p341, %p342
      %p344 = scmp.ne.s32.totalorder %s335, %s336
      %p345 = scmp.eq.s32.totalorder %s31, 0
      %p346 = por %p344, %p345
      %p347 = scmp.ne.s32.totalorder %s335, %s336
      %p348 = scmp.eq.s32.totalorder %s32, 1
      %p349 = por %p347, %p348
      %p351 = scmp.ne.s32.totalorder %s336, %s350
      %p352 = scmp.eq.s32.totalorder %s32, 0
      %p353 = por %p351, %p352
      %s355 = sadd.s32 %s354, 1
      %p358 = scmp.eq.s32.totalorder %s26, 1
      %p359 = scmp.ne.s32.totalorder %s354, %s356
      %p360 = scmp.eq.s32.totalorder %s26, 0
      %p361 = por %p359, %p360
      %p362 = scmp.ne.s32.totalorder %s354, %s356
      %p363 = scmp.eq.s32.totalorder %s31, 1
      %p364 = por %p362, %p363
      %p365 = scmp.ne.s32.totalorder %s356, %s357
      %p366 = scmp.eq.s32.totalorder %s31, 0
      %p367 = por %p365, %p366
      %p368 = scmp.ne.s32.totalorder %s356, %s357
      %p369 = scmp.eq.s32.totalorder %s32, 1
      %p370 = por %p368, %p369
      %p372 = scmp.ne.s32.totalorder %s357, %s371
      %p373 = scmp.eq.s32.totalorder %s32, 0
      %p374 = por %p372, %p373
      %s376 = sadd.s32 %s375, 1
      %p379 = scmp.eq.s32.totalorder %s26, 1
      %p380 = scmp.ne.s32.totalorder %s375, %s377
      %p381 = scmp.eq.s32.totalorder %s26, 0
      %p382 = por %p380, %p381
      %p383 = scmp.ne.s32.totalorder %s375, %s377
      %p384 = scmp.eq.s32.totalorder %s31, 1
      %p385 = por %p383, %p384
      %p386 = scmp.ne.s32.totalorder %s377, %s378
      %p387 = scmp.eq.s32.totalorder %s31, 0
      %p388 = por %p386, %p387
      %p389 = scmp.ne.s32.totalorder %s377, %s378
      %p390 = scmp.eq.s32.totalorder %s32, 1
      %p391 = por %p389, %p390
      %p393 = scmp.ne.s32.totalorder %s378, %s392
      %p394 = scmp.eq.s32.totalorder %s32, 0
      %p395 = por %p393, %p394
      %s396 = ssub.s32 %s26, %s33
      %p397 = scmp.eq.s32.totalorder %s396, 0
      %s399 = sadd.s32 %s398, 1
      %s400 = scalar_select %p397, %s398, %s399
      %p403 = pneg %p397
      %p404 = scmp.eq.s32.totalorder %s26, 1
      %p405 = por %p403, %p404
      %p406 = scmp.ne.s32.totalorder %s398, %s401
      %p407 = scmp.eq.s32.totalorder %s26, 0
      %p408 = por %p406, %p407
      %p409 = scmp.ne.s32.totalorder %s398, %s401
      %p410 = scmp.eq.s32.totalorder %s31, 1
      %p411 = por %p409, %p410
      %p412 = scmp.ne.s32.totalorder %s401, %s402
      %p413 = scmp.eq.s32.totalorder %s31, 0
      %p414 = por %p412, %p413
      %p415 = scmp.ne.s32.totalorder %s401, %s402
      %p416 = scmp.eq.s32.totalorder %s32, 1
      %p417 = por %p415, %p416
      %p419 = scmp.ne.s32.totalorder %s402, %s418
      %p420 = scmp.eq.s32.totalorder %s32, 0
      %p421 = por %p419, %p420
      %p422 = scmp.le.s32.totalorder 1, %s26
      %p423 = scmp.lt.s32.totalorder %s26, 3
      %p424 = pnand %p422, %p423
      %p425 = pneg %p424
      // Predicated region
      $region9: #{hnn_forward.1} parent=5 // pred_check
        _
      $region10: #{hnn_forward.1} parent=5 // pred_check_branch
        %427 = sbr.rel (%p424) target = $region12
      $region11: #{hnn_forward.1} parent=5 // pred_region
        %s428 = ssub.s32 %s26, 1
        // Predicated region
        $region13: #{hnn_forward.1} parent=11 // pred_check
          %p429 = pneg %p73
        $region14: #{hnn_forward.1} parent=11 // pred_check_branch
          %431 = sbr.rel (%p429) target = $region16
        $region15: #{hnn_forward.1} parent=11 // pred_region
          _
        $region16: #{hnn_forward.1} parent=11 // pred_fallthru
          _
        // Predicated region
        $region17: #{hnn_forward.1} parent=11 // pred_check
          %p432 = pneg %p94
        $region18: #{hnn_forward.1} parent=11 // pred_check_branch
          %434 = sbr.rel (%p432) target = $region20
        $region19: #{hnn_forward.1} parent=11 // pred_region
          _
        $region20: #{hnn_forward.1} parent=11 // pred_fallthru
          _
        // Predicated region
        $region21: #{hnn_forward.1} parent=11 // pred_check
          %p435 = pneg %p115
        $region22: #{hnn_forward.1} parent=11 // pred_check_branch
          %437 = sbr.rel (%p435) target = $region24
        $region23: #{hnn_forward.1} parent=11 // pred_region
          _
        $region24: #{hnn_forward.1} parent=11 // pred_fallthru
          _
        // Predicated region
        $region25: #{hnn_forward.1} parent=11 // pred_check
          %p438 = pneg %p136
        $region26: #{hnn_forward.1} parent=11 // pred_check_branch
          %440 = sbr.rel (%p438) target = $region28
        $region27: #{hnn_forward.1} parent=11 // pred_region
          _
        $region28: #{hnn_forward.1} parent=11 // pred_fallthru
          _
        // Predicated region
        $region29: #{hnn_forward.1} parent=11 // pred_check
          %p441 = pneg %p157
        $region30: #{hnn_forward.1} parent=11 // pred_check_branch
          %443 = sbr.rel (%p441) target = $region32
        $region31: #{hnn_forward.1} parent=11 // pred_region
          _
        $region32: #{hnn_forward.1} parent=11 // pred_fallthru
          _
        // Predicated region
        $region33: #{hnn_forward.1} parent=11 // pred_check
          %p444 = pneg %p178
        $region34: #{hnn_forward.1} parent=11 // pred_check_branch
          %446 = sbr.rel (%p444) target = $region36
        $region35: #{hnn_forward.1} parent=11 // pred_region
          _
        $region36: #{hnn_forward.1} parent=11 // pred_fallthru
          _
        // Predicated region
        $region37: #{hnn_forward.1} parent=11 // pred_check
          %p447 = pneg %p199
        $region38: #{hnn_forward.1} parent=11 // pred_check_branch
          %449 = sbr.rel (%p447) target = $region40
        $region39: #{hnn_forward.1} parent=11 // pred_region
          _
        $region40: #{hnn_forward.1} parent=11 // pred_fallthru
          _
        // Predicated region
        $region41: #{hnn_forward.1} parent=11 // pred_check
          %p450 = pneg %p220
        $region42: #{hnn_forward.1} parent=11 // pred_check_branch
          %452 = sbr.rel (%p450) target = $region44
        $region43: #{hnn_forward.1} parent=11 // pred_region
          _
        $region44: #{hnn_forward.1} parent=11 // pred_fallthru
          _
        // Predicated region
        $region45: #{hnn_forward.1} parent=11 // pred_check
          %p453 = pneg %p241
        $region46: #{hnn_forward.1} parent=11 // pred_check_branch
          %455 = sbr.rel (%p453) target = $region48
        $region47: #{hnn_forward.1} parent=11 // pred_region
          _
        $region48: #{hnn_forward.1} parent=11 // pred_fallthru
          _
        // Predicated region
        $region49: #{hnn_forward.1} parent=11 // pred_check
          %p456 = pneg %p262
        $region50: #{hnn_forward.1} parent=11 // pred_check_branch
          %458 = sbr.rel (%p456) target = $region52
        $region51: #{hnn_forward.1} parent=11 // pred_region
          _
        $region52: #{hnn_forward.1} parent=11 // pred_fallthru
          _
        // Predicated region
        $region53: #{hnn_forward.1} parent=11 // pred_check
          %p459 = pneg %p283
        $region54: #{hnn_forward.1} parent=11 // pred_check_branch
          %461 = sbr.rel (%p459) target = $region56
        $region55: #{hnn_forward.1} parent=11 // pred_region
          _
        $region56: #{hnn_forward.1} parent=11 // pred_fallthru
          _
        // Predicated region
        $region57: #{hnn_forward.1} parent=11 // pred_check
          %p462 = pneg %p304
        $region58: #{hnn_forward.1} parent=11 // pred_check_branch
          %464 = sbr.rel (%p462) target = $region60
        $region59: #{hnn_forward.1} parent=11 // pred_region
          _
        $region60: #{hnn_forward.1} parent=11 // pred_fallthru
          _
        // Predicated region
        $region61: #{hnn_forward.1} parent=11 // pred_check
          %p465 = pneg %p325
        $region62: #{hnn_forward.1} parent=11 // pred_check_branch
          %467 = sbr.rel (%p465) target = $region64
        $region63: #{hnn_forward.1} parent=11 // pred_region
          _
        $region64: #{hnn_forward.1} parent=11 // pred_fallthru
          _
        // Predicated region
        $region65: #{hnn_forward.1} parent=11 // pred_check
          %p468 = pneg %p346
        $region66: #{hnn_forward.1} parent=11 // pred_check_branch
          %470 = sbr.rel (%p468) target = $region68
        $region67: #{hnn_forward.1} parent=11 // pred_region
          _
        $region68: #{hnn_forward.1} parent=11 // pred_fallthru
          _
        // Predicated region
        $region69: #{hnn_forward.1} parent=11 // pred_check
          %p471 = pneg %p367
        $region70: #{hnn_forward.1} parent=11 // pred_check_branch
          %473 = sbr.rel (%p471) target = $region72
        $region71: #{hnn_forward.1} parent=11 // pred_region
          _
        $region72: #{hnn_forward.1} parent=11 // pred_fallthru
          _
        // Predicated region
        $region73: #{hnn_forward.1} parent=11 // pred_check
          %p474 = pneg %p388
        $region74: #{hnn_forward.1} parent=11 // pred_check_branch
          %476 = sbr.rel (%p474) target = $region76
        $region75: #{hnn_forward.1} parent=11 // pred_region
          _
        $region76: #{hnn_forward.1} parent=11 // pred_fallthru
          _
      $region12: #{hnn_forward.1} parent=5 // pred_fallthru
        _
      %p477 = scmp.lt.s32.totalorder %s26, 2
      // Predicated region
      $region77: #{hnn_forward.1} parent=5 // pred_check
        %p478 = pneg %p477
      $region78: #{hnn_forward.1} parent=5 // pred_check_branch
        %480 = sbr.rel (%p478) target = $region80
      $region79: #{hnn_forward.1} parent=5 // pred_region
        // Predicated region
        $region81: #{hnn_forward.1} parent=79 // pred_check
          %p481 = pneg %p46
        $region82: #{hnn_forward.1} parent=79 // pred_check_branch
          %483 = sbr.rel (%p481) target = $region84
        $region83: #{hnn_forward.1} parent=79 // pred_region
          %p484 = scmp.lt.s32.totalorder %s26, 1
          %s485 = scalar_select %p484, %s26, 1
          %s486 = smul.addr %s485, 8
          %s487 = smul.addr %s486, 2
          %s488 = scalar_lea.vmem %s0, %s487
        $region84: #{hnn_forward.1} parent=79 // pred_fallthru
          _
      $region80: #{hnn_forward.1} parent=5 // pred_fallthru
        _
      %p489 = scmp.le.s32.totalorder 1, %s26
      %p490 = scmp.lt.s32.totalorder %s26, 3
      %p491 = pnand %p489, %p490
      %p492 = pneg %p491
      // Predicated region
      $region85: #{hnn_forward.1} parent=5 // pred_check
        _
      $region86: #{hnn_forward.1} parent=5 // pred_check_branch
        %494 = sbr.rel (%p491) target = $region88
      $region87: #{hnn_forward.1} parent=5 // pred_region
        %s495 = ssub.s32 %s26, 1
        %p496 = scmp.lt.s32.totalorder %s31, 1
        %s497 = scalar_select %p496, %s31, 1
        %s498 = smul.addr %s497, 8
        %s499 = smul.addr %s498, 2
        %s500 = scalar_lea.vmem %s0, %s499
        %p501 = pneg %p52
        %p502 = pneg %p49
        %p503 = pneg %p73
        %p504 = pneg %p70
        %p505 = pneg %p94
        %p506 = pneg %p91
        %p507 = pneg %p115
        %p508 = pneg %p112
        %p509 = pneg %p136
        %p510 = pneg %p133
        %p511 = pneg %p157
        %p512 = pneg %p154
        %p513 = pneg %p178
        %p514 = pneg %p175
        %p515 = pneg %p199
        %p516 = pneg %p196
        %p517 = pneg %p220
        %p518 = pneg %p217
        %p519 = pneg %p241
        %p520 = pneg %p238
        %p521 = pneg %p262
        %p522 = pneg %p259
        %p523 = pneg %p283
        %p524 = pneg %p280
        %p525 = pneg %p304
        %p526 = pneg %p301
        %p527 = pneg %p325
        %p528 = pneg %p322
        %p529 = pneg %p346
        %p530 = pneg %p343
        %p531 = pneg %p367
        %p532 = pneg %p364
        %p533 = pneg %p388
        %p534 = pneg %p385
        %p535 = pneg %p414
        %p536 = pneg %p411
        %s537 = sand.u32 %s401, 1
        %s538 = scalar_lea.sflag [#allocation8], %s537
        %s539 = sand.u32 %s401, 1
        %s540 = scalar_lea.vmem [#allocation7], %s539
        %p541 = scmp.lt.s32.totalorder %s31, 1
        %s542 = scalar_select %p541, %s31, 1
        %s543 = smul.addr %s542, 8
        %s544 = smul.addr %s543, 2
        %s545 = scalar_lea.vmem %s0, %s544
        %vm546 = vcmask 1041408
        %vm547 = vcmask 1043458
        %vm548 = vmor %vm547, %vm546
        %vm549 = vcmask 275460
        %vm550 = vmor %vm549, %vm548
        %551 = vst.msk [vmem:[#allocation2] sm:$0x3f] %vm550, 0.0
        %552 = vst [vmem:[#allocation3] sm:$0xff] 0.0
        %vm553 = vcmask 273408
        %554 = vst.msk [vmem:[#allocation3 + $0x8] sm:$0xf] %vm553, 0.0
        %vm555 = vcmask 670720
        %556 = vst.msk [vmem:[#allocation4] sm:$0xff] %vm555, 0.0
        %vm557 = vcmask 666624
        %558 = vst.msk [vmem:[#allocation5] sm:$0xf] %vm557, 0.0
        %v559 = vld [vmem:[%s545] sm:$0xf]
        %561 = vrot.lane.b32.xlu0 %v559, 17
        %v562 = vpop.permute.xlu0 %561
        %v563 = vrot.slane %v562, 6
        %vm564 = vcmask 138240
        %v565 = vsel %vm564, %v563, %v562
        %vm567 = vcmask 1041544
        %vm568 = vmor %vm547, %vm567
        %vm569 = vcmask 136196
        %vm570 = vmor %vm569, %vm568
        %571 = vst.msk [vmem:[#allocation2] sm:$0x3f] %vm570, %v565
        %v572 = vld [vmem:[#allocation2] sm:$0xf]
        %v573 = vld [vmem:[%s6] ss:$8 sm:$0x3]
        %v575 = vlaneseq
        %v576 = vshrl.u32 %v575, 7
        %v577 = vsub.s32 0, %v576
        %v578 = vrot.slane %v573, %v577
        %v579 = vlaneseq
        %v580 = vshrl.u32 %v579, 7
        %v581 = vsub.s32 1, %v580
        %v582 = vrot.slane %v573, %v581
        %v583 = vcombine.low %v578, %v582
        %v585 = vunpack.c.l.s4 1983009808
        %v586 = vunpack.c.0.s8 %v585
        %v587 = vlaneseq
        %v588 = vshrl.u32 %v587, 7
        %v589 = vsub.s32 %v586, %v588
        %v590 = vrot.slane %v583, %v589
        %v592 = vmul.f32 %v572, %v590
        %v593 = vld [vmem:[#allocation2] sm:$0x3f]
        %s594 = scalar_lea.vmem %s6, 1
        %v595 = vld [vmem:[%s594] ss:$8 sm:$0x3]
        %v597 = vlaneseq
        %v598 = vshrl.u32 %v597, 7
        %v599 = vsub.s32 0, %v598
        %v600 = vrot.slane %v595, %v599
        %v601 = vlaneseq
        %v602 = vshrl.u32 %v601, 7
        %v603 = vsub.s32 1, %v602
        %v604 = vrot.slane %v595, %v603
        %v605 = vcombine.low %v600, %v604
        %v607 = vunpack.c.l.s4 1983009808
        %v608 = vunpack.c.0.s8 %v607
        %v609 = vlaneseq
        %v610 = vshrl.u32 %v609, 7
        %v611 = vsub.s32 %v608, %v610
        %v612 = vrot.slane %v605, %v611
        %613 = vrot.lane.b32.xlu0 %v612, 1
        %v614 = vpop.permute.xlu0 %613
        %v615 = vrot.slane %v614, 6
        %vm616 = vcmask 7168
        %v617 = vsel %vm616, %v615, %v614
        %v619 = vmul.f32 %v593, %v617
        %s620 = scalar_lea.vmem %s6, 2
        %v621 = vld [vmem:[%s620] ss:$8 sm:$0x3]
        %v623 = vlaneseq
        %v624 = vshrl.u32 %v623, 7
        %v625 = vsub.s32 0, %v624
        %v626 = vrot.slane %v621, %v625
        %v627 = vlaneseq
        %v628 = vshrl.u32 %v627, 7
        %v629 = vsub.s32 1, %v628
        %v630 = vrot.slane %v621, %v629
        %v631 = vcombine.low %v626, %v630
        %v633 = vunpack.c.l.s4 1983009808
        %v634 = vunpack.c.0.s8 %v633
        %v635 = vlaneseq
        %v636 = vshrl.u32 %v635, 7
        %v637 = vsub.s32 %v634, %v636
        %v638 = vrot.slane %v631, %v637
        %639 = vrot.lane.b32.xlu0 %v638, 2
        %v640 = vpop.permute.xlu0 %639
        %v641 = vrot.slane %v640, 6
        %vm642 = vcmask 15360
        %v643 = vsel %vm642, %v641, %v640
        %v645 = vmul.f32 %v593, %v643
        %s646 = scalar_lea.vmem %s6, 3
        %v647 = vld [vmem:[%s646] ss:$8 sm:$0x3]
        %v649 = vlaneseq
        %v650 = vshrl.u32 %v649, 7
        %v651 = vsub.s32 0, %v650
        %v652 = vrot.slane %v647, %v651
        %v653 = vlaneseq
        %v654 = vshrl.u32 %v653, 7
        %v655 = vsub.s32 1, %v654
        %v656 = vrot.slane %v647, %v655
        %v657 = vcombine.low %v652, %v656
        %v659 = vunpack.c.l.s4 1983009808
        %v660 = vunpack.c.0.s8 %v659
        %v661 = vlaneseq
        %v662 = vshrl.u32 %v661, 7
        %v663 = vsub.s32 %v660, %v662
        %v664 = vrot.slane %v657, %v663
        %665 = vrot.lane.b32.xlu0 %v664, 16
        %v666 = vpop.permute.xlu0 %665
        %v667 = vrot.slane %v666, 6
        %vm668 = vcmask 130048
        %v669 = vsel %vm668, %v667, %v666
        %v671 = vmul.f32 %v593, %v669
        %s672 = scalar_lea.vmem %s6, 4
        %v673 = vld [vmem:[%s672] ss:$8 sm:$0x3]
        %v675 = vlaneseq
        %v676 = vshrl.u32 %v675, 7
        %v677 = vsub.s32 0, %v676
        %v678 = vrot.slane %v673, %v677
        %v679 = vlaneseq
        %v680 = vshrl.u32 %v679, 7
        %v681 = vsub.s32 1, %v680
        %v682 = vrot.slane %v673, %v681
        %v683 = vcombine.low %v678, %v682
        %v685 = vunpack.c.l.s4 1983009808
        %v686 = vunpack.c.0.s8 %v685
        %v687 = vlaneseq
        %v688 = vshrl.u32 %v687, 7
        %v689 = vsub.s32 %v686, %v688
        %v690 = vrot.slane %v683, %v689
        %691 = vrot.lane.b32.xlu0 %v690, 17
        %v692 = vpop.permute.xlu0 %691
        %v693 = vrot.slane %v692, 6
        %v694 = vsel %vm564, %v693, %v692
        %v696 = vmul.f32 %v593, %v694
        %s697 = scalar_lea.vmem %s6, 5
        %v698 = vld [vmem:[%s697] ss:$8 sm:$0x3]
        %v700 = vlaneseq
        %v701 = vshrl.u32 %v700, 7
        %v702 = vsub.s32 0, %v701
        %v703 = vrot.slane %v698, %v702
        %v704 = vlaneseq
        %v705 = vshrl.u32 %v704, 7
        %v706 = vsub.s32 1, %v705
        %v707 = vrot.slane %v698, %v706
        %v708 = vcombine.low %v703, %v707
        %v710 = vunpack.c.l.s4 1983009808
        %v711 = vunpack.c.0.s8 %v710
        %v712 = vlaneseq
        %v713 = vshrl.u32 %v712, 7
        %v714 = vsub.s32 %v711, %v713
        %v715 = vrot.slane %v708, %v714
        %716 = vrot.lane.b32.xlu0 %v715, 18
        %v717 = vpop.permute.xlu0 %716
        %v718 = vrot.slane %v717, 6
        %vm719 = vcmask 146432
        %v720 = vsel %vm719, %v718, %v717
        %v722 = vmul.f32 %v593, %v720
        %s723 = scalar_lea.vmem %s6, 6
        %v724 = vld [vmem:[%s723] ss:$8 sm:$0x3]
        %v726 = vlaneseq
        %v727 = vshrl.u32 %v726, 7
        %v728 = vsub.s32 0, %v727
        %v729 = vrot.slane %v724, %v728
        %v730 = vlaneseq
        %v731 = vshrl.u32 %v730, 7
        %v732 = vsub.s32 1, %v731
        %v733 = vrot.slane %v724, %v732
        %v734 = vcombine.low %v729, %v733
        %v736 = vunpack.c.l.s4 1983009808
        %v737 = vunpack.c.0.s8 %v736
        %v738 = vlaneseq
        %v739 = vshrl.u32 %v738, 7
        %v740 = vsub.s32 %v737, %v739
        %v741 = vrot.slane %v734, %v740
        %742 = vrot.lane.b32.xlu0 %v741, 32
        %v743 = vpop.permute.xlu0 %742
        %v744 = vrot.slane %v743, 6
        %vm745 = vcmask 261120
        %v746 = vsel %vm745, %v744, %v743
        %v748 = vmul.f32 %v593, %v746
        %s749 = scalar_lea.vmem %s6, 7
        %v750 = vld [vmem:[%s749] ss:$8 sm:$0x3]
        %v752 = vlaneseq
        %v753 = vshrl.u32 %v752, 7
        %v754 = vsub.s32 0, %v753
        %v755 = vrot.slane %v750, %v754
        %v756 = vlaneseq
        %v757 = vshrl.u32 %v756, 7
        %v758 = vsub.s32 1, %v757
        %v759 = vrot.slane %v750, %v758
        %v760 = vcombine.low %v755, %v759
        %v762 = vunpack.c.l.s4 1983009808
        %v763 = vunpack.c.0.s8 %v762
        %v764 = vlaneseq
        %v765 = vshrl.u32 %v764, 7
        %v766 = vsub.s32 %v763, %v765
        %v767 = vrot.slane %v760, %v766
        %768 = vrot.lane.b32.xlu0 %v767, 33
        %v769 = vpop.permute.xlu0 %768
        %v770 = vrot.slane %v769, 6
        %vm771 = vcmask 269312
        %v772 = vsel %vm771, %v770, %v769
        %v774 = vmul.f32 %v593, %v772
        %s775 = scalar_lea.vmem %s6, 16
        %v776 = vld [vmem:[%s775] ss:$8 sm:$0x3]
        %v778 = vlaneseq
        %v779 = vshrl.u32 %v778, 7
        %v780 = vsub.s32 0, %v779
        %v781 = vrot.slane %v776, %v780
        %v782 = vlaneseq
        %v783 = vshrl.u32 %v782, 7
        %v784 = vsub.s32 1, %v783
        %v785 = vrot.slane %v776, %v784
        %v786 = vcombine.low %v781, %v785
        %v788 = vunpack.c.l.s4 1983009808
        %v789 = vunpack.c.0.s8 %v788
        %v790 = vlaneseq
        %v791 = vshrl.u32 %v790, 7
        %v792 = vsub.s32 %v789, %v791
        %v793 = vrot.slane %v786, %v792
        %794 = vrot.lane.b32.xlu0 %v793, 34
        %v795 = vpop.permute.xlu0 %794
        %v796 = vrot.slane %v795, 6
        %vm797 = vcmask 277504
        %v798 = vsel %vm797, %v796, %v795
        %v800 = vmul.f32 %v593, %v798
        %v803 = vunpack.c.l.s4 1983009808
        %v804 = vunpack.c.0.s8 %v803
        %v805 = vlaneseq
        %v806 = vshrl.u32 %v805, 7
        %v807 = vsub.s32 %v804, %v806
        %v808 = vrot.slane %v592, %v807
        %v809 = vcombine.high %v808, %v808
        %v813 = vcombine.low %v619, %v619
        %v815 = vunpack.c.l.s4 1983009808
        %v816 = vunpack.c.0.s8 %v815
        %v817 = vlaneseq
        %v818 = vshrl.u32 %v817, 7
        %v819 = vsub.s32 %v816, %v818
        %v820 = vrot.slane %v813, %v819
        %v822 = vunpack.c.l.s4 1983009808
        %v823 = vunpack.c.0.s8 %v822
        %v824 = vlaneseq
        %v825 = vshrl.u32 %v824, 7
        %v826 = vsub.s32 %v823, %v825
        %v827 = vrot.slane %v619, %v826
        %v828 = vcombine.high %v820, %v820
        %829 = vrot.lane.b32.xlu0 %v820, 127
        %v830 = vpop.permute.xlu0 %829
        %831 = vrot.lane.b32.xlu0 %v828, 127
        %v832 = vpop.permute.xlu0 %831
        %833 = vrot.lane.b32.xlu0 %v827, 127
        %v834 = vpop.permute.xlu0 %833
        %vm835 = vcmask 1039360
        %v836 = vsel %vm835, %v830, %v832
        %v837 = vsel %vm835, %v832, %v834
        %v841 = vcombine.high %v645, %v645
        %v843 = vunpack.c.l.s4 1983009808
        %v844 = vunpack.c.0.s8 %v843
        %v845 = vlaneseq
        %v846 = vshrl.u32 %v845, 7
        %v847 = vsub.s32 %v844, %v846
        %v848 = vrot.slane %v645, %v847
        %v850 = vunpack.c.l.s4 1983009808
        %v851 = vunpack.c.0.s8 %v850
        %v852 = vlaneseq
        %v853 = vshrl.u32 %v852, 7
        %v854 = vsub.s32 %v851, %v853
        %v855 = vrot.slane %v841, %v854
        %v856 = vcombine.low %v848, %v848
        %v857 = vcombine.low %v855, %v855
        %858 = vrot.lane.b32.xlu0 %v856, 126
        %v859 = vpop.permute.xlu0 %858
        %860 = vrot.lane.b32.xlu0 %v848, 126
        %v861 = vpop.permute.xlu0 %860
        %862 = vrot.lane.b32.xlu0 %v857, 126
        %v863 = vpop.permute.xlu0 %862
        %vm864 = vcmask 1031168
        %v865 = vsel %vm864, %v859, %v861
        %v866 = vsel %vm864, %v861, %v863
        %v870 = vcombine.low %v671, %v671
        %v872 = vunpack.c.l.s4 1983009808
        %v873 = vunpack.c.0.s8 %v872
        %v874 = vlaneseq
        %v875 = vshrl.u32 %v874, 7
        %v876 = vsub.s32 %v873, %v875
        %v877 = vrot.slane %v870, %v876
        %v879 = vunpack.c.l.s4 1983009808
        %v880 = vunpack.c.0.s8 %v879
        %v881 = vlaneseq
        %v882 = vshrl.u32 %v881, 7
        %v883 = vsub.s32 %v880, %v882
        %v884 = vrot.slane %v671, %v883
        %v885 = vcombine.low %v877, %v877
        %v886 = vcombine.low %v884, %v884
        %887 = vrot.lane.b32.xlu0 %v885, 112
        %v888 = vpop.permute.xlu0 %887
        %889 = vrot.lane.b32.xlu0 %v877, 112
        %v890 = vpop.permute.xlu0 %889
        %891 = vrot.lane.b32.xlu0 %v886, 112
        %v892 = vpop.permute.xlu0 %891
        %vm893 = vcmask 916480
        %v894 = vsel %vm893, %v888, %v890
        %v895 = vsel %vm893, %v890, %v892
        %v899 = vcombine.high %v696, %v696
        %v901 = vunpack.c.l.s4 1983009808
        %v902 = vunpack.c.0.s8 %v901
        %v903 = vlaneseq
        %v904 = vshrl.u32 %v903, 7
        %v905 = vsub.s32 %v902, %v904
        %v906 = vrot.slane %v696, %v905
        %v908 = vunpack.c.l.s4 1983009808
        %v909 = vunpack.c.0.s8 %v908
        %v910 = vlaneseq
        %v911 = vshrl.u32 %v910, 7
        %v912 = vsub.s32 %v909, %v911
        %v913 = vrot.slane %v899, %v912
        %v914 = vcombine.high %v906, %v906
        %915 = vrot.lane.b32.xlu0 %v906, 111
        %v916 = vpop.permute.xlu0 %915
        %917 = vrot.lane.b32.xlu0 %v914, 111
        %v918 = vpop.permute.xlu0 %917
        %919 = vrot.lane.b32.xlu0 %v913, 111
        %v920 = vpop.permute.xlu0 %919
        %vm921 = vcmask 908288
        %v922 = vsel %vm921, %v916, %v918
        %v923 = vsel %vm921, %v918, %v920
        %v927 = vcombine.low %v722, %v722
        %v929 = vunpack.c.l.s4 1983009808
        %v930 = vunpack.c.0.s8 %v929
        %v931 = vlaneseq
        %v932 = vshrl.u32 %v931, 7
        %v933 = vsub.s32 %v930, %v932
        %v934 = vrot.slane %v927, %v933
        %v936 = vunpack.c.l.s4 1983009808
        %v937 = vunpack.c.0.s8 %v936
        %v938 = vlaneseq
        %v939 = vshrl.u32 %v938, 7
        %v940 = vsub.s32 %v937, %v939
        %v941 = vrot.slane %v722, %v940
        %v942 = vcombine.high %v934, %v934
        %943 = vrot.lane.b32.xlu0 %v934, 110
        %v944 = vpop.permute.xlu0 %943
        %945 = vrot.lane.b32.xlu0 %v942, 110
        %v946 = vpop.permute.xlu0 %945
        %947 = vrot.lane.b32.xlu0 %v941, 110
        %v948 = vpop.permute.xlu0 %947
        %vm949 = vcmask 900096
        %v950 = vsel %vm949, %v944, %v946
        %v951 = vsel %vm949, %v946, %v948
        %v955 = vcombine.high %v748, %v748
        %v957 = vunpack.c.l.s4 1983009808
        %v958 = vunpack.c.0.s8 %v957
        %v959 = vlaneseq
        %v960 = vshrl.u32 %v959, 7
        %v961 = vsub.s32 %v958, %v960
        %v962 = vrot.slane %v748, %v961
        %v964 = vunpack.c.l.s4 1983009808
        %v965 = vunpack.c.0.s8 %v964
        %v966 = vlaneseq
        %v967 = vshrl.u32 %v966, 7
        %v968 = vsub.s32 %v965, %v967
        %v969 = vrot.slane %v955, %v968
        %v970 = vcombine.low %v962, %v962
        %v971 = vcombine.low %v969, %v969
        %972 = vrot.lane.b32.xlu0 %v970, 96
        %v973 = vpop.permute.xlu0 %972
        %974 = vrot.lane.b32.xlu0 %v962, 96
        %v975 = vpop.permute.xlu0 %974
        %976 = vrot.lane.b32.xlu0 %v971, 96
        %v977 = vpop.permute.xlu0 %976
        %vm978 = vcmask 785408
        %v979 = vsel %vm978, %v973, %v975
        %v980 = vsel %vm978, %v975, %v977
        %v984 = vcombine.low %v774, %v774
        %v986 = vunpack.c.l.s4 1983009808
        %v987 = vunpack.c.0.s8 %v986
        %v988 = vlaneseq
        %v989 = vshrl.u32 %v988, 7
        %v990 = vsub.s32 %v987, %v989
        %v991 = vrot.slane %v984, %v990
        %v993 = vunpack.c.l.s4 1983009808
        %v994 = vunpack.c.0.s8 %v993
        %v995 = vlaneseq
        %v996 = vshrl.u32 %v995, 7
        %v997 = vsub.s32 %v994, %v996
        %v998 = vrot.slane %v774, %v997
        %v999 = vcombine.low %v991, %v991
        %v1000 = vcombine.low %v998, %v998
        %1001 = vrot.lane.b32.xlu0 %v999, 95
        %v1002 = vpop.permute.xlu0 %1001
        %1003 = vrot.lane.b32.xlu0 %v991, 95
        %v1004 = vpop.permute.xlu0 %1003
        %1005 = vrot.lane.b32.xlu0 %v1000, 95
        %v1006 = vpop.permute.xlu0 %1005
        %vm1007 = vcmask 777216
        %v1008 = vsel %vm1007, %v1002, %v1004
        %v1009 = vsel %vm1007, %v1004, %v1006
        %v1013 = vcombine.high %v800, %v800
        %v1015 = vunpack.c.l.s4 1983009808
        %v1016 = vunpack.c.0.s8 %v1015
        %v1017 = vlaneseq
        %v1018 = vshrl.u32 %v1017, 7
        %v1019 = vsub.s32 %v1016, %v1018
        %v1020 = vrot.slane %v800, %v1019
        %v1022 = vunpack.c.l.s4 1983009808
        %v1023 = vunpack.c.0.s8 %v1022
        %v1024 = vlaneseq
        %v1025 = vshrl.u32 %v1024, 7
        %v1026 = vsub.s32 %v1023, %v1025
        %v1027 = vrot.slane %v1013, %v1026
        %v1028 = vcombine.high %v1020, %v1020
        %1029 = vrot.lane.b32.xlu0 %v1020, 94
        %v1030 = vpop.permute.xlu0 %1029
        %1031 = vrot.lane.b32.xlu0 %v1028, 94
        %v1032 = vpop.permute.xlu0 %1031
        %1033 = vrot.lane.b32.xlu0 %v1027, 94
        %v1034 = vpop.permute.xlu0 %1033
        %vm1035 = vcmask 769024
        %v1036 = vsel %vm1035, %v1030, %v1032
        %v1037 = vsel %vm1035, %v1032, %v1034
        %v1038 = vsel %vm546, %v808, %v836
        %v1039 = vsel %vm546, %v809, %v837
        %vm1040 = vcmask 1043456
        %v1041 = vsel %vm1040, %v1038, %v865
        %v1042 = vsel %vm1040, %v1039, %v866
        %vm1043 = vcmask 1045504
        %v1044 = vsel %vm1043, %v1041, %v894
        %v1045 = vsel %vm1043, %v1042, %v895
        %v1046 = vsel %vm546, %v922, %v950
        %v1047 = vsel %vm546, %v923, %v951
        %v1048 = vsel %vm1040, %v1046, %v979
        %v1049 = vsel %vm1040, %v1047, %v980
        %v1050 = vsel %vm1043, %v1048, %v1008
        %v1051 = vsel %vm1043, %v1049, %v1009
        %vm1052 = vcmask 1043592
        %vm1053 = vcmask 1047556
        %vm1054 = vmor %vm1053, %vm1052
        %1055 = vst.msk [vmem:[#allocation3] sm:$0xff] %vm1054, 0.0
        %vm1056 = vcmask 134144
        %1057 = vst.msk [vmem:[#allocation3 + $0x8] sm:$0xf] %vm1056, 0.0
        %v1058 = vld [vmem:[#allocation3] sm:$0xff]
        %v1059 = vld [vmem:[%s6] ss:$8 sm:$0x3]
        %v1061 = vlaneseq
        %v1062 = vshrl.u32 %v1061, 7
        %v1063 = vsub.s32 0, %v1062
        %v1064 = vrot.slane %v1059, %v1063
        %v1065 = vlaneseq
        %v1066 = vshrl.u32 %v1065, 7
        %v1067 = vsub.s32 1, %v1066
        %v1068 = vrot.slane %v1059, %v1067
        %v1069 = vcombine.low %v1064, %v1068
        %v1071 = vmul.f32 %v1058, %v1069
        %v1072 = vld [vmem:[#allocation3 + $0x8] sm:$0xf]
        %v1073 = vld [vmem:[%s594] ss:$8 sm:$0x3]
        %v1075 = vlaneseq
        %v1076 = vshrl.u32 %v1075, 7
        %v1077 = vsub.s32 0, %v1076
        %v1078 = vrot.slane %v1073, %v1077
        %v1079 = vlaneseq
        %v1080 = vshrl.u32 %v1079, 7
        %v1081 = vsub.s32 1, %v1080
        %v1082 = vrot.slane %v1073, %v1081
        %v1083 = vcombine.low %v1078, %v1082
        %1084 = vrot.lane.b32.xlu0 %v1083, 1
        %v1085 = vpop.permute.xlu0 %1084
        %v1086 = vrot.slane %v1085, 4
        %v1087 = vsel %vm616, %v1086, %v1085
        %v1090 = vmul.f32 %v1058, %v1087
        %v1091 = vmul.f32 %v1072, %v1086
        %v1092 = vld [vmem:[%s620] ss:$8 sm:$0x3]
        %v1094 = vlaneseq
        %v1095 = vshrl.u32 %v1094, 7
        %v1096 = vsub.s32 0, %v1095
        %v1097 = vrot.slane %v1092, %v1096
        %v1098 = vlaneseq
        %v1099 = vshrl.u32 %v1098, 7
        %v1100 = vsub.s32 1, %v1099
        %v1101 = vrot.slane %v1092, %v1100
        %v1102 = vcombine.low %v1097, %v1101
        %1103 = vrot.lane.b32.xlu0 %v1102, 2
        %v1104 = vpop.permute.xlu0 %1103
        %v1105 = vrot.slane %v1104, 4
        %v1106 = vsel %vm642, %v1105, %v1104
        %v1109 = vmul.f32 %v1058, %v1106
        %v1110 = vmul.f32 %v1072, %v1105
        %v1111 = vld [vmem:[%s646] ss:$8 sm:$0x3]
        %v1113 = vlaneseq
        %v1114 = vshrl.u32 %v1113, 7
        %v1115 = vsub.s32 0, %v1114
        %v1116 = vrot.slane %v1111, %v1115
        %v1117 = vlaneseq
        %v1118 = vshrl.u32 %v1117, 7
        %v1119 = vsub.s32 1, %v1118
        %v1120 = vrot.slane %v1111, %v1119
        %v1121 = vcombine.low %v1116, %v1120
        %1122 = vrot.lane.b32.xlu0 %v1121, 16
        %v1123 = vpop.permute.xlu0 %1122
        %v1124 = vrot.slane %v1123, 4
        %v1125 = vsel %vm668, %v1124, %v1123
        %v1128 = vmul.f32 %v1058, %v1125
        %v1129 = vmul.f32 %v1072, %v1124
        %v1130 = vld [vmem:[%s672] ss:$8 sm:$0x3]
        %v1132 = vlaneseq
        %v1133 = vshrl.u32 %v1132, 7
        %v1134 = vsub.s32 0, %v1133
        %v1135 = vrot.slane %v1130, %v1134
        %v1136 = vlaneseq
        %v1137 = vshrl.u32 %v1136, 7
        %v1138 = vsub.s32 1, %v1137
        %v1139 = vrot.slane %v1130, %v1138
        %v1140 = vcombine.low %v1135, %v1139
        %1141 = vrot.lane.b32.xlu0 %v1140, 17
        %v1142 = vpop.permute.xlu0 %1141
        %v1143 = vrot.slane %v1142, 4
        %v1144 = vsel %vm564, %v1143, %v1142
        %v1147 = vmul.f32 %v1058, %v1144
        %v1148 = vmul.f32 %v1072, %v1143
        %v1149 = vld [vmem:[%s697] ss:$8 sm:$0x3]
        %v1151 = vlaneseq
        %v1152 = vshrl.u32 %v1151, 7
        %v1153 = vsub.s32 0, %v1152
        %v1154 = vrot.slane %v1149, %v1153
        %v1155 = vlaneseq
        %v1156 = vshrl.u32 %v1155, 7
        %v1157 = vsub.s32 1, %v1156
        %v1158 = vrot.slane %v1149, %v1157
        %v1159 = vcombine.low %v1154, %v1158
        %1160 = vrot.lane.b32.xlu0 %v1159, 18
        %v1161 = vpop.permute.xlu0 %1160
        %v1162 = vrot.slane %v1161, 4
        %v1163 = vsel %vm719, %v1162, %v1161
        %v1166 = vmul.f32 %v1058, %v1163
        %v1167 = vmul.f32 %v1072, %v1162
        %v1168 = vld [vmem:[%s723] ss:$8 sm:$0x3]
        %v1170 = vlaneseq
        %v1171 = vshrl.u32 %v1170, 7
        %v1172 = vsub.s32 0, %v1171
        %v1173 = vrot.slane %v1168, %v1172
        %v1174 = vlaneseq
        %v1175 = vshrl.u32 %v1174, 7
        %v1176 = vsub.s32 1, %v1175
        %v1177 = vrot.slane %v1168, %v1176
        %v1178 = vcombine.low %v1173, %v1177
        %1179 = vrot.lane.b32.xlu0 %v1178, 32
        %v1180 = vpop.permute.xlu0 %1179
        %v1181 = vrot.slane %v1180, 4
        %v1182 = vsel %vm745, %v1181, %v1180
        %v1185 = vmul.f32 %v1058, %v1182
        %v1186 = vmul.f32 %v1072, %v1181
        %v1187 = vld [vmem:[%s749] ss:$8 sm:$0x3]
        %v1189 = vlaneseq
        %v1190 = vshrl.u32 %v1189, 7
        %v1191 = vsub.s32 0, %v1190
        %v1192 = vrot.slane %v1187, %v1191
        %v1193 = vlaneseq
        %v1194 = vshrl.u32 %v1193, 7
        %v1195 = vsub.s32 1, %v1194
        %v1196 = vrot.slane %v1187, %v1195
        %v1197 = vcombine.low %v1192, %v1196
        %1198 = vrot.lane.b32.xlu0 %v1197, 33
        %v1199 = vpop.permute.xlu0 %1198
        %v1200 = vrot.slane %v1199, 4
        %v1201 = vsel %vm771, %v1200, %v1199
        %v1204 = vmul.f32 %v1058, %v1201
        %v1205 = vmul.f32 %v1072, %v1200
        %v1206 = vld [vmem:[%s775] ss:$8 sm:$0x3]
        %v1208 = vlaneseq
        %v1209 = vshrl.u32 %v1208, 7
        %v1210 = vsub.s32 0, %v1209
        %v1211 = vrot.slane %v1206, %v1210
        %v1212 = vlaneseq
        %v1213 = vshrl.u32 %v1212, 7
        %v1214 = vsub.s32 1, %v1213
        %v1215 = vrot.slane %v1206, %v1214
        %v1216 = vcombine.low %v1211, %v1215
        %1217 = vrot.lane.b32.xlu0 %v1216, 34
        %v1218 = vpop.permute.xlu0 %1217
        %v1219 = vrot.slane %v1218, 4
        %v1220 = vsel %vm797, %v1219, %v1218
        %v1223 = vmul.f32 %v1058, %v1220
        %v1224 = vmul.f32 %v1072, %v1219
        %v1226 = vcombine.high %v1071, %v1071
        %v1230 = vcombine.low %v1090, %v1090
        %v1231 = vcombine.low %v1091, %v1091
        %1232 = vrot.lane.b32.xlu0 %v1230, 127
        %v1233 = vpop.permute.xlu0 %1232
        %1234 = vrot.lane.b32.xlu0 %v1090, 127
        %v1235 = vpop.permute.xlu0 %1234
        %1236 = vrot.lane.b32.xlu0 %v1231, 127
        %v1237 = vpop.permute.xlu0 %1236
        %v1238 = vsel %vm835, %v1233, %v1235
        %v1239 = vsel %vm835, %v1235, %v1237
        %v1244 = vcombine.high %v1109, %v1109
        %1245 = vrot.lane.b32.xlu0 %v1109, 126
        %v1246 = vpop.permute.xlu0 %1245
        %1247 = vrot.lane.b32.xlu0 %v1244, 126
        %v1248 = vpop.permute.xlu0 %1247
        %1249 = vrot.lane.b32.xlu0 %v1110, 126
        %v1250 = vpop.permute.xlu0 %1249
        %v1251 = vsel %vm864, %v1246, %v1248
        %v1252 = vsel %vm864, %v1248, %v1250
        %v1257 = vcombine.low %v1128, %v1128
        %v1258 = vcombine.low %v1129, %v1129
        %1259 = vrot.lane.b32.xlu0 %v1257, 112
        %v1260 = vpop.permute.xlu0 %1259
        %1261 = vrot.lane.b32.xlu0 %v1128, 112
        %v1262 = vpop.permute.xlu0 %1261
        %1263 = vrot.lane.b32.xlu0 %v1258, 112
        %v1264 = vpop.permute.xlu0 %1263
        %v1265 = vsel %vm893, %v1260, %v1262
        %v1266 = vsel %vm893, %v1262, %v1264
        %v1271 = vcombine.high %v1147, %v1147
        %1272 = vrot.lane.b32.xlu0 %v1147, 111
        %v1273 = vpop.permute.xlu0 %1272
        %1274 = vrot.lane.b32.xlu0 %v1271, 111
        %v1275 = vpop.permute.xlu0 %1274
        %1276 = vrot.lane.b32.xlu0 %v1148, 111
        %v1277 = vpop.permute.xlu0 %1276
        %v1278 = vsel %vm921, %v1273, %v1275
        %v1279 = vsel %vm921, %v1275, %v1277
        %v1284 = vcombine.low %v1166, %v1166
        %v1285 = vcombine.low %v1167, %v1167
        %1286 = vrot.lane.b32.xlu0 %v1284, 110
        %v1287 = vpop.permute.xlu0 %1286
        %1288 = vrot.lane.b32.xlu0 %v1166, 110
        %v1289 = vpop.permute.xlu0 %1288
        %1290 = vrot.lane.b32.xlu0 %v1285, 110
        %v1291 = vpop.permute.xlu0 %1290
        %v1292 = vsel %vm949, %v1287, %v1289
        %v1293 = vsel %vm949, %v1289, %v1291
        %v1298 = vcombine.high %v1185, %v1185
        %1299 = vrot.lane.b32.xlu0 %v1185, 96
        %v1300 = vpop.permute.xlu0 %1299
        %1301 = vrot.lane.b32.xlu0 %v1298, 96
        %v1302 = vpop.permute.xlu0 %1301
        %1303 = vrot.lane.b32.xlu0 %v1186, 96
        %v1304 = vpop.permute.xlu0 %1303
        %v1305 = vsel %vm978, %v1300, %v1302
        %v1306 = vsel %vm978, %v1302, %v1304
        %v1311 = vcombine.low %v1204, %v1204
        %v1312 = vcombine.low %v1205, %v1205
        %1313 = vrot.lane.b32.xlu0 %v1311, 95
        %v1314 = vpop.permute.xlu0 %1313
        %1315 = vrot.lane.b32.xlu0 %v1204, 95
        %v1316 = vpop.permute.xlu0 %1315
        %1317 = vrot.lane.b32.xlu0 %v1312, 95
        %v1318 = vpop.permute.xlu0 %1317
        %v1319 = vsel %vm1007, %v1314, %v1316
        %v1320 = vsel %vm1007, %v1316, %v1318
        %v1325 = vcombine.high %v1223, %v1223
        %1326 = vrot.lane.b32.xlu0 %v1223, 94
        %v1327 = vpop.permute.xlu0 %1326
        %1328 = vrot.lane.b32.xlu0 %v1325, 94
        %v1329 = vpop.permute.xlu0 %1328
        %1330 = vrot.lane.b32.xlu0 %v1224, 94
        %v1331 = vpop.permute.xlu0 %1330
        %v1332 = vsel %vm1035, %v1327, %v1329
        %v1333 = vsel %vm1035, %v1329, %v1331
        %v1334 = vsel %vm1040, %v1071, %v1238
        %v1335 = vsel %vm1040, %v1226, %v1239
        %v1336 = vsel %vm1040, %v1251, %v1265
        %v1337 = vsel %vm1040, %v1252, %v1266
        %v1338 = vsel %vm1040, %v1278, %v1292
        %v1339 = vsel %vm1040, %v1279, %v1293
        %v1340 = vsel %vm1040, %v1305, %v1319
        %v1341 = vsel %vm1040, %v1306, %v1320
        %v1342 = vld [vmem:[%s1] sm:$0xff]
        %v1343 = vld [vmem:[%s2] sm:$0xff]
        %1345 = vset.pattern.permute.xlu0 0
        %1346 = vperm.xlu0 %1345, %v1343
        %v1347 = vpop.permute.xlu0 %1346
        %v1350 = vsel %vm719, %v1342, 0
        %v1352 = vsel %vm546, %v1036, 0
        %v1354 = vsel %vm546, %v1037, 0
        %1356 = vmatprep.subr.mxu0 %v1045
        %1357 = vmatpush1.msra.mxu0 %v1044
        %1358 = vmatprep.subr.mxu0 %v1051
        %1359 = vmatpush1.msra.mxu0 %v1050
        %1360 = vmatprep.subr.mxu0 %v1354
        %1361 = vmatpush1.msra.mxu0 %v1352
        %1362 = vmatprep.subr.mxu0 0.0
        %1363 = vmatpush1.msra.mxu0 0.0
        %1364 = vmatprep.subr.mxu0 0.0
        %1365 = vmatpush1.msra.mxu0 0.0
        %1366 = vmatprep.subr.mxu0 0.0
        %1367 = vmatpush1.msra.mxu0 0.0
        %1368 = vmatprep.subr.mxu0 0.0
        %1369 = vmatpush1.msra.mxu0 0.0
        %1370 = vmatprep.subr.mxu0 0.0
        %1371 = vmatpush1.msra.mxu0 0.0
        %1372 = vmatprep.subr.mxu0 0.0
        %1373 = vmatpush1.msra.mxu0 0.0
        %1374 = vmatprep.subr.mxu0 0.0
        %1375 = vmatpush1.msra.mxu0 0.0
        %1376 = vmatprep.subr.mxu0 0.0
        %1377 = vmatpush1.msra.mxu0 0.0
        %1378 = vmatprep.subr.mxu0 0.0
        %1379 = vmatpush1.msra.mxu0 0.0
        %1380 = vmatprep.subr.mxu0 0.0
        %1381 = vmatpush1.msra.mxu0 0.0
        %1382 = vmatprep.subr.mxu0 0.0
        %1383 = vmatpush1.msra.mxu0 0.0
        %1384 = vmatprep.subr.mxu0 0.0
        %1385 = vmatpush1.msra.mxu0 0.0
        %1386 = vmatprep.subr.mxu0 0.0
        %1387 = vmatpush1.msra.mxu0 0.0
        %1388 = vmatprep.subr.mxu0 0.0
        %1389 = vmatpush1.msra.mxu0 0.0
        %1390 = vmatprep.subr.mxu0 0.0
        %1391 = vmatpush1.msra.mxu0 0.0
        %1392 = vmatprep.subr.mxu0 0.0
        %1393 = vmatpush1.msra.mxu0 0.0
        %1394 = vmatprep.subr.mxu0 0.0
        %1395 = vmatpush1.msra.mxu0 0.0
        %1396 = vmatprep.subr.mxu0 0.0
        %1397 = vmatpush1.msra.mxu0 0.0
        %1398 = vmatprep.subr.mxu0 0.0
        %1399 = vmatpush1.msra.mxu0 0.0
        %1400 = vmatprep.subr.mxu0 0.0
        %1401 = vmatpush1.msra.mxu0 0.0
        %1402 = vmatprep.subr.mxu0 0.0
        %1403 = vmatpush1.msra.mxu0 0.0
        %1404 = vmatprep.subr.mxu0 0.0
        %1405 = vmatpush1.msra.mxu0 0.0
        %1406 = vmatprep.subr.mxu0 0.0
        %1407 = vmatpush1.msra.mxu0 0.0
        %1408 = vmatprep.subr.mxu0 0.0
        %1409 = vmatpush1.msra.mxu0 0.0
        %1410 = vmatprep.subr.mxu0 0.0
        %1411 = vmatpush1.msra.mxu0 0.0
        %1412 = vmatprep.subr.mxu0 0.0
        %1413 = vmatpush1.msra.mxu0 0.0
        %1414 = vmatprep.subr.mxu0 0.0
        %1415 = vmatpush1.msra.mxu0 0.0
        %1416 = vmatprep.subr.mxu0 0.0
        %1417 = vmatpush1.msra.mxu0 0.0
        %1418 = vmatprep.subr.mxu0 0.0
        %1419 = vmatpush1.msra.mxu0 0.0
        %1420 = vmatprep.mubr.f32.mxu0 0.0
        %1421 = vmatmul.mubr.f32.gmra.mrb[0].mxu0 %v1350
        %v1422 = vpop.f32.mrb[0].mxu0
        %v1423 = vadd.f32 %v1347, %v1422
        %v1424 = vpop.f32.mrb[0].mxu0
        %v1425 = vadd.f32 %v1347, %v1424
        %1426 = vdwg.mxu0
        %v1427 = vld [vmem:[%s3] sm:$0xf]
        %v1428 = vld [vmem:[%s4] sm:$0xf]
        %1430 = vset.pattern.permute.xlu0 0
        %1431 = vperm.xlu0 %1430, %v1428
        %v1432 = vpop.permute.xlu0 %1431
        %vm1434 = vcmask 293888
        %v1436 = vsel %vm1434, %v1427, 0
        %v1438 = vsel %vm1040, %v1332, 0
        %v1440 = vsel %vm1040, %v1333, 0
        %1442 = vmatprep.subr.mxu0 %v1335
        %1443 = vmatpush1.msra.mxu0 %v1334
        %1444 = vmatprep.subr.mxu0 %v1337
        %1445 = vmatpush1.msra.mxu0 %v1336
        %1446 = vmatprep.subr.mxu0 %v1339
        %1447 = vmatpush1.msra.mxu0 %v1338
        %1448 = vmatprep.subr.mxu0 %v1341
        %1449 = vmatpush1.msra.mxu0 %v1340
        %1450 = vmatprep.subr.mxu0 %v1440
        %1451 = vmatpush1.msra.mxu0 %v1438
        %1452 = vmatprep.subr.mxu0 0.0
        %1453 = vmatpush1.msra.mxu0 0.0
        %1454 = vmatprep.subr.mxu0 0.0
        %1455 = vmatpush1.msra.mxu0 0.0
        %1456 = vmatprep.subr.mxu0 0.0
        %1457 = vmatpush1.msra.mxu0 0.0
        %1458 = vmatprep.subr.mxu0 0.0
        %1459 = vmatpush1.msra.mxu0 0.0
        %1460 = vmatprep.subr.mxu0 0.0
        %1461 = vmatpush1.msra.mxu0 0.0
        %1462 = vmatprep.subr.mxu0 0.0
        %1463 = vmatpush1.msra.mxu0 0.0
        %1464 = vmatprep.subr.mxu0 0.0
        %1465 = vmatpush1.msra.mxu0 0.0
        %1466 = vmatprep.subr.mxu0 0.0
        %1467 = vmatpush1.msra.mxu0 0.0
        %1468 = vmatprep.subr.mxu0 0.0
        %1469 = vmatpush1.msra.mxu0 0.0
        %1470 = vmatprep.subr.mxu0 0.0
        %1471 = vmatpush1.msra.mxu0 0.0
        %1472 = vmatprep.subr.mxu0 0.0
        %1473 = vmatpush1.msra.mxu0 0.0
        %1474 = vmatprep.subr.mxu0 0.0
        %1475 = vmatpush1.msra.mxu0 0.0
        %1476 = vmatprep.subr.mxu0 0.0
        %1477 = vmatpush1.msra.mxu0 0.0
        %1478 = vmatprep.subr.mxu0 0.0
        %1479 = vmatpush1.msra.mxu0 0.0
        %1480 = vmatprep.subr.mxu0 0.0
        %1481 = vmatpush1.msra.mxu0 0.0
        %1482 = vmatprep.subr.mxu0 0.0
        %1483 = vmatpush1.msra.mxu0 0.0
        %1484 = vmatprep.subr.mxu0 0.0
        %1485 = vmatpush1.msra.mxu0 0.0
        %1486 = vmatprep.subr.mxu0 0.0
        %1487 = vmatpush1.msra.mxu0 0.0
        %1488 = vmatprep.subr.mxu0 0.0
        %1489 = vmatpush1.msra.mxu0 0.0
        %1490 = vmatprep.subr.mxu0 0.0
        %1491 = vmatpush1.msra.mxu0 0.0
        %1492 = vmatprep.subr.mxu0 0.0
        %1493 = vmatpush1.msra.mxu0 0.0
        %1494 = vmatprep.subr.mxu0 0.0
        %1495 = vmatpush1.msra.mxu0 0.0
        %1496 = vmatprep.subr.mxu0 0.0
        %1497 = vmatpush1.msra.mxu0 0.0
        %1498 = vmatprep.subr.mxu0 0.0
        %1499 = vmatpush1.msra.mxu0 0.0
        %1500 = vmatprep.subr.mxu0 0.0
        %1501 = vmatpush1.msra.mxu0 0.0
        %1502 = vmatprep.subr.mxu0 0.0
        %1503 = vmatpush1.msra.mxu0 0.0
        %1504 = vmatprep.subr.mxu0 0.0
        %1505 = vmatpush1.msra.mxu0 0.0
        %1506 = vmatprep.mubr.f32.mxu0 0.0
        %1507 = vmatmul.mubr.f32.gmra.mrb[0].mxu0 %v1436
        %v1508 = vpop.f32.mrb[0].mxu0
        %v1509 = vadd.f32 %v1432, %v1508
        %v1510 = vpop.f32.mrb[0].mxu0
        %v1511 = vadd.f32 %v1432, %v1510
        %1512 = vdwg.mxu0
        %v1513 = vadd.f32 %v1423, 0.0
        %v1514 = vadd.f32 %v1425, 0.0
        %v1515 = vsub.f32 %v1513, 0.5
        %v1516 = vsub.f32 %v1514, 0.5
        %vm1517 = vcmp.gt.f32.partialorder %v1515, 0.0
        %vm1518 = vcmp.gt.f32.partialorder %v1516, 0.0
        %v1519 = vsel %vm1517, 1, 0
        %v1520 = vsel %vm1518, 1, 0
        %v1521 = vcvt.s32.f32 %v1519
        %v1522 = vcvt.s32.f32 %v1520
        %v1523 = vmax.f32 %v1509, 0.0
        %v1524 = vmax.f32 %v1511, 0.0
        %v1527 = vrot.slane %v1523, 4
        %v1528 = vrot.slane %v1524, 4
        %v1531 = vadd.f32 %v1423, %v1527
        %v1532 = vadd.f32 %v1425, %v1528
        %v1533 = vtanh.pop %v1531
        %v1534 = vtanh.pop %v1532
        %v1535 = vsel %vm1040, %v1521, %v1533
        %v1536 = vsel %vm1040, %v1522, %v1534
        %v1537 = vld [vmem:[%s5] sm:$0xff]
        %v1538 = vld [vmem:[%s5 + $0x8] sm:$0xff]
        %v1539 = vld [vmem:[%s5 + $0x10] sm:$0xff]
        %v1540 = vld [vmem:[%s5 + $0x18] sm:$0xff]
        %v1541 = vld [vmem:[%s5 + $0x20] sm:$0xff]
        %v1542 = vld [vmem:[%s5 + $0x28] sm:$0xff]
        %v1543 = vld [vmem:[%s5 + $0x30] sm:$0xff]
        %v1544 = vld [vmem:[%s5 + $0x38] sm:$0xff]
        %v1545 = vld [vmem:[%s5 + $0x40] sm:$0xff]
        %v1546 = vld [vmem:[%s5 + $0x48] sm:$0xff]
        %v1547 = vld [vmem:[%s5 + $0x50] sm:$0xff]
        %v1548 = vld [vmem:[%s5 + $0x58] sm:$0xff]
        %v1549 = vld [vmem:[%s5 + $0x60] sm:$0xff]
        %v1550 = vld [vmem:[%s5 + $0x68] sm:$0xff]
        %v1551 = vld [vmem:[%s5 + $0x70] sm:$0xff]
        %v1552 = vld [vmem:[%s5 + $0x78] sm:$0xff]
        %v1553 = vld [vmem:[%s5 + $0x80] sm:$0xff]
        %v1554 = vld [vmem:[%s5 + $0x88] sm:$0xff]
        %v1555 = vld [vmem:[%s5 + $0x90] sm:$0xff]
        %v1556 = vld [vmem:[%s5 + $0x98] sm:$0xff]
        %v1557 = vld [vmem:[%s5 + $0xa0] sm:$0xff]
        %v1558 = vld [vmem:[%s5 + $0xa8] sm:$0xff]
        %v1559 = vld [vmem:[%s5 + $0xb0] sm:$0xff]
        %v1560 = vld [vmem:[%s5 + $0xb8] sm:$0xff]
        %v1561 = vld [vmem:[%s5 + $0xc0] sm:$0xff]
        %v1562 = vld [vmem:[%s5 + $0xc8] sm:$0xff]
        %v1563 = vld [vmem:[%s5 + $0xd0] sm:$0xff]
        %v1564 = vld [vmem:[%s5 + $0xd8] sm:$0xff]
        %v1565 = vld [vmem:[%s5 + $0xe0] sm:$0xff]
        %v1566 = vld [vmem:[%s5 + $0xe8] sm:$0xff]
        %v1567 = vld [vmem:[%s5 + $0xf0] sm:$0xff]
        %v1568 = vld [vmem:[%s5 + $0xf8] sm:$0xff]
        %1569 = vmatprep.subr.mxu0 0.0
        %1570 = vmatpush1.msra.mxu0 %v1537
        %1571 = vmatprep.subr.mxu0 0.0
        %1572 = vmatpush1.msra.mxu0 %v1538
        %1573 = vmatprep.subr.mxu0 0.0
        %1574 = vmatpush1.msra.mxu0 %v1539
        %1575 = vmatprep.subr.mxu0 0.0
        %1576 = vmatpush1.msra.mxu0 %v1540
        %1577 = vmatprep.subr.mxu0 0.0
        %1578 = vmatpush1.msra.mxu0 %v1541
        %1579 = vmatprep.subr.mxu0 0.0
        %1580 = vmatpush1.msra.mxu0 %v1542
        %1581 = vmatprep.subr.mxu0 0.0
        %1582 = vmatpush1.msra.mxu0 %v1543
        %1583 = vmatprep.subr.mxu0 0.0
        %1584 = vmatpush1.msra.mxu0 %v1544
        %1585 = vmatprep.subr.mxu0 0.0
        %1586 = vmatpush1.msra.mxu0 %v1545
        %1587 = vmatprep.subr.mxu0 0.0
        %1588 = vmatpush1.msra.mxu0 %v1546
        %1589 = vmatprep.subr.mxu0 0.0
        %1590 = vmatpush1.msra.mxu0 %v1547
        %1591 = vmatprep.subr.mxu0 0.0
        %1592 = vmatpush1.msra.mxu0 %v1548
        %1593 = vmatprep.subr.mxu0 0.0
        %1594 = vmatpush1.msra.mxu0 %v1549
        %1595 = vmatprep.subr.mxu0 0.0
        %1596 = vmatpush1.msra.mxu0 %v1550
        %1597 = vmatprep.subr.mxu0 0.0
        %1598 = vmatpush1.msra.mxu0 %v1551
        %1599 = vmatprep.subr.mxu0 0.0
        %1600 = vmatpush1.msra.mxu0 %v1552
        %1601 = vmatprep.subr.mxu0 0.0
        %1602 = vmatpush1.msra.mxu0 %v1553
        %1603 = vmatprep.subr.mxu0 0.0
        %1604 = vmatpush1.msra.mxu0 %v1554
        %1605 = vmatprep.subr.mxu0 0.0
        %1606 = vmatpush1.msra.mxu0 %v1555
        %1607 = vmatprep.subr.mxu0 0.0
        %1608 = vmatpush1.msra.mxu0 %v1556
        %1609 = vmatprep.subr.mxu0 0.0
        %1610 = vmatpush1.msra.mxu0 %v1557
        %1611 = vmatprep.subr.mxu0 0.0
        %1612 = vmatpush1.msra.mxu0 %v1558
        %1613 = vmatprep.subr.mxu0 0.0
        %1614 = vmatpush1.msra.mxu0 %v1559
        %1615 = vmatprep.subr.mxu0 0.0
        %1616 = vmatpush1.msra.mxu0 %v1560
        %1617 = vmatprep.subr.mxu0 0.0
        %1618 = vmatpush1.msra.mxu0 %v1561
        %1619 = vmatprep.subr.mxu0 0.0
        %1620 = vmatpush1.msra.mxu0 %v1562
        %1621 = vmatprep.subr.mxu0 0.0
        %1622 = vmatpush1.msra.mxu0 %v1563
        %1623 = vmatprep.subr.mxu0 0.0
        %1624 = vmatpush1.msra.mxu0 %v1564
        %1625 = vmatprep.subr.mxu0 0.0
        %1626 = vmatpush1.msra.mxu0 %v1565
        %1627 = vmatprep.subr.mxu0 0.0
        %1628 = vmatpush1.msra.mxu0 %v1566
        %1629 = vmatprep.subr.mxu0 0.0
        %1630 = vmatpush1.msra.mxu0 %v1567
        %1631 = vmatprep.subr.mxu0 0.0
        %1632 = vmatpush1.msra.mxu0 %v1568
        %1633 = vmatprep.mubr.f32.mxu0 %v1536
        %1634 = vmatmul.mubr.f32.gmra.mrb[0].mxu0 %v1535
        %v1635 = vpop.f32.mrb[0].mxu0
        %v1636 = vadd.f32 0.0, %v1635
        %v1637 = vpop.f32.mrb[0].mxu0
        %1638 = vdwg.mxu0
        %1640 = vrot.lane.b32.xlu0 %v1636, 9
        %v1641 = vpop.permute.xlu0 %1640
        %vm1643 = vcmask 597064
        %1644 = vst.msk [vmem:[#allocation4] sm:$0xff] %vm1643, %v1641
        %v1645 = vld [vmem:[#allocation4] sm:$0xff]
        %v1646 = vld [vmem:[%s12] sm:$0x1]
        %v1647 = vlaneseq
        %v1648 = vshrl.u32 %v1647, 7
        %v1649 = vsub.s32 0, %v1648
        %v1650 = vrot.slane %v1646, %v1649
        %v1651 = vmul.f32 %v1645, %v1650
        %v1652 = vld [vmem:[%s12 + $0x1] sm:$0x1]
        %v1653 = vlaneseq
        %v1654 = vshrl.u32 %v1653, 7
        %v1655 = vsub.s32 0, %v1654
        %v1656 = vrot.slane %v1652, %v1655
        %1658 = vrot.lane.b32.xlu0 %v1656, 1
        %v1659 = vpop.permute.xlu0 %1658
        %v1661 = vmul.f32 %v1645, %v1659
        %v1662 = vld [vmem:[%s12 + $0x2] sm:$0x1]
        %v1663 = vlaneseq
        %v1664 = vshrl.u32 %v1663, 7
        %v1665 = vsub.s32 0, %v1664
        %v1666 = vrot.slane %v1662, %v1665
        %1668 = vrot.lane.b32.xlu0 %v1666, 2
        %v1669 = vpop.permute.xlu0 %1668
        %v1671 = vmul.f32 %v1645, %v1669
        %v1672 = vld [vmem:[%s12 + $0x3] sm:$0x1]
        %v1673 = vlaneseq
        %v1674 = vshrl.u32 %v1673, 7
        %v1675 = vsub.s32 0, %v1674
        %v1676 = vrot.slane %v1672, %v1675
        %1678 = vrot.lane.b32.xlu0 %v1676, 8
        %v1679 = vpop.permute.xlu0 %1678
        %v1681 = vmul.f32 %v1645, %v1679
        %v1682 = vld [vmem:[%s12 + $0x4] sm:$0x1]
        %v1683 = vlaneseq
        %v1684 = vshrl.u32 %v1683, 7
        %v1685 = vsub.s32 0, %v1684
        %v1686 = vrot.slane %v1682, %v1685
        %1688 = vrot.lane.b32.xlu0 %v1686, 9
        %v1689 = vpop.permute.xlu0 %1688
        %v1691 = vmul.f32 %v1645, %v1689
        %v1692 = vld [vmem:[%s12 + $0x5] sm:$0x1]
        %v1693 = vlaneseq
        %v1694 = vshrl.u32 %v1693, 7
        %v1695 = vsub.s32 0, %v1694
        %v1696 = vrot.slane %v1692, %v1695
        %1698 = vrot.lane.b32.xlu0 %v1696, 10
        %v1699 = vpop.permute.xlu0 %1698
        %v1701 = vmul.f32 %v1645, %v1699
        %v1702 = vld [vmem:[%s12 + $0x6] sm:$0x1]
        %v1703 = vlaneseq
        %v1704 = vshrl.u32 %v1703, 7
        %v1705 = vsub.s32 0, %v1704
        %v1706 = vrot.slane %v1702, %v1705
        %1708 = vrot.lane.b32.xlu0 %v1706, 16
        %v1709 = vpop.permute.xlu0 %1708
        %v1711 = vmul.f32 %v1645, %v1709
        %v1712 = vld [vmem:[%s12 + $0x7] sm:$0x1]
        %v1713 = vlaneseq
        %v1714 = vshrl.u32 %v1713, 7
        %v1715 = vsub.s32 0, %v1714
        %v1716 = vrot.slane %v1712, %v1715
        %1718 = vrot.lane.b32.xlu0 %v1716, 17
        %v1719 = vpop.permute.xlu0 %1718
        %v1721 = vmul.f32 %v1645, %v1719
        %v1722 = vld [vmem:[%s12 + $0x8] sm:$0x1]
        %v1723 = vlaneseq
        %v1724 = vshrl.u32 %v1723, 7
        %v1725 = vsub.s32 0, %v1724
        %v1726 = vrot.slane %v1722, %v1725
        %1728 = vrot.lane.b32.xlu0 %v1726, 18
        %v1729 = vpop.permute.xlu0 %1728
        %v1731 = vmul.f32 %v1645, %v1729
        %1733 = vrot.lane.b32.xlu0 %v1661, 127
        %v1734 = vpop.permute.xlu0 %1733
        %1737 = vrot.lane.b32.xlu0 %v1671, 126
        %v1738 = vpop.permute.xlu0 %1737
        %1741 = vrot.lane.b32.xlu0 %v1681, 120
        %v1742 = vpop.permute.xlu0 %1741
        %1745 = vrot.lane.b32.xlu0 %v1691, 119
        %v1746 = vpop.permute.xlu0 %1745
        %1749 = vrot.lane.b32.xlu0 %v1701, 118
        %v1750 = vpop.permute.xlu0 %1749
        %1753 = vrot.lane.b32.xlu0 %v1711, 112
        %v1754 = vpop.permute.xlu0 %1753
        %1757 = vrot.lane.b32.xlu0 %v1721, 111
        %v1758 = vpop.permute.xlu0 %1757
        %1761 = vrot.lane.b32.xlu0 %v1731, 110
        %v1762 = vpop.permute.xlu0 %1761
        %vm1764 = vcmask 592968
        %1765 = vst.msk [vmem:[#allocation5] sm:$0xf] %vm1764, 0.0
        %v1766 = vld [vmem:[#allocation5] sm:$0xf]
        %v1767 = vld [vmem:[%s12] sm:$0x1]
        %v1768 = vlaneseq
        %v1769 = vshrl.u32 %v1768, 7
        %v1770 = vsub.s32 0, %v1769
        %v1771 = vrot.slane %v1767, %v1770
        %v1772 = vmul.f32 %v1766, %v1771
        %v1773 = vld [vmem:[%s12 + $0x1] sm:$0x1]
        %v1774 = vlaneseq
        %v1775 = vshrl.u32 %v1774, 7
        %v1776 = vsub.s32 0, %v1775
        %v1777 = vrot.slane %v1773, %v1776
        %1779 = vrot.lane.b32.xlu0 %v1777, 1
        %v1780 = vpop.permute.xlu0 %1779
        %v1782 = vmul.f32 %v1766, %v1780
        %v1783 = vld [vmem:[%s12 + $0x2] sm:$0x1]
        %v1784 = vlaneseq
        %v1785 = vshrl.u32 %v1784, 7
        %v1786 = vsub.s32 0, %v1785
        %v1787 = vrot.slane %v1783, %v1786
        %1789 = vrot.lane.b32.xlu0 %v1787, 2
        %v1790 = vpop.permute.xlu0 %1789
        %v1792 = vmul.f32 %v1766, %v1790
        %v1793 = vld [vmem:[%s12 + $0x3] sm:$0x1]
        %v1794 = vlaneseq
        %v1795 = vshrl.u32 %v1794, 7
        %v1796 = vsub.s32 0, %v1795
        %v1797 = vrot.slane %v1793, %v1796
        %1799 = vrot.lane.b32.xlu0 %v1797, 8
        %v1800 = vpop.permute.xlu0 %1799
        %v1802 = vmul.f32 %v1766, %v1800
        %v1803 = vld [vmem:[%s12 + $0x4] sm:$0x1]
        %v1804 = vlaneseq
        %v1805 = vshrl.u32 %v1804, 7
        %v1806 = vsub.s32 0, %v1805
        %v1807 = vrot.slane %v1803, %v1806
        %1809 = vrot.lane.b32.xlu0 %v1807, 9
        %v1810 = vpop.permute.xlu0 %1809
        %v1812 = vmul.f32 %v1766, %v1810
        %v1813 = vld [vmem:[%s12 + $0x5] sm:$0x1]
        %v1814 = vlaneseq
        %v1815 = vshrl.u32 %v1814, 7
        %v1816 = vsub.s32 0, %v1815
        %v1817 = vrot.slane %v1813, %v1816
        %1819 = vrot.lane.b32.xlu0 %v1817, 10
        %v1820 = vpop.permute.xlu0 %1819
        %v1822 = vmul.f32 %v1766, %v1820
        %v1823 = vld [vmem:[%s12 + $0x6] sm:$0x1]
        %v1824 = vlaneseq
        %v1825 = vshrl.u32 %v1824, 7
        %v1826 = vsub.s32 0, %v1825
        %v1827 = vrot.slane %v1823, %v1826
        %1829 = vrot.lane.b32.xlu0 %v1827, 16
        %v1830 = vpop.permute.xlu0 %1829
        %v1832 = vmul.f32 %v1766, %v1830
        %v1833 = vld [vmem:[%s12 + $0x7] sm:$0x1]
        %v1834 = vlaneseq
        %v1835 = vshrl.u32 %v1834, 7
        %v1836 = vsub.s32 0, %v1835
        %v1837 = vrot.slane %v1833, %v1836
        %1839 = vrot.lane.b32.xlu0 %v1837, 17
        %v1840 = vpop.permute.xlu0 %1839
        %v1842 = vmul.f32 %v1766, %v1840
        %v1843 = vld [vmem:[%s12 + $0x8] sm:$0x1]
        %v1844 = vlaneseq
        %v1845 = vshrl.u32 %v1844, 7
        %v1846 = vsub.s32 0, %v1845
        %v1847 = vrot.slane %v1843, %v1846
        %1849 = vrot.lane.b32.xlu0 %v1847, 18
        %v1850 = vpop.permute.xlu0 %1849
        %v1852 = vmul.f32 %v1766, %v1850
        %v1854 = vrot.slane %v1782, 4
        %1855 = vrot.lane.b32.xlu0 %v1854, 127
        %v1856 = vpop.permute.xlu0 %1855
        %1859 = vrot.lane.b32.xlu0 %v1792, 126
        %v1860 = vpop.permute.xlu0 %1859
        %v1863 = vrot.slane %v1802, 4
        %1864 = vrot.lane.b32.xlu0 %v1863, 120
        %v1865 = vpop.permute.xlu0 %1864
        %1868 = vrot.lane.b32.xlu0 %v1812, 119
        %v1869 = vpop.permute.xlu0 %1868
        %v1872 = vrot.slane %v1822, 4
        %1873 = vrot.lane.b32.xlu0 %v1872, 118
        %v1874 = vpop.permute.xlu0 %1873
        %1877 = vrot.lane.b32.xlu0 %v1832, 112
        %v1878 = vpop.permute.xlu0 %1877
        %v1881 = vrot.slane %v1842, 4
        %1882 = vrot.lane.b32.xlu0 %v1881, 111
        %v1883 = vpop.permute.xlu0 %1882
        %1886 = vrot.lane.b32.xlu0 %v1852, 110
        %v1887 = vpop.permute.xlu0 %1886
        %v1888 = vsel %vm1040, %v1772, %v1856
        %v1889 = vsel %vm1040, %v1860, %v1865
        %v1890 = vsel %vm1040, %v1869, %v1874
        %v1891 = vsel %vm1040, %v1878, %v1883
        %v1892 = vld [vmem:[%s7] sm:$0xff]
        %v1893 = vld [vmem:[%s8] sm:$0xff]
        %1895 = vset.pattern.permute.xlu0 0
        %1896 = vperm.xlu0 %1895, %v1893
        %v1897 = vpop.permute.xlu0 %1896
        %vm1899 = vcmask 588800
        %v1901 = vsel %vm1899, %v1892, 0
        %1903 = vmatprep.subr.mxu0 0.0
        %1904 = vmatpush1.msra.mxu0 %v1651
        %1905 = vmatprep.subr.mxu0 0.0
        %1906 = vmatpush1.msra.mxu0 %v1734
        %1907 = vmatprep.subr.mxu0 0.0
        %1908 = vmatpush1.msra.mxu0 %v1738
        %1909 = vmatprep.subr.mxu0 0.0
        %1910 = vmatpush1.msra.mxu0 %v1742
        %1911 = vmatprep.subr.mxu0 0.0
        %1912 = vmatpush1.msra.mxu0 %v1746
        %1913 = vmatprep.subr.mxu0 0.0
        %1914 = vmatpush1.msra.mxu0 %v1750
        %1915 = vmatprep.subr.mxu0 0.0
        %1916 = vmatpush1.msra.mxu0 %v1754
        %1917 = vmatprep.subr.mxu0 0.0
        %1918 = vmatpush1.msra.mxu0 %v1758
        %1919 = vmatprep.subr.mxu0 0.0
        %1920 = vmatpush1.msra.mxu0 %v1762
        %1921 = vmatprep.subr.mxu0 0.0
        %1922 = vmatpush1.msra.mxu0 0.0
        %1923 = vmatprep.subr.mxu0 0.0
        %1924 = vmatpush1.msra.mxu0 0.0
        %1925 = vmatprep.subr.mxu0 0.0
        %1926 = vmatpush1.msra.mxu0 0.0
        %1927 = vmatprep.subr.mxu0 0.0
        %1928 = vmatpush1.msra.mxu0 0.0
        %1929 = vmatprep.subr.mxu0 0.0
        %1930 = vmatpush1.msra.mxu0 0.0
        %1931 = vmatprep.subr.mxu0 0.0
        %1932 = vmatpush1.msra.mxu0 0.0
        %1933 = vmatprep.subr.mxu0 0.0
        %1934 = vmatpush1.msra.mxu0 0.0
        %1935 = vmatprep.subr.mxu0 0.0
        %1936 = vmatpush1.msra.mxu0 0.0
        %1937 = vmatprep.subr.mxu0 0.0
        %1938 = vmatpush1.msra.mxu0 0.0
        %1939 = vmatprep.subr.mxu0 0.0
        %1940 = vmatpush1.msra.mxu0 0.0
        %1941 = vmatprep.subr.mxu0 0.0
        %1942 = vmatpush1.msra.mxu0 0.0
        %1943 = vmatprep.subr.mxu0 0.0
        %1944 = vmatpush1.msra.mxu0 0.0
        %1945 = vmatprep.subr.mxu0 0.0
        %1946 = vmatpush1.msra.mxu0 0.0
        %1947 = vmatprep.subr.mxu0 0.0
        %1948 = vmatpush1.msra.mxu0 0.0
        %1949 = vmatprep.subr.mxu0 0.0
        %1950 = vmatpush1.msra.mxu0 0.0
        %1951 = vmatprep.subr.mxu0 0.0
        %1952 = vmatpush1.msra.mxu0 0.0
        %1953 = vmatprep.subr.mxu0 0.0
        %1954 = vmatpush1.msra.mxu0 0.0
        %1955 = vmatprep.subr.mxu0 0.0
        %1956 = vmatpush1.msra.mxu0 0.0
        %1957 = vmatprep.subr.mxu0 0.0
        %1958 = vmatpush1.msra.mxu0 0.0
        %1959 = vmatprep.subr.mxu0 0.0
        %1960 = vmatpush1.msra.mxu0 0.0
        %1961 = vmatprep.subr.mxu0 0.0
        %1962 = vmatpush1.msra.mxu0 0.0
        %1963 = vmatprep.subr.mxu0 0.0
        %1964 = vmatpush1.msra.mxu0 0.0
        %1965 = vmatprep.subr.mxu0 0.0
        %1966 = vmatpush1.msra.mxu0 0.0
        %1967 = vmatprep.mubr.f32.mxu0 0.0
        %1968 = vmatmul.mubr.f32.gmra.mrb[0].mxu0 %v1901
        %v1969 = vpop.f32.mrb[0].mxu0
        %v1970 = vadd.f32 %v1897, %v1969
        %v1971 = vpop.f32.mrb[0].mxu0
        %1972 = vdwg.mxu0
        %v1973 = vld [vmem:[%s9] sm:$0xf]
        %v1974 = vld [vmem:[%s10] sm:$0xf]
        %1976 = vset.pattern.permute.xlu0 0
        %1977 = vperm.xlu0 %1976, %v1974
        %v1978 = vpop.permute.xlu0 %1977
        %v1981 = vsel %vm1434, %v1973, 0
        %v1983 = vsel %vm1040, %v1887, 0
        %1985 = vmatprep.subr.mxu0 0.0
        %1986 = vmatpush1.msra.mxu0 %v1888
        %1987 = vmatprep.subr.mxu0 0.0
        %1988 = vmatpush1.msra.mxu0 %v1889
        %1989 = vmatprep.subr.mxu0 0.0
        %1990 = vmatpush1.msra.mxu0 %v1890
        %1991 = vmatprep.subr.mxu0 0.0
        %1992 = vmatpush1.msra.mxu0 %v1891
        %1993 = vmatprep.subr.mxu0 0.0
        %1994 = vmatpush1.msra.mxu0 %v1983
        %1995 = vmatprep.subr.mxu0 0.0
        %1996 = vmatpush1.msra.mxu0 0.0
        %1997 = vmatprep.subr.mxu0 0.0
        %1998 = vmatpush1.msra.mxu0 0.0
        %1999 = vmatprep.subr.mxu0 0.0
        %2000 = vmatpush1.msra.mxu0 0.0
        %2001 = vmatprep.subr.mxu0 0.0
        %2002 = vmatpush1.msra.mxu0 0.0
        %2003 = vmatprep.subr.mxu0 0.0
        %2004 = vmatpush1.msra.mxu0 0.0
        %2005 = vmatprep.subr.mxu0 0.0
        %2006 = vmatpush1.msra.mxu0 0.0
        %2007 = vmatprep.subr.mxu0 0.0
        %2008 = vmatpush1.msra.mxu0 0.0
        %2009 = vmatprep.subr.mxu0 0.0
        %2010 = vmatpush1.msra.mxu0 0.0
        %2011 = vmatprep.subr.mxu0 0.0
        %2012 = vmatpush1.msra.mxu0 0.0
        %2013 = vmatprep.subr.mxu0 0.0
        %2014 = vmatpush1.msra.mxu0 0.0
        %2015 = vmatprep.subr.mxu0 0.0
        %2016 = vmatpush1.msra.mxu0 0.0
        %2017 = vmatprep.subr.mxu0 0.0
        %2018 = vmatpush1.msra.mxu0 0.0
        %2019 = vmatprep.subr.mxu0 0.0
        %2020 = vmatpush1.msra.mxu0 0.0
        %2021 = vmatprep.subr.mxu0 0.0
        %2022 = vmatpush1.msra.mxu0 0.0
        %2023 = vmatprep.subr.mxu0 0.0
        %2024 = vmatpush1.msra.mxu0 0.0
        %2025 = vmatprep.subr.mxu0 0.0
        %2026 = vmatpush1.msra.mxu0 0.0
        %2027 = vmatprep.subr.mxu0 0.0
        %2028 = vmatpush1.msra.mxu0 0.0
        %2029 = vmatprep.subr.mxu0 0.0
        %2030 = vmatpush1.msra.mxu0 0.0
        %2031 = vmatprep.subr.mxu0 0.0
        %2032 = vmatpush1.msra.mxu0 0.0
        %2033 = vmatprep.subr.mxu0 0.0
        %2034 = vmatpush1.msra.mxu0 0.0
        %2035 = vmatprep.subr.mxu0 0.0
        %2036 = vmatpush1.msra.mxu0 0.0
        %2037 = vmatprep.subr.mxu0 0.0
        %2038 = vmatpush1.msra.mxu0 0.0
        %2039 = vmatprep.subr.mxu0 0.0
        %2040 = vmatpush1.msra.mxu0 0.0
        %2041 = vmatprep.subr.mxu0 0.0
        %2042 = vmatpush1.msra.mxu0 0.0
        %2043 = vmatprep.subr.mxu0 0.0
        %2044 = vmatpush1.msra.mxu0 0.0
        %2045 = vmatprep.subr.mxu0 0.0
        %2046 = vmatpush1.msra.mxu0 0.0
        %2047 = vmatprep.subr.mxu0 0.0
        %2048 = vmatpush1.msra.mxu0 0.0
        %2049 = vmatprep.mubr.f32.mxu0 0.0
        %2050 = vmatmul.mubr.f32.gmra.mrb[0].mxu0 %v1981
        %v2051 = vpop.f32.mrb[0].mxu0
        %v2052 = vadd.f32 %v1978, %v2051
        %v2053 = vpop.f32.mrb[0].mxu0
        %2054 = vdwg.mxu0
        %v2055 = vadd.f32 %v1970, 0.0
        %v2056 = vsub.f32 %v2055, 0.5
        %vm2057 = vcmp.gt.f32.partialorder %v2056, 0.0
        %v2058 = vsel %vm2057, 1, 0
        %v2059 = vcvt.s32.f32 %v2058
        %v2060 = vmax.f32 %v2052, 0.0
        %v2062 = vrot.slane %v2060, 4
        %v2064 = vadd.f32 %v1970, %v2062
        %v2065 = vtanh.pop %v2064
        %v2066 = vsel %vm1040, %v2059, %v2065
        %v2067 = vld [vmem:[%s11] sm:$0xff]
        %v2068 = vld [vmem:[%s11 + $0x8] sm:$0xff]
        %v2069 = vld [vmem:[%s11 + $0x10] sm:$0xff]
        %v2070 = vld [vmem:[%s11 + $0x18] sm:$0xff]
        %v2071 = vld [vmem:[%s11 + $0x20] sm:$0xff]
        %v2072 = vld [vmem:[%s11 + $0x28] sm:$0xff]
        %v2073 = vld [vmem:[%s11 + $0x30] sm:$0xff]
        %v2074 = vld [vmem:[%s11 + $0x38] sm:$0xff]
        %s2075 = scalar_lea.vmem %s545, 4
        %v2076 = vld [vmem:[%s2075] sm:$0xf]
        %2078 = vrot.lane.b32.xlu0 %v2076, 17
        %v2079 = vpop.permute.xlu0 %2078
        %v2080 = vrot.slane %v2079, 6
        %v2081 = vsel %vm564, %v2080, %v2079
        %2083 = vst.msk [vmem:[#allocation2] sm:$0x3f] %vm570, %v2081
        %v2084 = vld [vmem:[#allocation2] sm:$0xf]
        %v2085 = vld [vmem:[%s6] ss:$8 sm:$0x3]
        %v2087 = vlaneseq
        %v2088 = vshrl.u32 %v2087, 7
        %v2089 = vsub.s32 0, %v2088
        %v2090 = vrot.slane %v2085, %v2089
        %v2091 = vlaneseq
        %v2092 = vshrl.u32 %v2091, 7
        %v2093 = vsub.s32 1, %v2092
        %v2094 = vrot.slane %v2085, %v2093
        %v2095 = vcombine.low %v2090, %v2094
        %v2097 = vunpack.c.l.s4 1983009808
        %v2098 = vunpack.c.0.s8 %v2097
        %v2099 = vlaneseq
        %v2100 = vshrl.u32 %v2099, 7
        %v2101 = vsub.s32 %v2098, %v2100
        %v2102 = vrot.slane %v2095, %v2101
        %v2104 = vmul.f32 %v2084, %v2102
        %v2105 = vld [vmem:[#allocation2] sm:$0x3f]
        %v2106 = vld [vmem:[%s594] ss:$8 sm:$0x3]
        %v2108 = vlaneseq
        %v2109 = vshrl.u32 %v2108, 7
        %v2110 = vsub.s32 0, %v2109
        %v2111 = vrot.slane %v2106, %v2110
        %v2112 = vlaneseq
        %v2113 = vshrl.u32 %v2112, 7
        %v2114 = vsub.s32 1, %v2113
        %v2115 = vrot.slane %v2106, %v2114
        %v2116 = vcombine.low %v2111, %v2115
        %v2118 = vunpack.c.l.s4 1983009808
        %v2119 = vunpack.c.0.s8 %v2118
        %v2120 = vlaneseq
        %v2121 = vshrl.u32 %v2120, 7
        %v2122 = vsub.s32 %v2119, %v2121
        %v2123 = vrot.slane %v2116, %v2122
        %2124 = vrot.lane.b32.xlu0 %v2123, 1
        %v2125 = vpop.permute.xlu0 %2124
        %v2126 = vrot.slane %v2125, 6
        %v2127 = vsel %vm616, %v2126, %v2125
        %v2129 = vmul.f32 %v2105, %v2127
        %v2130 = vld [vmem:[%s620] ss:$8 sm:$0x3]
        %v2132 = vlaneseq
        %v2133 = vshrl.u32 %v2132, 7
        %v2134 = vsub.s32 0, %v2133
        %v2135 = vrot.slane %v2130, %v2134
        %v2136 = vlaneseq
        %v2137 = vshrl.u32 %v2136, 7
        %v2138 = vsub.s32 1, %v2137
        %v2139 = vrot.slane %v2130, %v2138
        %v2140 = vcombine.low %v2135, %v2139
        %v2142 = vunpack.c.l.s4 1983009808
        %v2143 = vunpack.c.0.s8 %v2142
        %v2144 = vlaneseq
        %v2145 = vshrl.u32 %v2144, 7
        %v2146 = vsub.s32 %v2143, %v2145
        %v2147 = vrot.slane %v2140, %v2146
        %2148 = vrot.lane.b32.xlu0 %v2147, 2
        %v2149 = vpop.permute.xlu0 %2148
        %v2150 = vrot.slane %v2149, 6
        %v2151 = vsel %vm642, %v2150, %v2149
        %v2153 = vmul.f32 %v2105, %v2151
        %v2154 = vld [vmem:[%s646] ss:$8 sm:$0x3]
        %v2156 = vlaneseq
        %v2157 = vshrl.u32 %v2156, 7
        %v2158 = vsub.s32 0, %v2157
        %v2159 = vrot.slane %v2154, %v2158
        %v2160 = vlaneseq
        %v2161 = vshrl.u32 %v2160, 7
        %v2162 = vsub.s32 1, %v2161
        %v2163 = vrot.slane %v2154, %v2162
        %v2164 = vcombine.low %v2159, %v2163
        %v2166 = vunpack.c.l.s4 1983009808
        %v2167 = vunpack.c.0.s8 %v2166
        %v2168 = vlaneseq
        %v2169 = vshrl.u32 %v2168, 7
        %v2170 = vsub.s32 %v2167, %v2169
        %v2171 = vrot.slane %v2164, %v2170
        %2172 = vrot.lane.b32.xlu0 %v2171, 16
        %v2173 = vpop.permute.xlu0 %2172
        %v2174 = vrot.slane %v2173, 6
        %v2175 = vsel %vm668, %v2174, %v2173
        %v2177 = vmul.f32 %v2105, %v2175
        %v2178 = vld [vmem:[%s672] ss:$8 sm:$0x3]
        %v2180 = vlaneseq
        %v2181 = vshrl.u32 %v2180, 7
        %v2182 = vsub.s32 0, %v2181
        %v2183 = vrot.slane %v2178, %v2182
        %v2184 = vlaneseq
        %v2185 = vshrl.u32 %v2184, 7
        %v2186 = vsub.s32 1, %v2185
        %v2187 = vrot.slane %v2178, %v2186
        %v2188 = vcombine.low %v2183, %v2187
        %v2190 = vunpack.c.l.s4 1983009808
        %v2191 = vunpack.c.0.s8 %v2190
        %v2192 = vlaneseq
        %v2193 = vshrl.u32 %v2192, 7
        %v2194 = vsub.s32 %v2191, %v2193
        %v2195 = vrot.slane %v2188, %v2194
        %2196 = vrot.lane.b32.xlu0 %v2195, 17
        %v2197 = vpop.permute.xlu0 %2196
        %v2198 = vrot.slane %v2197, 6
        %v2199 = vsel %vm564, %v2198, %v2197
        %v2201 = vmul.f32 %v2105, %v2199
        %v2202 = vld [vmem:[%s697] ss:$8 sm:$0x3]
        %v2204 = vlaneseq
        %v2205 = vshrl.u32 %v2204, 7
        %v2206 = vsub.s32 0, %v2205
        %v2207 = vrot.slane %v2202, %v2206
        %v2208 = vlaneseq
        %v2209 = vshrl.u32 %v2208, 7
        %v2210 = vsub.s32 1, %v2209
        %v2211 = vrot.slane %v2202, %v2210
        %v2212 = vcombine.low %v2207, %v2211
        %v2214 = vunpack.c.l.s4 1983009808
        %v2215 = vunpack.c.0.s8 %v2214
        %v2216 = vlaneseq
        %v2217 = vshrl.u32 %v2216, 7
        %v2218 = vsub.s32 %v2215, %v2217
        %v2219 = vrot.slane %v2212, %v2218
        %2220 = vrot.lane.b32.xlu0 %v2219, 18
        %v2221 = vpop.permute.xlu0 %2220
        %v2222 = vrot.slane %v2221, 6
        %v2223 = vsel %vm719, %v2222, %v2221
        %v2225 = vmul.f32 %v2105, %v2223
        %v2226 = vld [vmem:[%s723] ss:$8 sm:$0x3]
        %v2228 = vlaneseq
        %v2229 = vshrl.u32 %v2228, 7
        %v2230 = vsub.s32 0, %v2229
        %v2231 = vrot.slane %v2226, %v2230
        %v2232 = vlaneseq
        %v2233 = vshrl.u32 %v2232, 7
        %v2234 = vsub.s32 1, %v2233
        %v2235 = vrot.slane %v2226, %v2234
        %v2236 = vcombine.low %v2231, %v2235
        %v2238 = vunpack.c.l.s4 1983009808
        %v2239 = vunpack.c.0.s8 %v2238
        %v2240 = vlaneseq
        %v2241 = vshrl.u32 %v2240, 7
        %v2242 = vsub.s32 %v2239, %v2241
        %v2243 = vrot.slane %v2236, %v2242
        %2244 = vrot.lane.b32.xlu0 %v2243, 32
        %v2245 = vpop.permute.xlu0 %2244
        %v2246 = vrot.slane %v2245, 6
        %v2247 = vsel %vm745, %v2246, %v2245
        %v2249 = vmul.f32 %v2105, %v2247
        %v2250 = vld [vmem:[%s749] ss:$8 sm:$0x3]
        %v2252 = vlaneseq
        %v2253 = vshrl.u32 %v2252, 7
        %v2254 = vsub.s32 0, %v2253
        %v2255 = vrot.slane %v2250, %v2254
        %v2256 = vlaneseq
        %v2257 = vshrl.u32 %v2256, 7
        %v2258 = vsub.s32 1, %v2257
        %v2259 = vrot.slane %v2250, %v2258
        %v2260 = vcombine.low %v2255, %v2259
        %v2262 = vunpack.c.l.s4 1983009808
        %v2263 = vunpack.c.0.s8 %v2262
        %v2264 = vlaneseq
        %v2265 = vshrl.u32 %v2264, 7
        %v2266 = vsub.s32 %v2263, %v2265
        %v2267 = vrot.slane %v2260, %v2266
        %2268 = vrot.lane.b32.xlu0 %v2267, 33
        %v2269 = vpop.permute.xlu0 %2268
        %v2270 = vrot.slane %v2269, 6
        %v2271 = vsel %vm771, %v2270, %v2269
        %v2273 = vmul.f32 %v2105, %v2271
        %v2274 = vld [vmem:[%s775] ss:$8 sm:$0x3]
        %v2276 = vlaneseq
        %v2277 = vshrl.u32 %v2276, 7
        %v2278 = vsub.s32 0, %v2277
        %v2279 = vrot.slane %v2274, %v2278
        %v2280 = vlaneseq
        %v2281 = vshrl.u32 %v2280, 7
        %v2282 = vsub.s32 1, %v2281
        %v2283 = vrot.slane %v2274, %v2282
        %v2284 = vcombine.low %v2279, %v2283
        %v2286 = vunpack.c.l.s4 1983009808
        %v2287 = vunpack.c.0.s8 %v2286
        %v2288 = vlaneseq
        %v2289 = vshrl.u32 %v2288, 7
        %v2290 = vsub.s32 %v2287, %v2289
        %v2291 = vrot.slane %v2284, %v2290
        %2292 = vrot.lane.b32.xlu0 %v2291, 34
        %v2293 = vpop.permute.xlu0 %2292
        %v2294 = vrot.slane %v2293, 6
        %v2295 = vsel %vm797, %v2294, %v2293
        %v2297 = vmul.f32 %v2105, %v2295
        %v2300 = vunpack.c.l.s4 1983009808
        %v2301 = vunpack.c.0.s8 %v2300
        %v2302 = vlaneseq
        %v2303 = vshrl.u32 %v2302, 7
        %v2304 = vsub.s32 %v2301, %v2303
        %v2305 = vrot.slane %v2104, %v2304
        %v2306 = vcombine.high %v2305, %v2305
        %v2310 = vcombine.low %v2129, %v2129
        %v2312 = vunpack.c.l.s4 1983009808
        %v2313 = vunpack.c.0.s8 %v2312
        %v2314 = vlaneseq
        %v2315 = vshrl.u32 %v2314, 7
        %v2316 = vsub.s32 %v2313, %v2315
        %v2317 = vrot.slane %v2310, %v2316
        %v2319 = vunpack.c.l.s4 1983009808
        %v2320 = vunpack.c.0.s8 %v2319
        %v2321 = vlaneseq
        %v2322 = vshrl.u32 %v2321, 7
        %v2323 = vsub.s32 %v2320, %v2322
        %v2324 = vrot.slane %v2129, %v2323
        %v2325 = vcombine.high %v2317, %v2317
        %2326 = vrot.lane.b32.xlu0 %v2317, 127
        %v2327 = vpop.permute.xlu0 %2326
        %2328 = vrot.lane.b32.xlu0 %v2325, 127
        %v2329 = vpop.permute.xlu0 %2328
        %2330 = vrot.lane.b32.xlu0 %v2324, 127
        %v2331 = vpop.permute.xlu0 %2330
        %v2332 = vsel %vm835, %v2327, %v2329
        %v2333 = vsel %vm835, %v2329, %v2331
        %v2337 = vcombine.high %v2153, %v2153
        %v2339 = vunpack.c.l.s4 1983009808
        %v2340 = vunpack.c.0.s8 %v2339
        %v2341 = vlaneseq
        %v2342 = vshrl.u32 %v2341, 7
        %v2343 = vsub.s32 %v2340, %v2342
        %v2344 = vrot.slane %v2153, %v2343
        %v2346 = vunpack.c.l.s4 1983009808
        %v2347 = vunpack.c.0.s8 %v2346
        %v2348 = vlaneseq
        %v2349 = vshrl.u32 %v2348, 7
        %v2350 = vsub.s32 %v2347, %v2349
        %v2351 = vrot.slane %v2337, %v2350
        %v2352 = vcombine.low %v2344, %v2344
        %v2353 = vcombine.low %v2351, %v2351
        %2354 = vrot.lane.b32.xlu0 %v2352, 126
        %v2355 = vpop.permute.xlu0 %2354
        %2356 = vrot.lane.b32.xlu0 %v2344, 126
        %v2357 = vpop.permute.xlu0 %2356
        %2358 = vrot.lane.b32.xlu0 %v2353, 126
        %v2359 = vpop.permute.xlu0 %2358
        %v2360 = vsel %vm864, %v2355, %v2357
        %v2361 = vsel %vm864, %v2357, %v2359
        %v2365 = vcombine.low %v2177, %v2177
        %v2367 = vunpack.c.l.s4 1983009808
        %v2368 = vunpack.c.0.s8 %v2367
        %v2369 = vlaneseq
        %v2370 = vshrl.u32 %v2369, 7
        %v2371 = vsub.s32 %v2368, %v2370
        %v2372 = vrot.slane %v2365, %v2371
        %v2374 = vunpack.c.l.s4 1983009808
        %v2375 = vunpack.c.0.s8 %v2374
        %v2376 = vlaneseq
        %v2377 = vshrl.u32 %v2376, 7
        %v2378 = vsub.s32 %v2375, %v2377
        %v2379 = vrot.slane %v2177, %v2378
        %v2380 = vcombine.low %v2372, %v2372
        %v2381 = vcombine.low %v2379, %v2379
        %2382 = vrot.lane.b32.xlu0 %v2380, 112
        %v2383 = vpop.permute.xlu0 %2382
        %2384 = vrot.lane.b32.xlu0 %v2372, 112
        %v2385 = vpop.permute.xlu0 %2384
        %2386 = vrot.lane.b32.xlu0 %v2381, 112
        %v2387 = vpop.permute.xlu0 %2386
        %v2388 = vsel %vm893, %v2383, %v2385
        %v2389 = vsel %vm893, %v2385, %v2387
        %v2393 = vcombine.high %v2201, %v2201
        %v2395 = vunpack.c.l.s4 1983009808
        %v2396 = vunpack.c.0.s8 %v2395
        %v2397 = vlaneseq
        %v2398 = vshrl.u32 %v2397, 7
        %v2399 = vsub.s32 %v2396, %v2398
        %v2400 = vrot.slane %v2201, %v2399
        %v2402 = vunpack.c.l.s4 1983009808
        %v2403 = vunpack.c.0.s8 %v2402
        %v2404 = vlaneseq
        %v2405 = vshrl.u32 %v2404, 7
        %v2406 = vsub.s32 %v2403, %v2405
        %v2407 = vrot.slane %v2393, %v2406
        %v2408 = vcombine.high %v2400, %v2400
        %2409 = vrot.lane.b32.xlu0 %v2400, 111
        %v2410 = vpop.permute.xlu0 %2409
        %2411 = vrot.lane.b32.xlu0 %v2408, 111
        %v2412 = vpop.permute.xlu0 %2411
        %2413 = vrot.lane.b32.xlu0 %v2407, 111
        %v2414 = vpop.permute.xlu0 %2413
        %v2415 = vsel %vm921, %v2410, %v2412
        %v2416 = vsel %vm921, %v2412, %v2414
        %v2420 = vcombine.low %v2225, %v2225
        %v2422 = vunpack.c.l.s4 1983009808
        %v2423 = vunpack.c.0.s8 %v2422
        %v2424 = vlaneseq
        %v2425 = vshrl.u32 %v2424, 7
        %v2426 = vsub.s32 %v2423, %v2425
        %v2427 = vrot.slane %v2420, %v2426
        %v2429 = vunpack.c.l.s4 1983009808
        %v2430 = vunpack.c.0.s8 %v2429
        %v2431 = vlaneseq
        %v2432 = vshrl.u32 %v2431, 7
        %v2433 = vsub.s32 %v2430, %v2432
        %v2434 = vrot.slane %v2225, %v2433
        %v2435 = vcombine.high %v2427, %v2427
        %2436 = vrot.lane.b32.xlu0 %v2427, 110
        %v2437 = vpop.permute.xlu0 %2436
        %2438 = vrot.lane.b32.xlu0 %v2435, 110
        %v2439 = vpop.permute.xlu0 %2438
        %2440 = vrot.lane.b32.xlu0 %v2434, 110
        %v2441 = vpop.permute.xlu0 %2440
        %v2442 = vsel %vm949, %v2437, %v2439
        %v2443 = vsel %vm949, %v2439, %v2441
        %v2447 = vcombine.high %v2249, %v2249
        %v2449 = vunpack.c.l.s4 1983009808
        %v2450 = vunpack.c.0.s8 %v2449
        %v2451 = vlaneseq
        %v2452 = vshrl.u32 %v2451, 7
        %v2453 = vsub.s32 %v2450, %v2452
        %v2454 = vrot.slane %v2249, %v2453
        %v2456 = vunpack.c.l.s4 1983009808
        %v2457 = vunpack.c.0.s8 %v2456
        %v2458 = vlaneseq
        %v2459 = vshrl.u32 %v2458, 7
        %v2460 = vsub.s32 %v2457, %v2459
        %v2461 = vrot.slane %v2447, %v2460
        %v2462 = vcombine.low %v2454, %v2454
        %v2463 = vcombine.low %v2461, %v2461
        %2464 = vrot.lane.b32.xlu0 %v2462, 96
        %v2465 = vpop.permute.xlu0 %2464
        %2466 = vrot.lane.b32.xlu0 %v2454, 96
        %v2467 = vpop.permute.xlu0 %2466
        %2468 = vrot.lane.b32.xlu0 %v2463, 96
        %v2469 = vpop.permute.xlu0 %2468
        %v2470 = vsel %vm978, %v2465, %v2467
        %v2471 = vsel %vm978, %v2467, %v2469
        %v2475 = vcombine.low %v2273, %v2273
        %v2477 = vunpack.c.l.s4 1983009808
        %v2478 = vunpack.c.0.s8 %v2477
        %v2479 = vlaneseq
        %v2480 = vshrl.u32 %v2479, 7
        %v2481 = vsub.s32 %v2478, %v2480
        %v2482 = vrot.slane %v2475, %v2481
        %v2484 = vunpack.c.l.s4 1983009808
        %v2485 = vunpack.c.0.s8 %v2484
        %v2486 = vlaneseq
        %v2487 = vshrl.u32 %v2486, 7
        %v2488 = vsub.s32 %v2485, %v2487
        %v2489 = vrot.slane %v2273, %v2488
        %v2490 = vcombine.low %v2482, %v2482
        %v2491 = vcombine.low %v2489, %v2489
        %2492 = vrot.lane.b32.xlu0 %v2490, 95
        %v2493 = vpop.permute.xlu0 %2492
        %2494 = vrot.lane.b32.xlu0 %v2482, 95
        %v2495 = vpop.permute.xlu0 %2494
        %2496 = vrot.lane.b32.xlu0 %v2491, 95
        %v2497 = vpop.permute.xlu0 %2496
        %v2498 = vsel %vm1007, %v2493, %v2495
        %v2499 = vsel %vm1007, %v2495, %v2497
        %v2503 = vcombine.high %v2297, %v2297
        %v2505 = vunpack.c.l.s4 1983009808
        %v2506 = vunpack.c.0.s8 %v2505
        %v2507 = vlaneseq
        %v2508 = vshrl.u32 %v2507, 7
        %v2509 = vsub.s32 %v2506, %v2508
        %v2510 = vrot.slane %v2297, %v2509
        %v2512 = vunpack.c.l.s4 1983009808
        %v2513 = vunpack.c.0.s8 %v2512
        %v2514 = vlaneseq
        %v2515 = vshrl.u32 %v2514, 7
        %v2516 = vsub.s32 %v2513, %v2515
        %v2517 = vrot.slane %v2503, %v2516
        %v2518 = vcombine.high %v2510, %v2510
        %2519 = vrot.lane.b32.xlu0 %v2510, 94
        %v2520 = vpop.permute.xlu0 %2519
        %2521 = vrot.lane.b32.xlu0 %v2518, 94
        %v2522 = vpop.permute.xlu0 %2521
        %2523 = vrot.lane.b32.xlu0 %v2517, 94
        %v2524 = vpop.permute.xlu0 %2523
        %v2525 = vsel %vm1035, %v2520, %v2522
        %v2526 = vsel %vm1035, %v2522, %v2524
        %v2527 = vsel %vm546, %v2305, %v2332
        %v2528 = vsel %vm546, %v2306, %v2333
        %v2529 = vsel %vm1040, %v2527, %v2360
        %v2530 = vsel %vm1040, %v2528, %v2361
        %v2531 = vsel %vm1043, %v2529, %v2388
        %v2532 = vsel %vm1043, %v2530, %v2389
        %v2533 = vsel %vm546, %v2415, %v2442
        %v2534 = vsel %vm546, %v2416, %v2443
        %v2535 = vsel %vm1040, %v2533, %v2470
        %v2536 = vsel %vm1040, %v2534, %v2471
        %v2537 = vsel %vm1043, %v2535, %v2498
        %v2538 = vsel %vm1043, %v2536, %v2499
        %v2541 = vcombine.high %v1533, %v1534
        %2542 = vrot.lane.b32.xlu0 %v2541, 17
        %v2543 = vpop.permute.xlu0 %2542
        %v2544 = vrot.slane %v2543, 4
        %v2545 = vsel %vm564, %v2544, %v2543
        %2548 = vst.msk [vmem:[#allocation3] sm:$0xff] %vm1054, %v2545
        %2549 = vst.msk [vmem:[#allocation3 + $0x8] sm:$0xf] %vm1056, %v2544
        %v2550 = vld [vmem:[#allocation3] sm:$0xff]
        %v2551 = vld [vmem:[%s6] ss:$8 sm:$0x3]
        %v2553 = vlaneseq
        %v2554 = vshrl.u32 %v2553, 7
        %v2555 = vsub.s32 0, %v2554
        %v2556 = vrot.slane %v2551, %v2555
        %v2557 = vlaneseq
        %v2558 = vshrl.u32 %v2557, 7
        %v2559 = vsub.s32 1, %v2558
        %v2560 = vrot.slane %v2551, %v2559
        %v2561 = vcombine.low %v2556, %v2560
        %v2563 = vmul.f32 %v2550, %v2561
        %v2564 = vld [vmem:[#allocation3 + $0x8] sm:$0xf]
        %v2565 = vld [vmem:[%s594] ss:$8 sm:$0x3]
        %v2567 = vlaneseq
        %v2568 = vshrl.u32 %v2567, 7
        %v2569 = vsub.s32 0, %v2568
        %v2570 = vrot.slane %v2565, %v2569
        %v2571 = vlaneseq
        %v2572 = vshrl.u32 %v2571, 7
        %v2573 = vsub.s32 1, %v2572
        %v2574 = vrot.slane %v2565, %v2573
        %v2575 = vcombine.low %v2570, %v2574
        %2576 = vrot.lane.b32.xlu0 %v2575, 1
        %v2577 = vpop.permute.xlu0 %2576
        %v2578 = vrot.slane %v2577, 4
        %v2579 = vsel %vm616, %v2578, %v2577
        %v2582 = vmul.f32 %v2550, %v2579
        %v2583 = vmul.f32 %v2564, %v2578
        %v2584 = vld [vmem:[%s620] ss:$8 sm:$0x3]
        %v2586 = vlaneseq
        %v2587 = vshrl.u32 %v2586, 7
        %v2588 = vsub.s32 0, %v2587
        %v2589 = vrot.slane %v2584, %v2588
        %v2590 = vlaneseq
        %v2591 = vshrl.u32 %v2590, 7
        %v2592 = vsub.s32 1, %v2591
        %v2593 = vrot.slane %v2584, %v2592
        %v2594 = vcombine.low %v2589, %v2593
        %2595 = vrot.lane.b32.xlu0 %v2594, 2
        %v2596 = vpop.permute.xlu0 %2595
        %v2597 = vrot.slane %v2596, 4
        %v2598 = vsel %vm642, %v2597, %v2596
        %v2601 = vmul.f32 %v2550, %v2598
        %v2602 = vmul.f32 %v2564, %v2597
        %v2603 = vld [vmem:[%s646] ss:$8 sm:$0x3]
        %v2605 = vlaneseq
        %v2606 = vshrl.u32 %v2605, 7
        %v2607 = vsub.s32 0, %v2606
        %v2608 = vrot.slane %v2603, %v2607
        %v2609 = vlaneseq
        %v2610 = vshrl.u32 %v2609, 7
        %v2611 = vsub.s32 1, %v2610
        %v2612 = vrot.slane %v2603, %v2611
        %v2613 = vcombine.low %v2608, %v2612
        %2614 = vrot.lane.b32.xlu0 %v2613, 16
        %v2615 = vpop.permute.xlu0 %2614
        %v2616 = vrot.slane %v2615, 4
        %v2617 = vsel %vm668, %v2616, %v2615
        %v2620 = vmul.f32 %v2550, %v2617
        %v2621 = vmul.f32 %v2564, %v2616
        %v2622 = vld [vmem:[%s672] ss:$8 sm:$0x3]
        %v2624 = vlaneseq
        %v2625 = vshrl.u32 %v2624, 7
        %v2626 = vsub.s32 0, %v2625
        %v2627 = vrot.slane %v2622, %v2626
        %v2628 = vlaneseq
        %v2629 = vshrl.u32 %v2628, 7
        %v2630 = vsub.s32 1, %v2629
        %v2631 = vrot.slane %v2622, %v2630
        %v2632 = vcombine.low %v2627, %v2631
        %2633 = vrot.lane.b32.xlu0 %v2632, 17
        %v2634 = vpop.permute.xlu0 %2633
        %v2635 = vrot.slane %v2634, 4
        %v2636 = vsel %vm564, %v2635, %v2634
        %v2639 = vmul.f32 %v2550, %v2636
        %v2640 = vmul.f32 %v2564, %v2635
        %v2641 = vld [vmem:[%s697] ss:$8 sm:$0x3]
        %v2643 = vlaneseq
        %v2644 = vshrl.u32 %v2643, 7
        %v2645 = vsub.s32 0, %v2644
        %v2646 = vrot.slane %v2641, %v2645
        %v2647 = vlaneseq
        %v2648 = vshrl.u32 %v2647, 7
        %v2649 = vsub.s32 1, %v2648
        %v2650 = vrot.slane %v2641, %v2649
        %v2651 = vcombine.low %v2646, %v2650
        %2652 = vrot.lane.b32.xlu0 %v2651, 18
        %v2653 = vpop.permute.xlu0 %2652
        %v2654 = vrot.slane %v2653, 4
        %v2655 = vsel %vm719, %v2654, %v2653
        %v2658 = vmul.f32 %v2550, %v2655
        %v2659 = vmul.f32 %v2564, %v2654
        %v2660 = vld [vmem:[%s723] ss:$8 sm:$0x3]
        %v2662 = vlaneseq
        %v2663 = vshrl.u32 %v2662, 7
        %v2664 = vsub.s32 0, %v2663
        %v2665 = vrot.slane %v2660, %v2664
        %v2666 = vlaneseq
        %v2667 = vshrl.u32 %v2666, 7
        %v2668 = vsub.s32 1, %v2667
        %v2669 = vrot.slane %v2660, %v2668
        %v2670 = vcombine.low %v2665, %v2669
        %2671 = vrot.lane.b32.xlu0 %v2670, 32
        %v2672 = vpop.permute.xlu0 %2671
        %v2673 = vrot.slane %v2672, 4
        %v2674 = vsel %vm745, %v2673, %v2672
        %v2677 = vmul.f32 %v2550, %v2674
        %v2678 = vmul.f32 %v2564, %v2673
        %v2679 = vld [vmem:[%s749] ss:$8 sm:$0x3]
        %v2681 = vlaneseq
        %v2682 = vshrl.u32 %v2681, 7
        %v2683 = vsub.s32 0, %v2682
        %v2684 = vrot.slane %v2679, %v2683
        %v2685 = vlaneseq
        %v2686 = vshrl.u32 %v2685, 7
        %v2687 = vsub.s32 1, %v2686
        %v2688 = vrot.slane %v2679, %v2687
        %v2689 = vcombine.low %v2684, %v2688
        %2690 = vrot.lane.b32.xlu0 %v2689, 33
        %v2691 = vpop.permute.xlu0 %2690
        %v2692 = vrot.slane %v2691, 4
        %v2693 = vsel %vm771, %v2692, %v2691
        %v2696 = vmul.f32 %v2550, %v2693
        %v2697 = vmul.f32 %v2564, %v2692
        %v2698 = vld [vmem:[%s775] ss:$8 sm:$0x3]
        %v2700 = vlaneseq
        %v2701 = vshrl.u32 %v2700, 7
        %v2702 = vsub.s32 0, %v2701
        %v2703 = vrot.slane %v2698, %v2702
        %v2704 = vlaneseq
        %v2705 = vshrl.u32 %v2704, 7
        %v2706 = vsub.s32 1, %v2705
        %v2707 = vrot.slane %v2698, %v2706
        %v2708 = vcombine.low %v2703, %v2707
        %2709 = vrot.lane.b32.xlu0 %v2708, 34
        %v2710 = vpop.permute.xlu0 %2709
        %v2711 = vrot.slane %v2710, 4
        %v2712 = vsel %vm797, %v2711, %v2710
        %v2715 = vmul.f32 %v2550, %v2712
        %v2716 = vmul.f32 %v2564, %v2711
        %v2718 = vcombine.high %v2563, %v2563
        %v2722 = vcombine.low %v2582, %v2582
        %v2723 = vcombine.low %v2583, %v2583
        %2724 = vrot.lane.b32.xlu0 %v2722, 127
        %v2725 = vpop.permute.xlu0 %2724
        %2726 = vrot.lane.b32.xlu0 %v2582, 127
        %v2727 = vpop.permute.xlu0 %2726
        %2728 = vrot.lane.b32.xlu0 %v2723, 127
        %v2729 = vpop.permute.xlu0 %2728
        %v2730 = vsel %vm835, %v2725, %v2727
        %v2731 = vsel %vm835, %v2727, %v2729
        %v2736 = vcombine.high %v2601, %v2601
        %2737 = vrot.lane.b32.xlu0 %v2601, 126
        %v2738 = vpop.permute.xlu0 %2737
        %2739 = vrot.lane.b32.xlu0 %v2736, 126
        %v2740 = vpop.permute.xlu0 %2739
        %2741 = vrot.lane.b32.xlu0 %v2602, 126
        %v2742 = vpop.permute.xlu0 %2741
        %v2743 = vsel %vm864, %v2738, %v2740
        %v2744 = vsel %vm864, %v2740, %v2742
        %v2749 = vcombine.low %v2620, %v2620
        %v2750 = vcombine.low %v2621, %v2621
        %2751 = vrot.lane.b32.xlu0 %v2749, 112
        %v2752 = vpop.permute.xlu0 %2751
        %2753 = vrot.lane.b32.xlu0 %v2620, 112
        %v2754 = vpop.permute.xlu0 %2753
        %2755 = vrot.lane.b32.xlu0 %v2750, 112
        %v2756 = vpop.permute.xlu0 %2755
        %v2757 = vsel %vm893, %v2752, %v2754
        %v2758 = vsel %vm893, %v2754, %v2756
        %v2763 = vcombine.high %v2639, %v2639
        %2764 = vrot.lane.b32.xlu0 %v2639, 111
        %v2765 = vpop.permute.xlu0 %2764
        %2766 = vrot.lane.b32.xlu0 %v2763, 111
        %v2767 = vpop.permute.xlu0 %2766
        %2768 = vrot.lane.b32.xlu0 %v2640, 111
        %v2769 = vpop.permute.xlu0 %2768
        %v2770 = vsel %vm921, %v2765, %v2767
        %v2771 = vsel %vm921, %v2767, %v2769
        %v2776 = vcombine.low %v2658, %v2658
        %v2777 = vcombine.low %v2659, %v2659
        %2778 = vrot.lane.b32.xlu0 %v2776, 110
        %v2779 = vpop.permute.xlu0 %2778
        %2780 = vrot.lane.b32.xlu0 %v2658, 110
        %v2781 = vpop.permute.xlu0 %2780
        %2782 = vrot.lane.b32.xlu0 %v2777, 110
        %v2783 = vpop.permute.xlu0 %2782
        %v2784 = vsel %vm949, %v2779, %v2781
        %v2785 = vsel %vm949, %v2781, %v2783
        %v2790 = vcombine.high %v2677, %v2677
        %2791 = vrot.lane.b32.xlu0 %v2677, 96
        %v2792 = vpop.permute.xlu0 %2791
        %2793 = vrot.lane.b32.xlu0 %v2790, 96
        %v2794 = vpop.permute.xlu0 %2793
        %2795 = vrot.lane.b32.xlu0 %v2678, 96
        %v2796 = vpop.permute.xlu0 %2795
        %v2797 = vsel %vm978, %v2792, %v2794
        %v2798 = vsel %vm978, %v2794, %v2796
        %v2803 = vcombine.low %v2696, %v2696
        %v2804 = vcombine.low %v2697, %v2697
        %2805 = vrot.lane.b32.xlu0 %v2803, 95
        %v2806 = vpop.permute.xlu0 %2805
        %2807 = vrot.lane.b32.xlu0 %v2696, 95
        %v2808 = vpop.permute.xlu0 %2807
        %2809 = vrot.lane.b32.xlu0 %v2804, 95
        %v2810 = vpop.permute.xlu0 %2809
        %v2811 = vsel %vm1007, %v2806, %v2808
        %v2812 = vsel %vm1007, %v2808, %v2810
        %v2817 = vcombine.high %v2715, %v2715
        %2818 = vrot.lane.b32.xlu0 %v2715, 94
        %v2819 = vpop.permute.xlu0 %2818
        %2820 = vrot.lane.b32.xlu0 %v2817, 94
        %v2821 = vpop.permute.xlu0 %2820
        %2822 = vrot.lane.b32.xlu0 %v2716, 94
        %v2823 = vpop.permute.xlu0 %2822
        %v2824 = vsel %vm1035, %v2819, %v2821
        %v2825 = vsel %vm1035, %v2821, %v2823
        %v2826 = vsel %vm1040, %v2563, %v2730
        %v2827 = vsel %vm1040, %v2718, %v2731
        %v2828 = vsel %vm1040, %v2743, %v2757
        %v2829 = vsel %vm1040, %v2744, %v2758
        %v2830 = vsel %vm1040, %v2770, %v2784
        %v2831 = vsel %vm1040, %v2771, %v2785
        %v2832 = vsel %vm1040, %v2797, %v2811
        %v2833 = vsel %vm1040, %v2798, %v2812
        %v2834 = vld [vmem:[%s1] sm:$0xff]
        %v2835 = vld [vmem:[%s2] sm:$0xff]
        %2837 = vset.pattern.permute.xlu0 0
        %2838 = vperm.xlu0 %2837, %v2835
        %v2839 = vpop.permute.xlu0 %2838
        %v2842 = vsel %vm719, %v2834, 0
        %v2844 = vsel %vm546, %v2525, 0
        %v2846 = vsel %vm546, %v2526, 0
        %2848 = vmatprep.subr.mxu0 %v2532
        %2849 = vmatpush1.msra.mxu0 %v2531
        %2850 = vmatprep.subr.mxu0 %v2538
        %2851 = vmatpush1.msra.mxu0 %v2537
        %2852 = vmatprep.subr.mxu0 %v2846
        %2853 = vmatpush1.msra.mxu0 %v2844
        %2854 = vmatprep.subr.mxu0 0.0
        %2855 = vmatpush1.msra.mxu0 0.0
        %2856 = vmatprep.subr.mxu0 0.0
        %2857 = vmatpush1.msra.mxu0 0.0
        %2858 = vmatprep.subr.mxu0 0.0
        %2859 = vmatpush1.msra.mxu0 0.0
        %2860 = vmatprep.subr.mxu0 0.0
        %2861 = vmatpush1.msra.mxu0 0.0
        %2862 = vmatprep.subr.mxu0 0.0
        %2863 = vmatpush1.msra.mxu0 0.0
        %2864 = vmatprep.subr.mxu0 0.0
        %2865 = vmatpush1.msra.mxu0 0.0
        %2866 = vmatprep.subr.mxu0 0.0
        %2867 = vmatpush1.msra.mxu0 0.0
        %2868 = vmatprep.subr.mxu0 0.0
        %2869 = vmatpush1.msra.mxu0 0.0
        %2870 = vmatprep.subr.mxu0 0.0
        %2871 = vmatpush1.msra.mxu0 0.0
        %2872 = vmatprep.subr.mxu0 0.0
        %2873 = vmatpush1.msra.mxu0 0.0
        %2874 = vmatprep.subr.mxu0 0.0
        %2875 = vmatpush1.msra.mxu0 0.0
        %2876 = vmatprep.subr.mxu0 0.0
        %2877 = vmatpush1.msra.mxu0 0.0
        %2878 = vmatprep.subr.mxu0 0.0
        %2879 = vmatpush1.msra.mxu0 0.0
        %2880 = vmatprep.subr.mxu0 0.0
        %2881 = vmatpush1.msra.mxu0 0.0
        %2882 = vmatprep.subr.mxu0 0.0
        %2883 = vmatpush1.msra.mxu0 0.0
        %2884 = vmatprep.subr.mxu0 0.0
        %2885 = vmatpush1.msra.mxu0 0.0
        %2886 = vmatprep.subr.mxu0 0.0
        %2887 = vmatpush1.msra.mxu0 0.0
        %2888 = vmatprep.subr.mxu0 0.0
        %2889 = vmatpush1.msra.mxu0 0.0
        %2890 = vmatprep.subr.mxu0 0.0
        %2891 = vmatpush1.msra.mxu0 0.0
        %2892 = vmatprep.subr.mxu0 0.0
        %2893 = vmatpush1.msra.mxu0 0.0
        %2894 = vmatprep.subr.mxu0 0.0
        %2895 = vmatpush1.msra.mxu0 0.0
        %2896 = vmatprep.subr.mxu0 0.0
        %2897 = vmatpush1.msra.mxu0 0.0
        %2898 = vmatprep.subr.mxu0 0.0
        %2899 = vmatpush1.msra.mxu0 0.0
        %2900 = vmatprep.subr.mxu0 0.0
        %2901 = vmatpush1.msra.mxu0 0.0
        %2902 = vmatprep.subr.mxu0 0.0
        %2903 = vmatpush1.msra.mxu0 0.0
        %2904 = vmatprep.subr.mxu0 0.0
        %2905 = vmatpush1.msra.mxu0 0.0
        %2906 = vmatprep.subr.mxu0 0.0
        %2907 = vmatpush1.msra.mxu0 0.0
        %2908 = vmatprep.subr.mxu0 0.0
        %2909 = vmatpush1.msra.mxu0 0.0
        %2910 = vmatprep.subr.mxu0 0.0
        %2911 = vmatpush1.msra.mxu0 0.0
        %2912 = vmatprep.mubr.f32.mxu0 0.0
        %2913 = vmatmul.mubr.f32.gmra.mrb[0].mxu0 %v2842
        %v2914 = vpop.f32.mrb[0].mxu0
        %v2915 = vadd.f32 %v2839, %v2914
        %v2916 = vpop.f32.mrb[0].mxu0
        %v2917 = vadd.f32 %v2839, %v2916
        %2918 = vdwg.mxu0
        %v2919 = vld [vmem:[%s3] sm:$0xf]
        %v2920 = vld [vmem:[%s4] sm:$0xf]
        %2922 = vset.pattern.permute.xlu0 0
        %2923 = vperm.xlu0 %2922, %v2920
        %v2924 = vpop.permute.xlu0 %2923
        %v2927 = vsel %vm1434, %v2919, 0
        %v2929 = vsel %vm1040, %v2824, 0
        %v2931 = vsel %vm1040, %v2825, 0
        %2933 = vmatprep.subr.mxu0 %v2827
        %2934 = vmatpush1.msra.mxu0 %v2826
        %2935 = vmatprep.subr.mxu0 %v2829
        %2936 = vmatpush1.msra.mxu0 %v2828
        %2937 = vmatprep.subr.mxu0 %v2831
        %2938 = vmatpush1.msra.mxu0 %v2830
        %2939 = vmatprep.subr.mxu0 %v2833
        %2940 = vmatpush1.msra.mxu0 %v2832
        %2941 = vmatprep.subr.mxu0 %v2931
        %2942 = vmatpush1.msra.mxu0 %v2929
        %2943 = vmatprep.subr.mxu0 0.0
        %2944 = vmatpush1.msra.mxu0 0.0
        %2945 = vmatprep.subr.mxu0 0.0
        %2946 = vmatpush1.msra.mxu0 0.0
        %2947 = vmatprep.subr.mxu0 0.0
        %2948 = vmatpush1.msra.mxu0 0.0
        %2949 = vmatprep.subr.mxu0 0.0
        %2950 = vmatpush1.msra.mxu0 0.0
        %2951 = vmatprep.subr.mxu0 0.0
        %2952 = vmatpush1.msra.mxu0 0.0
        %2953 = vmatprep.subr.mxu0 0.0
        %2954 = vmatpush1.msra.mxu0 0.0
        %2955 = vmatprep.subr.mxu0 0.0
        %2956 = vmatpush1.msra.mxu0 0.0
        %2957 = vmatprep.subr.mxu0 0.0
        %2958 = vmatpush1.msra.mxu0 0.0
        %2959 = vmatprep.subr.mxu0 0.0
        %2960 = vmatpush1.msra.mxu0 0.0
        %2961 = vmatprep.subr.mxu0 0.0
        %2962 = vmatpush1.msra.mxu0 0.0
        %2963 = vmatprep.subr.mxu0 0.0
        %2964 = vmatpush1.msra.mxu0 0.0
        %2965 = vmatprep.subr.mxu0 0.0
        %2966 = vmatpush1.msra.mxu0 0.0
        %2967 = vmatprep.subr.mxu0 0.0
        %2968 = vmatpush1.msra.mxu0 0.0
        %2969 = vmatprep.subr.mxu0 0.0
        %2970 = vmatpush1.msra.mxu0 0.0
        %2971 = vmatprep.subr.mxu0 0.0
        %2972 = vmatpush1.msra.mxu0 0.0
        %2973 = vmatprep.subr.mxu0 0.0
        %2974 = vmatpush1.msra.mxu0 0.0
        %2975 = vmatprep.subr.mxu0 0.0
        %2976 = vmatpush1.msra.mxu0 0.0
        %2977 = vmatprep.subr.mxu0 0.0
        %2978 = vmatpush1.msra.mxu0 0.0
        %2979 = vmatprep.subr.mxu0 0.0
        %2980 = vmatpush1.msra.mxu0 0.0
        %2981 = vmatprep.subr.mxu0 0.0
        %2982 = vmatpush1.msra.mxu0 0.0
        %2983 = vmatprep.subr.mxu0 0.0
        %2984 = vmatpush1.msra.mxu0 0.0
        %2985 = vmatprep.subr.mxu0 0.0
        %2986 = vmatpush1.msra.mxu0 0.0
        %2987 = vmatprep.subr.mxu0 0.0
        %2988 = vmatpush1.msra.mxu0 0.0
        %2989 = vmatprep.subr.mxu0 0.0
        %2990 = vmatpush1.msra.mxu0 0.0
        %2991 = vmatprep.subr.mxu0 0.0
        %2992 = vmatpush1.msra.mxu0 0.0
        %2993 = vmatprep.subr.mxu0 0.0
        %2994 = vmatpush1.msra.mxu0 0.0
        %2995 = vmatprep.subr.mxu0 0.0
        %2996 = vmatpush1.msra.mxu0 0.0
        %2997 = vmatprep.mubr.f32.mxu0 0.0
        %2998 = vmatmul.mubr.f32.gmra.mrb[0].mxu0 %v2927
        %v2999 = vpop.f32.mrb[0].mxu0
        %v3000 = vadd.f32 %v2924, %v2999
        %v3001 = vpop.f32.mrb[0].mxu0
        %v3002 = vadd.f32 %v2924, %v3001
        %3003 = vdwg.mxu0
        %v3004 = vmul.f32 %v1513, 0.3
        %v3005 = vmul.f32 %v1514, 0.3
        %v3006 = vsub.f32 1.0, %v1521
        %v3007 = vsub.f32 1.0, %v1522
        %v3008 = vmul.f32 %v3004, %v3006
        %v3009 = vmul.f32 %v3005, %v3007
        %v3010 = vadd.f32 %v3008, %v2915
        %v3011 = vadd.f32 %v3009, %v2917
        %v3012 = vsub.f32 %v3010, 0.5
        %v3013 = vsub.f32 %v3011, 0.5
        %vm3014 = vcmp.gt.f32.partialorder %v3012, 0.0
        %vm3015 = vcmp.gt.f32.partialorder %v3013, 0.0
        %v3016 = vsel %vm3014, 1, 0
        %v3017 = vsel %vm3015, 1, 0
        %v3018 = vcvt.s32.f32 %v3016
        %v3019 = vcvt.s32.f32 %v3017
        %v3020 = vmax.f32 %v3000, 0.0
        %v3021 = vmax.f32 %v3002, 0.0
        %v3024 = vrot.slane %v3020, 4
        %v3025 = vrot.slane %v3021, 4
        %v3028 = vadd.f32 %v2915, %v3024
        %v3029 = vadd.f32 %v2917, %v3025
        %v3030 = vtanh.pop %v3028
        %v3031 = vtanh.pop %v3029
        %v3032 = vsel %vm1040, %v3018, %v3030
        %v3033 = vsel %vm1040, %v3019, %v3031
        %v3034 = vld [vmem:[%s5] sm:$0xff]
        %v3035 = vld [vmem:[%s5 + $0x8] sm:$0xff]
        %v3036 = vld [vmem:[%s5 + $0x10] sm:$0xff]
        %v3037 = vld [vmem:[%s5 + $0x18] sm:$0xff]
        %v3038 = vld [vmem:[%s5 + $0x20] sm:$0xff]
        %v3039 = vld [vmem:[%s5 + $0x28] sm:$0xff]
        %v3040 = vld [vmem:[%s5 + $0x30] sm:$0xff]
        %v3041 = vld [vmem:[%s5 + $0x38] sm:$0xff]
        %v3042 = vld [vmem:[%s5 + $0x40] sm:$0xff]
        %v3043 = vld [vmem:[%s5 + $0x48] sm:$0xff]
        %v3044 = vld [vmem:[%s5 + $0x50] sm:$0xff]
        %v3045 = vld [vmem:[%s5 + $0x58] sm:$0xff]
        %v3046 = vld [vmem:[%s5 + $0x60] sm:$0xff]
        %v3047 = vld [vmem:[%s5 + $0x68] sm:$0xff]
        %v3048 = vld [vmem:[%s5 + $0x70] sm:$0xff]
        %v3049 = vld [vmem:[%s5 + $0x78] sm:$0xff]
        %v3050 = vld [vmem:[%s5 + $0x80] sm:$0xff]
        %v3051 = vld [vmem:[%s5 + $0x88] sm:$0xff]
        %v3052 = vld [vmem:[%s5 + $0x90] sm:$0xff]
        %v3053 = vld [vmem:[%s5 + $0x98] sm:$0xff]
        %v3054 = vld [vmem:[%s5 + $0xa0] sm:$0xff]
        %v3055 = vld [vmem:[%s5 + $0xa8] sm:$0xff]
        %v3056 = vld [vmem:[%s5 + $0xb0] sm:$0xff]
        %v3057 = vld [vmem:[%s5 + $0xb8] sm:$0xff]
        %v3058 = vld [vmem:[%s5 + $0xc0] sm:$0xff]
        %v3059 = vld [vmem:[%s5 + $0xc8] sm:$0xff]
        %v3060 = vld [vmem:[%s5 + $0xd0] sm:$0xff]
        %v3061 = vld [vmem:[%s5 + $0xd8] sm:$0xff]
        %v3062 = vld [vmem:[%s5 + $0xe0] sm:$0xff]
        %v3063 = vld [vmem:[%s5 + $0xe8] sm:$0xff]
        %v3064 = vld [vmem:[%s5 + $0xf0] sm:$0xff]
        %v3065 = vld [vmem:[%s5 + $0xf8] sm:$0xff]
        %3066 = vmatprep.subr.mxu0 0.0
        %3067 = vmatpush1.msra.mxu0 %v3034
        %3068 = vmatprep.subr.mxu0 0.0
        %3069 = vmatpush1.msra.mxu0 %v3035
        %3070 = vmatprep.subr.mxu0 0.0
        %3071 = vmatpush1.msra.mxu0 %v3036
        %3072 = vmatprep.subr.mxu0 0.0
        %3073 = vmatpush1.msra.mxu0 %v3037
        %3074 = vmatprep.subr.mxu0 0.0
        %3075 = vmatpush1.msra.mxu0 %v3038
        %3076 = vmatprep.subr.mxu0 0.0
        %3077 = vmatpush1.msra.mxu0 %v3039
        %3078 = vmatprep.subr.mxu0 0.0
        %3079 = vmatpush1.msra.mxu0 %v3040
        %3080 = vmatprep.subr.mxu0 0.0
        %3081 = vmatpush1.msra.mxu0 %v3041
        %3082 = vmatprep.subr.mxu0 0.0
        %3083 = vmatpush1.msra.mxu0 %v3042
        %3084 = vmatprep.subr.mxu0 0.0
        %3085 = vmatpush1.msra.mxu0 %v3043
        %3086 = vmatprep.subr.mxu0 0.0
        %3087 = vmatpush1.msra.mxu0 %v3044
        %3088 = vmatprep.subr.mxu0 0.0
        %3089 = vmatpush1.msra.mxu0 %v3045
        %3090 = vmatprep.subr.mxu0 0.0
        %3091 = vmatpush1.msra.mxu0 %v3046
        %3092 = vmatprep.subr.mxu0 0.0
        %3093 = vmatpush1.msra.mxu0 %v3047
        %3094 = vmatprep.subr.mxu0 0.0
        %3095 = vmatpush1.msra.mxu0 %v3048
        %3096 = vmatprep.subr.mxu0 0.0
        %3097 = vmatpush1.msra.mxu0 %v3049
        %3098 = vmatprep.subr.mxu0 0.0
        %3099 = vmatpush1.msra.mxu0 %v3050
        %3100 = vmatprep.subr.mxu0 0.0
        %3101 = vmatpush1.msra.mxu0 %v3051
        %3102 = vmatprep.subr.mxu0 0.0
        %3103 = vmatpush1.msra.mxu0 %v3052
        %3104 = vmatprep.subr.mxu0 0.0
        %3105 = vmatpush1.msra.mxu0 %v3053
        %3106 = vmatprep.subr.mxu0 0.0
        %3107 = vmatpush1.msra.mxu0 %v3054
        %3108 = vmatprep.subr.mxu0 0.0
        %3109 = vmatpush1.msra.mxu0 %v3055
        %3110 = vmatprep.subr.mxu0 0.0
        %3111 = vmatpush1.msra.mxu0 %v3056
        %3112 = vmatprep.subr.mxu0 0.0
        %3113 = vmatpush1.msra.mxu0 %v3057
        %3114 = vmatprep.subr.mxu0 0.0
        %3115 = vmatpush1.msra.mxu0 %v3058
        %3116 = vmatprep.subr.mxu0 0.0
        %3117 = vmatpush1.msra.mxu0 %v3059
        %3118 = vmatprep.subr.mxu0 0.0
        %3119 = vmatpush1.msra.mxu0 %v3060
        %3120 = vmatprep.subr.mxu0 0.0
        %3121 = vmatpush1.msra.mxu0 %v3061
        %3122 = vmatprep.subr.mxu0 0.0
        %3123 = vmatpush1.msra.mxu0 %v3062
        %3124 = vmatprep.subr.mxu0 0.0
        %3125 = vmatpush1.msra.mxu0 %v3063
        %3126 = vmatprep.subr.mxu0 0.0
        %3127 = vmatpush1.msra.mxu0 %v3064
        %3128 = vmatprep.subr.mxu0 0.0
        %3129 = vmatpush1.msra.mxu0 %v3065
        %3130 = vmatprep.mubr.f32.mxu0 %v3033
        %3131 = vmatmul.mubr.f32.gmra.mrb[0].mxu0 %v3032
        %v3132 = vpop.f32.mrb[0].mxu0
        %v3133 = vadd.f32 0.0, %v3132
        %v3134 = vpop.f32.mrb[0].mxu0
        %3135 = vdwg.mxu0
        %3137 = vrot.lane.b32.xlu0 %v3133, 9
        %v3138 = vpop.permute.xlu0 %3137
        %3140 = vst.msk [vmem:[#allocation4] sm:$0xff] %vm1643, %v3138
        %v3141 = vld [vmem:[#allocation4] sm:$0xff]
        %v3142 = vld [vmem:[%s12] sm:$0x1]
        %v3143 = vlaneseq
        %v3144 = vshrl.u32 %v3143, 7
        %v3145 = vsub.s32 0, %v3144
        %v3146 = vrot.slane %v3142, %v3145
        %v3147 = vmul.f32 %v3141, %v3146
        %v3148 = vld [vmem:[%s12 + $0x1] sm:$0x1]
        %v3149 = vlaneseq
        %v3150 = vshrl.u32 %v3149, 7
        %v3151 = vsub.s32 0, %v3150
        %v3152 = vrot.slane %v3148, %v3151
        %3154 = vrot.lane.b32.xlu0 %v3152, 1
        %v3155 = vpop.permute.xlu0 %3154
        %v3157 = vmul.f32 %v3141, %v3155
        %v3158 = vld [vmem:[%s12 + $0x2] sm:$0x1]
        %v3159 = vlaneseq
        %v3160 = vshrl.u32 %v3159, 7
        %v3161 = vsub.s32 0, %v3160
        %v3162 = vrot.slane %v3158, %v3161
        %3164 = vrot.lane.b32.xlu0 %v3162, 2
        %v3165 = vpop.permute.xlu0 %3164
        %v3167 = vmul.f32 %v3141, %v3165
        %v3168 = vld [vmem:[%s12 + $0x3] sm:$0x1]
        %v3169 = vlaneseq
        %v3170 = vshrl.u32 %v3169, 7
        %v3171 = vsub.s32 0, %v3170
        %v3172 = vrot.slane %v3168, %v3171
        %3174 = vrot.lane.b32.xlu0 %v3172, 8
        %v3175 = vpop.permute.xlu0 %3174
        %v3177 = vmul.f32 %v3141, %v3175
        %v3178 = vld [vmem:[%s12 + $0x4] sm:$0x1]
        %v3179 = vlaneseq
        %v3180 = vshrl.u32 %v3179, 7
        %v3181 = vsub.s32 0, %v3180
        %v3182 = vrot.slane %v3178, %v3181
        %3184 = vrot.lane.b32.xlu0 %v3182, 9
        %v3185 = vpop.permute.xlu0 %3184
        %v3187 = vmul.f32 %v3141, %v3185
        %v3188 = vld [vmem:[%s12 + $0x5] sm:$0x1]
        %v3189 = vlaneseq
        %v3190 = vshrl.u32 %v3189, 7
        %v3191 = vsub.s32 0, %v3190
        %v3192 = vrot.slane %v3188, %v3191
        %3194 = vrot.lane.b32.xlu0 %v3192, 10
        %v3195 = vpop.permute.xlu0 %3194
        %v3197 = vmul.f32 %v3141, %v3195
        %v3198 = vld [vmem:[%s12 + $0x6] sm:$0x1]
        %v3199 = vlaneseq
        %v3200 = vshrl.u32 %v3199, 7
        %v3201 = vsub.s32 0, %v3200
        %v3202 = vrot.slane %v3198, %v3201
        %3204 = vrot.lane.b32.xlu0 %v3202, 16
        %v3205 = vpop.permute.xlu0 %3204
        %v3207 = vmul.f32 %v3141, %v3205
        %v3208 = vld [vmem:[%s12 + $0x7] sm:$0x1]
        %v3209 = vlaneseq
        %v3210 = vshrl.u32 %v3209, 7
        %v3211 = vsub.s32 0, %v3210
        %v3212 = vrot.slane %v3208, %v3211
        %3214 = vrot.lane.b32.xlu0 %v3212, 17
        %v3215 = vpop.permute.xlu0 %3214
        %v3217 = vmul.f32 %v3141, %v3215
        %v3218 = vld [vmem:[%s12 + $0x8] sm:$0x1]
        %v3219 = vlaneseq
        %v3220 = vshrl.u32 %v3219, 7
        %v3221 = vsub.s32 0, %v3220
        %v3222 = vrot.slane %v3218, %v3221
        %3224 = vrot.lane.b32.xlu0 %v3222, 18
        %v3225 = vpop.permute.xlu0 %3224
        %v3227 = vmul.f32 %v3141, %v3225
        %3229 = vrot.lane.b32.xlu0 %v3157, 127
        %v3230 = vpop.permute.xlu0 %3229
        %3233 = vrot.lane.b32.xlu0 %v3167, 126
        %v3234 = vpop.permute.xlu0 %3233
        %3237 = vrot.lane.b32.xlu0 %v3177, 120
        %v3238 = vpop.permute.xlu0 %3237
        %3241 = vrot.lane.b32.xlu0 %v3187, 119
        %v3242 = vpop.permute.xlu0 %3241
        %3245 = vrot.lane.b32.xlu0 %v3197, 118
        %v3246 = vpop.permute.xlu0 %3245
        %3249 = vrot.lane.b32.xlu0 %v3207, 112
        %v3250 = vpop.permute.xlu0 %3249
        %3253 = vrot.lane.b32.xlu0 %v3217, 111
        %v3254 = vpop.permute.xlu0 %3253
        %3257 = vrot.lane.b32.xlu0 %v3227, 110
        %v3258 = vpop.permute.xlu0 %3257
        %3261 = vrot.lane.b32.xlu0 %v2065, 9
        %v3262 = vpop.permute.xlu0 %3261
        %vm3264 = vcmask 597068
        %3265 = vst.msk [vmem:[#allocation5 - $0x4] sm:$0xf0] %vm3264, %v3262
        %v3266 = vld [vmem:[#allocation5] sm:$0xf]
        %v3267 = vld [vmem:[%s12] sm:$0x1]
        %v3268 = vlaneseq
        %v3269 = vshrl.u32 %v3268, 7
        %v3270 = vsub.s32 0, %v3269
        %v3271 = vrot.slane %v3267, %v3270
        %v3272 = vmul.f32 %v3266, %v3271
        %v3273 = vld [vmem:[%s12 + $0x1] sm:$0x1]
        %v3274 = vlaneseq
        %v3275 = vshrl.u32 %v3274, 7
        %v3276 = vsub.s32 0, %v3275
        %v3277 = vrot.slane %v3273, %v3276
        %3279 = vrot.lane.b32.xlu0 %v3277, 1
        %v3280 = vpop.permute.xlu0 %3279
        %v3282 = vmul.f32 %v3266, %v3280
        %v3283 = vld [vmem:[%s12 + $0x2] sm:$0x1]
        %v3284 = vlaneseq
        %v3285 = vshrl.u32 %v3284, 7
        %v3286 = vsub.s32 0, %v3285
        %v3287 = vrot.slane %v3283, %v3286
        %3289 = vrot.lane.b32.xlu0 %v3287, 2
        %v3290 = vpop.permute.xlu0 %3289
        %v3292 = vmul.f32 %v3266, %v3290
        %v3293 = vld [vmem:[%s12 + $0x3] sm:$0x1]
        %v3294 = vlaneseq
        %v3295 = vshrl.u32 %v3294, 7
        %v3296 = vsub.s32 0, %v3295
        %v3297 = vrot.slane %v3293, %v3296
        %3299 = vrot.lane.b32.xlu0 %v3297, 8
        %v3300 = vpop.permute.xlu0 %3299
        %v3302 = vmul.f32 %v3266, %v3300
        %v3303 = vld [vmem:[%s12 + $0x4] sm:$0x1]
        %v3304 = vlaneseq
        %v3305 = vshrl.u32 %v3304, 7
        %v3306 = vsub.s32 0, %v3305
        %v3307 = vrot.slane %v3303, %v3306
        %3309 = vrot.lane.b32.xlu0 %v3307, 9
        %v3310 = vpop.permute.xlu0 %3309
        %v3312 = vmul.f32 %v3266, %v3310
        %v3313 = vld [vmem:[%s12 + $0x5] sm:$0x1]
        %v3314 = vlaneseq
        %v3315 = vshrl.u32 %v3314, 7
        %v3316 = vsub.s32 0, %v3315
        %v3317 = vrot.slane %v3313, %v3316
        %3319 = vrot.lane.b32.xlu0 %v3317, 10
        %v3320 = vpop.permute.xlu0 %3319
        %v3322 = vmul.f32 %v3266, %v3320
        %v3323 = vld [vmem:[%s12 + $0x6] sm:$0x1]
        %v3324 = vlaneseq
        %v3325 = vshrl.u32 %v3324, 7
        %v3326 = vsub.s32 0, %v3325
        %v3327 = vrot.slane %v3323, %v3326
        %3329 = vrot.lane.b32.xlu0 %v3327, 16
        %v3330 = vpop.permute.xlu0 %3329
        %v3332 = vmul.f32 %v3266, %v3330
        %v3333 = vld [vmem:[%s12 + $0x7] sm:$0x1]
        %v3334 = vlaneseq
        %v3335 = vshrl.u32 %v3334, 7
        %v3336 = vsub.s32 0, %v3335
        %v3337 = vrot.slane %v3333, %v3336
        %3339 = vrot.lane.b32.xlu0 %v3337, 17
        %v3340 = vpop.permute.xlu0 %3339
        %v3342 = vmul.f32 %v3266, %v3340
        %v3343 = vld [vmem:[%s12 + $0x8] sm:$0x1]
        %v3344 = vlaneseq
        %v3345 = vshrl.u32 %v3344, 7
        %v3346 = vsub.s32 0, %v3345
        %v3347 = vrot.slane %v3343, %v3346
        %3349 = vrot.lane.b32.xlu0 %v3347, 18
        %v3350 = vpop.permute.xlu0 %3349
        %v3352 = vmul.f32 %v3266, %v3350
        %v3354 = vrot.slane %v3282, 4
        %3355 = vrot.lane.b32.xlu0 %v3354, 127
        %v3356 = vpop.permute.xlu0 %3355
        %3359 = vrot.lane.b32.xlu0 %v3292, 126
        %v3360 = vpop.permute.xlu0 %3359
        %v3363 = vrot.slane %v3302, 4
        %3364 = vrot.lane.b32.xlu0 %v3363, 120
        %v3365 = vpop.permute.xlu0 %3364
        %3368 = vrot.lane.b32.xlu0 %v3312, 119
        %v3369 = vpop.permute.xlu0 %3368
        %v3372 = vrot.slane %v3322, 4
        %3373 = vrot.lane.b32.xlu0 %v3372, 118
        %v3374 = vpop.permute.xlu0 %3373
        %3377 = vrot.lane.b32.xlu0 %v3332, 112
        %v3378 = vpop.permute.xlu0 %3377
        %v3381 = vrot.slane %v3342, 4
        %3382 = vrot.lane.b32.xlu0 %v3381, 111
        %v3383 = vpop.permute.xlu0 %3382
        %3386 = vrot.lane.b32.xlu0 %v3352, 110
        %v3387 = vpop.permute.xlu0 %3386
        %v3388 = vsel %vm1040, %v3272, %v3356
        %v3389 = vsel %vm1040, %v3360, %v3365
        %v3390 = vsel %vm1040, %v3369, %v3374
        %v3391 = vsel %vm1040, %v3378, %v3383
        %v3392 = vld [vmem:[%s7] sm:$0xff]
        %v3393 = vld [vmem:[%s8] sm:$0xff]
        %3395 = vset.pattern.permute.xlu0 0
        %3396 = vperm.xlu0 %3395, %v3393
        %v3397 = vpop.permute.xlu0 %3396
        %v3400 = vsel %vm1899, %v3392, 0
        %3402 = vmatprep.subr.mxu0 0.0
        %3403 = vmatpush1.msra.mxu0 %v3147
        %3404 = vmatprep.subr.mxu0 0.0
        %3405 = vmatpush1.msra.mxu0 %v3230
        %3406 = vmatprep.subr.mxu0 0.0
        %3407 = vmatpush1.msra.mxu0 %v3234
        %3408 = vmatprep.subr.mxu0 0.0
        %3409 = vmatpush1.msra.mxu0 %v3238
        %3410 = vmatprep.subr.mxu0 0.0
        %3411 = vmatpush1.msra.mxu0 %v3242
        %3412 = vmatprep.subr.mxu0 0.0
        %3413 = vmatpush1.msra.mxu0 %v3246
        %3414 = vmatprep.subr.mxu0 0.0
        %3415 = vmatpush1.msra.mxu0 %v3250
        %3416 = vmatprep.subr.mxu0 0.0
        %3417 = vmatpush1.msra.mxu0 %v3254
        %3418 = vmatprep.subr.mxu0 0.0
        %3419 = vmatpush1.msra.mxu0 %v3258
        %3420 = vmatprep.subr.mxu0 0.0
        %3421 = vmatpush1.msra.mxu0 0.0
        %3422 = vmatprep.subr.mxu0 0.0
        %3423 = vmatpush1.msra.mxu0 0.0
        %3424 = vmatprep.subr.mxu0 0.0
        %3425 = vmatpush1.msra.mxu0 0.0
        %3426 = vmatprep.subr.mxu0 0.0
        %3427 = vmatpush1.msra.mxu0 0.0
        %3428 = vmatprep.subr.mxu0 0.0
        %3429 = vmatpush1.msra.mxu0 0.0
        %3430 = vmatprep.subr.mxu0 0.0
        %3431 = vmatpush1.msra.mxu0 0.0
        %3432 = vmatprep.subr.mxu0 0.0
        %3433 = vmatpush1.msra.mxu0 0.0
        %3434 = vmatprep.subr.mxu0 0.0
        %3435 = vmatpush1.msra.mxu0 0.0
        %3436 = vmatprep.subr.mxu0 0.0
        %3437 = vmatpush1.msra.mxu0 0.0
        %3438 = vmatprep.subr.mxu0 0.0
        %3439 = vmatpush1.msra.mxu0 0.0
        %3440 = vmatprep.subr.mxu0 0.0
        %3441 = vmatpush1.msra.mxu0 0.0
        %3442 = vmatprep.subr.mxu0 0.0
        %3443 = vmatpush1.msra.mxu0 0.0
        %3444 = vmatprep.subr.mxu0 0.0
        %3445 = vmatpush1.msra.mxu0 0.0
        %3446 = vmatprep.subr.mxu0 0.0
        %3447 = vmatpush1.msra.mxu0 0.0
        %3448 = vmatprep.subr.mxu0 0.0
        %3449 = vmatpush1.msra.mxu0 0.0
        %3450 = vmatprep.subr.mxu0 0.0
        %3451 = vmatpush1.msra.mxu0 0.0
        %3452 = vmatprep.subr.mxu0 0.0
        %3453 = vmatpush1.msra.mxu0 0.0
        %3454 = vmatprep.subr.mxu0 0.0
        %3455 = vmatpush1.msra.mxu0 0.0
        %3456 = vmatprep.subr.mxu0 0.0
        %3457 = vmatpush1.msra.mxu0 0.0
        %3458 = vmatprep.subr.mxu0 0.0
        %3459 = vmatpush1.msra.mxu0 0.0
        %3460 = vmatprep.subr.mxu0 0.0
        %3461 = vmatpush1.msra.mxu0 0.0
        %3462 = vmatprep.subr.mxu0 0.0
        %3463 = vmatpush1.msra.mxu0 0.0
        %3464 = vmatprep.subr.mxu0 0.0
        %3465 = vmatpush1.msra.mxu0 0.0
        %3466 = vmatprep.mubr.f32.mxu0 0.0
        %3467 = vmatmul.mubr.f32.gmra.mrb[0].mxu0 %v3400
        %v3468 = vpop.f32.mrb[0].mxu0
        %v3469 = vadd.f32 %v3397, %v3468
        %v3470 = vpop.f32.mrb[0].mxu0
        %3471 = vdwg.mxu0
        %v3472 = vld [vmem:[%s9] sm:$0xf]
        %v3473 = vld [vmem:[%s10] sm:$0xf]
        %3475 = vset.pattern.permute.xlu0 0
        %3476 = vperm.xlu0 %3475, %v3473
        %v3477 = vpop.permute.xlu0 %3476
        %v3480 = vsel %vm1434, %v3472, 0
        %v3482 = vsel %vm1040, %v3387, 0
        %3484 = vmatprep.subr.mxu0 0.0
        %3485 = vmatpush1.msra.mxu0 %v3388
        %3486 = vmatprep.subr.mxu0 0.0
        %3487 = vmatpush1.msra.mxu0 %v3389
        %3488 = vmatprep.subr.mxu0 0.0
        %3489 = vmatpush1.msra.mxu0 %v3390
        %3490 = vmatprep.subr.mxu0 0.0
        %3491 = vmatpush1.msra.mxu0 %v3391
        %3492 = vmatprep.subr.mxu0 0.0
        %3493 = vmatpush1.msra.mxu0 %v3482
        %3494 = vmatprep.subr.mxu0 0.0
        %3495 = vmatpush1.msra.mxu0 0.0
        %3496 = vmatprep.subr.mxu0 0.0
        %3497 = vmatpush1.msra.mxu0 0.0
        %3498 = vmatprep.subr.mxu0 0.0
        %3499 = vmatpush1.msra.mxu0 0.0
        %3500 = vmatprep.subr.mxu0 0.0
        %3501 = vmatpush1.msra.mxu0 0.0
        %3502 = vmatprep.subr.mxu0 0.0
        %3503 = vmatpush1.msra.mxu0 0.0
        %3504 = vmatprep.subr.mxu0 0.0
        %3505 = vmatpush1.msra.mxu0 0.0
        %3506 = vmatprep.subr.mxu0 0.0
        %3507 = vmatpush1.msra.mxu0 0.0
        %3508 = vmatprep.subr.mxu0 0.0
        %3509 = vmatpush1.msra.mxu0 0.0
        %3510 = vmatprep.subr.mxu0 0.0
        %3511 = vmatpush1.msra.mxu0 0.0
        %3512 = vmatprep.subr.mxu0 0.0
        %3513 = vmatpush1.msra.mxu0 0.0
        %3514 = vmatprep.subr.mxu0 0.0
        %3515 = vmatpush1.msra.mxu0 0.0
        %3516 = vmatprep.subr.mxu0 0.0
        %3517 = vmatpush1.msra.mxu0 0.0
        %3518 = vmatprep.subr.mxu0 0.0
        %3519 = vmatpush1.msra.mxu0 0.0
        %3520 = vmatprep.subr.mxu0 0.0
        %3521 = vmatpush1.msra.mxu0 0.0
        %3522 = vmatprep.subr.mxu0 0.0
        %3523 = vmatpush1.msra.mxu0 0.0
        %3524 = vmatprep.subr.mxu0 0.0
        %3525 = vmatpush1.msra.mxu0 0.0
        %3526 = vmatprep.subr.mxu0 0.0
        %3527 = vmatpush1.msra.mxu0 0.0
        %3528 = vmatprep.subr.mxu0 0.0
        %3529 = vmatpush1.msra.mxu0 0.0
        %3530 = vmatprep.subr.mxu0 0.0
        %3531 = vmatpush1.msra.mxu0 0.0
        %3532 = vmatprep.subr.mxu0 0.0
        %3533 = vmatpush1.msra.mxu0 0.0
        %3534 = vmatprep.subr.mxu0 0.0
        %3535 = vmatpush1.msra.mxu0 0.0
        %3536 = vmatprep.subr.mxu0 0.0
        %3537 = vmatpush1.msra.mxu0 0.0
        %3538 = vmatprep.subr.mxu0 0.0
        %3539 = vmatpush1.msra.mxu0 0.0
        %3540 = vmatprep.subr.mxu0 0.0
        %3541 = vmatpush1.msra.mxu0 0.0
        %3542 = vmatprep.subr.mxu0 0.0
        %3543 = vmatpush1.msra.mxu0 0.0
        %3544 = vmatprep.subr.mxu0 0.0
        %3545 = vmatpush1.msra.mxu0 0.0
        %3546 = vmatprep.subr.mxu0 0.0
        %3547 = vmatpush1.msra.mxu0 0.0
        %3548 = vmatprep.mubr.f32.mxu0 0.0
        %3549 = vmatmul.mubr.f32.gmra.mrb[0].mxu0 %v3480
        %v3550 = vpop.f32.mrb[0].mxu0
        %v3551 = vadd.f32 %v3477, %v3550
        %v3552 = vpop.f32.mrb[0].mxu0
        %3553 = vdwg.mxu0
        %v3554 = vmul.f32 %v2055, 0.3
        %v3555 = vsub.f32 1.0, %v2059
        %v3556 = vmul.f32 %v3554, %v3555
        %v3557 = vadd.f32 %v3556, %v3469
        %v3558 = vsub.f32 %v3557, 0.5
        %vm3559 = vcmp.gt.f32.partialorder %v3558, 0.0
        %v3560 = vsel %vm3559, 1, 0
        %v3561 = vcvt.s32.f32 %v3560
        %v3562 = vmax.f32 %v3551, 0.0
        %v3564 = vrot.slane %v3562, 4
        %v3566 = vadd.f32 %v3469, %v3564
        %v3567 = vtanh.pop %v3566
        %v3568 = vsel %vm1040, %v3561, %v3567
        %v3569 = vld [vmem:[%s11] sm:$0xff]
        %v3570 = vld [vmem:[%s11 + $0x8] sm:$0xff]
        %v3571 = vld [vmem:[%s11 + $0x10] sm:$0xff]
        %v3572 = vld [vmem:[%s11 + $0x18] sm:$0xff]
        %v3573 = vld [vmem:[%s11 + $0x20] sm:$0xff]
        %v3574 = vld [vmem:[%s11 + $0x28] sm:$0xff]
        %v3575 = vld [vmem:[%s11 + $0x30] sm:$0xff]
        %v3576 = vld [vmem:[%s11 + $0x38] sm:$0xff]
        %vm3577 = vcmask 523264
        %v3579 = vsel %vm3577, %v3568, 0
        %3581 = vmatprep.subr.mxu0 0.0
        %3582 = vmatpush1.msra.mxu0 %v3569
        %3583 = vmatprep.subr.mxu0 0.0
        %3584 = vmatpush1.msra.mxu0 %v3570
        %3585 = vmatprep.subr.mxu0 0.0
        %3586 = vmatpush1.msra.mxu0 %v3571
        %3587 = vmatprep.subr.mxu0 0.0
        %3588 = vmatpush1.msra.mxu0 %v3572
        %3589 = vmatprep.subr.mxu0 0.0
        %3590 = vmatpush1.msra.mxu0 %v3573
        %3591 = vmatprep.subr.mxu0 0.0
        %3592 = vmatpush1.msra.mxu0 %v3574
        %3593 = vmatprep.subr.mxu0 0.0
        %3594 = vmatpush1.msra.mxu0 %v3575
        %3595 = vmatprep.subr.mxu0 0.0
        %3596 = vmatpush1.msra.mxu0 %v3576
        %3597 = vmatprep.subr.mxu0 0.0
        %3598 = vmatpush1.msra.mxu0 0.0
        %3599 = vmatprep.subr.mxu0 0.0
        %3600 = vmatpush1.msra.mxu0 0.0
        %3601 = vmatprep.subr.mxu0 0.0
        %3602 = vmatpush1.msra.mxu0 0.0
        %3603 = vmatprep.subr.mxu0 0.0
        %3604 = vmatpush1.msra.mxu0 0.0
        %3605 = vmatprep.subr.mxu0 0.0
        %3606 = vmatpush1.msra.mxu0 0.0
        %3607 = vmatprep.subr.mxu0 0.0
        %3608 = vmatpush1.msra.mxu0 0.0
        %3609 = vmatprep.subr.mxu0 0.0
        %3610 = vmatpush1.msra.mxu0 0.0
        %3611 = vmatprep.subr.mxu0 0.0
        %3612 = vmatpush1.msra.mxu0 0.0
        %3613 = vmatprep.subr.mxu0 0.0
        %3614 = vmatpush1.msra.mxu0 0.0
        %3615 = vmatprep.subr.mxu0 0.0
        %3616 = vmatpush1.msra.mxu0 0.0
        %3617 = vmatprep.subr.mxu0 0.0
        %3618 = vmatpush1.msra.mxu0 0.0
        %3619 = vmatprep.subr.mxu0 0.0
        %3620 = vmatpush1.msra.mxu0 0.0
        %3621 = vmatprep.subr.mxu0 0.0
        %3622 = vmatpush1.msra.mxu0 0.0
        %3623 = vmatprep.subr.mxu0 0.0
        %3624 = vmatpush1.msra.mxu0 0.0
        %3625 = vmatprep.subr.mxu0 0.0
        %3626 = vmatpush1.msra.mxu0 0.0
        %3627 = vmatprep.subr.mxu0 0.0
        %3628 = vmatpush1.msra.mxu0 0.0
        %3629 = vmatprep.subr.mxu0 0.0
        %3630 = vmatpush1.msra.mxu0 0.0
        %3631 = vmatprep.subr.mxu0 0.0
        %3632 = vmatpush1.msra.mxu0 0.0
        %3633 = vmatprep.subr.mxu0 0.0
        %3634 = vmatpush1.msra.mxu0 0.0
        %3635 = vmatprep.subr.mxu0 0.0
        %3636 = vmatpush1.msra.mxu0 0.0
        %3637 = vmatprep.subr.mxu0 0.0
        %3638 = vmatpush1.msra.mxu0 0.0
        %3639 = vmatprep.subr.mxu0 0.0
        %3640 = vmatpush1.msra.mxu0 0.0
        %3641 = vmatprep.subr.mxu0 0.0
        %3642 = vmatpush1.msra.mxu0 0.0
        %3643 = vmatprep.subr.mxu0 0.0
        %3644 = vmatpush1.msra.mxu0 0.0
        %3645 = vmatprep.mubr.f32.mxu0 0.0
        %3646 = vmatmul.mubr.f32.gmra.mrb[0].mxu0 %v3579
        %v3647 = vpop.f32.mrb[0].mxu0
        %v3648 = vadd.f32 0.0, %v3647
        %v3649 = vpop.f32.mrb[0].mxu0
        %3650 = vdwg.mxu0
        %v3652 = vsel %vm3577, %v2066, 0
        %3654 = vmatprep.subr.mxu0 0.0
        %3655 = vmatpush1.msra.mxu0 %v2067
        %3656 = vmatprep.subr.mxu0 0.0
        %3657 = vmatpush1.msra.mxu0 %v2068
        %3658 = vmatprep.subr.mxu0 0.0
        %3659 = vmatpush1.msra.mxu0 %v2069
        %3660 = vmatprep.subr.mxu0 0.0
        %3661 = vmatpush1.msra.mxu0 %v2070
        %3662 = vmatprep.subr.mxu0 0.0
        %3663 = vmatpush1.msra.mxu0 %v2071
        %3664 = vmatprep.subr.mxu0 0.0
        %3665 = vmatpush1.msra.mxu0 %v2072
        %3666 = vmatprep.subr.mxu0 0.0
        %3667 = vmatpush1.msra.mxu0 %v2073
        %3668 = vmatprep.subr.mxu0 0.0
        %3669 = vmatpush1.msra.mxu0 %v2074
        %3670 = vmatprep.subr.mxu0 0.0
        %3671 = vmatpush1.msra.mxu0 0.0
        %3672 = vmatprep.subr.mxu0 0.0
        %3673 = vmatpush1.msra.mxu0 0.0
        %3674 = vmatprep.subr.mxu0 0.0
        %3675 = vmatpush1.msra.mxu0 0.0
        %3676 = vmatprep.subr.mxu0 0.0
        %3677 = vmatpush1.msra.mxu0 0.0
        %3678 = vmatprep.subr.mxu0 0.0
        %3679 = vmatpush1.msra.mxu0 0.0
        %3680 = vmatprep.subr.mxu0 0.0
        %3681 = vmatpush1.msra.mxu0 0.0
        %3682 = vmatprep.subr.mxu0 0.0
        %3683 = vmatpush1.msra.mxu0 0.0
        %3684 = vmatprep.subr.mxu0 0.0
        %3685 = vmatpush1.msra.mxu0 0.0
        %3686 = vmatprep.subr.mxu0 0.0
        %3687 = vmatpush1.msra.mxu0 0.0
        %3688 = vmatprep.subr.mxu0 0.0
        %3689 = vmatpush1.msra.mxu0 0.0
        %3690 = vmatprep.subr.mxu0 0.0
        %3691 = vmatpush1.msra.mxu0 0.0
        %3692 = vmatprep.subr.mxu0 0.0
        %3693 = vmatpush1.msra.mxu0 0.0
        %3694 = vmatprep.subr.mxu0 0.0
        %3695 = vmatpush1.msra.mxu0 0.0
        %3696 = vmatprep.subr.mxu0 0.0
        %3697 = vmatpush1.msra.mxu0 0.0
        %3698 = vmatprep.subr.mxu0 0.0
        %3699 = vmatpush1.msra.mxu0 0.0
        %3700 = vmatprep.subr.mxu0 0.0
        %3701 = vmatpush1.msra.mxu0 0.0
        %3702 = vmatprep.subr.mxu0 0.0
        %3703 = vmatpush1.msra.mxu0 0.0
        %3704 = vmatprep.subr.mxu0 0.0
        %3705 = vmatpush1.msra.mxu0 0.0
        %3706 = vmatprep.subr.mxu0 0.0
        %3707 = vmatpush1.msra.mxu0 0.0
        %3708 = vmatprep.subr.mxu0 0.0
        %3709 = vmatpush1.msra.mxu0 0.0
        %3710 = vmatprep.subr.mxu0 0.0
        %3711 = vmatpush1.msra.mxu0 0.0
        %3712 = vmatprep.subr.mxu0 0.0
        %3713 = vmatpush1.msra.mxu0 0.0
        %3714 = vmatprep.subr.mxu0 0.0
        %3715 = vmatpush1.msra.mxu0 0.0
        %3716 = vmatprep.subr.mxu0 0.0
        %3717 = vmatpush1.msra.mxu0 0.0
        %3718 = vmatprep.mubr.f32.mxu0 0.0
        %3719 = vmatmul.mubr.f32.gmra.mrb[0].mxu0 %v3652
        %v3720 = vpop.f32.mrb[0].mxu0
        %v3721 = vadd.f32 %v3648, %v3720
        %v3722 = vpop.f32.mrb[0].mxu0
        %3723 = vdwg.mxu0
        %s3724 = scalar_lea.vmem %s545, 8
        %v3725 = vld [vmem:[%s3724] sm:$0xf]
        %3727 = vrot.lane.b32.xlu0 %v3725, 17
        %v3728 = vpop.permute.xlu0 %3727
        %v3729 = vrot.slane %v3728, 6
        %v3730 = vsel %vm564, %v3729, %v3728
        %3732 = vst.msk [vmem:[#allocation2] sm:$0x3f] %vm570, %v3730
        %v3733 = vld [vmem:[#allocation2] sm:$0xf]
        %v3734 = vld [vmem:[%s6] ss:$8 sm:$0x3]
        %v3736 = vlaneseq
        %v3737 = vshrl.u32 %v3736, 7
        %v3738 = vsub.s32 0, %v3737
        %v3739 = vrot.slane %v3734, %v3738
        %v3740 = vlaneseq
        %v3741 = vshrl.u32 %v3740, 7
        %v3742 = vsub.s32 1, %v3741
        %v3743 = vrot.slane %v3734, %v3742
        %v3744 = vcombine.low %v3739, %v3743
        %v3746 = vunpack.c.l.s4 1983009808
        %v3747 = vunpack.c.0.s8 %v3746
        %v3748 = vlaneseq
        %v3749 = vshrl.u32 %v3748, 7
        %v3750 = vsub.s32 %v3747, %v3749
        %v3751 = vrot.slane %v3744, %v3750
        %v3753 = vmul.f32 %v3733, %v3751
        %v3754 = vld [vmem:[#allocation2] sm:$0x3f]
        %v3755 = vld [vmem:[%s594] ss:$8 sm:$0x3]
        %v3757 = vlaneseq
        %v3758 = vshrl.u32 %v3757, 7
        %v3759 = vsub.s32 0, %v3758
        %v3760 = vrot.slane %v3755, %v3759
        %v3761 = vlaneseq
        %v3762 = vshrl.u32 %v3761, 7
        %v3763 = vsub.s32 1, %v3762
        %v3764 = vrot.slane %v3755, %v3763
        %v3765 = vcombine.low %v3760, %v3764
        %v3767 = vunpack.c.l.s4 1983009808
        %v3768 = vunpack.c.0.s8 %v3767
        %v3769 = vlaneseq
        %v3770 = vshrl.u32 %v3769, 7
        %v3771 = vsub.s32 %v3768, %v3770
        %v3772 = vrot.slane %v3765, %v3771
        %3773 = vrot.lane.b32.xlu0 %v3772, 1
        %v3774 = vpop.permute.xlu0 %3773
        %v3775 = vrot.slane %v3774, 6
        %v3776 = vsel %vm616, %v3775, %v3774
        %v3778 = vmul.f32 %v3754, %v3776
        %v3779 = vld [vmem:[%s620] ss:$8 sm:$0x3]
        %v3781 = vlaneseq
        %v3782 = vshrl.u32 %v3781, 7
        %v3783 = vsub.s32 0, %v3782
        %v3784 = vrot.slane %v3779, %v3783
        %v3785 = vlaneseq
        %v3786 = vshrl.u32 %v3785, 7
        %v3787 = vsub.s32 1, %v3786
        %v3788 = vrot.slane %v3779, %v3787
        %v3789 = vcombine.low %v3784, %v3788
        %v3791 = vunpack.c.l.s4 1983009808
        %v3792 = vunpack.c.0.s8 %v3791
        %v3793 = vlaneseq
        %v3794 = vshrl.u32 %v3793, 7
        %v3795 = vsub.s32 %v3792, %v3794
        %v3796 = vrot.slane %v3789, %v3795
        %3797 = vrot.lane.b32.xlu0 %v3796, 2
        %v3798 = vpop.permute.xlu0 %3797
        %v3799 = vrot.slane %v3798, 6
        %v3800 = vsel %vm642, %v3799, %v3798
        %v3802 = vmul.f32 %v3754, %v3800
        %v3803 = vld [vmem:[%s646] ss:$8 sm:$0x3]
        %v3805 = vlaneseq
        %v3806 = vshrl.u32 %v3805, 7
        %v3807 = vsub.s32 0, %v3806
        %v3808 = vrot.slane %v3803, %v3807
        %v3809 = vlaneseq
        %v3810 = vshrl.u32 %v3809, 7
        %v3811 = vsub.s32 1, %v3810
        %v3812 = vrot.slane %v3803, %v3811
        %v3813 = vcombine.low %v3808, %v3812
        %v3815 = vunpack.c.l.s4 1983009808
        %v3816 = vunpack.c.0.s8 %v3815
        %v3817 = vlaneseq
        %v3818 = vshrl.u32 %v3817, 7
        %v3819 = vsub.s32 %v3816, %v3818
        %v3820 = vrot.slane %v3813, %v3819
        %3821 = vrot.lane.b32.xlu0 %v3820, 16
        %v3822 = vpop.permute.xlu0 %3821
        %v3823 = vrot.slane %v3822, 6
        %v3824 = vsel %vm668, %v3823, %v3822
        %v3826 = vmul.f32 %v3754, %v3824
        %v3827 = vld [vmem:[%s672] ss:$8 sm:$0x3]
        %v3829 = vlaneseq
        %v3830 = vshrl.u32 %v3829, 7
        %v3831 = vsub.s32 0, %v3830
        %v3832 = vrot.slane %v3827, %v3831
        %v3833 = vlaneseq
        %v3834 = vshrl.u32 %v3833, 7
        %v3835 = vsub.s32 1, %v3834
        %v3836 = vrot.slane %v3827, %v3835
        %v3837 = vcombine.low %v3832, %v3836
        %v3839 = vunpack.c.l.s4 1983009808
        %v3840 = vunpack.c.0.s8 %v3839
        %v3841 = vlaneseq
        %v3842 = vshrl.u32 %v3841, 7
        %v3843 = vsub.s32 %v3840, %v3842
        %v3844 = vrot.slane %v3837, %v3843
        %3845 = vrot.lane.b32.xlu0 %v3844, 17
        %v3846 = vpop.permute.xlu0 %3845
        %v3847 = vrot.slane %v3846, 6
        %v3848 = vsel %vm564, %v3847, %v3846
        %v3850 = vmul.f32 %v3754, %v3848
        %v3851 = vld [vmem:[%s697] ss:$8 sm:$0x3]
        %v3853 = vlaneseq
        %v3854 = vshrl.u32 %v3853, 7
        %v3855 = vsub.s32 0, %v3854
        %v3856 = vrot.slane %v3851, %v3855
        %v3857 = vlaneseq
        %v3858 = vshrl.u32 %v3857, 7
        %v3859 = vsub.s32 1, %v3858
        %v3860 = vrot.slane %v3851, %v3859
        %v3861 = vcombine.low %v3856, %v3860
        %v3863 = vunpack.c.l.s4 1983009808
        %v3864 = vunpack.c.0.s8 %v3863
        %v3865 = vlaneseq
        %v3866 = vshrl.u32 %v3865, 7
        %v3867 = vsub.s32 %v3864, %v3866
        %v3868 = vrot.slane %v3861, %v3867
        %3869 = vrot.lane.b32.xlu0 %v3868, 18
        %v3870 = vpop.permute.xlu0 %3869
        %v3871 = vrot.slane %v3870, 6
        %v3872 = vsel %vm719, %v3871, %v3870
        %v3874 = vmul.f32 %v3754, %v3872
        %v3875 = vld [vmem:[%s723] ss:$8 sm:$0x3]
        %v3877 = vlaneseq
        %v3878 = vshrl.u32 %v3877, 7
        %v3879 = vsub.s32 0, %v3878
        %v3880 = vrot.slane %v3875, %v3879
        %v3881 = vlaneseq
        %v3882 = vshrl.u32 %v3881, 7
        %v3883 = vsub.s32 1, %v3882
        %v3884 = vrot.slane %v3875, %v3883
        %v3885 = vcombine.low %v3880, %v3884
        %v3887 = vunpack.c.l.s4 1983009808
        %v3888 = vunpack.c.0.s8 %v3887
        %v3889 = vlaneseq
        %v3890 = vshrl.u32 %v3889, 7
        %v3891 = vsub.s32 %v3888, %v3890
        %v3892 = vrot.slane %v3885, %v3891
        %3893 = vrot.lane.b32.xlu0 %v3892, 32
        %v3894 = vpop.permute.xlu0 %3893
        %v3895 = vrot.slane %v3894, 6
        %v3896 = vsel %vm745, %v3895, %v3894
        %v3898 = vmul.f32 %v3754, %v3896
        %v3899 = vld [vmem:[%s749] ss:$8 sm:$0x3]
        %v3901 = vlaneseq
        %v3902 = vshrl.u32 %v3901, 7
        %v3903 = vsub.s32 0, %v3902
        %v3904 = vrot.slane %v3899, %v3903
        %v3905 = vlaneseq
        %v3906 = vshrl.u32 %v3905, 7
        %v3907 = vsub.s32 1, %v3906
        %v3908 = vrot.slane %v3899, %v3907
        %v3909 = vcombine.low %v3904, %v3908
        %v3911 = vunpack.c.l.s4 1983009808
        %v3912 = vunpack.c.0.s8 %v3911
        %v3913 = vlaneseq
        %v3914 = vshrl.u32 %v3913, 7
        %v3915 = vsub.s32 %v3912, %v3914
        %v3916 = vrot.slane %v3909, %v3915
        %3917 = vrot.lane.b32.xlu0 %v3916, 33
        %v3918 = vpop.permute.xlu0 %3917
        %v3919 = vrot.slane %v3918, 6
        %v3920 = vsel %vm771, %v3919, %v3918
        %v3922 = vmul.f32 %v3754, %v3920
        %v3923 = vld [vmem:[%s775] ss:$8 sm:$0x3]
        %v3925 = vlaneseq
        %v3926 = vshrl.u32 %v3925, 7
        %v3927 = vsub.s32 0, %v3926
        %v3928 = vrot.slane %v3923, %v3927
        %v3929 = vlaneseq
        %v3930 = vshrl.u32 %v3929, 7
        %v3931 = vsub.s32 1, %v3930
        %v3932 = vrot.slane %v3923, %v3931
        %v3933 = vcombine.low %v3928, %v3932
        %v3935 = vunpack.c.l.s4 1983009808
        %v3936 = vunpack.c.0.s8 %v3935
        %v3937 = vlaneseq
        %v3938 = vshrl.u32 %v3937, 7
        %v3939 = vsub.s32 %v3936, %v3938
        %v3940 = vrot.slane %v3933, %v3939
        %3941 = vrot.lane.b32.xlu0 %v3940, 34
        %v3942 = vpop.permute.xlu0 %3941
        %v3943 = vrot.slane %v3942, 6
        %v3944 = vsel %vm797, %v3943, %v3942
        %v3946 = vmul.f32 %v3754, %v3944
        %v3949 = vunpack.c.l.s4 1983009808
        %v3950 = vunpack.c.0.s8 %v3949
        %v3951 = vlaneseq
        %v3952 = vshrl.u32 %v3951, 7
        %v3953 = vsub.s32 %v3950, %v3952
        %v3954 = vrot.slane %v3753, %v3953
        %v3955 = vcombine.high %v3954, %v3954
        %v3959 = vcombine.low %v3778, %v3778
        %v3961 = vunpack.c.l.s4 1983009808
        %v3962 = vunpack.c.0.s8 %v3961
        %v3963 = vlaneseq
        %v3964 = vshrl.u32 %v3963, 7
        %v3965 = vsub.s32 %v3962, %v3964
        %v3966 = vrot.slane %v3959, %v3965
        %v3968 = vunpack.c.l.s4 1983009808
        %v3969 = vunpack.c.0.s8 %v3968
        %v3970 = vlaneseq
        %v3971 = vshrl.u32 %v3970, 7
        %v3972 = vsub.s32 %v3969, %v3971
        %v3973 = vrot.slane %v3778, %v3972
        %v3974 = vcombine.high %v3966, %v3966
        %3975 = vrot.lane.b32.xlu0 %v3966, 127
        %v3976 = vpop.permute.xlu0 %3975
        %3977 = vrot.lane.b32.xlu0 %v3974, 127
        %v3978 = vpop.permute.xlu0 %3977
        %3979 = vrot.lane.b32.xlu0 %v3973, 127
        %v3980 = vpop.permute.xlu0 %3979
        %v3981 = vsel %vm835, %v3976, %v3978
        %v3982 = vsel %vm835, %v3978, %v3980
        %v3986 = vcombine.high %v3802, %v3802
        %v3988 = vunpack.c.l.s4 1983009808
        %v3989 = vunpack.c.0.s8 %v3988
        %v3990 = vlaneseq
        %v3991 = vshrl.u32 %v3990, 7
        %v3992 = vsub.s32 %v3989, %v3991
        %v3993 = vrot.slane %v3802, %v3992
        %v3995 = vunpack.c.l.s4 1983009808
        %v3996 = vunpack.c.0.s8 %v3995
        %v3997 = vlaneseq
        %v3998 = vshrl.u32 %v3997, 7
        %v3999 = vsub.s32 %v3996, %v3998
        %v4000 = vrot.slane %v3986, %v3999
        %v4001 = vcombine.low %v3993, %v3993
        %v4002 = vcombine.low %v4000, %v4000
        %4003 = vrot.lane.b32.xlu0 %v4001, 126
        %v4004 = vpop.permute.xlu0 %4003
        %4005 = vrot.lane.b32.xlu0 %v3993, 126
        %v4006 = vpop.permute.xlu0 %4005
        %4007 = vrot.lane.b32.xlu0 %v4002, 126
        %v4008 = vpop.permute.xlu0 %4007
        %v4009 = vsel %vm864, %v4004, %v4006
        %v4010 = vsel %vm864, %v4006, %v4008
        %v4014 = vcombine.low %v3826, %v3826
        %v4016 = vunpack.c.l.s4 1983009808
        %v4017 = vunpack.c.0.s8 %v4016
        %v4018 = vlaneseq
        %v4019 = vshrl.u32 %v4018, 7
        %v4020 = vsub.s32 %v4017, %v4019
        %v4021 = vrot.slane %v4014, %v4020
        %v4023 = vunpack.c.l.s4 1983009808
        %v4024 = vunpack.c.0.s8 %v4023
        %v4025 = vlaneseq
        %v4026 = vshrl.u32 %v4025, 7
        %v4027 = vsub.s32 %v4024, %v4026
        %v4028 = vrot.slane %v3826, %v4027
        %v4029 = vcombine.low %v4021, %v4021
        %v4030 = vcombine.low %v4028, %v4028
        %4031 = vrot.lane.b32.xlu0 %v4029, 112
        %v4032 = vpop.permute.xlu0 %4031
        %4033 = vrot.lane.b32.xlu0 %v4021, 112
        %v4034 = vpop.permute.xlu0 %4033
        %4035 = vrot.lane.b32.xlu0 %v4030, 112
        %v4036 = vpop.permute.xlu0 %4035
        %v4037 = vsel %vm893, %v4032, %v4034
        %v4038 = vsel %vm893, %v4034, %v4036
        %v4042 = vcombine.high %v3850, %v3850
        %v4044 = vunpack.c.l.s4 1983009808
        %v4045 = vunpack.c.0.s8 %v4044
        %v4046 = vlaneseq
        %v4047 = vshrl.u32 %v4046, 7
        %v4048 = vsub.s32 %v4045, %v4047
        %v4049 = vrot.slane %v3850, %v4048
        %v4051 = vunpack.c.l.s4 1983009808
        %v4052 = vunpack.c.0.s8 %v4051
        %v4053 = vlaneseq
        %v4054 = vshrl.u32 %v4053, 7
        %v4055 = vsub.s32 %v4052, %v4054
        %v4056 = vrot.slane %v4042, %v4055
        %v4057 = vcombine.high %v4049, %v4049
        %4058 = vrot.lane.b32.xlu0 %v4049, 111
        %v4059 = vpop.permute.xlu0 %4058
        %4060 = vrot.lane.b32.xlu0 %v4057, 111
        %v4061 = vpop.permute.xlu0 %4060
        %4062 = vrot.lane.b32.xlu0 %v4056, 111
        %v4063 = vpop.permute.xlu0 %4062
        %v4064 = vsel %vm921, %v4059, %v4061
        %v4065 = vsel %vm921, %v4061, %v4063
        %v4069 = vcombine.low %v3874, %v3874
        %v4071 = vunpack.c.l.s4 1983009808
        %v4072 = vunpack.c.0.s8 %v4071
        %v4073 = vlaneseq
        %v4074 = vshrl.u32 %v4073, 7
        %v4075 = vsub.s32 %v4072, %v4074
        %v4076 = vrot.slane %v4069, %v4075
        %v4078 = vunpack.c.l.s4 1983009808
        %v4079 = vunpack.c.0.s8 %v4078
        %v4080 = vlaneseq
        %v4081 = vshrl.u32 %v4080, 7
        %v4082 = vsub.s32 %v4079, %v4081
        %v4083 = vrot.slane %v3874, %v4082
        %v4084 = vcombine.high %v4076, %v4076
        %4085 = vrot.lane.b32.xlu0 %v4076, 110
        %v4086 = vpop.permute.xlu0 %4085
        %4087 = vrot.lane.b32.xlu0 %v4084, 110
        %v4088 = vpop.permute.xlu0 %4087
        %4089 = vrot.lane.b32.xlu0 %v4083, 110
        %v4090 = vpop.permute.xlu0 %4089
        %v4091 = vsel %vm949, %v4086, %v4088
        %v4092 = vsel %vm949, %v4088, %v4090
        %v4096 = vcombine.high %v3898, %v3898
        %v4098 = vunpack.c.l.s4 1983009808
        %v4099 = vunpack.c.0.s8 %v4098
        %v4100 = vlaneseq
        %v4101 = vshrl.u32 %v4100, 7
        %v4102 = vsub.s32 %v4099, %v4101
        %v4103 = vrot.slane %v3898, %v4102
        %v4105 = vunpack.c.l.s4 1983009808
        %v4106 = vunpack.c.0.s8 %v4105
        %v4107 = vlaneseq
        %v4108 = vshrl.u32 %v4107, 7
        %v4109 = vsub.s32 %v4106, %v4108
        %v4110 = vrot.slane %v4096, %v4109
        %v4111 = vcombine.low %v4103, %v4103
        %v4112 = vcombine.low %v4110, %v4110
        %4113 = vrot.lane.b32.xlu0 %v4111, 96
        %v4114 = vpop.permute.xlu0 %4113
        %4115 = vrot.lane.b32.xlu0 %v4103, 96
        %v4116 = vpop.permute.xlu0 %4115
        %4117 = vrot.lane.b32.xlu0 %v4112, 96
        %v4118 = vpop.permute.xlu0 %4117
        %v4119 = vsel %vm978, %v4114, %v4116
        %v4120 = vsel %vm978, %v4116, %v4118
        %v4124 = vcombine.low %v3922, %v3922
        %v4126 = vunpack.c.l.s4 1983009808
        %v4127 = vunpack.c.0.s8 %v4126
        %v4128 = vlaneseq
        %v4129 = vshrl.u32 %v4128, 7
        %v4130 = vsub.s32 %v4127, %v4129
        %v4131 = vrot.slane %v4124, %v4130
        %v4133 = vunpack.c.l.s4 1983009808
        %v4134 = vunpack.c.0.s8 %v4133
        %v4135 = vlaneseq
        %v4136 = vshrl.u32 %v4135, 7
        %v4137 = vsub.s32 %v4134, %v4136
        %v4138 = vrot.slane %v3922, %v4137
        %v4139 = vcombine.low %v4131, %v4131
        %v4140 = vcombine.low %v4138, %v4138
        %4141 = vrot.lane.b32.xlu0 %v4139, 95
        %v4142 = vpop.permute.xlu0 %4141
        %4143 = vrot.lane.b32.xlu0 %v4131, 95
        %v4144 = vpop.permute.xlu0 %4143
        %4145 = vrot.lane.b32.xlu0 %v4140, 95
        %v4146 = vpop.permute.xlu0 %4145
        %v4147 = vsel %vm1007, %v4142, %v4144
        %v4148 = vsel %vm1007, %v4144, %v4146
        %v4152 = vcombine.high %v3946, %v3946
        %v4154 = vunpack.c.l.s4 1983009808
        %v4155 = vunpack.c.0.s8 %v4154
        %v4156 = vlaneseq
        %v4157 = vshrl.u32 %v4156, 7
        %v4158 = vsub.s32 %v4155, %v4157
        %v4159 = vrot.slane %v3946, %v4158
        %v4161 = vunpack.c.l.s4 1983009808
        %v4162 = vunpack.c.0.s8 %v4161
        %v4163 = vlaneseq
        %v4164 = vshrl.u32 %v4163, 7
        %v4165 = vsub.s32 %v4162, %v4164
        %v4166 = vrot.slane %v4152, %v4165
        %v4167 = vcombine.high %v4159, %v4159
        %4168 = vrot.lane.b32.xlu0 %v4159, 94
        %v4169 = vpop.permute.xlu0 %4168
        %4170 = vrot.lane.b32.xlu0 %v4167, 94
        %v4171 = vpop.permute.xlu0 %4170
        %4172 = vrot.lane.b32.xlu0 %v4166, 94
        %v4173 = vpop.permute.xlu0 %4172
        %v4174 = vsel %vm1035, %v4169, %v4171
        %v4175 = vsel %vm1035, %v4171, %v4173
        %v4176 = vsel %vm546, %v3954, %v3981
        %v4177 = vsel %vm546, %v3955, %v3982
        %v4178 = vsel %vm1040, %v4176, %v4009
        %v4179 = vsel %vm1040, %v4177, %v4010
        %v4180 = vsel %vm1043, %v4178, %v4037
        %v4181 = vsel %vm1043, %v4179, %v4038
        %v4182 = vsel %vm546, %v4064, %v4091
        %v4183 = vsel %vm546, %v4065, %v4092
        %v4184 = vsel %vm1040, %v4182, %v4119
        %v4185 = vsel %vm1040, %v4183, %v4120
        %v4186 = vsel %vm1043, %v4184, %v4147
        %v4187 = vsel %vm1043, %v4185, %v4148
        %v4190 = vcombine.high %v3030, %v3031
        %4191 = vrot.lane.b32.xlu0 %v4190, 17
        %v4192 = vpop.permute.xlu0 %4191
        %v4193 = vrot.slane %v4192, 4
        %v4194 = vsel %vm564, %v4193, %v4192
        %4197 = vst.msk [vmem:[#allocation3] sm:$0xff] %vm1054, %v4194
        %4198 = vst.msk [vmem:[#allocation3 + $0x8] sm:$0xf] %vm1056, %v4193
        %v4199 = vld [vmem:[#allocation3] sm:$0xff]
        %v4200 = vld [vmem:[%s6] ss:$8 sm:$0x3]
        %v4202 = vlaneseq
        %v4203 = vshrl.u32 %v4202, 7
        %v4204 = vsub.s32 0, %v4203
        %v4205 = vrot.slane %v4200, %v4204
        %v4206 = vlaneseq
        %v4207 = vshrl.u32 %v4206, 7
        %v4208 = vsub.s32 1, %v4207
        %v4209 = vrot.slane %v4200, %v4208
        %v4210 = vcombine.low %v4205, %v4209
        %v4212 = vmul.f32 %v4199, %v4210
        %v4213 = vld [vmem:[#allocation3 + $0x8] sm:$0xf]
        %v4214 = vld [vmem:[%s594] ss:$8 sm:$0x3]
        %v4216 = vlaneseq
        %v4217 = vshrl.u32 %v4216, 7
        %v4218 = vsub.s32 0, %v4217
        %v4219 = vrot.slane %v4214, %v4218
        %v4220 = vlaneseq
        %v4221 = vshrl.u32 %v4220, 7
        %v4222 = vsub.s32 1, %v4221
        %v4223 = vrot.slane %v4214, %v4222
        %v4224 = vcombine.low %v4219, %v4223
        %4225 = vrot.lane.b32.xlu0 %v4224, 1
        %v4226 = vpop.permute.xlu0 %4225
        %v4227 = vrot.slane %v4226, 4
        %v4228 = vsel %vm616, %v4227, %v4226
        %v4231 = vmul.f32 %v4199, %v4228
        %v4232 = vmul.f32 %v4213, %v4227
        %v4233 = vld [vmem:[%s620] ss:$8 sm:$0x3]
        %v4235 = vlaneseq
        %v4236 = vshrl.u32 %v4235, 7
        %v4237 = vsub.s32 0, %v4236
        %v4238 = vrot.slane %v4233, %v4237
        %v4239 = vlaneseq
        %v4240 = vshrl.u32 %v4239, 7
        %v4241 = vsub.s32 1, %v4240
        %v4242 = vrot.slane %v4233, %v4241
        %v4243 = vcombine.low %v4238, %v4242
        %4244 = vrot.lane.b32.xlu0 %v4243, 2
        %v4245 = vpop.permute.xlu0 %4244
        %v4246 = vrot.slane %v4245, 4
        %v4247 = vsel %vm642, %v4246, %v4245
        %v4250 = vmul.f32 %v4199, %v4247
        %v4251 = vmul.f32 %v4213, %v4246
        %v4252 = vld [vmem:[%s646] ss:$8 sm:$0x3]
        %v4254 = vlaneseq
        %v4255 = vshrl.u32 %v4254, 7
        %v4256 = vsub.s32 0, %v4255
        %v4257 = vrot.slane %v4252, %v4256
        %v4258 = vlaneseq
        %v4259 = vshrl.u32 %v4258, 7
        %v4260 = vsub.s32 1, %v4259
        %v4261 = vrot.slane %v4252, %v4260
        %v4262 = vcombine.low %v4257, %v4261
        %4263 = vrot.lane.b32.xlu0 %v4262, 16
        %v4264 = vpop.permute.xlu0 %4263
        %v4265 = vrot.slane %v4264, 4
        %v4266 = vsel %vm668, %v4265, %v4264
        %v4269 = vmul.f32 %v4199, %v4266
        %v4270 = vmul.f32 %v4213, %v4265
        %v4271 = vld [vmem:[%s672] ss:$8 sm:$0x3]
        %v4273 = vlaneseq
        %v4274 = vshrl.u32 %v4273, 7
        %v4275 = vsub.s32 0, %v4274
        %v4276 = vrot.slane %v4271, %v4275
        %v4277 = vlaneseq
        %v4278 = vshrl.u32 %v4277, 7
        %v4279 = vsub.s32 1, %v4278
        %v4280 = vrot.slane %v4271, %v4279
        %v4281 = vcombine.low %v4276, %v4280
        %4282 = vrot.lane.b32.xlu0 %v4281, 17
        %v4283 = vpop.permute.xlu0 %4282
        %v4284 = vrot.slane %v4283, 4
        %v4285 = vsel %vm564, %v4284, %v4283
        %v4288 = vmul.f32 %v4199, %v4285
        %v4289 = vmul.f32 %v4213, %v4284
        %v4290 = vld [vmem:[%s697] ss:$8 sm:$0x3]
        %v4292 = vlaneseq
        %v4293 = vshrl.u32 %v4292, 7
        %v4294 = vsub.s32 0, %v4293
        %v4295 = vrot.slane %v4290, %v4294
        %v4296 = vlaneseq
        %v4297 = vshrl.u32 %v4296, 7
        %v4298 = vsub.s32 1, %v4297
        %v4299 = vrot.slane %v4290, %v4298
        %v4300 = vcombine.low %v4295, %v4299
        %4301 = vrot.lane.b32.xlu0 %v4300, 18
        %v4302 = vpop.permute.xlu0 %4301
        %v4303 = vrot.slane %v4302, 4
        %v4304 = vsel %vm719, %v4303, %v4302
        %v4307 = vmul.f32 %v4199, %v4304
        %v4308 = vmul.f32 %v4213, %v4303
        %v4309 = vld [vmem:[%s723] ss:$8 sm:$0x3]
        %v4311 = vlaneseq
        %v4312 = vshrl.u32 %v4311, 7
        %v4313 = vsub.s32 0, %v4312
        %v4314 = vrot.slane %v4309, %v4313
        %v4315 = vlaneseq
        %v4316 = vshrl.u32 %v4315, 7
        %v4317 = vsub.s32 1, %v4316
        %v4318 = vrot.slane %v4309, %v4317
        %v4319 = vcombine.low %v4314, %v4318
        %4320 = vrot.lane.b32.xlu0 %v4319, 32
        %v4321 = vpop.permute.xlu0 %4320
        %v4322 = vrot.slane %v4321, 4
        %v4323 = vsel %vm745, %v4322, %v4321
        %v4326 = vmul.f32 %v4199, %v4323
        %v4327 = vmul.f32 %v4213, %v4322
        %v4328 = vld [vmem:[%s749] ss:$8 sm:$0x3]
        %v4330 = vlaneseq
        %v4331 = vshrl.u32 %v4330, 7
        %v4332 = vsub.s32 0, %v4331
        %v4333 = vrot.slane %v4328, %v4332
        %v4334 = vlaneseq
        %v4335 = vshrl.u32 %v4334, 7
        %v4336 = vsub.s32 1, %v4335
        %v4337 = vrot.slane %v4328, %v4336
        %v4338 = vcombine.low %v4333, %v4337
        %4339 = vrot.lane.b32.xlu0 %v4338, 33
        %v4340 = vpop.permute.xlu0 %4339
        %v4341 = vrot.slane %v4340, 4
        %v4342 = vsel %vm771, %v4341, %v4340
        %v4345 = vmul.f32 %v4199, %v4342
        %v4346 = vmul.f32 %v4213, %v4341
        %v4347 = vld [vmem:[%s775] ss:$8 sm:$0x3]
        %v4349 = vlaneseq
        %v4350 = vshrl.u32 %v4349, 7
        %v4351 = vsub.s32 0, %v4350
        %v4352 = vrot.slane %v4347, %v4351
        %v4353 = vlaneseq
        %v4354 = vshrl.u32 %v4353, 7
        %v4355 = vsub.s32 1, %v4354
        %v4356 = vrot.slane %v4347, %v4355
        %v4357 = vcombine.low %v4352, %v4356
        %4358 = vrot.lane.b32.xlu0 %v4357, 34
        %v4359 = vpop.permute.xlu0 %4358
        %v4360 = vrot.slane %v4359, 4
        %v4361 = vsel %vm797, %v4360, %v4359
        %v4364 = vmul.f32 %v4199, %v4361
        %v4365 = vmul.f32 %v4213, %v4360
        %v4367 = vcombine.high %v4212, %v4212
        %v4371 = vcombine.low %v4231, %v4231
        %v4372 = vcombine.low %v4232, %v4232
        %4373 = vrot.lane.b32.xlu0 %v4371, 127
        %v4374 = vpop.permute.xlu0 %4373
        %4375 = vrot.lane.b32.xlu0 %v4231, 127
        %v4376 = vpop.permute.xlu0 %4375
        %4377 = vrot.lane.b32.xlu0 %v4372, 127
        %v4378 = vpop.permute.xlu0 %4377
        %v4379 = vsel %vm835, %v4374, %v4376
        %v4380 = vsel %vm835, %v4376, %v4378
        %v4385 = vcombine.high %v4250, %v4250
        %4386 = vrot.lane.b32.xlu0 %v4250, 126
        %v4387 = vpop.permute.xlu0 %4386
        %4388 = vrot.lane.b32.xlu0 %v4385, 126
        %v4389 = vpop.permute.xlu0 %4388
        %4390 = vrot.lane.b32.xlu0 %v4251, 126
        %v4391 = vpop.permute.xlu0 %4390
        %v4392 = vsel %vm864, %v4387, %v4389
        %v4393 = vsel %vm864, %v4389, %v4391
        %v4398 = vcombine.low %v4269, %v4269
        %v4399 = vcombine.low %v4270, %v4270
        %4400 = vrot.lane.b32.xlu0 %v4398, 112
        %v4401 = vpop.permute.xlu0 %4400
        %4402 = vrot.lane.b32.xlu0 %v4269, 112
        %v4403 = vpop.permute.xlu0 %4402
        %4404 = vrot.lane.b32.xlu0 %v4399, 112
        %v4405 = vpop.permute.xlu0 %4404
        %v4406 = vsel %vm893, %v4401, %v4403
        %v4407 = vsel %vm893, %v4403, %v4405
        %v4412 = vcombine.high %v4288, %v4288
        %4413 = vrot.lane.b32.xlu0 %v4288, 111
        %v4414 = vpop.permute.xlu0 %4413
        %4415 = vrot.lane.b32.xlu0 %v4412, 111
        %v4416 = vpop.permute.xlu0 %4415
        %4417 = vrot.lane.b32.xlu0 %v4289, 111
        %v4418 = vpop.permute.xlu0 %4417
        %v4419 = vsel %vm921, %v4414, %v4416
        %v4420 = vsel %vm921, %v4416, %v4418
        %v4425 = vcombine.low %v4307, %v4307
        %v4426 = vcombine.low %v4308, %v4308
        %4427 = vrot.lane.b32.xlu0 %v4425, 110
        %v4428 = vpop.permute.xlu0 %4427
        %4429 = vrot.lane.b32.xlu0 %v4307, 110
        %v4430 = vpop.permute.xlu0 %4429
        %4431 = vrot.lane.b32.xlu0 %v4426, 110
        %v4432 = vpop.permute.xlu0 %4431
        %v4433 = vsel %vm949, %v4428, %v4430
        %v4434 = vsel %vm949, %v4430, %v4432
        %v4439 = vcombine.high %v4326, %v4326
        %4440 = vrot.lane.b32.xlu0 %v4326, 96
        %v4441 = vpop.permute.xlu0 %4440
        %4442 = vrot.lane.b32.xlu0 %v4439, 96
        %v4443 = vpop.permute.xlu0 %4442
        %4444 = vrot.lane.b32.xlu0 %v4327, 96
        %v4445 = vpop.permute.xlu0 %4444
        %v4446 = vsel %vm978, %v4441, %v4443
        %v4447 = vsel %vm978, %v4443, %v4445
        %v4452 = vcombine.low %v4345, %v4345
        %v4453 = vcombine.low %v4346, %v4346
        %4454 = vrot.lane.b32.xlu0 %v4452, 95
        %v4455 = vpop.permute.xlu0 %4454
        %4456 = vrot.lane.b32.xlu0 %v4345, 95
        %v4457 = vpop.permute.xlu0 %4456
        %4458 = vrot.lane.b32.xlu0 %v4453, 95
        %v4459 = vpop.permute.xlu0 %4458
        %v4460 = vsel %vm1007, %v4455, %v4457
        %v4461 = vsel %vm1007, %v4457, %v4459
        %v4466 = vcombine.high %v4364, %v4364
        %4467 = vrot.lane.b32.xlu0 %v4364, 94
        %v4468 = vpop.permute.xlu0 %4467
        %4469 = vrot.lane.b32.xlu0 %v4466, 94
        %v4470 = vpop.permute.xlu0 %4469
        %4471 = vrot.lane.b32.xlu0 %v4365, 94
        %v4472 = vpop.permute.xlu0 %4471
        %v4473 = vsel %vm1035, %v4468, %v4470
        %v4474 = vsel %vm1035, %v4470, %v4472
        %v4475 = vsel %vm1040, %v4212, %v4379
        %v4476 = vsel %vm1040, %v4367, %v4380
        %v4477 = vsel %vm1040, %v4392, %v4406
        %v4478 = vsel %vm1040, %v4393, %v4407
        %v4479 = vsel %vm1040, %v4419, %v4433
        %v4480 = vsel %vm1040, %v4420, %v4434
        %v4481 = vsel %vm1040, %v4446, %v4460
        %v4482 = vsel %vm1040, %v4447, %v4461
        %v4483 = vld [vmem:[%s1] sm:$0xff]
        %v4484 = vld [vmem:[%s2] sm:$0xff]
        %4486 = vset.pattern.permute.xlu0 0
        %4487 = vperm.xlu0 %4486, %v4484
        %v4488 = vpop.permute.xlu0 %4487
        %v4491 = vsel %vm719, %v4483, 0
        %v4493 = vsel %vm546, %v4174, 0
        %v4495 = vsel %vm546, %v4175, 0
        %4497 = vmatprep.subr.mxu0 %v4181
        %4498 = vmatpush1.msra.mxu0 %v4180
        %4499 = vmatprep.subr.mxu0 %v4187
        %4500 = vmatpush1.msra.mxu0 %v4186
        %4501 = vmatprep.subr.mxu0 %v4495
        %4502 = vmatpush1.msra.mxu0 %v4493
        %4503 = vmatprep.subr.mxu0 0.0
        %4504 = vmatpush1.msra.mxu0 0.0
        %4505 = vmatprep.subr.mxu0 0.0
        %4506 = vmatpush1.msra.mxu0 0.0
        %4507 = vmatprep.subr.mxu0 0.0
        %4508 = vmatpush1.msra.mxu0 0.0
        %4509 = vmatprep.subr.mxu0 0.0
        %4510 = vmatpush1.msra.mxu0 0.0
        %4511 = vmatprep.subr.mxu0 0.0
        %4512 = vmatpush1.msra.mxu0 0.0
        %4513 = vmatprep.subr.mxu0 0.0
        %4514 = vmatpush1.msra.mxu0 0.0
        %4515 = vmatprep.subr.mxu0 0.0
        %4516 = vmatpush1.msra.mxu0 0.0
        %4517 = vmatprep.subr.mxu0 0.0
        %4518 = vmatpush1.msra.mxu0 0.0
        %4519 = vmatprep.subr.mxu0 0.0
        %4520 = vmatpush1.msra.mxu0 0.0
        %4521 = vmatprep.subr.mxu0 0.0
        %4522 = vmatpush1.msra.mxu0 0.0
        %4523 = vmatprep.subr.mxu0 0.0
        %4524 = vmatpush1.msra.mxu0 0.0
        %4525 = vmatprep.subr.mxu0 0.0
        %4526 = vmatpush1.msra.mxu0 0.0
        %4527 = vmatprep.subr.mxu0 0.0
        %4528 = vmatpush1.msra.mxu0 0.0
        %4529 = vmatprep.subr.mxu0 0.0
        %4530 = vmatpush1.msra.mxu0 0.0
        %4531 = vmatprep.subr.mxu0 0.0
        %4532 = vmatpush1.msra.mxu0 0.0
        %4533 = vmatprep.subr.mxu0 0.0
        %4534 = vmatpush1.msra.mxu0 0.0
        %4535 = vmatprep.subr.mxu0 0.0
        %4536 = vmatpush1.msra.mxu0 0.0
        %4537 = vmatprep.subr.mxu0 0.0
        %4538 = vmatpush1.msra.mxu0 0.0
        %4539 = vmatprep.subr.mxu0 0.0
        %4540 = vmatpush1.msra.mxu0 0.0
        %4541 = vmatprep.subr.mxu0 0.0
        %4542 = vmatpush1.msra.mxu0 0.0
        %4543 = vmatprep.subr.mxu0 0.0
        %4544 = vmatpush1.msra.mxu0 0.0
        %4545 = vmatprep.subr.mxu0 0.0
        %4546 = vmatpush1.msra.mxu0 0.0
        %4547 = vmatprep.subr.mxu0 0.0
        %4548 = vmatpush1.msra.mxu0 0.0
        %4549 = vmatprep.subr.mxu0 0.0
        %4550 = vmatpush1.msra.mxu0 0.0
        %4551 = vmatprep.subr.mxu0 0.0
        %4552 = vmatpush1.msra.mxu0 0.0
        %4553 = vmatprep.subr.mxu0 0.0
        %4554 = vmatpush1.msra.mxu0 0.0
        %4555 = vmatprep.subr.mxu0 0.0
        %4556 = vmatpush1.msra.mxu0 0.0
        %4557 = vmatprep.subr.mxu0 0.0
        %4558 = vmatpush1.msra.mxu0 0.0
        %4559 = vmatprep.subr.mxu0 0.0
        %4560 = vmatpush1.msra.mxu0 0.0
        %4561 = vmatprep.mubr.f32.mxu0 0.0
        %4562 = vmatmul.mubr.f32.gmra.mrb[0].mxu0 %v4491
        %v4563 = vpop.f32.mrb[0].mxu0
        %v4564 = vadd.f32 %v4488, %v4563
        %v4565 = vpop.f32.mrb[0].mxu0
        %v4566 = vadd.f32 %v4488, %v4565
        %4567 = vdwg.mxu0
        %v4568 = vld [vmem:[%s3] sm:$0xf]
        %v4569 = vld [vmem:[%s4] sm:$0xf]
        %4571 = vset.pattern.permute.xlu0 0
        %4572 = vperm.xlu0 %4571, %v4569
        %v4573 = vpop.permute.xlu0 %4572
        %v4576 = vsel %vm1434, %v4568, 0
        %v4578 = vsel %vm1040, %v4473, 0
        %v4580 = vsel %vm1040, %v4474, 0
        %4582 = vmatprep.subr.mxu0 %v4476
        %4583 = vmatpush1.msra.mxu0 %v4475
        %4584 = vmatprep.subr.mxu0 %v4478
        %4585 = vmatpush1.msra.mxu0 %v4477
        %4586 = vmatprep.subr.mxu0 %v4480
        %4587 = vmatpush1.msra.mxu0 %v4479
        %4588 = vmatprep.subr.mxu0 %v4482
        %4589 = vmatpush1.msra.mxu0 %v4481
        %4590 = vmatprep.subr.mxu0 %v4580
        %4591 = vmatpush1.msra.mxu0 %v4578
        %4592 = vmatprep.subr.mxu0 0.0
        %4593 = vmatpush1.msra.mxu0 0.0
        %4594 = vmatprep.subr.mxu0 0.0
        %4595 = vmatpush1.msra.mxu0 0.0
        %4596 = vmatprep.subr.mxu0 0.0
        %4597 = vmatpush1.msra.mxu0 0.0
        %4598 = vmatprep.subr.mxu0 0.0
        %4599 = vmatpush1.msra.mxu0 0.0
        %4600 = vmatprep.subr.mxu0 0.0
        %4601 = vmatpush1.msra.mxu0 0.0
        %4602 = vmatprep.subr.mxu0 0.0
        %4603 = vmatpush1.msra.mxu0 0.0
        %4604 = vmatprep.subr.mxu0 0.0
        %4605 = vmatpush1.msra.mxu0 0.0
        %4606 = vmatprep.subr.mxu0 0.0
        %4607 = vmatpush1.msra.mxu0 0.0
        %4608 = vmatprep.subr.mxu0 0.0
        %4609 = vmatpush1.msra.mxu0 0.0
        %4610 = vmatprep.subr.mxu0 0.0
        %4611 = vmatpush1.msra.mxu0 0.0
        %4612 = vmatprep.subr.mxu0 0.0
        %4613 = vmatpush1.msra.mxu0 0.0
        %4614 = vmatprep.subr.mxu0 0.0
        %4615 = vmatpush1.msra.mxu0 0.0
        %4616 = vmatprep.subr.mxu0 0.0
        %4617 = vmatpush1.msra.mxu0 0.0
        %4618 = vmatprep.subr.mxu0 0.0
        %4619 = vmatpush1.msra.mxu0 0.0
        %4620 = vmatprep.subr.mxu0 0.0
        %4621 = vmatpush1.msra.mxu0 0.0
        %4622 = vmatprep.subr.mxu0 0.0
        %4623 = vmatpush1.msra.mxu0 0.0
        %4624 = vmatprep.subr.mxu0 0.0
        %4625 = vmatpush1.msra.mxu0 0.0
        %4626 = vmatprep.subr.mxu0 0.0
        %4627 = vmatpush1.msra.mxu0 0.0
        %4628 = vmatprep.subr.mxu0 0.0
        %4629 = vmatpush1.msra.mxu0 0.0
        %4630 = vmatprep.subr.mxu0 0.0
        %4631 = vmatpush1.msra.mxu0 0.0
        %4632 = vmatprep.subr.mxu0 0.0
        %4633 = vmatpush1.msra.mxu0 0.0
        %4634 = vmatprep.subr.mxu0 0.0
        %4635 = vmatpush1.msra.mxu0 0.0
        %4636 = vmatprep.subr.mxu0 0.0
        %4637 = vmatpush1.msra.mxu0 0.0
        %4638 = vmatprep.subr.mxu0 0.0
        %4639 = vmatpush1.msra.mxu0 0.0
        %4640 = vmatprep.subr.mxu0 0.0
        %4641 = vmatpush1.msra.mxu0 0.0
        %4642 = vmatprep.subr.mxu0 0.0
        %4643 = vmatpush1.msra.mxu0 0.0
        %4644 = vmatprep.subr.mxu0 0.0
        %4645 = vmatpush1.msra.mxu0 0.0
        %4646 = vmatprep.mubr.f32.mxu0 0.0
        %4647 = vmatmul.mubr.f32.gmra.mrb[0].mxu0 %v4576
        %v4648 = vpop.f32.mrb[0].mxu0
        %v4649 = vadd.f32 %v4573, %v4648
        %v4650 = vpop.f32.mrb[0].mxu0
        %v4651 = vadd.f32 %v4573, %v4650
        %4652 = vdwg.mxu0
        %v4653 = vmul.f32 %v3010, 0.3
        %v4654 = vmul.f32 %v3011, 0.3
        %v4655 = vsub.f32 1.0, %v3018
        %v4656 = vsub.f32 1.0, %v3019
        %v4657 = vmul.f32 %v4653, %v4655
        %v4658 = vmul.f32 %v4654, %v4656
        %v4659 = vadd.f32 %v4657, %v4564
        %v4660 = vadd.f32 %v4658, %v4566
        %v4661 = vsub.f32 %v4659, 0.5
        %v4662 = vsub.f32 %v4660, 0.5
        %vm4663 = vcmp.gt.f32.partialorder %v4661, 0.0
        %vm4664 = vcmp.gt.f32.partialorder %v4662, 0.0
        %v4665 = vsel %vm4663, 1, 0
        %v4666 = vsel %vm4664, 1, 0
        %v4667 = vcvt.s32.f32 %v4665
        %v4668 = vcvt.s32.f32 %v4666
        %v4669 = vmax.f32 %v4649, 0.0
        %v4670 = vmax.f32 %v4651, 0.0
        %v4673 = vrot.slane %v4669, 4
        %v4674 = vrot.slane %v4670, 4
        %v4677 = vadd.f32 %v4564, %v4673
        %v4678 = vadd.f32 %v4566, %v4674
        %v4679 = vtanh.pop %v4677
        %v4680 = vtanh.pop %v4678
        %v4681 = vsel %vm1040, %v4667, %v4679
        %v4682 = vsel %vm1040, %v4668, %v4680
        %v4683 = vld [vmem:[%s5] sm:$0xff]
        %v4684 = vld [vmem:[%s5 + $0x8] sm:$0xff]
        %v4685 = vld [vmem:[%s5 + $0x10] sm:$0xff]
        %v4686 = vld [vmem:[%s5 + $0x18] sm:$0xff]
        %v4687 = vld [vmem:[%s5 + $0x20] sm:$0xff]
        %v4688 = vld [vmem:[%s5 + $0x28] sm:$0xff]
        %v4689 = vld [vmem:[%s5 + $0x30] sm:$0xff]
        %v4690 = vld [vmem:[%s5 + $0x38] sm:$0xff]
        %v4691 = vld [vmem:[%s5 + $0x40] sm:$0xff]
        %v4692 = vld [vmem:[%s5 + $0x48] sm:$0xff]
        %v4693 = vld [vmem:[%s5 + $0x50] sm:$0xff]
        %v4694 = vld [vmem:[%s5 + $0x58] sm:$0xff]
        %v4695 = vld [vmem:[%s5 + $0x60] sm:$0xff]
        %v4696 = vld [vmem:[%s5 + $0x68] sm:$0xff]
        %v4697 = vld [vmem:[%s5 + $0x70] sm:$0xff]
        %v4698 = vld [vmem:[%s5 + $0x78] sm:$0xff]
        %v4699 = vld [vmem:[%s5 + $0x80] sm:$0xff]
        %v4700 = vld [vmem:[%s5 + $0x88] sm:$0xff]
        %v4701 = vld [vmem:[%s5 + $0x90] sm:$0xff]
        %v4702 = vld [vmem:[%s5 + $0x98] sm:$0xff]
        %v4703 = vld [vmem:[%s5 + $0xa0] sm:$0xff]
        %v4704 = vld [vmem:[%s5 + $0xa8] sm:$0xff]
        %v4705 = vld [vmem:[%s5 + $0xb0] sm:$0xff]
        %v4706 = vld [vmem:[%s5 + $0xb8] sm:$0xff]
        %v4707 = vld [vmem:[%s5 + $0xc0] sm:$0xff]
        %v4708 = vld [vmem:[%s5 + $0xc8] sm:$0xff]
        %v4709 = vld [vmem:[%s5 + $0xd0] sm:$0xff]
        %v4710 = vld [vmem:[%s5 + $0xd8] sm:$0xff]
        %v4711 = vld [vmem:[%s5 + $0xe0] sm:$0xff]
        %v4712 = vld [vmem:[%s5 + $0xe8] sm:$0xff]
        %v4713 = vld [vmem:[%s5 + $0xf0] sm:$0xff]
        %v4714 = vld [vmem:[%s5 + $0xf8] sm:$0xff]
        %4715 = vmatprep.subr.mxu0 0.0
        %4716 = vmatpush1.msra.mxu0 %v4683
        %4717 = vmatprep.subr.mxu0 0.0
        %4718 = vmatpush1.msra.mxu0 %v4684
        %4719 = vmatprep.subr.mxu0 0.0
        %4720 = vmatpush1.msra.mxu0 %v4685
        %4721 = vmatprep.subr.mxu0 0.0
        %4722 = vmatpush1.msra.mxu0 %v4686
        %4723 = vmatprep.subr.mxu0 0.0
        %4724 = vmatpush1.msra.mxu0 %v4687
        %4725 = vmatprep.subr.mxu0 0.0
        %4726 = vmatpush1.msra.mxu0 %v4688
        %4727 = vmatprep.subr.mxu0 0.0
        %4728 = vmatpush1.msra.mxu0 %v4689
        %4729 = vmatprep.subr.mxu0 0.0
        %4730 = vmatpush1.msra.mxu0 %v4690
        %4731 = vmatprep.subr.mxu0 0.0
        %4732 = vmatpush1.msra.mxu0 %v4691
        %4733 = vmatprep.subr.mxu0 0.0
        %4734 = vmatpush1.msra.mxu0 %v4692
        %4735 = vmatprep.subr.mxu0 0.0
        %4736 = vmatpush1.msra.mxu0 %v4693
        %4737 = vmatprep.subr.mxu0 0.0
        %4738 = vmatpush1.msra.mxu0 %v4694
        %4739 = vmatprep.subr.mxu0 0.0
        %4740 = vmatpush1.msra.mxu0 %v4695
        %4741 = vmatprep.subr.mxu0 0.0
        %4742 = vmatpush1.msra.mxu0 %v4696
        %4743 = vmatprep.subr.mxu0 0.0
        %4744 = vmatpush1.msra.mxu0 %v4697
        %4745 = vmatprep.subr.mxu0 0.0
        %4746 = vmatpush1.msra.mxu0 %v4698
        %4747 = vmatprep.subr.mxu0 0.0
        %4748 = vmatpush1.msra.mxu0 %v4699
        %4749 = vmatprep.subr.mxu0 0.0
        %4750 = vmatpush1.msra.mxu0 %v4700
        %4751 = vmatprep.subr.mxu0 0.0
        %4752 = vmatpush1.msra.mxu0 %v4701
        %4753 = vmatprep.subr.mxu0 0.0
        %4754 = vmatpush1.msra.mxu0 %v4702
        %4755 = vmatprep.subr.mxu0 0.0
        %4756 = vmatpush1.msra.mxu0 %v4703
        %4757 = vmatprep.subr.mxu0 0.0
        %4758 = vmatpush1.msra.mxu0 %v4704
        %4759 = vmatprep.subr.mxu0 0.0
        %4760 = vmatpush1.msra.mxu0 %v4705
        %4761 = vmatprep.subr.mxu0 0.0
        %4762 = vmatpush1.msra.mxu0 %v4706
        %4763 = vmatprep.subr.mxu0 0.0
        %4764 = vmatpush1.msra.mxu0 %v4707
        %4765 = vmatprep.subr.mxu0 0.0
        %4766 = vmatpush1.msra.mxu0 %v4708
        %4767 = vmatprep.subr.mxu0 0.0
        %4768 = vmatpush1.msra.mxu0 %v4709
        %4769 = vmatprep.subr.mxu0 0.0
        %4770 = vmatpush1.msra.mxu0 %v4710
        %4771 = vmatprep.subr.mxu0 0.0
        %4772 = vmatpush1.msra.mxu0 %v4711
        %4773 = vmatprep.subr.mxu0 0.0
        %4774 = vmatpush1.msra.mxu0 %v4712
        %4775 = vmatprep.subr.mxu0 0.0
        %4776 = vmatpush1.msra.mxu0 %v4713
        %4777 = vmatprep.subr.mxu0 0.0
        %4778 = vmatpush1.msra.mxu0 %v4714
        %4779 = vmatprep.mubr.f32.mxu0 %v4682
        %4780 = vmatmul.mubr.f32.gmra.mrb[0].mxu0 %v4681
        %v4781 = vpop.f32.mrb[0].mxu0
        %v4782 = vadd.f32 0.0, %v4781
        %v4783 = vpop.f32.mrb[0].mxu0
        %4784 = vdwg.mxu0
        %4786 = vrot.lane.b32.xlu0 %v4782, 9
        %v4787 = vpop.permute.xlu0 %4786
        %4789 = vst.msk [vmem:[#allocation4] sm:$0xff] %vm1643, %v4787
        %v4790 = vld [vmem:[#allocation4] sm:$0xff]
        %v4791 = vld [vmem:[%s12] sm:$0x1]
        %v4792 = vlaneseq
        %v4793 = vshrl.u32 %v4792, 7
        %v4794 = vsub.s32 0, %v4793
        %v4795 = vrot.slane %v4791, %v4794
        %v4796 = vmul.f32 %v4790, %v4795
        %v4797 = vld [vmem:[%s12 + $0x1] sm:$0x1]
        %v4798 = vlaneseq
        %v4799 = vshrl.u32 %v4798, 7
        %v4800 = vsub.s32 0, %v4799
        %v4801 = vrot.slane %v4797, %v4800
        %4803 = vrot.lane.b32.xlu0 %v4801, 1
        %v4804 = vpop.permute.xlu0 %4803
        %v4806 = vmul.f32 %v4790, %v4804
        %v4807 = vld [vmem:[%s12 + $0x2] sm:$0x1]
        %v4808 = vlaneseq
        %v4809 = vshrl.u32 %v4808, 7
        %v4810 = vsub.s32 0, %v4809
        %v4811 = vrot.slane %v4807, %v4810
        %4813 = vrot.lane.b32.xlu0 %v4811, 2
        %v4814 = vpop.permute.xlu0 %4813
        %v4816 = vmul.f32 %v4790, %v4814
        %v4817 = vld [vmem:[%s12 + $0x3] sm:$0x1]
        %v4818 = vlaneseq
        %v4819 = vshrl.u32 %v4818, 7
        %v4820 = vsub.s32 0, %v4819
        %v4821 = vrot.slane %v4817, %v4820
        %4823 = vrot.lane.b32.xlu0 %v4821, 8
        %v4824 = vpop.permute.xlu0 %4823
        %v4826 = vmul.f32 %v4790, %v4824
        %v4827 = vld [vmem:[%s12 + $0x4] sm:$0x1]
        %v4828 = vlaneseq
        %v4829 = vshrl.u32 %v4828, 7
        %v4830 = vsub.s32 0, %v4829
        %v4831 = vrot.slane %v4827, %v4830
        %4833 = vrot.lane.b32.xlu0 %v4831, 9
        %v4834 = vpop.permute.xlu0 %4833
        %v4836 = vmul.f32 %v4790, %v4834
        %v4837 = vld [vmem:[%s12 + $0x5] sm:$0x1]
        %v4838 = vlaneseq
        %v4839 = vshrl.u32 %v4838, 7
        %v4840 = vsub.s32 0, %v4839
        %v4841 = vrot.slane %v4837, %v4840
        %4843 = vrot.lane.b32.xlu0 %v4841, 10
        %v4844 = vpop.permute.xlu0 %4843
        %v4846 = vmul.f32 %v4790, %v4844
        %v4847 = vld [vmem:[%s12 + $0x6] sm:$0x1]
        %v4848 = vlaneseq
        %v4849 = vshrl.u32 %v4848, 7
        %v4850 = vsub.s32 0, %v4849
        %v4851 = vrot.slane %v4847, %v4850
        %4853 = vrot.lane.b32.xlu0 %v4851, 16
        %v4854 = vpop.permute.xlu0 %4853
        %v4856 = vmul.f32 %v4790, %v4854
        %v4857 = vld [vmem:[%s12 + $0x7] sm:$0x1]
        %v4858 = vlaneseq
        %v4859 = vshrl.u32 %v4858, 7
        %v4860 = vsub.s32 0, %v4859
        %v4861 = vrot.slane %v4857, %v4860
        %4863 = vrot.lane.b32.xlu0 %v4861, 17
        %v4864 = vpop.permute.xlu0 %4863
        %v4866 = vmul.f32 %v4790, %v4864
        %v4867 = vld [vmem:[%s12 + $0x8] sm:$0x1]
        %v4868 = vlaneseq
        %v4869 = vshrl.u32 %v4868, 7
        %v4870 = vsub.s32 0, %v4869
        %v4871 = vrot.slane %v4867, %v4870
        %4873 = vrot.lane.b32.xlu0 %v4871, 18
        %v4874 = vpop.permute.xlu0 %4873
        %v4876 = vmul.f32 %v4790, %v4874
        %4878 = vrot.lane.b32.xlu0 %v4806, 127
        %v4879 = vpop.permute.xlu0 %4878
        %4882 = vrot.lane.b32.xlu0 %v4816, 126
        %v4883 = vpop.permute.xlu0 %4882
        %4886 = vrot.lane.b32.xlu0 %v4826, 120
        %v4887 = vpop.permute.xlu0 %4886
        %4890 = vrot.lane.b32.xlu0 %v4836, 119
        %v4891 = vpop.permute.xlu0 %4890
        %4894 = vrot.lane.b32.xlu0 %v4846, 118
        %v4895 = vpop.permute.xlu0 %4894
        %4898 = vrot.lane.b32.xlu0 %v4856, 112
        %v4899 = vpop.permute.xlu0 %4898
        %4902 = vrot.lane.b32.xlu0 %v4866, 111
        %v4903 = vpop.permute.xlu0 %4902
        %4906 = vrot.lane.b32.xlu0 %v4876, 110
        %v4907 = vpop.permute.xlu0 %4906
        %4910 = vrot.lane.b32.xlu0 %v3567, 9
        %v4911 = vpop.permute.xlu0 %4910
        %4913 = vst.msk [vmem:[#allocation5 - $0x4] sm:$0xf0] %vm3264, %v4911
        %v4914 = vld [vmem:[#allocation5] sm:$0xf]
        %v4915 = vld [vmem:[%s12] sm:$0x1]
        %v4916 = vlaneseq
        %v4917 = vshrl.u32 %v4916, 7
        %v4918 = vsub.s32 0, %v4917
        %v4919 = vrot.slane %v4915, %v4918
        %v4920 = vmul.f32 %v4914, %v4919
        %v4921 = vld [vmem:[%s12 + $0x1] sm:$0x1]
        %v4922 = vlaneseq
        %v4923 = vshrl.u32 %v4922, 7
        %v4924 = vsub.s32 0, %v4923
        %v4925 = vrot.slane %v4921, %v4924
        %4927 = vrot.lane.b32.xlu0 %v4925, 1
        %v4928 = vpop.permute.xlu0 %4927
        %v4930 = vmul.f32 %v4914, %v4928
        %v4931 = vld [vmem:[%s12 + $0x2] sm:$0x1]
        %v4932 = vlaneseq
        %v4933 = vshrl.u32 %v4932, 7
        %v4934 = vsub.s32 0, %v4933
        %v4935 = vrot.slane %v4931, %v4934
        %4937 = vrot.lane.b32.xlu0 %v4935, 2
        %v4938 = vpop.permute.xlu0 %4937
        %v4940 = vmul.f32 %v4914, %v4938
        %v4941 = vld [vmem:[%s12 + $0x3] sm:$0x1]
        %v4942 = vlaneseq
        %v4943 = vshrl.u32 %v4942, 7
        %v4944 = vsub.s32 0, %v4943
        %v4945 = vrot.slane %v4941, %v4944
        %4947 = vrot.lane.b32.xlu0 %v4945, 8
        %v4948 = vpop.permute.xlu0 %4947
        %v4950 = vmul.f32 %v4914, %v4948
        %v4951 = vld [vmem:[%s12 + $0x4] sm:$0x1]
        %v4952 = vlaneseq
        %v4953 = vshrl.u32 %v4952, 7
        %v4954 = vsub.s32 0, %v4953
        %v4955 = vrot.slane %v4951, %v4954
        %4957 = vrot.lane.b32.xlu0 %v4955, 9
        %v4958 = vpop.permute.xlu0 %4957
        %v4960 = vmul.f32 %v4914, %v4958
        %v4961 = vld [vmem:[%s12 + $0x5] sm:$0x1]
        %v4962 = vlaneseq
        %v4963 = vshrl.u32 %v4962, 7
        %v4964 = vsub.s32 0, %v4963
        %v4965 = vrot.slane %v4961, %v4964
        %4967 = vrot.lane.b32.xlu0 %v4965, 10
        %v4968 = vpop.permute.xlu0 %4967
        %v4970 = vmul.f32 %v4914, %v4968
        %v4971 = vld [vmem:[%s12 + $0x6] sm:$0x1]
        %v4972 = vlaneseq
        %v4973 = vshrl.u32 %v4972, 7
        %v4974 = vsub.s32 0, %v4973
        %v4975 = vrot.slane %v4971, %v4974
        %4977 = vrot.lane.b32.xlu0 %v4975, 16
        %v4978 = vpop.permute.xlu0 %4977
        %v4980 = vmul.f32 %v4914, %v4978
        %v4981 = vld [vmem:[%s12 + $0x7] sm:$0x1]
        %v4982 = vlaneseq
        %v4983 = vshrl.u32 %v4982, 7
        %v4984 = vsub.s32 0, %v4983
        %v4985 = vrot.slane %v4981, %v4984
        %4987 = vrot.lane.b32.xlu0 %v4985, 17
        %v4988 = vpop.permute.xlu0 %4987
        %v4990 = vmul.f32 %v4914, %v4988
        %v4991 = vld [vmem:[%s12 + $0x8] sm:$0x1]
        %v4992 = vlaneseq
        %v4993 = vshrl.u32 %v4992, 7
        %v4994 = vsub.s32 0, %v4993
        %v4995 = vrot.slane %v4991, %v4994
        %4997 = vrot.lane.b32.xlu0 %v4995, 18
        %v4998 = vpop.permute.xlu0 %4997
        %v5000 = vmul.f32 %v4914, %v4998
        %v5002 = vrot.slane %v4930, 4
        %5003 = vrot.lane.b32.xlu0 %v5002, 127
        %v5004 = vpop.permute.xlu0 %5003
        %5007 = vrot.lane.b32.xlu0 %v4940, 126
        %v5008 = vpop.permute.xlu0 %5007
        %v5011 = vrot.slane %v4950, 4
        %5012 = vrot.lane.b32.xlu0 %v5011, 120
        %v5013 = vpop.permute.xlu0 %5012
        %5016 = vrot.lane.b32.xlu0 %v4960, 119
        %v5017 = vpop.permute.xlu0 %5016
        %v5020 = vrot.slane %v4970, 4
        %5021 = vrot.lane.b32.xlu0 %v5020, 118
        %v5022 = vpop.permute.xlu0 %5021
        %5025 = vrot.lane.b32.xlu0 %v4980, 112
        %v5026 = vpop.permute.xlu0 %5025
        %v5029 = vrot.slane %v4990, 4
        %5030 = vrot.lane.b32.xlu0 %v5029, 111
        %v5031 = vpop.permute.xlu0 %5030
        %5034 = vrot.lane.b32.xlu0 %v5000, 110
        %v5035 = vpop.permute.xlu0 %5034
        %v5036 = vsel %vm1040, %v4920, %v5004
        %v5037 = vsel %vm1040, %v5008, %v5013
        %v5038 = vsel %vm1040, %v5017, %v5022
        %v5039 = vsel %vm1040, %v5026, %v5031
        %v5040 = vld [vmem:[%s7] sm:$0xff]
        %v5041 = vld [vmem:[%s8] sm:$0xff]
        %5043 = vset.pattern.permute.xlu0 0
        %5044 = vperm.xlu0 %5043, %v5041
        %v5045 = vpop.permute.xlu0 %5044
        %v5048 = vsel %vm1899, %v5040, 0
        %5050 = vmatprep.subr.mxu0 0.0
        %5051 = vmatpush1.msra.mxu0 %v4796
        %5052 = vmatprep.subr.mxu0 0.0
        %5053 = vmatpush1.msra.mxu0 %v4879
        %5054 = vmatprep.subr.mxu0 0.0
        %5055 = vmatpush1.msra.mxu0 %v4883
        %5056 = vmatprep.subr.mxu0 0.0
        %5057 = vmatpush1.msra.mxu0 %v4887
        %5058 = vmatprep.subr.mxu0 0.0
        %5059 = vmatpush1.msra.mxu0 %v4891
        %5060 = vmatprep.subr.mxu0 0.0
        %5061 = vmatpush1.msra.mxu0 %v4895
        %5062 = vmatprep.subr.mxu0 0.0
        %5063 = vmatpush1.msra.mxu0 %v4899
        %5064 = vmatprep.subr.mxu0 0.0
        %5065 = vmatpush1.msra.mxu0 %v4903
        %5066 = vmatprep.subr.mxu0 0.0
        %5067 = vmatpush1.msra.mxu0 %v4907
        %5068 = vmatprep.subr.mxu0 0.0
        %5069 = vmatpush1.msra.mxu0 0.0
        %5070 = vmatprep.subr.mxu0 0.0
        %5071 = vmatpush1.msra.mxu0 0.0
        %5072 = vmatprep.subr.mxu0 0.0
        %5073 = vmatpush1.msra.mxu0 0.0
        %5074 = vmatprep.subr.mxu0 0.0
        %5075 = vmatpush1.msra.mxu0 0.0
        %5076 = vmatprep.subr.mxu0 0.0
        %5077 = vmatpush1.msra.mxu0 0.0
        %5078 = vmatprep.subr.mxu0 0.0
        %5079 = vmatpush1.msra.mxu0 0.0
        %5080 = vmatprep.subr.mxu0 0.0
        %5081 = vmatpush1.msra.mxu0 0.0
        %5082 = vmatprep.subr.mxu0 0.0
        %5083 = vmatpush1.msra.mxu0 0.0
        %5084 = vmatprep.subr.mxu0 0.0
        %5085 = vmatpush1.msra.mxu0 0.0
        %5086 = vmatprep.subr.mxu0 0.0
        %5087 = vmatpush1.msra.mxu0 0.0
        %5088 = vmatprep.subr.mxu0 0.0
        %5089 = vmatpush1.msra.mxu0 0.0
        %5090 = vmatprep.subr.mxu0 0.0
        %5091 = vmatpush1.msra.mxu0 0.0
        %5092 = vmatprep.subr.mxu0 0.0
        %5093 = vmatpush1.msra.mxu0 0.0
        %5094 = vmatprep.subr.mxu0 0.0
        %5095 = vmatpush1.msra.mxu0 0.0
        %5096 = vmatprep.subr.mxu0 0.0
        %5097 = vmatpush1.msra.mxu0 0.0
        %5098 = vmatprep.subr.mxu0 0.0
        %5099 = vmatpush1.msra.mxu0 0.0
        %5100 = vmatprep.subr.mxu0 0.0
        %5101 = vmatpush1.msra.mxu0 0.0
        %5102 = vmatprep.subr.mxu0 0.0
        %5103 = vmatpush1.msra.mxu0 0.0
        %5104 = vmatprep.subr.mxu0 0.0
        %5105 = vmatpush1.msra.mxu0 0.0
        %5106 = vmatprep.subr.mxu0 0.0
        %5107 = vmatpush1.msra.mxu0 0.0
        %5108 = vmatprep.subr.mxu0 0.0
        %5109 = vmatpush1.msra.mxu0 0.0
        %5110 = vmatprep.subr.mxu0 0.0
        %5111 = vmatpush1.msra.mxu0 0.0
        %5112 = vmatprep.subr.mxu0 0.0
        %5113 = vmatpush1.msra.mxu0 0.0
        %5114 = vmatprep.mubr.f32.mxu0 0.0
        %5115 = vmatmul.mubr.f32.gmra.mrb[0].mxu0 %v5048
        %v5116 = vpop.f32.mrb[0].mxu0
        %v5117 = vadd.f32 %v5045, %v5116
        %v5118 = vpop.f32.mrb[0].mxu0
        %5119 = vdwg.mxu0
        %v5120 = vld [vmem:[%s9] sm:$0xf]
        %v5121 = vld [vmem:[%s10] sm:$0xf]
        %5123 = vset.pattern.permute.xlu0 0
        %5124 = vperm.xlu0 %5123, %v5121
        %v5125 = vpop.permute.xlu0 %5124
        %v5128 = vsel %vm1434, %v5120, 0
        %v5130 = vsel %vm1040, %v5035, 0
        %5132 = vmatprep.subr.mxu0 0.0
        %5133 = vmatpush1.msra.mxu0 %v5036
        %5134 = vmatprep.subr.mxu0 0.0
        %5135 = vmatpush1.msra.mxu0 %v5037
        %5136 = vmatprep.subr.mxu0 0.0
        %5137 = vmatpush1.msra.mxu0 %v5038
        %5138 = vmatprep.subr.mxu0 0.0
        %5139 = vmatpush1.msra.mxu0 %v5039
        %5140 = vmatprep.subr.mxu0 0.0
        %5141 = vmatpush1.msra.mxu0 %v5130
        %5142 = vmatprep.subr.mxu0 0.0
        %5143 = vmatpush1.msra.mxu0 0.0
        %5144 = vmatprep.subr.mxu0 0.0
        %5145 = vmatpush1.msra.mxu0 0.0
        %5146 = vmatprep.subr.mxu0 0.0
        %5147 = vmatpush1.msra.mxu0 0.0
        %5148 = vmatprep.subr.mxu0 0.0
        %5149 = vmatpush1.msra.mxu0 0.0
        %5150 = vmatprep.subr.mxu0 0.0
        %5151 = vmatpush1.msra.mxu0 0.0
        %5152 = vmatprep.subr.mxu0 0.0
        %5153 = vmatpush1.msra.mxu0 0.0
        %5154 = vmatprep.subr.mxu0 0.0
        %5155 = vmatpush1.msra.mxu0 0.0
        %5156 = vmatprep.subr.mxu0 0.0
        %5157 = vmatpush1.msra.mxu0 0.0
        %5158 = vmatprep.subr.mxu0 0.0
        %5159 = vmatpush1.msra.mxu0 0.0
        %5160 = vmatprep.subr.mxu0 0.0
        %5161 = vmatpush1.msra.mxu0 0.0
        %5162 = vmatprep.subr.mxu0 0.0
        %5163 = vmatpush1.msra.mxu0 0.0
        %5164 = vmatprep.subr.mxu0 0.0
        %5165 = vmatpush1.msra.mxu0 0.0
        %5166 = vmatprep.subr.mxu0 0.0
        %5167 = vmatpush1.msra.mxu0 0.0
        %5168 = vmatprep.subr.mxu0 0.0
        %5169 = vmatpush1.msra.mxu0 0.0
        %5170 = vmatprep.subr.mxu0 0.0
        %5171 = vmatpush1.msra.mxu0 0.0
        %5172 = vmatprep.subr.mxu0 0.0
        %5173 = vmatpush1.msra.mxu0 0.0
        %5174 = vmatprep.subr.mxu0 0.0
        %5175 = vmatpush1.msra.mxu0 0.0
        %5176 = vmatprep.subr.mxu0 0.0
        %5177 = vmatpush1.msra.mxu0 0.0
        %5178 = vmatprep.subr.mxu0 0.0
        %5179 = vmatpush1.msra.mxu0 0.0
        %5180 = vmatprep.subr.mxu0 0.0
        %5181 = vmatpush1.msra.mxu0 0.0
        %5182 = vmatprep.subr.mxu0 0.0
        %5183 = vmatpush1.msra.mxu0 0.0
        %5184 = vmatprep.subr.mxu0 0.0
        %5185 = vmatpush1.msra.mxu0 0.0
        %5186 = vmatprep.subr.mxu0 0.0
        %5187 = vmatpush1.msra.mxu0 0.0
        %5188 = vmatprep.subr.mxu0 0.0
        %5189 = vmatpush1.msra.mxu0 0.0
        %5190 = vmatprep.subr.mxu0 0.0
        %5191 = vmatpush1.msra.mxu0 0.0
        %5192 = vmatprep.subr.mxu0 0.0
        %5193 = vmatpush1.msra.mxu0 0.0
        %5194 = vmatprep.subr.mxu0 0.0
        %5195 = vmatpush1.msra.mxu0 0.0
        %5196 = vmatprep.mubr.f32.mxu0 0.0
        %5197 = vmatmul.mubr.f32.gmra.mrb[0].mxu0 %v5128
        %v5198 = vpop.f32.mrb[0].mxu0
        %v5199 = vadd.f32 %v5125, %v5198
        %v5200 = vpop.f32.mrb[0].mxu0
        %5201 = vdwg.mxu0
        %v5202 = vmul.f32 %v3557, 0.3
        %v5203 = vsub.f32 1.0, %v3561
        %v5204 = vmul.f32 %v5202, %v5203
        %v5205 = vadd.f32 %v5204, %v5117
        %v5206 = vsub.f32 %v5205, 0.5
        %vm5207 = vcmp.gt.f32.partialorder %v5206, 0.0
        %v5208 = vsel %vm5207, 1, 0
        %v5209 = vcvt.s32.f32 %v5208
        %v5210 = vmax.f32 %v5199, 0.0
        %v5212 = vrot.slane %v5210, 4
        %v5214 = vadd.f32 %v5117, %v5212
        %v5215 = vtanh.pop %v5214
        %v5216 = vsel %vm1040, %v5209, %v5215
        %v5217 = vld [vmem:[%s11] sm:$0xff]
        %v5218 = vld [vmem:[%s11 + $0x8] sm:$0xff]
        %v5219 = vld [vmem:[%s11 + $0x10] sm:$0xff]
        %v5220 = vld [vmem:[%s11 + $0x18] sm:$0xff]
        %v5221 = vld [vmem:[%s11 + $0x20] sm:$0xff]
        %v5222 = vld [vmem:[%s11 + $0x28] sm:$0xff]
        %v5223 = vld [vmem:[%s11 + $0x30] sm:$0xff]
        %v5224 = vld [vmem:[%s11 + $0x38] sm:$0xff]
        %v5226 = vsel %vm3577, %v5216, 0
        %5228 = vmatprep.subr.mxu0 0.0
        %5229 = vmatpush1.msra.mxu0 %v5217
        %5230 = vmatprep.subr.mxu0 0.0
        %5231 = vmatpush1.msra.mxu0 %v5218
        %5232 = vmatprep.subr.mxu0 0.0
        %5233 = vmatpush1.msra.mxu0 %v5219
        %5234 = vmatprep.subr.mxu0 0.0
        %5235 = vmatpush1.msra.mxu0 %v5220
        %5236 = vmatprep.subr.mxu0 0.0
        %5237 = vmatpush1.msra.mxu0 %v5221
        %5238 = vmatprep.subr.mxu0 0.0
        %5239 = vmatpush1.msra.mxu0 %v5222
        %5240 = vmatprep.subr.mxu0 0.0
        %5241 = vmatpush1.msra.mxu0 %v5223
        %5242 = vmatprep.subr.mxu0 0.0
        %5243 = vmatpush1.msra.mxu0 %v5224
        %5244 = vmatprep.subr.mxu0 0.0
        %5245 = vmatpush1.msra.mxu0 0.0
        %5246 = vmatprep.subr.mxu0 0.0
        %5247 = vmatpush1.msra.mxu0 0.0
        %5248 = vmatprep.subr.mxu0 0.0
        %5249 = vmatpush1.msra.mxu0 0.0
        %5250 = vmatprep.subr.mxu0 0.0
        %5251 = vmatpush1.msra.mxu0 0.0
        %5252 = vmatprep.subr.mxu0 0.0
        %5253 = vmatpush1.msra.mxu0 0.0
        %5254 = vmatprep.subr.mxu0 0.0
        %5255 = vmatpush1.msra.mxu0 0.0
        %5256 = vmatprep.subr.mxu0 0.0
        %5257 = vmatpush1.msra.mxu0 0.0
        %5258 = vmatprep.subr.mxu0 0.0
        %5259 = vmatpush1.msra.mxu0 0.0
        %5260 = vmatprep.subr.mxu0 0.0
        %5261 = vmatpush1.msra.mxu0 0.0
        %5262 = vmatprep.subr.mxu0 0.0
        %5263 = vmatpush1.msra.mxu0 0.0
        %5264 = vmatprep.subr.mxu0 0.0
        %5265 = vmatpush1.msra.mxu0 0.0
        %5266 = vmatprep.subr.mxu0 0.0
        %5267 = vmatpush1.msra.mxu0 0.0
        %5268 = vmatprep.subr.mxu0 0.0
        %5269 = vmatpush1.msra.mxu0 0.0
        %5270 = vmatprep.subr.mxu0 0.0
        %5271 = vmatpush1.msra.mxu0 0.0
        %5272 = vmatprep.subr.mxu0 0.0
        %5273 = vmatpush1.msra.mxu0 0.0
        %5274 = vmatprep.subr.mxu0 0.0
        %5275 = vmatpush1.msra.mxu0 0.0
        %5276 = vmatprep.subr.mxu0 0.0
        %5277 = vmatpush1.msra.mxu0 0.0
        %5278 = vmatprep.subr.mxu0 0.0
        %5279 = vmatpush1.msra.mxu0 0.0
        %5280 = vmatprep.subr.mxu0 0.0
        %5281 = vmatpush1.msra.mxu0 0.0
        %5282 = vmatprep.subr.mxu0 0.0
        %5283 = vmatpush1.msra.mxu0 0.0
        %5284 = vmatprep.subr.mxu0 0.0
        %5285 = vmatpush1.msra.mxu0 0.0
        %5286 = vmatprep.subr.mxu0 0.0
        %5287 = vmatpush1.msra.mxu0 0.0
        %5288 = vmatprep.subr.mxu0 0.0
        %5289 = vmatpush1.msra.mxu0 0.0
        %5290 = vmatprep.subr.mxu0 0.0
        %5291 = vmatpush1.msra.mxu0 0.0
        %5292 = vmatprep.mubr.f32.mxu0 0.0
        %5293 = vmatmul.mubr.f32.gmra.mrb[0].mxu0 %v5226
        %v5294 = vpop.f32.mrb[0].mxu0
        %v5295 = vadd.f32 0.0, %v5294
        %v5296 = vpop.f32.mrb[0].mxu0
        %5297 = vdwg.mxu0
        %v5298 = vadd.f32 %v3721, %v5295
        %s5299 = scalar_lea.vmem %s545, 12
        %v5300 = vld [vmem:[%s5299] sm:$0xf]
        %5302 = vrot.lane.b32.xlu0 %v5300, 17
        %v5303 = vpop.permute.xlu0 %5302
        %v5304 = vrot.slane %v5303, 6
        %v5305 = vsel %vm564, %v5304, %v5303
        %5307 = vst.msk [vmem:[#allocation2] sm:$0x3f] %vm570, %v5305
        %v5308 = vld [vmem:[#allocation2] sm:$0xf]
        %v5309 = vld [vmem:[%s6] ss:$8 sm:$0x3]
        %v5311 = vlaneseq
        %v5312 = vshrl.u32 %v5311, 7
        %v5313 = vsub.s32 0, %v5312
        %v5314 = vrot.slane %v5309, %v5313
        %v5315 = vlaneseq
        %v5316 = vshrl.u32 %v5315, 7
        %v5317 = vsub.s32 1, %v5316
        %v5318 = vrot.slane %v5309, %v5317
        %v5319 = vcombine.low %v5314, %v5318
        %v5321 = vunpack.c.l.s4 1983009808
        %v5322 = vunpack.c.0.s8 %v5321
        %v5323 = vlaneseq
        %v5324 = vshrl.u32 %v5323, 7
        %v5325 = vsub.s32 %v5322, %v5324
        %v5326 = vrot.slane %v5319, %v5325
        %v5328 = vmul.f32 %v5308, %v5326
        %v5329 = vld [vmem:[#allocation2] sm:$0x3f]
        %v5330 = vld [vmem:[%s594] ss:$8 sm:$0x3]
        %v5332 = vlaneseq
        %v5333 = vshrl.u32 %v5332, 7
        %v5334 = vsub.s32 0, %v5333
        %v5335 = vrot.slane %v5330, %v5334
        %v5336 = vlaneseq
        %v5337 = vshrl.u32 %v5336, 7
        %v5338 = vsub.s32 1, %v5337
        %v5339 = vrot.slane %v5330, %v5338
        %v5340 = vcombine.low %v5335, %v5339
        %v5342 = vunpack.c.l.s4 1983009808
        %v5343 = vunpack.c.0.s8 %v5342
        %v5344 = vlaneseq
        %v5345 = vshrl.u32 %v5344, 7
        %v5346 = vsub.s32 %v5343, %v5345
        %v5347 = vrot.slane %v5340, %v5346
        %5348 = vrot.lane.b32.xlu0 %v5347, 1
        %v5349 = vpop.permute.xlu0 %5348
        %v5350 = vrot.slane %v5349, 6
        %v5351 = vsel %vm616, %v5350, %v5349
        %v5353 = vmul.f32 %v5329, %v5351
        %v5354 = vld [vmem:[%s620] ss:$8 sm:$0x3]
        %v5356 = vlaneseq
        %v5357 = vshrl.u32 %v5356, 7
        %v5358 = vsub.s32 0, %v5357
        %v5359 = vrot.slane %v5354, %v5358
        %v5360 = vlaneseq
        %v5361 = vshrl.u32 %v5360, 7
        %v5362 = vsub.s32 1, %v5361
        %v5363 = vrot.slane %v5354, %v5362
        %v5364 = vcombine.low %v5359, %v5363
        %v5366 = vunpack.c.l.s4 1983009808
        %v5367 = vunpack.c.0.s8 %v5366
        %v5368 = vlaneseq
        %v5369 = vshrl.u32 %v5368, 7
        %v5370 = vsub.s32 %v5367, %v5369
        %v5371 = vrot.slane %v5364, %v5370
        %5372 = vrot.lane.b32.xlu0 %v5371, 2
        %v5373 = vpop.permute.xlu0 %5372
        %v5374 = vrot.slane %v5373, 6
        %v5375 = vsel %vm642, %v5374, %v5373
        %v5377 = vmul.f32 %v5329, %v5375
        %v5378 = vld [vmem:[%s646] ss:$8 sm:$0x3]
        %v5380 = vlaneseq
        %v5381 = vshrl.u32 %v5380, 7
        %v5382 = vsub.s32 0, %v5381
        %v5383 = vrot.slane %v5378, %v5382
        %v5384 = vlaneseq
        %v5385 = vshrl.u32 %v5384, 7
        %v5386 = vsub.s32 1, %v5385
        %v5387 = vrot.slane %v5378, %v5386
        %v5388 = vcombine.low %v5383, %v5387
        %v5390 = vunpack.c.l.s4 1983009808
        %v5391 = vunpack.c.0.s8 %v5390
        %v5392 = vlaneseq
        %v5393 = vshrl.u32 %v5392, 7
        %v5394 = vsub.s32 %v5391, %v5393
        %v5395 = vrot.slane %v5388, %v5394
        %5396 = vrot.lane.b32.xlu0 %v5395, 16
        %v5397 = vpop.permute.xlu0 %5396
        %v5398 = vrot.slane %v5397, 6
        %v5399 = vsel %vm668, %v5398, %v5397
        %v5401 = vmul.f32 %v5329, %v5399
        %v5402 = vld [vmem:[%s672] ss:$8 sm:$0x3]
        %v5404 = vlaneseq
        %v5405 = vshrl.u32 %v5404, 7
        %v5406 = vsub.s32 0, %v5405
        %v5407 = vrot.slane %v5402, %v5406
        %v5408 = vlaneseq
        %v5409 = vshrl.u32 %v5408, 7
        %v5410 = vsub.s32 1, %v5409
        %v5411 = vrot.slane %v5402, %v5410
        %v5412 = vcombine.low %v5407, %v5411
        %v5414 = vunpack.c.l.s4 1983009808
        %v5415 = vunpack.c.0.s8 %v5414
        %v5416 = vlaneseq
        %v5417 = vshrl.u32 %v5416, 7
        %v5418 = vsub.s32 %v5415, %v5417
        %v5419 = vrot.slane %v5412, %v5418
        %5420 = vrot.lane.b32.xlu0 %v5419, 17
        %v5421 = vpop.permute.xlu0 %5420
        %v5422 = vrot.slane %v5421, 6
        %v5423 = vsel %vm564, %v5422, %v5421
        %v5425 = vmul.f32 %v5329, %v5423
        %v5426 = vld [vmem:[%s697] ss:$8 sm:$0x3]
        %v5428 = vlaneseq
        %v5429 = vshrl.u32 %v5428, 7
        %v5430 = vsub.s32 0, %v5429
        %v5431 = vrot.slane %v5426, %v5430
        %v5432 = vlaneseq
        %v5433 = vshrl.u32 %v5432, 7
        %v5434 = vsub.s32 1, %v5433
        %v5435 = vrot.slane %v5426, %v5434
        %v5436 = vcombine.low %v5431, %v5435
        %v5438 = vunpack.c.l.s4 1983009808
        %v5439 = vunpack.c.0.s8 %v5438
        %v5440 = vlaneseq
        %v5441 = vshrl.u32 %v5440, 7
        %v5442 = vsub.s32 %v5439, %v5441
        %v5443 = vrot.slane %v5436, %v5442
        %5444 = vrot.lane.b32.xlu0 %v5443, 18
        %v5445 = vpop.permute.xlu0 %5444
        %v5446 = vrot.slane %v5445, 6
        %v5447 = vsel %vm719, %v5446, %v5445
        %v5449 = vmul.f32 %v5329, %v5447
        %v5450 = vld [vmem:[%s723] ss:$8 sm:$0x3]
        %v5452 = vlaneseq
        %v5453 = vshrl.u32 %v5452, 7
        %v5454 = vsub.s32 0, %v5453
        %v5455 = vrot.slane %v5450, %v5454
        %v5456 = vlaneseq
        %v5457 = vshrl.u32 %v5456, 7
        %v5458 = vsub.s32 1, %v5457
        %v5459 = vrot.slane %v5450, %v5458
        %v5460 = vcombine.low %v5455, %v5459
        %v5462 = vunpack.c.l.s4 1983009808
        %v5463 = vunpack.c.0.s8 %v5462
        %v5464 = vlaneseq
        %v5465 = vshrl.u32 %v5464, 7
        %v5466 = vsub.s32 %v5463, %v5465
        %v5467 = vrot.slane %v5460, %v5466
        %5468 = vrot.lane.b32.xlu0 %v5467, 32
        %v5469 = vpop.permute.xlu0 %5468
        %v5470 = vrot.slane %v5469, 6
        %v5471 = vsel %vm745, %v5470, %v5469
        %v5473 = vmul.f32 %v5329, %v5471
        %v5474 = vld [vmem:[%s749] ss:$8 sm:$0x3]
        %v5476 = vlaneseq
        %v5477 = vshrl.u32 %v5476, 7
        %v5478 = vsub.s32 0, %v5477
        %v5479 = vrot.slane %v5474, %v5478
        %v5480 = vlaneseq
        %v5481 = vshrl.u32 %v5480, 7
        %v5482 = vsub.s32 1, %v5481
        %v5483 = vrot.slane %v5474, %v5482
        %v5484 = vcombine.low %v5479, %v5483
        %v5486 = vunpack.c.l.s4 1983009808
        %v5487 = vunpack.c.0.s8 %v5486
        %v5488 = vlaneseq
        %v5489 = vshrl.u32 %v5488, 7
        %v5490 = vsub.s32 %v5487, %v5489
        %v5491 = vrot.slane %v5484, %v5490
        %5492 = vrot.lane.b32.xlu0 %v5491, 33
        %v5493 = vpop.permute.xlu0 %5492
        %v5494 = vrot.slane %v5493, 6
        %v5495 = vsel %vm771, %v5494, %v5493
        %v5497 = vmul.f32 %v5329, %v5495
        %v5498 = vld [vmem:[%s775] ss:$8 sm:$0x3]
        %v5500 = vlaneseq
        %v5501 = vshrl.u32 %v5500, 7
        %v5502 = vsub.s32 0, %v5501
        %v5503 = vrot.slane %v5498, %v5502
        %v5504 = vlaneseq
        %v5505 = vshrl.u32 %v5504, 7
        %v5506 = vsub.s32 1, %v5505
        %v5507 = vrot.slane %v5498, %v5506
        %v5508 = vcombine.low %v5503, %v5507
        %v5510 = vunpack.c.l.s4 1983009808
        %v5511 = vunpack.c.0.s8 %v5510
        %v5512 = vlaneseq
        %v5513 = vshrl.u32 %v5512, 7
        %v5514 = vsub.s32 %v5511, %v5513
        %v5515 = vrot.slane %v5508, %v5514
        %5516 = vrot.lane.b32.xlu0 %v5515, 34
        %v5517 = vpop.permute.xlu0 %5516
        %v5518 = vrot.slane %v5517, 6
        %v5519 = vsel %vm797, %v5518, %v5517
        %v5521 = vmul.f32 %v5329, %v5519
        %v5524 = vunpack.c.l.s4 1983009808
        %v5525 = vunpack.c.0.s8 %v5524
        %v5526 = vlaneseq
        %v5527 = vshrl.u32 %v5526, 7
        %v5528 = vsub.s32 %v5525, %v5527
        %v5529 = vrot.slane %v5328, %v5528
        %v5530 = vcombine.high %v5529, %v5529
        %v5534 = vcombine.low %v5353, %v5353
        %v5536 = vunpack.c.l.s4 1983009808
        %v5537 = vunpack.c.0.s8 %v5536
        %v5538 = vlaneseq
        %v5539 = vshrl.u32 %v5538, 7
        %v5540 = vsub.s32 %v5537, %v5539
        %v5541 = vrot.slane %v5534, %v5540
        %v5543 = vunpack.c.l.s4 1983009808
        %v5544 = vunpack.c.0.s8 %v5543
        %v5545 = vlaneseq
        %v5546 = vshrl.u32 %v5545, 7
        %v5547 = vsub.s32 %v5544, %v5546
        %v5548 = vrot.slane %v5353, %v5547
        %v5549 = vcombine.high %v5541, %v5541
        %5550 = vrot.lane.b32.xlu0 %v5541, 127
        %v5551 = vpop.permute.xlu0 %5550
        %5552 = vrot.lane.b32.xlu0 %v5549, 127
        %v5553 = vpop.permute.xlu0 %5552
        %5554 = vrot.lane.b32.xlu0 %v5548, 127
        %v5555 = vpop.permute.xlu0 %5554
        %v5556 = vsel %vm835, %v5551, %v5553
        %v5557 = vsel %vm835, %v5553, %v5555
        %v5561 = vcombine.high %v5377, %v5377
        %v5563 = vunpack.c.l.s4 1983009808
        %v5564 = vunpack.c.0.s8 %v5563
        %v5565 = vlaneseq
        %v5566 = vshrl.u32 %v5565, 7
        %v5567 = vsub.s32 %v5564, %v5566
        %v5568 = vrot.slane %v5377, %v5567
        %v5570 = vunpack.c.l.s4 1983009808
        %v5571 = vunpack.c.0.s8 %v5570
        %v5572 = vlaneseq
        %v5573 = vshrl.u32 %v5572, 7
        %v5574 = vsub.s32 %v5571, %v5573
        %v5575 = vrot.slane %v5561, %v5574
        %v5576 = vcombine.low %v5568, %v5568
        %v5577 = vcombine.low %v5575, %v5575
        %5578 = vrot.lane.b32.xlu0 %v5576, 126
        %v5579 = vpop.permute.xlu0 %5578
        %5580 = vrot.lane.b32.xlu0 %v5568, 126
        %v5581 = vpop.permute.xlu0 %5580
        %5582 = vrot.lane.b32.xlu0 %v5577, 126
        %v5583 = vpop.permute.xlu0 %5582
        %v5584 = vsel %vm864, %v5579, %v5581
        %v5585 = vsel %vm864, %v5581, %v5583
        %v5589 = vcombine.low %v5401, %v5401
        %v5591 = vunpack.c.l.s4 1983009808
        %v5592 = vunpack.c.0.s8 %v5591
        %v5593 = vlaneseq
        %v5594 = vshrl.u32 %v5593, 7
        %v5595 = vsub.s32 %v5592, %v5594
        %v5596 = vrot.slane %v5589, %v5595
        %v5598 = vunpack.c.l.s4 1983009808
        %v5599 = vunpack.c.0.s8 %v5598
        %v5600 = vlaneseq
        %v5601 = vshrl.u32 %v5600, 7
        %v5602 = vsub.s32 %v5599, %v5601
        %v5603 = vrot.slane %v5401, %v5602
        %v5604 = vcombine.low %v5596, %v5596
        %v5605 = vcombine.low %v5603, %v5603
        %5606 = vrot.lane.b32.xlu0 %v5604, 112
        %v5607 = vpop.permute.xlu0 %5606
        %5608 = vrot.lane.b32.xlu0 %v5596, 112
        %v5609 = vpop.permute.xlu0 %5608
        %5610 = vrot.lane.b32.xlu0 %v5605, 112
        %v5611 = vpop.permute.xlu0 %5610
        %v5612 = vsel %vm893, %v5607, %v5609
        %v5613 = vsel %vm893, %v5609, %v5611
        %v5617 = vcombine.high %v5425, %v5425
        %v5619 = vunpack.c.l.s4 1983009808
        %v5620 = vunpack.c.0.s8 %v5619
        %v5621 = vlaneseq
        %v5622 = vshrl.u32 %v5621, 7
        %v5623 = vsub.s32 %v5620, %v5622
        %v5624 = vrot.slane %v5425, %v5623
        %v5626 = vunpack.c.l.s4 1983009808
        %v5627 = vunpack.c.0.s8 %v5626
        %v5628 = vlaneseq
        %v5629 = vshrl.u32 %v5628, 7
        %v5630 = vsub.s32 %v5627, %v5629
        %v5631 = vrot.slane %v5617, %v5630
        %v5632 = vcombine.high %v5624, %v5624
        %5633 = vrot.lane.b32.xlu0 %v5624, 111
        %v5634 = vpop.permute.xlu0 %5633
        %5635 = vrot.lane.b32.xlu0 %v5632, 111
        %v5636 = vpop.permute.xlu0 %5635
        %5637 = vrot.lane.b32.xlu0 %v5631, 111
        %v5638 = vpop.permute.xlu0 %5637
        %v5639 = vsel %vm921, %v5634, %v5636
        %v5640 = vsel %vm921, %v5636, %v5638
        %v5644 = vcombine.low %v5449, %v5449
        %v5646 = vunpack.c.l.s4 1983009808
        %v5647 = vunpack.c.0.s8 %v5646
        %v5648 = vlaneseq
        %v5649 = vshrl.u32 %v5648, 7
        %v5650 = vsub.s32 %v5647, %v5649
        %v5651 = vrot.slane %v5644, %v5650
        %v5653 = vunpack.c.l.s4 1983009808
        %v5654 = vunpack.c.0.s8 %v5653
        %v5655 = vlaneseq
        %v5656 = vshrl.u32 %v5655, 7
        %v5657 = vsub.s32 %v5654, %v5656
        %v5658 = vrot.slane %v5449, %v5657
        %v5659 = vcombine.high %v5651, %v5651
        %5660 = vrot.lane.b32.xlu0 %v5651, 110
        %v5661 = vpop.permute.xlu0 %5660
        %5662 = vrot.lane.b32.xlu0 %v5659, 110
        %v5663 = vpop.permute.xlu0 %5662
        %5664 = vrot.lane.b32.xlu0 %v5658, 110
        %v5665 = vpop.permute.xlu0 %5664
        %v5666 = vsel %vm949, %v5661, %v5663
        %v5667 = vsel %vm949, %v5663, %v5665
        %v5671 = vcombine.high %v5473, %v5473
        %v5673 = vunpack.c.l.s4 1983009808
        %v5674 = vunpack.c.0.s8 %v5673
        %v5675 = vlaneseq
        %v5676 = vshrl.u32 %v5675, 7
        %v5677 = vsub.s32 %v5674, %v5676
        %v5678 = vrot.slane %v5473, %v5677
        %v5680 = vunpack.c.l.s4 1983009808
        %v5681 = vunpack.c.0.s8 %v5680
        %v5682 = vlaneseq
        %v5683 = vshrl.u32 %v5682, 7
        %v5684 = vsub.s32 %v5681, %v5683
        %v5685 = vrot.slane %v5671, %v5684
        %v5686 = vcombine.low %v5678, %v5678
        %v5687 = vcombine.low %v5685, %v5685
        %5688 = vrot.lane.b32.xlu0 %v5686, 96
        %v5689 = vpop.permute.xlu0 %5688
        %5690 = vrot.lane.b32.xlu0 %v5678, 96
        %v5691 = vpop.permute.xlu0 %5690
        %5692 = vrot.lane.b32.xlu0 %v5687, 96
        %v5693 = vpop.permute.xlu0 %5692
        %v5694 = vsel %vm978, %v5689, %v5691
        %v5695 = vsel %vm978, %v5691, %v5693
        %v5699 = vcombine.low %v5497, %v5497
        %v5701 = vunpack.c.l.s4 1983009808
        %v5702 = vunpack.c.0.s8 %v5701
        %v5703 = vlaneseq
        %v5704 = vshrl.u32 %v5703, 7
        %v5705 = vsub.s32 %v5702, %v5704
        %v5706 = vrot.slane %v5699, %v5705
        %v5708 = vunpack.c.l.s4 1983009808
        %v5709 = vunpack.c.0.s8 %v5708
        %v5710 = vlaneseq
        %v5711 = vshrl.u32 %v5710, 7
        %v5712 = vsub.s32 %v5709, %v5711
        %v5713 = vrot.slane %v5497, %v5712
        %v5714 = vcombine.low %v5706, %v5706
        %v5715 = vcombine.low %v5713, %v5713
        %5716 = vrot.lane.b32.xlu0 %v5714, 95
        %v5717 = vpop.permute.xlu0 %5716
        %5718 = vrot.lane.b32.xlu0 %v5706, 95
        %v5719 = vpop.permute.xlu0 %5718
        %5720 = vrot.lane.b32.xlu0 %v5715, 95
        %v5721 = vpop.permute.xlu0 %5720
        %v5722 = vsel %vm1007, %v5717, %v5719
        %v5723 = vsel %vm1007, %v5719, %v5721
        %v5727 = vcombine.high %v5521, %v5521
        %v5729 = vunpack.c.l.s4 1983009808
        %v5730 = vunpack.c.0.s8 %v5729
        %v5731 = vlaneseq
        %v5732 = vshrl.u32 %v5731, 7
        %v5733 = vsub.s32 %v5730, %v5732
        %v5734 = vrot.slane %v5521, %v5733
        %v5736 = vunpack.c.l.s4 1983009808
        %v5737 = vunpack.c.0.s8 %v5736
        %v5738 = vlaneseq
        %v5739 = vshrl.u32 %v5738, 7
        %v5740 = vsub.s32 %v5737, %v5739
        %v5741 = vrot.slane %v5727, %v5740
        %v5742 = vcombine.high %v5734, %v5734
        %5743 = vrot.lane.b32.xlu0 %v5734, 94
        %v5744 = vpop.permute.xlu0 %5743
        %5745 = vrot.lane.b32.xlu0 %v5742, 94
        %v5746 = vpop.permute.xlu0 %5745
        %5747 = vrot.lane.b32.xlu0 %v5741, 94
        %v5748 = vpop.permute.xlu0 %5747
        %v5749 = vsel %vm1035, %v5744, %v5746
        %v5750 = vsel %vm1035, %v5746, %v5748
        %v5751 = vsel %vm546, %v5529, %v5556
        %v5752 = vsel %vm546, %v5530, %v5557
        %v5753 = vsel %vm1040, %v5751, %v5584
        %v5754 = vsel %vm1040, %v5752, %v5585
        %v5755 = vsel %vm1043, %v5753, %v5612
        %v5756 = vsel %vm1043, %v5754, %v5613
        %v5757 = vsel %vm546, %v5639, %v5666
        %v5758 = vsel %vm546, %v5640, %v5667
        %v5759 = vsel %vm1040, %v5757, %v5694
        %v5760 = vsel %vm1040, %v5758, %v5695
        %v5761 = vsel %vm1043, %v5759, %v5722
        %v5762 = vsel %vm1043, %v5760, %v5723
        %v5765 = vcombine.high %v4679, %v4680
        %5766 = vrot.lane.b32.xlu0 %v5765, 17
        %v5767 = vpop.permute.xlu0 %5766
        %v5768 = vrot.slane %v5767, 4
        %v5769 = vsel %vm564, %v5768, %v5767
        %5772 = vst.msk [vmem:[#allocation3] sm:$0xff] %vm1054, %v5769
        %5773 = vst.msk [vmem:[#allocation3 + $0x8] sm:$0xf] %vm1056, %v5768
        %v5774 = vld [vmem:[#allocation3] sm:$0xff]
        %v5775 = vld [vmem:[%s6] ss:$8 sm:$0x3]
        %v5777 = vlaneseq
        %v5778 = vshrl.u32 %v5777, 7
        %v5779 = vsub.s32 0, %v5778
        %v5780 = vrot.slane %v5775, %v5779
        %v5781 = vlaneseq
        %v5782 = vshrl.u32 %v5781, 7
        %v5783 = vsub.s32 1, %v5782
        %v5784 = vrot.slane %v5775, %v5783
        %v5785 = vcombine.low %v5780, %v5784
        %v5787 = vmul.f32 %v5774, %v5785
        %v5788 = vld [vmem:[#allocation3 + $0x8] sm:$0xf]
        %v5789 = vld [vmem:[%s594] ss:$8 sm:$0x3]
        %v5791 = vlaneseq
        %v5792 = vshrl.u32 %v5791, 7
        %v5793 = vsub.s32 0, %v5792
        %v5794 = vrot.slane %v5789, %v5793
        %v5795 = vlaneseq
        %v5796 = vshrl.u32 %v5795, 7
        %v5797 = vsub.s32 1, %v5796
        %v5798 = vrot.slane %v5789, %v5797
        %v5799 = vcombine.low %v5794, %v5798
        %5800 = vrot.lane.b32.xlu0 %v5799, 1
        %v5801 = vpop.permute.xlu0 %5800
        %v5802 = vrot.slane %v5801, 4
        %v5803 = vsel %vm616, %v5802, %v5801
        %v5806 = vmul.f32 %v5774, %v5803
        %v5807 = vmul.f32 %v5788, %v5802
        %v5808 = vld [vmem:[%s620] ss:$8 sm:$0x3]
        %v5810 = vlaneseq
        %v5811 = vshrl.u32 %v5810, 7
        %v5812 = vsub.s32 0, %v5811
        %v5813 = vrot.slane %v5808, %v5812
        %v5814 = vlaneseq
        %v5815 = vshrl.u32 %v5814, 7
        %v5816 = vsub.s32 1, %v5815
        %v5817 = vrot.slane %v5808, %v5816
        %v5818 = vcombine.low %v5813, %v5817
        %5819 = vrot.lane.b32.xlu0 %v5818, 2
        %v5820 = vpop.permute.xlu0 %5819
        %v5821 = vrot.slane %v5820, 4
        %v5822 = vsel %vm642, %v5821, %v5820
        %v5825 = vmul.f32 %v5774, %v5822
        %v5826 = vmul.f32 %v5788, %v5821
        %v5827 = vld [vmem:[%s646] ss:$8 sm:$0x3]
        %v5829 = vlaneseq
        %v5830 = vshrl.u32 %v5829, 7
        %v5831 = vsub.s32 0, %v5830
        %v5832 = vrot.slane %v5827, %v5831
        %v5833 = vlaneseq
        %v5834 = vshrl.u32 %v5833, 7
        %v5835 = vsub.s32 1, %v5834
        %v5836 = vrot.slane %v5827, %v5835
        %v5837 = vcombine.low %v5832, %v5836
        %5838 = vrot.lane.b32.xlu0 %v5837, 16
        %v5839 = vpop.permute.xlu0 %5838
        %v5840 = vrot.slane %v5839, 4
        %v5841 = vsel %vm668, %v5840, %v5839
        %v5844 = vmul.f32 %v5774, %v5841
        %v5845 = vmul.f32 %v5788, %v5840
        %v5846 = vld [vmem:[%s672] ss:$8 sm:$0x3]
        %v5848 = vlaneseq
        %v5849 = vshrl.u32 %v5848, 7
        %v5850 = vsub.s32 0, %v5849
        %v5851 = vrot.slane %v5846, %v5850
        %v5852 = vlaneseq
        %v5853 = vshrl.u32 %v5852, 7
        %v5854 = vsub.s32 1, %v5853
        %v5855 = vrot.slane %v5846, %v5854
        %v5856 = vcombine.low %v5851, %v5855
        %5857 = vrot.lane.b32.xlu0 %v5856, 17
        %v5858 = vpop.permute.xlu0 %5857
        %v5859 = vrot.slane %v5858, 4
        %v5860 = vsel %vm564, %v5859, %v5858
        %v5863 = vmul.f32 %v5774, %v5860
        %v5864 = vmul.f32 %v5788, %v5859
        %v5865 = vld [vmem:[%s697] ss:$8 sm:$0x3]
        %v5867 = vlaneseq
        %v5868 = vshrl.u32 %v5867, 7
        %v5869 = vsub.s32 0, %v5868
        %v5870 = vrot.slane %v5865, %v5869
        %v5871 = vlaneseq
        %v5872 = vshrl.u32 %v5871, 7
        %v5873 = vsub.s32 1, %v5872
        %v5874 = vrot.slane %v5865, %v5873
        %v5875 = vcombine.low %v5870, %v5874
        %5876 = vrot.lane.b32.xlu0 %v5875, 18
        %v5877 = vpop.permute.xlu0 %5876
        %v5878 = vrot.slane %v5877, 4
        %v5879 = vsel %vm719, %v5878, %v5877
        %v5882 = vmul.f32 %v5774, %v5879
        %v5883 = vmul.f32 %v5788, %v5878
        %v5884 = vld [vmem:[%s723] ss:$8 sm:$0x3]
        %v5886 = vlaneseq
        %v5887 = vshrl.u32 %v5886, 7
        %v5888 = vsub.s32 0, %v5887
        %v5889 = vrot.slane %v5884, %v5888
        %v5890 = vlaneseq
        %v5891 = vshrl.u32 %v5890, 7
        %v5892 = vsub.s32 1, %v5891
        %v5893 = vrot.slane %v5884, %v5892
        %v5894 = vcombine.low %v5889, %v5893
        %5895 = vrot.lane.b32.xlu0 %v5894, 32
        %v5896 = vpop.permute.xlu0 %5895
        %v5897 = vrot.slane %v5896, 4
        %v5898 = vsel %vm745, %v5897, %v5896
        %v5901 = vmul.f32 %v5774, %v5898
        %v5902 = vmul.f32 %v5788, %v5897
        %v5903 = vld [vmem:[%s749] ss:$8 sm:$0x3]
        %v5905 = vlaneseq
        %v5906 = vshrl.u32 %v5905, 7
        %v5907 = vsub.s32 0, %v5906
        %v5908 = vrot.slane %v5903, %v5907
        %v5909 = vlaneseq
        %v5910 = vshrl.u32 %v5909, 7
        %v5911 = vsub.s32 1, %v5910
        %v5912 = vrot.slane %v5903, %v5911
        %v5913 = vcombine.low %v5908, %v5912
        %5914 = vrot.lane.b32.xlu0 %v5913, 33
        %v5915 = vpop.permute.xlu0 %5914
        %v5916 = vrot.slane %v5915, 4
        %v5917 = vsel %vm771, %v5916, %v5915
        %v5920 = vmul.f32 %v5774, %v5917
        %v5921 = vmul.f32 %v5788, %v5916
        %v5922 = vld [vmem:[%s775] ss:$8 sm:$0x3]
        %v5924 = vlaneseq
        %v5925 = vshrl.u32 %v5924, 7
        %v5926 = vsub.s32 0, %v5925
        %v5927 = vrot.slane %v5922, %v5926
        %v5928 = vlaneseq
        %v5929 = vshrl.u32 %v5928, 7
        %v5930 = vsub.s32 1, %v5929
        %v5931 = vrot.slane %v5922, %v5930
        %v5932 = vcombine.low %v5927, %v5931
        %5933 = vrot.lane.b32.xlu0 %v5932, 34
        %v5934 = vpop.permute.xlu0 %5933
        %v5935 = vrot.slane %v5934, 4
        %v5936 = vsel %vm797, %v5935, %v5934
        %v5939 = vmul.f32 %v5774, %v5936
        %v5940 = vmul.f32 %v5788, %v5935
        %v5942 = vcombine.high %v5787, %v5787
        %v5946 = vcombine.low %v5806, %v5806
        %v5947 = vcombine.low %v5807, %v5807
        %5948 = vrot.lane.b32.xlu0 %v5946, 127
        %v5949 = vpop.permute.xlu0 %5948
        %5950 = vrot.lane.b32.xlu0 %v5806, 127
        %v5951 = vpop.permute.xlu0 %5950
        %5952 = vrot.lane.b32.xlu0 %v5947, 127
        %v5953 = vpop.permute.xlu0 %5952
        %v5954 = vsel %vm835, %v5949, %v5951
        %v5955 = vsel %vm835, %v5951, %v5953
        %v5960 = vcombine.high %v5825, %v5825
        %5961 = vrot.lane.b32.xlu0 %v5825, 126
        %v5962 = vpop.permute.xlu0 %5961
        %5963 = vrot.lane.b32.xlu0 %v5960, 126
        %v5964 = vpop.permute.xlu0 %5963
        %5965 = vrot.lane.b32.xlu0 %v5826, 126
        %v5966 = vpop.permute.xlu0 %5965
        %v5967 = vsel %vm864, %v5962, %v5964
        %v5968 = vsel %vm864, %v5964, %v5966
        %v5973 = vcombine.low %v5844, %v5844
        %v5974 = vcombine.low %v5845, %v5845
        %5975 = vrot.lane.b32.xlu0 %v5973, 112
        %v5976 = vpop.permute.xlu0 %5975
        %5977 = vrot.lane.b32.xlu0 %v5844, 112
        %v5978 = vpop.permute.xlu0 %5977
        %5979 = vrot.lane.b32.xlu0 %v5974, 112
        %v5980 = vpop.permute.xlu0 %5979
        %v5981 = vsel %vm893, %v5976, %v5978
        %v5982 = vsel %vm893, %v5978, %v5980
        %v5987 = vcombine.high %v5863, %v5863
        %5988 = vrot.lane.b32.xlu0 %v5863, 111
        %v5989 = vpop.permute.xlu0 %5988
        %5990 = vrot.lane.b32.xlu0 %v5987, 111
        %v5991 = vpop.permute.xlu0 %5990
        %5992 = vrot.lane.b32.xlu0 %v5864, 111
        %v5993 = vpop.permute.xlu0 %5992
        %v5994 = vsel %vm921, %v5989, %v5991
        %v5995 = vsel %vm921, %v5991, %v5993
        %v6000 = vcombine.low %v5882, %v5882
        %v6001 = vcombine.low %v5883, %v5883
        %6002 = vrot.lane.b32.xlu0 %v6000, 110
        %v6003 = vpop.permute.xlu0 %6002
        %6004 = vrot.lane.b32.xlu0 %v5882, 110
        %v6005 = vpop.permute.xlu0 %6004
        %6006 = vrot.lane.b32.xlu0 %v6001, 110
        %v6007 = vpop.permute.xlu0 %6006
        %v6008 = vsel %vm949, %v6003, %v6005
        %v6009 = vsel %vm949, %v6005, %v6007
        %v6014 = vcombine.high %v5901, %v5901
        %6015 = vrot.lane.b32.xlu0 %v5901, 96
        %v6016 = vpop.permute.xlu0 %6015
        %6017 = vrot.lane.b32.xlu0 %v6014, 96
        %v6018 = vpop.permute.xlu0 %6017
        %6019 = vrot.lane.b32.xlu0 %v5902, 96
        %v6020 = vpop.permute.xlu0 %6019
        %v6021 = vsel %vm978, %v6016, %v6018
        %v6022 = vsel %vm978, %v6018, %v6020
        %v6027 = vcombine.low %v5920, %v5920
        %v6028 = vcombine.low %v5921, %v5921
        %6029 = vrot.lane.b32.xlu0 %v6027, 95
        %v6030 = vpop.permute.xlu0 %6029
        %6031 = vrot.lane.b32.xlu0 %v5920, 95
        %v6032 = vpop.permute.xlu0 %6031
        %6033 = vrot.lane.b32.xlu0 %v6028, 95
        %v6034 = vpop.permute.xlu0 %6033
        %v6035 = vsel %vm1007, %v6030, %v6032
        %v6036 = vsel %vm1007, %v6032, %v6034
        %v6041 = vcombine.high %v5939, %v5939
        %6042 = vrot.lane.b32.xlu0 %v5939, 94
        %v6043 = vpop.permute.xlu0 %6042
        %6044 = vrot.lane.b32.xlu0 %v6041, 94
        %v6045 = vpop.permute.xlu0 %6044
        %6046 = vrot.lane.b32.xlu0 %v5940, 94
        %v6047 = vpop.permute.xlu0 %6046
        %v6048 = vsel %vm1035, %v6043, %v6045
        %v6049 = vsel %vm1035, %v6045, %v6047
        %v6050 = vsel %vm1040, %v5787, %v5954
        %v6051 = vsel %vm1040, %v5942, %v5955
        %v6052 = vsel %vm1040, %v5967, %v5981
        %v6053 = vsel %vm1040, %v5968, %v5982
        %v6054 = vsel %vm1040, %v5994, %v6008
        %v6055 = vsel %vm1040, %v5995, %v6009
        %v6056 = vsel %vm1040, %v6021, %v6035
        %v6057 = vsel %vm1040, %v6022, %v6036
        %v6058 = vld [vmem:[%s1] sm:$0xff]
        %v6059 = vld [vmem:[%s2] sm:$0xff]
        %6061 = vset.pattern.permute.xlu0 0
        %6062 = vperm.xlu0 %6061, %v6059
        %v6063 = vpop.permute.xlu0 %6062
        %v6066 = vsel %vm719, %v6058, 0
        %v6068 = vsel %vm546, %v5749, 0
        %v6070 = vsel %vm546, %v5750, 0
        %6072 = vmatprep.subr.mxu0 %v5756
        %6073 = vmatpush1.msra.mxu0 %v5755
        %6074 = vmatprep.subr.mxu0 %v5762
        %6075 = vmatpush1.msra.mxu0 %v5761
        %6076 = vmatprep.subr.mxu0 %v6070
        %6077 = vmatpush1.msra.mxu0 %v6068
        %6078 = vmatprep.subr.mxu0 0.0
        %6079 = vmatpush1.msra.mxu0 0.0
        %6080 = vmatprep.subr.mxu0 0.0
        %6081 = vmatpush1.msra.mxu0 0.0
        %6082 = vmatprep.subr.mxu0 0.0
        %6083 = vmatpush1.msra.mxu0 0.0
        %6084 = vmatprep.subr.mxu0 0.0
        %6085 = vmatpush1.msra.mxu0 0.0
        %6086 = vmatprep.subr.mxu0 0.0
        %6087 = vmatpush1.msra.mxu0 0.0
        %6088 = vmatprep.subr.mxu0 0.0
        %6089 = vmatpush1.msra.mxu0 0.0
        %6090 = vmatprep.subr.mxu0 0.0
        %6091 = vmatpush1.msra.mxu0 0.0
        %6092 = vmatprep.subr.mxu0 0.0
        %6093 = vmatpush1.msra.mxu0 0.0
        %6094 = vmatprep.subr.mxu0 0.0
        %6095 = vmatpush1.msra.mxu0 0.0
        %6096 = vmatprep.subr.mxu0 0.0
        %6097 = vmatpush1.msra.mxu0 0.0
        %6098 = vmatprep.subr.mxu0 0.0
        %6099 = vmatpush1.msra.mxu0 0.0
        %6100 = vmatprep.subr.mxu0 0.0
        %6101 = vmatpush1.msra.mxu0 0.0
        %6102 = vmatprep.subr.mxu0 0.0
        %6103 = vmatpush1.msra.mxu0 0.0
        %6104 = vmatprep.subr.mxu0 0.0
        %6105 = vmatpush1.msra.mxu0 0.0
        %6106 = vmatprep.subr.mxu0 0.0
        %6107 = vmatpush1.msra.mxu0 0.0
        %6108 = vmatprep.subr.mxu0 0.0
        %6109 = vmatpush1.msra.mxu0 0.0
        %6110 = vmatprep.subr.mxu0 0.0
        %6111 = vmatpush1.msra.mxu0 0.0
        %6112 = vmatprep.subr.mxu0 0.0
        %6113 = vmatpush1.msra.mxu0 0.0
        %6114 = vmatprep.subr.mxu0 0.0
        %6115 = vmatpush1.msra.mxu0 0.0
        %6116 = vmatprep.subr.mxu0 0.0
        %6117 = vmatpush1.msra.mxu0 0.0
        %6118 = vmatprep.subr.mxu0 0.0
        %6119 = vmatpush1.msra.mxu0 0.0
        %6120 = vmatprep.subr.mxu0 0.0
        %6121 = vmatpush1.msra.mxu0 0.0
        %6122 = vmatprep.subr.mxu0 0.0
        %6123 = vmatpush1.msra.mxu0 0.0
        %6124 = vmatprep.subr.mxu0 0.0
        %6125 = vmatpush1.msra.mxu0 0.0
        %6126 = vmatprep.subr.mxu0 0.0
        %6127 = vmatpush1.msra.mxu0 0.0
        %6128 = vmatprep.subr.mxu0 0.0
        %6129 = vmatpush1.msra.mxu0 0.0
        %6130 = vmatprep.subr.mxu0 0.0
        %6131 = vmatpush1.msra.mxu0 0.0
        %6132 = vmatprep.subr.mxu0 0.0
        %6133 = vmatpush1.msra.mxu0 0.0
        %6134 = vmatprep.subr.mxu0 0.0
        %6135 = vmatpush1.msra.mxu0 0.0
        %6136 = vmatprep.mubr.f32.mxu0 0.0
        %6137 = vmatmul.mubr.f32.gmra.mrb[0].mxu0 %v6066
        %v6138 = vpop.f32.mrb[0].mxu0
        %v6139 = vadd.f32 %v6063, %v6138
        %v6140 = vpop.f32.mrb[0].mxu0
        %v6141 = vadd.f32 %v6063, %v6140
        %6142 = vdwg.mxu0
        %v6143 = vld [vmem:[%s3] sm:$0xf]
        %v6144 = vld [vmem:[%s4] sm:$0xf]
        %6146 = vset.pattern.permute.xlu0 0
        %6147 = vperm.xlu0 %6146, %v6144
        %v6148 = vpop.permute.xlu0 %6147
        %v6151 = vsel %vm1434, %v6143, 0
        %v6153 = vsel %vm1040, %v6048, 0
        %v6155 = vsel %vm1040, %v6049, 0
        %6157 = vmatprep.subr.mxu0 %v6051
        %6158 = vmatpush1.msra.mxu0 %v6050
        %6159 = vmatprep.subr.mxu0 %v6053
        %6160 = vmatpush1.msra.mxu0 %v6052
        %6161 = vmatprep.subr.mxu0 %v6055
        %6162 = vmatpush1.msra.mxu0 %v6054
        %6163 = vmatprep.subr.mxu0 %v6057
        %6164 = vmatpush1.msra.mxu0 %v6056
        %6165 = vmatprep.subr.mxu0 %v6155
        %6166 = vmatpush1.msra.mxu0 %v6153
        %6167 = vmatprep.subr.mxu0 0.0
        %6168 = vmatpush1.msra.mxu0 0.0
        %6169 = vmatprep.subr.mxu0 0.0
        %6170 = vmatpush1.msra.mxu0 0.0
        %6171 = vmatprep.subr.mxu0 0.0
        %6172 = vmatpush1.msra.mxu0 0.0
        %6173 = vmatprep.subr.mxu0 0.0
        %6174 = vmatpush1.msra.mxu0 0.0
        %6175 = vmatprep.subr.mxu0 0.0
        %6176 = vmatpush1.msra.mxu0 0.0
        %6177 = vmatprep.subr.mxu0 0.0
        %6178 = vmatpush1.msra.mxu0 0.0
        %6179 = vmatprep.subr.mxu0 0.0
        %6180 = vmatpush1.msra.mxu0 0.0
        %6181 = vmatprep.subr.mxu0 0.0
        %6182 = vmatpush1.msra.mxu0 0.0
        %6183 = vmatprep.subr.mxu0 0.0
        %6184 = vmatpush1.msra.mxu0 0.0
        %6185 = vmatprep.subr.mxu0 0.0
        %6186 = vmatpush1.msra.mxu0 0.0
        %6187 = vmatprep.subr.mxu0 0.0
        %6188 = vmatpush1.msra.mxu0 0.0
        %6189 = vmatprep.subr.mxu0 0.0
        %6190 = vmatpush1.msra.mxu0 0.0
        %6191 = vmatprep.subr.mxu0 0.0
        %6192 = vmatpush1.msra.mxu0 0.0
        %6193 = vmatprep.subr.mxu0 0.0
        %6194 = vmatpush1.msra.mxu0 0.0
        %6195 = vmatprep.subr.mxu0 0.0
        %6196 = vmatpush1.msra.mxu0 0.0
        %6197 = vmatprep.subr.mxu0 0.0
        %6198 = vmatpush1.msra.mxu0 0.0
        %6199 = vmatprep.subr.mxu0 0.0
        %6200 = vmatpush1.msra.mxu0 0.0
        %6201 = vmatprep.subr.mxu0 0.0
        %6202 = vmatpush1.msra.mxu0 0.0
        %6203 = vmatprep.subr.mxu0 0.0
        %6204 = vmatpush1.msra.mxu0 0.0
        %6205 = vmatprep.subr.mxu0 0.0
        %6206 = vmatpush1.msra.mxu0 0.0
        %6207 = vmatprep.subr.mxu0 0.0
        %6208 = vmatpush1.msra.mxu0 0.0
        %6209 = vmatprep.subr.mxu0 0.0
        %6210 = vmatpush1.msra.mxu0 0.0
        %6211 = vmatprep.subr.mxu0 0.0
        %6212 = vmatpush1.msra.mxu0 0.0
        %6213 = vmatprep.subr.mxu0 0.0
        %6214 = vmatpush1.msra.mxu0 0.0
        %6215 = vmatprep.subr.mxu0 0.0
        %6216 = vmatpush1.msra.mxu0 0.0
        %6217 = vmatprep.subr.mxu0 0.0
        %6218 = vmatpush1.msra.mxu0 0.0
        %6219 = vmatprep.subr.mxu0 0.0
        %6220 = vmatpush1.msra.mxu0 0.0
        %6221 = vmatprep.mubr.f32.mxu0 0.0
        %6222 = vmatmul.mubr.f32.gmra.mrb[0].mxu0 %v6151
        %v6223 = vpop.f32.mrb[0].mxu0
        %v6224 = vadd.f32 %v6148, %v6223
        %v6225 = vpop.f32.mrb[0].mxu0
        %v6226 = vadd.f32 %v6148, %v6225
        %6227 = vdwg.mxu0
        %v6228 = vmul.f32 %v4659, 0.3
        %v6229 = vmul.f32 %v4660, 0.3
        %v6230 = vsub.f32 1.0, %v4667
        %v6231 = vsub.f32 1.0, %v4668
        %v6232 = vmul.f32 %v6228, %v6230
        %v6233 = vmul.f32 %v6229, %v6231
        %v6234 = vadd.f32 %v6232, %v6139
        %v6235 = vadd.f32 %v6233, %v6141
        %v6236 = vsub.f32 %v6234, 0.5
        %v6237 = vsub.f32 %v6235, 0.5
        %vm6238 = vcmp.gt.f32.partialorder %v6236, 0.0
        %vm6239 = vcmp.gt.f32.partialorder %v6237, 0.0
        %v6240 = vsel %vm6238, 1, 0
        %v6241 = vsel %vm6239, 1, 0
        %v6242 = vcvt.s32.f32 %v6240
        %v6243 = vcvt.s32.f32 %v6241
        %v6244 = vmax.f32 %v6224, 0.0
        %v6245 = vmax.f32 %v6226, 0.0
        %v6248 = vrot.slane %v6244, 4
        %v6249 = vrot.slane %v6245, 4
        %v6252 = vadd.f32 %v6139, %v6248
        %v6253 = vadd.f32 %v6141, %v6249
        %v6254 = vtanh.pop %v6252
        %v6255 = vtanh.pop %v6253
        %v6256 = vsel %vm1040, %v6242, %v6254
        %v6257 = vsel %vm1040, %v6243, %v6255
        %v6258 = vld [vmem:[%s5] sm:$0xff]
        %v6259 = vld [vmem:[%s5 + $0x8] sm:$0xff]
        %v6260 = vld [vmem:[%s5 + $0x10] sm:$0xff]
        %v6261 = vld [vmem:[%s5 + $0x18] sm:$0xff]
        %v6262 = vld [vmem:[%s5 + $0x20] sm:$0xff]
        %v6263 = vld [vmem:[%s5 + $0x28] sm:$0xff]
        %v6264 = vld [vmem:[%s5 + $0x30] sm:$0xff]
        %v6265 = vld [vmem:[%s5 + $0x38] sm:$0xff]
        %v6266 = vld [vmem:[%s5 + $0x40] sm:$0xff]
        %v6267 = vld [vmem:[%s5 + $0x48] sm:$0xff]
        %v6268 = vld [vmem:[%s5 + $0x50] sm:$0xff]
        %v6269 = vld [vmem:[%s5 + $0x58] sm:$0xff]
        %v6270 = vld [vmem:[%s5 + $0x60] sm:$0xff]
        %v6271 = vld [vmem:[%s5 + $0x68] sm:$0xff]
        %v6272 = vld [vmem:[%s5 + $0x70] sm:$0xff]
        %v6273 = vld [vmem:[%s5 + $0x78] sm:$0xff]
        %v6274 = vld [vmem:[%s5 + $0x80] sm:$0xff]
        %v6275 = vld [vmem:[%s5 + $0x88] sm:$0xff]
        %v6276 = vld [vmem:[%s5 + $0x90] sm:$0xff]
        %v6277 = vld [vmem:[%s5 + $0x98] sm:$0xff]
        %v6278 = vld [vmem:[%s5 + $0xa0] sm:$0xff]
        %v6279 = vld [vmem:[%s5 + $0xa8] sm:$0xff]
        %v6280 = vld [vmem:[%s5 + $0xb0] sm:$0xff]
        %v6281 = vld [vmem:[%s5 + $0xb8] sm:$0xff]
        %v6282 = vld [vmem:[%s5 + $0xc0] sm:$0xff]
        %v6283 = vld [vmem:[%s5 + $0xc8] sm:$0xff]
        %v6284 = vld [vmem:[%s5 + $0xd0] sm:$0xff]
        %v6285 = vld [vmem:[%s5 + $0xd8] sm:$0xff]
        %v6286 = vld [vmem:[%s5 + $0xe0] sm:$0xff]
        %v6287 = vld [vmem:[%s5 + $0xe8] sm:$0xff]
        %v6288 = vld [vmem:[%s5 + $0xf0] sm:$0xff]
        %v6289 = vld [vmem:[%s5 + $0xf8] sm:$0xff]
        %6290 = vmatprep.subr.mxu0 0.0
        %6291 = vmatpush1.msra.mxu0 %v6258
        %6292 = vmatprep.subr.mxu0 0.0
        %6293 = vmatpush1.msra.mxu0 %v6259
        %6294 = vmatprep.subr.mxu0 0.0
        %6295 = vmatpush1.msra.mxu0 %v6260
        %6296 = vmatprep.subr.mxu0 0.0
        %6297 = vmatpush1.msra.mxu0 %v6261
        %6298 = vmatprep.subr.mxu0 0.0
        %6299 = vmatpush1.msra.mxu0 %v6262
        %6300 = vmatprep.subr.mxu0 0.0
        %6301 = vmatpush1.msra.mxu0 %v6263
        %6302 = vmatprep.subr.mxu0 0.0
        %6303 = vmatpush1.msra.mxu0 %v6264
        %6304 = vmatprep.subr.mxu0 0.0
        %6305 = vmatpush1.msra.mxu0 %v6265
        %6306 = vmatprep.subr.mxu0 0.0
        %6307 = vmatpush1.msra.mxu0 %v6266
        %6308 = vmatprep.subr.mxu0 0.0
        %6309 = vmatpush1.msra.mxu0 %v6267
        %6310 = vmatprep.subr.mxu0 0.0
        %6311 = vmatpush1.msra.mxu0 %v6268
        %6312 = vmatprep.subr.mxu0 0.0
        %6313 = vmatpush1.msra.mxu0 %v6269
        %6314 = vmatprep.subr.mxu0 0.0
        %6315 = vmatpush1.msra.mxu0 %v6270
        %6316 = vmatprep.subr.mxu0 0.0
        %6317 = vmatpush1.msra.mxu0 %v6271
        %6318 = vmatprep.subr.mxu0 0.0
        %6319 = vmatpush1.msra.mxu0 %v6272
        %6320 = vmatprep.subr.mxu0 0.0
        %6321 = vmatpush1.msra.mxu0 %v6273
        %6322 = vmatprep.subr.mxu0 0.0
        %6323 = vmatpush1.msra.mxu0 %v6274
        %6324 = vmatprep.subr.mxu0 0.0
        %6325 = vmatpush1.msra.mxu0 %v6275
        %6326 = vmatprep.subr.mxu0 0.0
        %6327 = vmatpush1.msra.mxu0 %v6276
        %6328 = vmatprep.subr.mxu0 0.0
        %6329 = vmatpush1.msra.mxu0 %v6277
        %6330 = vmatprep.subr.mxu0 0.0
        %6331 = vmatpush1.msra.mxu0 %v6278
        %6332 = vmatprep.subr.mxu0 0.0
        %6333 = vmatpush1.msra.mxu0 %v6279
        %6334 = vmatprep.subr.mxu0 0.0
        %6335 = vmatpush1.msra.mxu0 %v6280
        %6336 = vmatprep.subr.mxu0 0.0
        %6337 = vmatpush1.msra.mxu0 %v6281
        %6338 = vmatprep.subr.mxu0 0.0
        %6339 = vmatpush1.msra.mxu0 %v6282
        %6340 = vmatprep.subr.mxu0 0.0
        %6341 = vmatpush1.msra.mxu0 %v6283
        %6342 = vmatprep.subr.mxu0 0.0
        %6343 = vmatpush1.msra.mxu0 %v6284
        %6344 = vmatprep.subr.mxu0 0.0
        %6345 = vmatpush1.msra.mxu0 %v6285
        %6346 = vmatprep.subr.mxu0 0.0
        %6347 = vmatpush1.msra.mxu0 %v6286
        %6348 = vmatprep.subr.mxu0 0.0
        %6349 = vmatpush1.msra.mxu0 %v6287
        %6350 = vmatprep.subr.mxu0 0.0
        %6351 = vmatpush1.msra.mxu0 %v6288
        %6352 = vmatprep.subr.mxu0 0.0
        %6353 = vmatpush1.msra.mxu0 %v6289
        %6354 = vmatprep.mubr.f32.mxu0 %v6257
        %6355 = vmatmul.mubr.f32.gmra.mrb[0].mxu0 %v6256
        %v6356 = vpop.f32.mrb[0].mxu0
        %v6357 = vadd.f32 0.0, %v6356
        %v6358 = vpop.f32.mrb[0].mxu0
        %6359 = vdwg.mxu0
        %6361 = vrot.lane.b32.xlu0 %v6357, 9
        %v6362 = vpop.permute.xlu0 %6361
        %6364 = vst.msk [vmem:[#allocation4] sm:$0xff] %vm1643, %v6362
        %v6365 = vld [vmem:[#allocation4] sm:$0xff]
        %v6366 = vld [vmem:[%s12] sm:$0x1]
        %v6367 = vlaneseq
        %v6368 = vshrl.u32 %v6367, 7
        %v6369 = vsub.s32 0, %v6368
        %v6370 = vrot.slane %v6366, %v6369
        %v6371 = vmul.f32 %v6365, %v6370
        %v6372 = vld [vmem:[%s12 + $0x1] sm:$0x1]
        %v6373 = vlaneseq
        %v6374 = vshrl.u32 %v6373, 7
        %v6375 = vsub.s32 0, %v6374
        %v6376 = vrot.slane %v6372, %v6375
        %6378 = vrot.lane.b32.xlu0 %v6376, 1
        %v6379 = vpop.permute.xlu0 %6378
        %v6381 = vmul.f32 %v6365, %v6379
        %v6382 = vld [vmem:[%s12 + $0x2] sm:$0x1]
        %v6383 = vlaneseq
        %v6384 = vshrl.u32 %v6383, 7
        %v6385 = vsub.s32 0, %v6384
        %v6386 = vrot.slane %v6382, %v6385
        %6388 = vrot.lane.b32.xlu0 %v6386, 2
        %v6389 = vpop.permute.xlu0 %6388
        %v6391 = vmul.f32 %v6365, %v6389
        %v6392 = vld [vmem:[%s12 + $0x3] sm:$0x1]
        %v6393 = vlaneseq
        %v6394 = vshrl.u32 %v6393, 7
        %v6395 = vsub.s32 0, %v6394
        %v6396 = vrot.slane %v6392, %v6395
        %6398 = vrot.lane.b32.xlu0 %v6396, 8
        %v6399 = vpop.permute.xlu0 %6398
        %v6401 = vmul.f32 %v6365, %v6399
        %v6402 = vld [vmem:[%s12 + $0x4] sm:$0x1]
        %v6403 = vlaneseq
        %v6404 = vshrl.u32 %v6403, 7
        %v6405 = vsub.s32 0, %v6404
        %v6406 = vrot.slane %v6402, %v6405
        %6408 = vrot.lane.b32.xlu0 %v6406, 9
        %v6409 = vpop.permute.xlu0 %6408
        %v6411 = vmul.f32 %v6365, %v6409
        %v6412 = vld [vmem:[%s12 + $0x5] sm:$0x1]
        %v6413 = vlaneseq
        %v6414 = vshrl.u32 %v6413, 7
        %v6415 = vsub.s32 0, %v6414
        %v6416 = vrot.slane %v6412, %v6415
        %6418 = vrot.lane.b32.xlu0 %v6416, 10
        %v6419 = vpop.permute.xlu0 %6418
        %v6421 = vmul.f32 %v6365, %v6419
        %v6422 = vld [vmem:[%s12 + $0x6] sm:$0x1]
        %v6423 = vlaneseq
        %v6424 = vshrl.u32 %v6423, 7
        %v6425 = vsub.s32 0, %v6424
        %v6426 = vrot.slane %v6422, %v6425
        %6428 = vrot.lane.b32.xlu0 %v6426, 16
        %v6429 = vpop.permute.xlu0 %6428
        %v6431 = vmul.f32 %v6365, %v6429
        %v6432 = vld [vmem:[%s12 + $0x7] sm:$0x1]
        %v6433 = vlaneseq
        %v6434 = vshrl.u32 %v6433, 7
        %v6435 = vsub.s32 0, %v6434
        %v6436 = vrot.slane %v6432, %v6435
        %6438 = vrot.lane.b32.xlu0 %v6436, 17
        %v6439 = vpop.permute.xlu0 %6438
        %v6441 = vmul.f32 %v6365, %v6439
        %v6442 = vld [vmem:[%s12 + $0x8] sm:$0x1]
        %v6443 = vlaneseq
        %v6444 = vshrl.u32 %v6443, 7
        %v6445 = vsub.s32 0, %v6444
        %v6446 = vrot.slane %v6442, %v6445
        %6448 = vrot.lane.b32.xlu0 %v6446, 18
        %v6449 = vpop.permute.xlu0 %6448
        %v6451 = vmul.f32 %v6365, %v6449
        %6453 = vrot.lane.b32.xlu0 %v6381, 127
        %v6454 = vpop.permute.xlu0 %6453
        %6457 = vrot.lane.b32.xlu0 %v6391, 126
        %v6458 = vpop.permute.xlu0 %6457
        %6461 = vrot.lane.b32.xlu0 %v6401, 120
        %v6462 = vpop.permute.xlu0 %6461
        %6465 = vrot.lane.b32.xlu0 %v6411, 119
        %v6466 = vpop.permute.xlu0 %6465
        %6469 = vrot.lane.b32.xlu0 %v6421, 118
        %v6470 = vpop.permute.xlu0 %6469
        %6473 = vrot.lane.b32.xlu0 %v6431, 112
        %v6474 = vpop.permute.xlu0 %6473
        %6477 = vrot.lane.b32.xlu0 %v6441, 111
        %v6478 = vpop.permute.xlu0 %6477
        %6481 = vrot.lane.b32.xlu0 %v6451, 110
        %v6482 = vpop.permute.xlu0 %6481
        %6485 = vrot.lane.b32.xlu0 %v5215, 9
        %v6486 = vpop.permute.xlu0 %6485
        %6488 = vst.msk [vmem:[#allocation5 - $0x4] sm:$0xf0] %vm3264, %v6486
        %v6489 = vld [vmem:[#allocation5] sm:$0xf]
        %v6490 = vld [vmem:[%s12] sm:$0x1]
        %v6491 = vlaneseq
        %v6492 = vshrl.u32 %v6491, 7
        %v6493 = vsub.s32 0, %v6492
        %v6494 = vrot.slane %v6490, %v6493
        %v6495 = vmul.f32 %v6489, %v6494
        %v6496 = vld [vmem:[%s12 + $0x1] sm:$0x1]
        %v6497 = vlaneseq
        %v6498 = vshrl.u32 %v6497, 7
        %v6499 = vsub.s32 0, %v6498
        %v6500 = vrot.slane %v6496, %v6499
        %6502 = vrot.lane.b32.xlu0 %v6500, 1
        %v6503 = vpop.permute.xlu0 %6502
        %v6505 = vmul.f32 %v6489, %v6503
        %v6506 = vld [vmem:[%s12 + $0x2] sm:$0x1]
        %v6507 = vlaneseq
        %v6508 = vshrl.u32 %v6507, 7
        %v6509 = vsub.s32 0, %v6508
        %v6510 = vrot.slane %v6506, %v6509
        %6512 = vrot.lane.b32.xlu0 %v6510, 2
        %v6513 = vpop.permute.xlu0 %6512
        %v6515 = vmul.f32 %v6489, %v6513
        %v6516 = vld [vmem:[%s12 + $0x3] sm:$0x1]
        %v6517 = vlaneseq
        %v6518 = vshrl.u32 %v6517, 7
        %v6519 = vsub.s32 0, %v6518
        %v6520 = vrot.slane %v6516, %v6519
        %6522 = vrot.lane.b32.xlu0 %v6520, 8
        %v6523 = vpop.permute.xlu0 %6522
        %v6525 = vmul.f32 %v6489, %v6523
        %v6526 = vld [vmem:[%s12 + $0x4] sm:$0x1]
        %v6527 = vlaneseq
        %v6528 = vshrl.u32 %v6527, 7
        %v6529 = vsub.s32 0, %v6528
        %v6530 = vrot.slane %v6526, %v6529
        %6532 = vrot.lane.b32.xlu0 %v6530, 9
        %v6533 = vpop.permute.xlu0 %6532
        %v6535 = vmul.f32 %v6489, %v6533
        %v6536 = vld [vmem:[%s12 + $0x5] sm:$0x1]
        %v6537 = vlaneseq
        %v6538 = vshrl.u32 %v6537, 7
        %v6539 = vsub.s32 0, %v6538
        %v6540 = vrot.slane %v6536, %v6539
        %6542 = vrot.lane.b32.xlu0 %v6540, 10
        %v6543 = vpop.permute.xlu0 %6542
        %v6545 = vmul.f32 %v6489, %v6543
        %v6546 = vld [vmem:[%s12 + $0x6] sm:$0x1]
        %v6547 = vlaneseq
        %v6548 = vshrl.u32 %v6547, 7
        %v6549 = vsub.s32 0, %v6548
        %v6550 = vrot.slane %v6546, %v6549
        %6552 = vrot.lane.b32.xlu0 %v6550, 16
        %v6553 = vpop.permute.xlu0 %6552
        %v6555 = vmul.f32 %v6489, %v6553
        %v6556 = vld [vmem:[%s12 + $0x7] sm:$0x1]
        %v6557 = vlaneseq
        %v6558 = vshrl.u32 %v6557, 7
        %v6559 = vsub.s32 0, %v6558
        %v6560 = vrot.slane %v6556, %v6559
        %6562 = vrot.lane.b32.xlu0 %v6560, 17
        %v6563 = vpop.permute.xlu0 %6562
        %v6565 = vmul.f32 %v6489, %v6563
        %v6566 = vld [vmem:[%s12 + $0x8] sm:$0x1]
        %v6567 = vlaneseq
        %v6568 = vshrl.u32 %v6567, 7
        %v6569 = vsub.s32 0, %v6568
        %v6570 = vrot.slane %v6566, %v6569
        %6572 = vrot.lane.b32.xlu0 %v6570, 18
        %v6573 = vpop.permute.xlu0 %6572
        %v6575 = vmul.f32 %v6489, %v6573
        %v6577 = vrot.slane %v6505, 4
        %6578 = vrot.lane.b32.xlu0 %v6577, 127
        %v6579 = vpop.permute.xlu0 %6578
        %6582 = vrot.lane.b32.xlu0 %v6515, 126
        %v6583 = vpop.permute.xlu0 %6582
        %v6586 = vrot.slane %v6525, 4
        %6587 = vrot.lane.b32.xlu0 %v6586, 120
        %v6588 = vpop.permute.xlu0 %6587
        %6591 = vrot.lane.b32.xlu0 %v6535, 119
        %v6592 = vpop.permute.xlu0 %6591
        %v6595 = vrot.slane %v6545, 4
        %6596 = vrot.lane.b32.xlu0 %v6595, 118
        %v6597 = vpop.permute.xlu0 %6596
        %6600 = vrot.lane.b32.xlu0 %v6555, 112
        %v6601 = vpop.permute.xlu0 %6600
        %v6604 = vrot.slane %v6565, 4
        %6605 = vrot.lane.b32.xlu0 %v6604, 111
        %v6606 = vpop.permute.xlu0 %6605
        %6609 = vrot.lane.b32.xlu0 %v6575, 110
        %v6610 = vpop.permute.xlu0 %6609
        %v6611 = vsel %vm1040, %v6495, %v6579
        %v6612 = vsel %vm1040, %v6583, %v6588
        %v6613 = vsel %vm1040, %v6592, %v6597
        %v6614 = vsel %vm1040, %v6601, %v6606
        %v6615 = vld [vmem:[%s7] sm:$0xff]
        %v6616 = vld [vmem:[%s8] sm:$0xff]
        %6618 = vset.pattern.permute.xlu0 0
        %6619 = vperm.xlu0 %6618, %v6616
        %v6620 = vpop.permute.xlu0 %6619
        %v6623 = vsel %vm1899, %v6615, 0
        %6625 = vmatprep.subr.mxu0 0.0
        %6626 = vmatpush1.msra.mxu0 %v6371
        %6627 = vmatprep.subr.mxu0 0.0
        %6628 = vmatpush1.msra.mxu0 %v6454
        %6629 = vmatprep.subr.mxu0 0.0
        %6630 = vmatpush1.msra.mxu0 %v6458
        %6631 = vmatprep.subr.mxu0 0.0
        %6632 = vmatpush1.msra.mxu0 %v6462
        %6633 = vmatprep.subr.mxu0 0.0
        %6634 = vmatpush1.msra.mxu0 %v6466
        %6635 = vmatprep.subr.mxu0 0.0
        %6636 = vmatpush1.msra.mxu0 %v6470
        %6637 = vmatprep.subr.mxu0 0.0
        %6638 = vmatpush1.msra.mxu0 %v6474
        %6639 = vmatprep.subr.mxu0 0.0
        %6640 = vmatpush1.msra.mxu0 %v6478
        %6641 = vmatprep.subr.mxu0 0.0
        %6642 = vmatpush1.msra.mxu0 %v6482
        %6643 = vmatprep.subr.mxu0 0.0
        %6644 = vmatpush1.msra.mxu0 0.0
        %6645 = vmatprep.subr.mxu0 0.0
        %6646 = vmatpush1.msra.mxu0 0.0
        %6647 = vmatprep.subr.mxu0 0.0
        %6648 = vmatpush1.msra.mxu0 0.0
        %6649 = vmatprep.subr.mxu0 0.0
        %6650 = vmatpush1.msra.mxu0 0.0
        %6651 = vmatprep.subr.mxu0 0.0
        %6652 = vmatpush1.msra.mxu0 0.0
        %6653 = vmatprep.subr.mxu0 0.0
        %6654 = vmatpush1.msra.mxu0 0.0
        %6655 = vmatprep.subr.mxu0 0.0
        %6656 = vmatpush1.msra.mxu0 0.0
        %6657 = vmatprep.subr.mxu0 0.0
        %6658 = vmatpush1.msra.mxu0 0.0
        %6659 = vmatprep.subr.mxu0 0.0
        %6660 = vmatpush1.msra.mxu0 0.0
        %6661 = vmatprep.subr.mxu0 0.0
        %6662 = vmatpush1.msra.mxu0 0.0
        %6663 = vmatprep.subr.mxu0 0.0
        %6664 = vmatpush1.msra.mxu0 0.0
        %6665 = vmatprep.subr.mxu0 0.0
        %6666 = vmatpush1.msra.mxu0 0.0
        %6667 = vmatprep.subr.mxu0 0.0
        %6668 = vmatpush1.msra.mxu0 0.0
        %6669 = vmatprep.subr.mxu0 0.0
        %6670 = vmatpush1.msra.mxu0 0.0
        %6671 = vmatprep.subr.mxu0 0.0
        %6672 = vmatpush1.msra.mxu0 0.0
        %6673 = vmatprep.subr.mxu0 0.0
        %6674 = vmatpush1.msra.mxu0 0.0
        %6675 = vmatprep.subr.mxu0 0.0
        %6676 = vmatpush1.msra.mxu0 0.0
        %6677 = vmatprep.subr.mxu0 0.0
        %6678 = vmatpush1.msra.mxu0 0.0
        %6679 = vmatprep.subr.mxu0 0.0
        %6680 = vmatpush1.msra.mxu0 0.0
        %6681 = vmatprep.subr.mxu0 0.0
        %6682 = vmatpush1.msra.mxu0 0.0
        %6683 = vmatprep.subr.mxu0 0.0
        %6684 = vmatpush1.msra.mxu0 0.0
        %6685 = vmatprep.subr.mxu0 0.0
        %6686 = vmatpush1.msra.mxu0 0.0
        %6687 = vmatprep.subr.mxu0 0.0
        %6688 = vmatpush1.msra.mxu0 0.0
        %6689 = vmatprep.mubr.f32.mxu0 0.0
        %6690 = vmatmul.mubr.f32.gmra.mrb[0].mxu0 %v6623
        %v6691 = vpop.f32.mrb[0].mxu0
        %v6692 = vadd.f32 %v6620, %v6691
        %v6693 = vpop.f32.mrb[0].mxu0
        %6694 = vdwg.mxu0
        %v6695 = vld [vmem:[%s9] sm:$0xf]
        %v6696 = vld [vmem:[%s10] sm:$0xf]
        %6698 = vset.pattern.permute.xlu0 0
        %6699 = vperm.xlu0 %6698, %v6696
        %v6700 = vpop.permute.xlu0 %6699
        %v6703 = vsel %vm1434, %v6695, 0
        %v6705 = vsel %vm1040, %v6610, 0
        %6707 = vmatprep.subr.mxu0 0.0
        %6708 = vmatpush1.msra.mxu0 %v6611
        %6709 = vmatprep.subr.mxu0 0.0
        %6710 = vmatpush1.msra.mxu0 %v6612
        %6711 = vmatprep.subr.mxu0 0.0
        %6712 = vmatpush1.msra.mxu0 %v6613
        %6713 = vmatprep.subr.mxu0 0.0
        %6714 = vmatpush1.msra.mxu0 %v6614
        %6715 = vmatprep.subr.mxu0 0.0
        %6716 = vmatpush1.msra.mxu0 %v6705
        %6717 = vmatprep.subr.mxu0 0.0
        %6718 = vmatpush1.msra.mxu0 0.0
        %6719 = vmatprep.subr.mxu0 0.0
        %6720 = vmatpush1.msra.mxu0 0.0
        %6721 = vmatprep.subr.mxu0 0.0
        %6722 = vmatpush1.msra.mxu0 0.0
        %6723 = vmatprep.subr.mxu0 0.0
        %6724 = vmatpush1.msra.mxu0 0.0
        %6725 = vmatprep.subr.mxu0 0.0
        %6726 = vmatpush1.msra.mxu0 0.0
        %6727 = vmatprep.subr.mxu0 0.0
        %6728 = vmatpush1.msra.mxu0 0.0
        %6729 = vmatprep.subr.mxu0 0.0
        %6730 = vmatpush1.msra.mxu0 0.0
        %6731 = vmatprep.subr.mxu0 0.0
        %6732 = vmatpush1.msra.mxu0 0.0
        %6733 = vmatprep.subr.mxu0 0.0
        %6734 = vmatpush1.msra.mxu0 0.0
        %6735 = vmatprep.subr.mxu0 0.0
        %6736 = vmatpush1.msra.mxu0 0.0
        %6737 = vmatprep.subr.mxu0 0.0
        %6738 = vmatpush1.msra.mxu0 0.0
        %6739 = vmatprep.subr.mxu0 0.0
        %6740 = vmatpush1.msra.mxu0 0.0
        %6741 = vmatprep.subr.mxu0 0.0
        %6742 = vmatpush1.msra.mxu0 0.0
        %6743 = vmatprep.subr.mxu0 0.0
        %6744 = vmatpush1.msra.mxu0 0.0
        %6745 = vmatprep.subr.mxu0 0.0
        %6746 = vmatpush1.msra.mxu0 0.0
        %6747 = vmatprep.subr.mxu0 0.0
        %6748 = vmatpush1.msra.mxu0 0.0
        %6749 = vmatprep.subr.mxu0 0.0
        %6750 = vmatpush1.msra.mxu0 0.0
        %6751 = vmatprep.subr.mxu0 0.0
        %6752 = vmatpush1.msra.mxu0 0.0
        %6753 = vmatprep.subr.mxu0 0.0
        %6754 = vmatpush1.msra.mxu0 0.0
        %6755 = vmatprep.subr.mxu0 0.0
        %6756 = vmatpush1.msra.mxu0 0.0
        %6757 = vmatprep.subr.mxu0 0.0
        %6758 = vmatpush1.msra.mxu0 0.0
        %6759 = vmatprep.subr.mxu0 0.0
        %6760 = vmatpush1.msra.mxu0 0.0
        %6761 = vmatprep.subr.mxu0 0.0
        %6762 = vmatpush1.msra.mxu0 0.0
        %6763 = vmatprep.subr.mxu0 0.0
        %6764 = vmatpush1.msra.mxu0 0.0
        %6765 = vmatprep.subr.mxu0 0.0
        %6766 = vmatpush1.msra.mxu0 0.0
        %6767 = vmatprep.subr.mxu0 0.0
        %6768 = vmatpush1.msra.mxu0 0.0
        %6769 = vmatprep.subr.mxu0 0.0
        %6770 = vmatpush1.msra.mxu0 0.0
        %6771 = vmatprep.mubr.f32.mxu0 0.0
        %6772 = vmatmul.mubr.f32.gmra.mrb[0].mxu0 %v6703
        %v6773 = vpop.f32.mrb[0].mxu0
        %v6774 = vadd.f32 %v6700, %v6773
        %v6775 = vpop.f32.mrb[0].mxu0
        %6776 = vdwg.mxu0
        %v6777 = vmul.f32 %v5205, 0.3
        %v6778 = vsub.f32 1.0, %v5209
        %v6779 = vmul.f32 %v6777, %v6778
        %v6780 = vadd.f32 %v6779, %v6692
        %v6781 = vsub.f32 %v6780, 0.5
        %vm6782 = vcmp.gt.f32.partialorder %v6781, 0.0
        %v6783 = vsel %vm6782, 1, 0
        %v6784 = vcvt.s32.f32 %v6783
        %v6785 = vmax.f32 %v6774, 0.0
        %v6787 = vrot.slane %v6785, 4
        %v6789 = vadd.f32 %v6692, %v6787
        %v6790 = vtanh.pop %v6789
        %v6791 = vsel %vm1040, %v6784, %v6790
        %v6792 = vld [vmem:[%s11] sm:$0xff]
        %v6793 = vld [vmem:[%s11 + $0x8] sm:$0xff]
        %v6794 = vld [vmem:[%s11 + $0x10] sm:$0xff]
        %v6795 = vld [vmem:[%s11 + $0x18] sm:$0xff]
        %v6796 = vld [vmem:[%s11 + $0x20] sm:$0xff]
        %v6797 = vld [vmem:[%s11 + $0x28] sm:$0xff]
        %v6798 = vld [vmem:[%s11 + $0x30] sm:$0xff]
        %v6799 = vld [vmem:[%s11 + $0x38] sm:$0xff]
        %v6801 = vsel %vm3577, %v6791, 0
        %6803 = vmatprep.subr.mxu0 0.0
        %6804 = vmatpush1.msra.mxu0 %v6792
        %6805 = vmatprep.subr.mxu0 0.0
        %6806 = vmatpush1.msra.mxu0 %v6793
        %6807 = vmatprep.subr.mxu0 0.0
        %6808 = vmatpush1.msra.mxu0 %v6794
        %6809 = vmatprep.subr.mxu0 0.0
        %6810 = vmatpush1.msra.mxu0 %v6795
        %6811 = vmatprep.subr.mxu0 0.0
        %6812 = vmatpush1.msra.mxu0 %v6796
        %6813 = vmatprep.subr.mxu0 0.0
        %6814 = vmatpush1.msra.mxu0 %v6797
        %6815 = vmatprep.subr.mxu0 0.0
        %6816 = vmatpush1.msra.mxu0 %v6798
        %6817 = vmatprep.subr.mxu0 0.0
        %6818 = vmatpush1.msra.mxu0 %v6799
        %6819 = vmatprep.subr.mxu0 0.0
        %6820 = vmatpush1.msra.mxu0 0.0
        %6821 = vmatprep.subr.mxu0 0.0
        %6822 = vmatpush1.msra.mxu0 0.0
        %6823 = vmatprep.subr.mxu0 0.0
        %6824 = vmatpush1.msra.mxu0 0.0
        %6825 = vmatprep.subr.mxu0 0.0
        %6826 = vmatpush1.msra.mxu0 0.0
        %6827 = vmatprep.subr.mxu0 0.0
        %6828 = vmatpush1.msra.mxu0 0.0
        %6829 = vmatprep.subr.mxu0 0.0
        %6830 = vmatpush1.msra.mxu0 0.0
        %6831 = vmatprep.subr.mxu0 0.0
        %6832 = vmatpush1.msra.mxu0 0.0
        %6833 = vmatprep.subr.mxu0 0.0
        %6834 = vmatpush1.msra.mxu0 0.0
        %6835 = vmatprep.subr.mxu0 0.0
        %6836 = vmatpush1.msra.mxu0 0.0
        %6837 = vmatprep.subr.mxu0 0.0
        %6838 = vmatpush1.msra.mxu0 0.0
        %6839 = vmatprep.subr.mxu0 0.0
        %6840 = vmatpush1.msra.mxu0 0.0
        %6841 = vmatprep.subr.mxu0 0.0
        %6842 = vmatpush1.msra.mxu0 0.0
        %6843 = vmatprep.subr.mxu0 0.0
        %6844 = vmatpush1.msra.mxu0 0.0
        %6845 = vmatprep.subr.mxu0 0.0
        %6846 = vmatpush1.msra.mxu0 0.0
        %6847 = vmatprep.subr.mxu0 0.0
        %6848 = vmatpush1.msra.mxu0 0.0
        %6849 = vmatprep.subr.mxu0 0.0
        %6850 = vmatpush1.msra.mxu0 0.0
        %6851 = vmatprep.subr.mxu0 0.0
        %6852 = vmatpush1.msra.mxu0 0.0
        %6853 = vmatprep.subr.mxu0 0.0
        %6854 = vmatpush1.msra.mxu0 0.0
        %6855 = vmatprep.subr.mxu0 0.0
        %6856 = vmatpush1.msra.mxu0 0.0
        %6857 = vmatprep.subr.mxu0 0.0
        %6858 = vmatpush1.msra.mxu0 0.0
        %6859 = vmatprep.subr.mxu0 0.0
        %6860 = vmatpush1.msra.mxu0 0.0
        %6861 = vmatprep.subr.mxu0 0.0
        %6862 = vmatpush1.msra.mxu0 0.0
        %6863 = vmatprep.subr.mxu0 0.0
        %6864 = vmatpush1.msra.mxu0 0.0
        %6865 = vmatprep.subr.mxu0 0.0
        %6866 = vmatpush1.msra.mxu0 0.0
        %6867 = vmatprep.mubr.f32.mxu0 0.0
        %6868 = vmatmul.mubr.f32.gmra.mrb[0].mxu0 %v6801
        %v6869 = vpop.f32.mrb[0].mxu0
        %v6870 = vadd.f32 0.0, %v6869
        %v6871 = vpop.f32.mrb[0].mxu0
        %6872 = vdwg.mxu0
        %v6873 = vadd.f32 %v5298, %v6870
        %vm6874 = vcmask 122880
        %6875 = vst.msk [vmem:[#allocation6] sm:$0x1] %vm6874, %v6873
        %6877 = vrot.lane.b32.xlu0 %v6873, 16
        %v6878 = vpop.permute.xlu0 %6877
        %vm6880 = vcmask 255105
        %6881 = vst.msk [vmem:[#allocation6 - $0x1] sm:$0x2] %vm6880, %v6878
        %6882 = vrot.lane.b32.xlu0 %v6873, 32
        %v6883 = vpop.permute.xlu0 %6882
        %vm6885 = vcmask 387330
        %6886 = vst.msk [vmem:[#allocation6 - $0x2] sm:$0x4] %vm6885, %v6883
        %6887 = vrot.lane.b32.xlu0 %v6873, 48
        %v6888 = vpop.permute.xlu0 %6887
        %vm6890 = vcmask 519555
        %6891 = vst.msk [vmem:[#allocation6 - $0x3] sm:$0x8] %vm6890, %v6888
        %6893 = vrot.lane.b32.xlu0 %v6870, 64
        %v6894 = vpop.permute.xlu0 %6893
        %vm6896 = vcmask 651780
        %6897 = vst.msk [vmem:[#allocation6 - $0x4] sm:$0x10] %vm6896, %v6894
        %6898 = vrot.lane.b32.xlu0 %v6870, 80
        %v6899 = vpop.permute.xlu0 %6898
        %vm6901 = vcmask 784005
        %6902 = vst.msk [vmem:[#allocation6 - $0x5] sm:$0x20] %vm6901, %v6899
        %6903 = vrot.lane.b32.xlu0 %v6870, 96
        %v6904 = vpop.permute.xlu0 %6903
        %vm6906 = vcmask 916230
        %6907 = vst.msk [vmem:[#allocation6 - $0x6] sm:$0x40] %vm6906, %v6904
        %6908 = vrot.lane.b32.xlu0 %v6870, 112
        %v6909 = vpop.permute.xlu0 %6908
        %vm6911 = vcmask 1048455
        %6912 = vst.msk [vmem:[#allocation6 - $0x7] sm:$0x80] %vm6911, %v6909
        %v6913 = vld [vmem:[#allocation6] sm:$0x1]
        %v6914 = vld [vmem:[%s13] sm:$0xff]
        %v6915 = vld [vmem:[%s13 + $0x8] sm:$0xff]
        %v6916 = vld [vmem:[%s13 + $0x10] sm:$0xff]
        %v6917 = vld [vmem:[%s13 + $0x18] sm:$0xff]
        %v6918 = vld [vmem:[%s13 + $0x20] sm:$0xff]
        %v6919 = vld [vmem:[%s13 + $0x28] sm:$0xff]
        %v6920 = vld [vmem:[%s13 + $0x30] sm:$0xff]
        %v6921 = vld [vmem:[%s13 + $0x38] sm:$0xff]
        %v6922 = vld [vmem:[%s13 + $0x40] sm:$0xff]
        %v6923 = vld [vmem:[%s13 + $0x48] sm:$0xff]
        %v6924 = vld [vmem:[%s13 + $0x50] sm:$0xff]
        %v6925 = vld [vmem:[%s13 + $0x58] sm:$0xff]
        %v6926 = vld [vmem:[%s13 + $0x60] sm:$0xff]
        %v6927 = vld [vmem:[%s13 + $0x68] sm:$0xff]
        %v6928 = vld [vmem:[%s13 + $0x70] sm:$0xff]
        %v6929 = vld [vmem:[%s13 + $0x78] sm:$0xff]
        %v6930 = vld [vmem:[%s14] sm:$0x1]
        %6931 = vmatprep.subr.mxu0 0.0
        %6932 = vmatpush1.msra.mxu0 %v6914
        %6933 = vmatprep.subr.mxu0 0.0
        %6934 = vmatpush1.msra.mxu0 %v6915
        %6935 = vmatprep.subr.mxu0 0.0
        %6936 = vmatpush1.msra.mxu0 %v6916
        %6937 = vmatprep.subr.mxu0 0.0
        %6938 = vmatpush1.msra.mxu0 %v6917
        %6939 = vmatprep.subr.mxu0 0.0
        %6940 = vmatpush1.msra.mxu0 %v6918
        %6941 = vmatprep.subr.mxu0 0.0
        %6942 = vmatpush1.msra.mxu0 %v6919
        %6943 = vmatprep.subr.mxu0 0.0
        %6944 = vmatpush1.msra.mxu0 %v6920
        %6945 = vmatprep.subr.mxu0 0.0
        %6946 = vmatpush1.msra.mxu0 %v6921
        %6947 = vmatprep.subr.mxu0 0.0
        %6948 = vmatpush1.msra.mxu0 %v6922
        %6949 = vmatprep.subr.mxu0 0.0
        %6950 = vmatpush1.msra.mxu0 %v6923
        %6951 = vmatprep.subr.mxu0 0.0
        %6952 = vmatpush1.msra.mxu0 %v6924
        %6953 = vmatprep.subr.mxu0 0.0
        %6954 = vmatpush1.msra.mxu0 %v6925
        %6955 = vmatprep.subr.mxu0 0.0
        %6956 = vmatpush1.msra.mxu0 %v6926
        %6957 = vmatprep.subr.mxu0 0.0
        %6958 = vmatpush1.msra.mxu0 %v6927
        %6959 = vmatprep.subr.mxu0 0.0
        %6960 = vmatpush1.msra.mxu0 %v6928
        %6961 = vmatprep.subr.mxu0 0.0
        %6962 = vmatpush1.msra.mxu0 %v6929
        %6963 = vmatprep.subr.mxu0 0.0
        %6964 = vmatpush1.msra.mxu0 0.0
        %6965 = vmatprep.subr.mxu0 0.0
        %6966 = vmatpush1.msra.mxu0 0.0
        %6967 = vmatprep.subr.mxu0 0.0
        %6968 = vmatpush1.msra.mxu0 0.0
        %6969 = vmatprep.subr.mxu0 0.0
        %6970 = vmatpush1.msra.mxu0 0.0
        %6971 = vmatprep.subr.mxu0 0.0
        %6972 = vmatpush1.msra.mxu0 0.0
        %6973 = vmatprep.subr.mxu0 0.0
        %6974 = vmatpush1.msra.mxu0 0.0
        %6975 = vmatprep.subr.mxu0 0.0
        %6976 = vmatpush1.msra.mxu0 0.0
        %6977 = vmatprep.subr.mxu0 0.0
        %6978 = vmatpush1.msra.mxu0 0.0
        %6979 = vmatprep.subr.mxu0 0.0
        %6980 = vmatpush1.msra.mxu0 0.0
        %6981 = vmatprep.subr.mxu0 0.0
        %6982 = vmatpush1.msra.mxu0 0.0
        %6983 = vmatprep.subr.mxu0 0.0
        %6984 = vmatpush1.msra.mxu0 0.0
        %6985 = vmatprep.subr.mxu0 0.0
        %6986 = vmatpush1.msra.mxu0 0.0
        %6987 = vmatprep.subr.mxu0 0.0
        %6988 = vmatpush1.msra.mxu0 0.0
        %6989 = vmatprep.subr.mxu0 0.0
        %6990 = vmatpush1.msra.mxu0 0.0
        %6991 = vmatprep.subr.mxu0 0.0
        %6992 = vmatpush1.msra.mxu0 0.0
        %6993 = vmatprep.subr.mxu0 0.0
        %6994 = vmatpush1.msra.mxu0 0.0
        %6995 = vmatprep.mubr.f32.mxu0 0.0
        %6996 = vmatmul.mubr.f32.gmra.mrb[0].mxu0 %v6913
        %v6997 = vpop.f32.mrb[0].mxu0
        %v6998 = vadd.f32 %v6930, %v6997
        %v6999 = vpop.f32.mrb[0].mxu0
        %7000 = vdwg.mxu0
        %v7001 = vmax.f32 %v6998, 0.0
        %v7002 = vld [vmem:[%s15] sm:$0xff]
        %v7003 = vld [vmem:[%s15 + $0x8] sm:$0xff]
        %v7004 = vld [vmem:[%s15 + $0x10] sm:$0xff]
        %v7005 = vld [vmem:[%s15 + $0x18] sm:$0xff]
        %v7006 = vld [vmem:[%s16] sm:$0x1]
        %v7008 = vsel %vm745, %v7001, 0
        %7010 = vmatprep.subr.mxu0 0.0
        %7011 = vmatpush1.msra.mxu0 %v7002
        %7012 = vmatprep.subr.mxu0 0.0
        %7013 = vmatpush1.msra.mxu0 %v7003
        %7014 = vmatprep.subr.mxu0 0.0
        %7015 = vmatpush1.msra.mxu0 %v7004
        %7016 = vmatprep.subr.mxu0 0.0
        %7017 = vmatpush1.msra.mxu0 %v7005
        %7018 = vmatprep.subr.mxu0 0.0
        %7019 = vmatpush1.msra.mxu0 0.0
        %7020 = vmatprep.subr.mxu0 0.0
        %7021 = vmatpush1.msra.mxu0 0.0
        %7022 = vmatprep.subr.mxu0 0.0
        %7023 = vmatpush1.msra.mxu0 0.0
        %7024 = vmatprep.subr.mxu0 0.0
        %7025 = vmatpush1.msra.mxu0 0.0
        %7026 = vmatprep.subr.mxu0 0.0
        %7027 = vmatpush1.msra.mxu0 0.0
        %7028 = vmatprep.subr.mxu0 0.0
        %7029 = vmatpush1.msra.mxu0 0.0
        %7030 = vmatprep.subr.mxu0 0.0
        %7031 = vmatpush1.msra.mxu0 0.0
        %7032 = vmatprep.subr.mxu0 0.0
        %7033 = vmatpush1.msra.mxu0 0.0
        %7034 = vmatprep.subr.mxu0 0.0
        %7035 = vmatpush1.msra.mxu0 0.0
        %7036 = vmatprep.subr.mxu0 0.0
        %7037 = vmatpush1.msra.mxu0 0.0
        %7038 = vmatprep.subr.mxu0 0.0
        %7039 = vmatpush1.msra.mxu0 0.0
        %7040 = vmatprep.subr.mxu0 0.0
        %7041 = vmatpush1.msra.mxu0 0.0
        %7042 = vmatprep.subr.mxu0 0.0
        %7043 = vmatpush1.msra.mxu0 0.0
        %7044 = vmatprep.subr.mxu0 0.0
        %7045 = vmatpush1.msra.mxu0 0.0
        %7046 = vmatprep.subr.mxu0 0.0
        %7047 = vmatpush1.msra.mxu0 0.0
        %7048 = vmatprep.subr.mxu0 0.0
        %7049 = vmatpush1.msra.mxu0 0.0
        %7050 = vmatprep.subr.mxu0 0.0
        %7051 = vmatpush1.msra.mxu0 0.0
        %7052 = vmatprep.subr.mxu0 0.0
        %7053 = vmatpush1.msra.mxu0 0.0
        %7054 = vmatprep.subr.mxu0 0.0
        %7055 = vmatpush1.msra.mxu0 0.0
        %7056 = vmatprep.subr.mxu0 0.0
        %7057 = vmatpush1.msra.mxu0 0.0
        %7058 = vmatprep.subr.mxu0 0.0
        %7059 = vmatpush1.msra.mxu0 0.0
        %7060 = vmatprep.subr.mxu0 0.0
        %7061 = vmatpush1.msra.mxu0 0.0
        %7062 = vmatprep.subr.mxu0 0.0
        %7063 = vmatpush1.msra.mxu0 0.0
        %7064 = vmatprep.subr.mxu0 0.0
        %7065 = vmatpush1.msra.mxu0 0.0
        %7066 = vmatprep.subr.mxu0 0.0
        %7067 = vmatpush1.msra.mxu0 0.0
        %7068 = vmatprep.subr.mxu0 0.0
        %7069 = vmatpush1.msra.mxu0 0.0
        %7070 = vmatprep.subr.mxu0 0.0
        %7071 = vmatpush1.msra.mxu0 0.0
        %7072 = vmatprep.subr.mxu0 0.0
        %7073 = vmatpush1.msra.mxu0 0.0
        %7074 = vmatprep.mubr.f32.mxu0 0.0
        %7075 = vmatmul.mubr.f32.gmra.mrb[0].mxu0 %v7008
        %v7076 = vpop.f32.mrb[0].mxu0
        %v7077 = vadd.f32 %v7006, %v7076
        %v7078 = vpop.f32.mrb[0].mxu0
        %7079 = vdwg.mxu0
        %vm7080 = vcmask 73728
        %7081 = vst.msk [vmem:[%s540] sm:$0x1] %vm7080, %v7077
        %s7082 = sand.u32 %s401, 1
        %s7083 = scalar_lea.sflag [#allocation8], %s7082
        %s7084 = sand.u32 %s401, 1
        %s7085 = scalar_lea.vmem [#allocation7], %s7084
        // Predicated region
        $region89: #{hnn_forward.1} parent=87 // pred_check
          %p7086 = pneg %p411
        $region90: #{hnn_forward.1} parent=87 // pred_check_branch
          %7088 = sbr.rel (%p7086) target = $region92
        $region91: #{hnn_forward.1} parent=87 // pred_region
          %s7090 = ssub.s32 16, 16
          %7091 = vsyncadd %s7083, %s7090
          %s7092 = smul.addr %s31, 16
          %s7093 = scalar_lea.hbm %s17, %s7092
          %s7095 = sshll.u32 %s7085, 4
          %s7096 = int_to_ptr.vmem [resolvable:$true] %s7095
          %7098 = dma.vmem_to_hbm [thread:$0]  %s7096, 16, %s7093, %s7083
        $region92: #{hnn_forward.1} parent=87 // pred_fallthru
          _
      $region88: #{hnn_forward.1} parent=5 // pred_fallthru
        _
      %p7099 = scmp.le.s32.totalorder 2, %s26
      // Predicated region
      $region93: #{hnn_forward.1} parent=5 // pred_check
        %p7100 = pneg %p7099
      $region94: #{hnn_forward.1} parent=5 // pred_check_branch
        %7102 = sbr.rel (%p7100) target = $region96
      $region95: #{hnn_forward.1} parent=5 // pred_region
        %s7103 = ssub.s32 %s26, 2
        // Predicated region
        $region97: #{hnn_forward.1} parent=95 // pred_check
          %p7104 = pneg %p417
        $region98: #{hnn_forward.1} parent=95 // pred_check_branch
          %7106 = sbr.rel (%p7104) target = $region100
        $region99: #{hnn_forward.1} parent=95 // pred_region
          %s7107 = sand.u32 %s402, 1
          %s7108 = scalar_lea.sflag [#allocation8], %s7107
          %s7109 = sand.u32 %s402, 1
          %s7110 = scalar_lea.vmem [#allocation7], %s7109
          %7111 = dma.done %s7108, 16
        $region100: #{hnn_forward.1} parent=95 // pred_fallthru
          _
      $region96: #{hnn_forward.1} parent=5 // pred_fallthru
        _
    $region6: #{hnn_forward.1} parent=1 // loop_footer
      %s30 = sadd.s32 1, %s26
    $region7: #{hnn_forward.1} parent=1 // loop_footer_branch
      %25 = sbr.rel target = $region3
    $region8: #{hnn_forward.1} parent=1 // loop_exit
      _
    %7112 = vsyncpa [#allocation8], 1
    %s7113 = scalar_lea.sflag [#allocation8], 1
    %7114 = vsyncpa %s7113, 1

</llo_original>
